<compile_context>
chip_gen: v6e
topology: v6e:2x2x1
jax: 0.10.0
libtpu: 0.0.40
codegen_flags: <defaults>
</compile_context>

<pallas_src>
import numpy as np
import jax
import jax.numpy as jnp
from jax import lax
from jax.experimental import pallas as pl
from jax.experimental.pallas import tpu as pltpu

SIZE = 100          # spatial size (architecture requires 100: 100->32->16->8->4->1)
N_COMPONENTS = 5    # bottleneck size
BATCH = 2
MP = 8              # sublane-padded batch rows
KP = 10240          # padded input features  (10000 -> 2.4% pad, 128-aligned)
ZP = 128            # padded bottleneck      (5 -> 128, one lane tile)
NP = 10240          # padded output features (10000 -> 2.4% pad, 128-aligned)
N_BLOCKS = 2        # >=2 "parallel" N blocks so v7x megacore can split A_dec
TN = NP // N_BLOCKS # 5120-wide lane-dense output blocks


# ----------------------------- Pallas kernel --------------------------------

def fused_forward_kernel(x_ref, ae_ref, ce_ref, ad_ref, cd_ref, o_ref):
    """Entire autoencoder forward for one output column block.

    z = x @ A_enc + c_enc   (rank-5 bottleneck, zero-padded to 128 lanes)
    y = z @ A_dec + c_dec   (this grid step's (MP, TN) output slab)
    bf16 operands on the MXU, f32 accumulation, f32 bias add / output.
    """
    z = jnp.dot(x_ref[...].astype(jnp.bfloat16), ae_ref[...],
                preferred_element_type=jnp.float32) + ce_ref[...]
    o_ref[...] = jnp.dot(z.astype(jnp.bfloat16), ad_ref[...],
                         preferred_element_type=jnp.float32) + cd_ref[...]


def fused_forward(xp, p):
    """xp: (MP, KP) f32 padded input -> (MP, NP) f32 padded output."""
    return pl.pallas_call(
        fused_forward_kernel,
        out_shape=jax.ShapeDtypeStruct((MP, NP), jnp.float32),
        grid_spec=pltpu.PrefetchScalarGridSpec(
            num_scalar_prefetch=0,
            grid=(N_BLOCKS,),
            in_specs=[
                pl.BlockSpec((MP, KP), lambda j: (0, 0)),   # x      (revisited -> 1 DMA)
                pl.BlockSpec((KP, ZP), lambda j: (0, 0)),   # A_enc  (revisited -> 1 DMA)
                pl.BlockSpec((MP, ZP), lambda j: (0, 0)),   # c_enc  (revisited -> 1 DMA)
                pl.BlockSpec((ZP, TN), lambda j: (0, j)),   # A_dec column block
                pl.BlockSpec((MP, TN), lambda j: (0, j)),   # c_dec column block
            ],
            out_specs=pl.BlockSpec((MP, TN), lambda j: (0, j)),
        ),
        compiler_params=pltpu.CompilerParams(
            dimension_semantics=("parallel",),
            vmem_limit_bytes=32 * 1024 * 1024),
    )(xp, p['A_enc'], p['c_enc'], p['A_dec'], p['c_dec'])


# ------------------ layer -> dense affine (Toeplitz) builders ----------------

def conv_toeplitz(w, H, W):
    """Dense T such that Conv2d(x, w) (stride 1, VALID, NCHW) ==
       (x.reshape(B, Ci*H*W) @ T).reshape(B, Co, Ho, Wo)."""
    Co, Ci, k, _ = w.shape
    Ho, Wo = H - k + 1, W - k + 1
    T = np.zeros((Ci, H, W, Co, Ho, Wo), dtype=np.float32)
    wt = np.transpose(w, (1, 2, 3, 0))  # (Ci, k, k, Co)
    for i in range(Ho):
        for j in range(Wo):
            T[:, i:i + k, j:j + k, :, i, j] = wt
    return T.reshape(Ci * H * W, Co * Ho * Wo)


def deconv_toeplitz(w, Hi, Wi):
    """Dense T such that ConvTranspose2d(x, w) (stride 1, padding 0) ==
       (x.reshape(B, Ci*Hi*Wi) @ T).reshape(B, Co, Ho, Wo)."""
    Ci, Co, k, _ = w.shape
    Ho, Wo = Hi + k - 1, Wi + k - 1
    T = np.zeros((Ci, Hi, Wi, Co, Ho, Wo), dtype=np.float32)
    for a in range(Hi):
        for b in range(Wi):
            T[:, a, b, :, a:a + k, b:b + k] = w
    return T.reshape(Ci * Hi * Wi, Co * Ho * Wo)


def compose_pool(T, C, H, W):
    """Fold a trailing AvgPool2d(2) into T (output side (C,H,W) -> (C,H/2,W/2))."""
    K = T.shape[0]
    Tp = T.reshape(K, C, H // 2, 2, W // 2, 2).mean(axis=(3, 5))
    return np.ascontiguousarray(Tp.reshape(K, C * (H // 2) * (W // 2)))


def compose_upsample(T, C, H, W):
    """Fold a leading Upsample(x2, nearest) into T (input side (C,2H,2W) -> (C,H,W))."""
    N = T.shape[1]
    Tu = T.reshape(C, H, 2, W, 2, N).sum(axis=(2, 4))
    return np.ascontiguousarray(Tu.reshape(C * H * W, N))


def compose_affine(layers):
    """Compose affine layers y = x @ T + b (applied left to right) into (A, c),
    accumulating in float64 on the host for accuracy."""
    A = layers[-1][0].astype(np.float64)
    for T, _ in reversed(layers[:-1]):
        A = T.astype(np.float64) @ A
    c = layers[0][1].astype(np.float64)
    for T, b in layers[1:]:
        c = c @ T.astype(np.float64) + b.astype(np.float64)
    return A.astype(np.float32), c.astype(np.float32)


# ------------------------------ parameters -----------------------------------

def init_raw_params(rng):
    def u(shape, fan_in):
        bound = 1.0 / np.sqrt(fan_in)
        return rng.uniform(-bound, bound, size=shape).astype(np.float32)

    raw = {}
    raw['w1'] = u((4, 1, 69, 69), 1 * 69 * 69); raw['b1'] = u((4,), 1 * 69 * 69)
    raw['w2'] = u((16, 4, 9, 9), 4 * 81);       raw['b2'] = u((16,), 4 * 81)
    raw['w3'] = u((128, 16, 4, 4), 16 * 16);    raw['b3'] = u((128,), 16 * 16)
    raw['Wenc'] = u((N_COMPONENTS, 128), 128);  raw['benc'] = u((N_COMPONENTS,), 128)
    raw['Wdec'] = u((128, N_COMPONENTS), N_COMPONENTS)
    raw['bdec'] = u((128,), N_COMPONENTS)
    raw['wd1'] = u((128, 16, 4, 4), 128 * 16);  raw['bd1'] = u((16,), 128 * 16)
    raw['wd2'] = u((16, 4, 9, 9), 16 * 81);     raw['bd2'] = u((4,), 16 * 81)
    raw['wd3'] = u((4, 1, 69, 69), 4 * 69 * 69); raw['bd3'] = u((1,), 4 * 69 * 69)
    return raw


def build_params(raw):
    # Per-layer dense affine maps (exact: Toeplitz placement of the f32 weights,
    # with AvgPool2d folded into the preceding conv and Upsample into the
    # following deconv).
    enc_layers = [
        (compose_pool(conv_toeplitz(raw['w1'], SIZE, SIZE), 4, 32, 32),
         np.repeat(raw['b1'], 16 * 16)),                           # Conv1+Pool -> (10000,1024)
        (compose_pool(conv_toeplitz(raw['w2'], 16, 16), 16, 8, 8),
         np.repeat(raw['b2'], 4 * 4)),                             # Conv2+Pool -> (1024,256)
        (conv_toeplitz(raw['w3'], 4, 4), raw['b3']),               # Conv3      -> (256,128)
        (np.ascontiguousarray(raw['Wenc'].T), raw['benc']),        # Linear enc -> (128,5)
    ]
    dec_layers = [
        (np.ascontiguousarray(raw['Wdec'].T), raw['bdec']),        # Linear dec -> (5,128)
        (deconv_toeplitz(raw['wd1'], 1, 1), np.repeat(raw['bd1'], 4 * 4)),        # (128,256)
        (compose_upsample(deconv_toeplitz(raw['wd2'], 8, 8), 16, 4, 4),
         np.repeat(raw['bd2'], 16 * 16)),                                          # (256,1024)
        (compose_upsample(deconv_toeplitz(raw['wd3'], 32, 32), 4, 16, 16),
         np.repeat(raw['bd3'], SIZE * SIZE)),                                      # (1024,10000)
    ]

    # Rank-5 affine collapse (valid: the module has no activation functions).
    A_enc, c_enc = compose_affine(enc_layers)   # (10000, 5), (5,)
    A_dec, c_dec = compose_affine(dec_layers)   # (5, 10000), (10000,)

    # Pad to TPU-friendly shapes (zero padding -> exact math) and cast weights
    # to bf16 on the host (review item 1).  Biases stay f32.
    A_enc_p = np.zeros((KP, ZP), np.float32)
    A_enc_p[:SIZE * SIZE, :N_COMPONENTS] = A_enc
    c_enc_p = np.zeros((MP, ZP), np.float32)
    c_enc_p[:, :N_COMPONENTS] = c_enc
    A_dec_p = np.zeros((ZP, NP), np.float32)
    A_dec_p[:N_COMPONENTS, :SIZE * SIZE] = A_dec
    c_dec_p = np.zeros((MP, NP), np.float32)
    c_dec_p[:, :SIZE * SIZE] = c_dec

    return {
        'A_enc': jnp.asarray(A_enc_p, dtype=jnp.bfloat16),
        'c_enc': jnp.asarray(c_enc_p),
        'A_dec': jnp.asarray(A_dec_p, dtype=jnp.bfloat16),
        'c_dec': jnp.asarray(c_dec_p),
    }


# -------------------------------- forward ------------------------------------

def forward(x, p):
    """x: (B, SIZE*SIZE) float32 -> (B, SIZE*SIZE) float32."""
    B = x.shape[0]
    xp = jnp.pad(x, ((0, MP - B), (0, KP - x.shape[1])))   # tiny activation pad only
    y = fused_forward(xp, p)                               # single pallas_call
    return y[:B, :SIZE * SIZE]


# --------------------------- pure-JAX reference ------------------------------

def _conv_ref(x, w, b):
    y = lax.conv_general_dilated(
        x, w, window_strides=(1, 1), padding='VALID',
        dimension_numbers=('NCHW', 'OIHW', 'NCHW'),
        precision=lax.Precision.HIGHEST)
    return y + b[None, :, None, None]


def _deconv_ref(x, w, b):
    k = w.shape[-1]
    w_flip = jnp.transpose(w[:, :, ::-1, ::-1], (1, 0, 2, 3))  # (Co, Ci, k, k)
    y = lax.conv_general_dilated(
        x, w_flip, window_strides=(1, 1),
        padding=((k - 1, k - 1), (k - 1, k - 1)),
        dimension_numbers=('NCHW', 'OIHW', 'NCHW'),
        precision=lax.Precision.HIGHEST)
    return y + b[None, :, None, None]


def _avgpool_ref(x):
    B, C, H, W = x.shape
    return x.reshape(B, C, H // 2, 2, W // 2, 2).mean(axis=(3, 5))


def reference_forward(x, raw):
    B = x.shape[0]
    h = x.reshape(B, 1, SIZE, SIZE)
    h = _conv_ref(h, raw['w1'], raw['b1'])
    h = _avgpool_ref(h)
    h = _conv_ref(h, raw['w2'], raw['b2'])
    h = _avgpool_ref(h)
    h = _conv_ref(h, raw['w3'], raw['b3'])
    h = h.reshape(B, 128)
    z = jnp.dot(h, raw['Wenc'].T, precision=lax.Precision.HIGHEST) + raw['benc']
    h = jnp.dot(z, raw['Wdec'].T, precision=lax.Precision.HIGHEST) + raw['bdec']
    h = h.reshape(B, 128, 1, 1)
    h = _deconv_ref(h, raw['wd1'], raw['bd1'])
    h = jnp.repeat(jnp.repeat(h, 2, axis=2), 2, axis=3)
    h = _deconv_ref(h, raw['wd2'], raw['bd2'])
    h = jnp.repeat(jnp.repeat(h, 2, axis=2), 2, axis=3)
    h = _deconv_ref(h, raw['wd3'], raw['bd3'])
    return h.reshape(B, SIZE * SIZE)


# ----------------------------------- main ------------------------------------

if __name__ == "__main__":
    x = jax.random.normal(jax.random.PRNGKey(0), (BATCH, SIZE * SIZE),
                          dtype=jnp.float32)

    rng = np.random.default_rng(0)
    raw = init_raw_params(rng)
    params = build_params(raw)

    fwd = jax.jit(lambda xx: forward(xx, params))
    out = jax.block_until_ready(fwd(x))

    assert out.shape == (BATCH, SIZE * SIZE)
    assert bool(jnp.all(jnp.isfinite(out)))

    # Validate against a pure-JAX, layer-by-layer reference of the module.
    raw_j = {k: jnp.asarray(v) for k, v in raw.items()}
    ref = jax.block_until_ready(reference_forward(x, raw_j))
    if not np.allclose(np.asarray(out), np.asarray(ref), rtol=1e-2, atol=1e-2):
        err = float(jnp.max(jnp.abs(out - ref)))
        raise AssertionError(f"Pallas output mismatch vs reference, max abs err={err}")

    print("KERNEL_OK")
</pallas_src>

<mosaic_0001>
module attributes {stable_mosaic.version = 11 : i64} {
  func.func @fused_forward_kernel(%arg0: i32, %arg1: memref<8x10240xf32, #tpu.memory_space<vmem>>, %arg2: memref<10240x128xbf16, #tpu.memory_space<vmem>>, %arg3: memref<8x128xf32, #tpu.memory_space<vmem>>, %arg4: memref<128x5120xbf16, #tpu.memory_space<vmem>>, %arg5: memref<8x5120xf32, #tpu.memory_space<vmem>>, %arg6: memref<8x5120xf32, #tpu.memory_space<vmem>>) attributes {dimension_semantics = [#tpu.dimension_semantics<parallel>], iteration_bounds = array<i64: 2>, scalar_prefetch = 0 : i64, scratch_operands = 0 : i64, tpu.core_type = #tpu.core_type<tc>, window_params = [{pipeline_mode = #tpu.pipeline_mode<synchronous>, transform_indices = @transform_0, window_bounds = array<i64: 8, 10240>}, {pipeline_mode = #tpu.pipeline_mode<synchronous>, transform_indices = @transform_1, window_bounds = array<i64: 10240, 128>}, {pipeline_mode = #tpu.pipeline_mode<synchronous>, transform_indices = @transform_2, window_bounds = array<i64: 8, 128>}, {transform_indices = @transform_3, window_bounds = array<i64: 128, 5120>}, {transform_indices = @transform_4, window_bounds = array<i64: 8, 5120>}, {transform_indices = @transform_5, window_bounds = array<i64: 8, 5120>}]} {
    %c0 = arith.constant 0 : index
    %c0_0 = arith.constant 0 : index
    %0 = vector.load %arg1[%c0, %c0_0] : memref<8x10240xf32, #tpu.memory_space<vmem>>, vector<8x10240xf32>
    %1 = arith.truncf %0 : vector<8x10240xf32> to vector<8x10240xbf16>
    %c0_1 = arith.constant 0 : index
    %c0_2 = arith.constant 0 : index
    %2 = vector.load %arg2[%c0_1, %c0_2] : memref<10240x128xbf16, #tpu.memory_space<vmem>>, vector<10240x128xbf16>
    %cst = arith.constant dense<0.000000e+00> : vector<8x128xf32>
    %3 = tpu.matmul %1, %2, %cst {dimension_numbers = #tpu.dot_dimension_numbers<[1], [0], [0], [1], [0, 0, 1, 1], [], []>} : vector<8x10240xbf16>, vector<10240x128xbf16>, vector<8x128xf32> -> vector<8x128xf32>
    %c0_3 = arith.constant 0 : index
    %c0_4 = arith.constant 0 : index
    %4 = vector.load %arg3[%c0_3, %c0_4] : memref<8x128xf32, #tpu.memory_space<vmem>>, vector<8x128xf32>
    %5 = arith.addf %3, %4 : vector<8x128xf32>
    %6 = arith.truncf %5 : vector<8x128xf32> to vector<8x128xbf16>
    %c0_5 = arith.constant 0 : index
    %c0_6 = arith.constant 0 : index
    %7 = vector.load %arg4[%c0_5, %c0_6] : memref<128x5120xbf16, #tpu.memory_space<vmem>>, vector<128x5120xbf16>
    %cst_7 = arith.constant dense<0.000000e+00> : vector<8x5120xf32>
    %8 = tpu.matmul %6, %7, %cst_7 {dimension_numbers = #tpu.dot_dimension_numbers<[1], [0], [0], [1], [0, 0, 1, 1], [], []>} : vector<8x128xbf16>, vector<128x5120xbf16>, vector<8x5120xf32> -> vector<8x5120xf32>
    %c0_8 = arith.constant 0 : index
    %c0_9 = arith.constant 0 : index
    %9 = vector.load %arg5[%c0_8, %c0_9] : memref<8x5120xf32, #tpu.memory_space<vmem>>, vector<8x5120xf32>
    %10 = arith.addf %8, %9 : vector<8x5120xf32>
    %c0_10 = arith.constant 0 : index
    %c0_11 = arith.constant 0 : index
    %11 = vector.load %arg6[%c0_10, %c0_11] : memref<8x5120xf32, #tpu.memory_space<vmem>>, vector<8x5120xf32>
    tpu.vector_store %arg6[%c0_10, %c0_11], %10 {strides = array<i32>} : memref<8x5120xf32, #tpu.memory_space<vmem>>, vector<8x5120xf32>,
    return
  }
  func.func @transform_0(%arg0: i32) -> (i32, i32) {
    %c0_i32 = arith.constant 0 : i32
    %c0_i32_0 = arith.constant 0 : i32
    %c0_i32_1 = arith.constant 0 : i32
    return %c0_i32, %c0_i32_0 : i32, i32
  }
  func.func @transform_1(%arg0: i32) -> (i32, i32) {
    %c0_i32 = arith.constant 0 : i32
    %c0_i32_0 = arith.constant 0 : i32
    %c0_i32_1 = arith.constant 0 : i32
    return %c0_i32, %c0_i32_0 : i32, i32
  }
  func.func @transform_2(%arg0: i32) -> (i32, i32) {
    %c0_i32 = arith.constant 0 : i32
    %c0_i32_0 = arith.constant 0 : i32
    %c0_i32_1 = arith.constant 0 : i32
    return %c0_i32, %c0_i32_0 : i32, i32
  }
  func.func @transform_3(%arg0: i32) -> (i32, i32) {
    %c0_i32 = arith.constant 0 : i32
    %c0_i32_0 = arith.constant 0 : i32
    return %c0_i32, %arg0 : i32, i32
  }
  func.func @transform_4(%arg0: i32) -> (i32, i32) {
    %c0_i32 = arith.constant 0 : i32
    %c0_i32_0 = arith.constant 0 : i32
    return %c0_i32, %arg0 : i32, i32
  }
  func.func @transform_5(%arg0: i32) -> (i32, i32) {
    %c0_i32 = arith.constant 0 : i32
    %c0_i32_0 = arith.constant 0 : i32
    return %c0_i32, %arg0 : i32, i32
  }
}

</mosaic_0001>

<llo_original>
// kernel: _lambda_.1
$region0: #{_lambda_.1}
  #allocation0 [shape = 'u32[]', space=smem, size = 0x4, offset = 0x4, fixed_abs, tag = 'smem constant byte address 0x4 - core index']
  #allocation1 [shape = 'u32[144,128]{1,0:T(1,128)}', space=vmem, size = 0x12000, scoped, tag = 'internal scratch']
  %s0 = inlined_call_operand.vmem [shape: f32[8,10240], index: 0, kind: input, shape index: {}]
  %s1 = inlined_call_operand.hbm [shape: bf16[10240,128], index: 1, kind: input, shape index: {}]
  %s2 = inlined_call_operand.hbm [shape: f32[8,128], index: 2, kind: input, shape index: {}]
  %s3 = inlined_call_operand.hbm [shape: bf16[128,10240], index: 3, kind: input, shape index: {}]
  %s4 = inlined_call_operand.hbm [shape: f32[8,10240], index: 4, kind: input, shape index: {}]
  %s5 = inlined_call_operand.vmem [shape: f32[8,10240], index: 5, kind: output, shape index: {}]
  %s6 = sld [smem:[#allocation0]]
  $region69: #{_lambda_.1} parent=0
    _
  %s8 = ssub.s32 1, %s6
  %s9 = scalar_select 0, %s8, %s6
  $region1: #{_lambda_.1} parent=0
    #allocation2 [shape = 'u8[2621440]{0}', space=vmem, size = 0x280000, scoped, tag = 'input window, operand 1, single buffered']
    #allocation3 [shape = 's32[2]{0}', space=sflag, size = 0x8, scoped, tag = 'scoped memory for _lambda_.1']
    #allocation4 [shape = 'u8[4096]{0}', space=vmem, size = 0x1000, scoped, tag = 'input window, operand 2, single buffered']
    #allocation5 [shape = 's32[1]{0}', space=sflag, size = 0x4, scoped, tag = 'scoped memory for _lambda_.1']
    #allocation6 [shape = 'u8[2621440]{0}', space=vmem, size = 0x280000, scoped, tag = 'input window, operand 3']
    #allocation7 [shape = 'u8[327680]{0}', space=vmem, size = 0x50000, scoped, tag = 'input window, operand 4']
    %10 = vsyncpa [#allocation3], 0
    %11 = vsyncpa [#allocation5], 0
    loop: start=0, step=1, limit=4
    $region2: #{_lambda_.1} parent=1 // loop_pre_header
      _
    $region3: #{_lambda_.1} parent=1 // loop_header
      %s13 = sphi 0, %s17
      %p14 = scmp.ge.s32.totalorder %s13, 4
      %s21 = sphi 0, %s21
      %s23 = sphi 0, %s21
      %s24 = sphi 0, %s23
      %s38 = sphi 0, %s24
      %s42 = sphi 0, %s42
      %s44 = sphi 0, %s42
      %s45 = sphi 0, %s44
      %s59 = sphi 0, %s45
      %s63 = sphi 0, %s63
      %s65 = sphi 0, %s63
      %s66 = sphi 0, %s65
      %s80 = sphi 0, %s66
      %s86 = sphi 0, %s88
      %s89 = sphi 0, %s86
      %s90 = sphi 0, %s89
      %s106 = sphi 0, %s90
      %s112 = sphi 0, %s114
      %s115 = sphi 0, %s112
      %s116 = sphi 0, %s115
      %s132 = sphi 0, %s116
      %s138 = sphi 0, %s140
      %s141 = sphi 0, %s138
      %s142 = sphi 0, %s141
      %s158 = sphi 0, %s142
    $region4: #{_lambda_.1} parent=1 // loop_header_branch
      %16 = sbr.rel (%p14) target = $region8
    $region5: #{_lambda_.1} parent=1 // loop_body
      %s18 = ssub.s32 %s13, 1
      %s19 = ssub.s32 %s13, 2
      %s20 = sadd.s32 %s13, 1
      %s22 = sadd.s32 %s21, 1
      %p25 = scmp.eq.s32.totalorder %s13, 1
      %p26 = scmp.ne.s32.totalorder %s21, %s23
      %p27 = scmp.eq.s32.totalorder %s13, 0
      %p28 = por %p26, %p27
      %p29 = scmp.ne.s32.totalorder %s21, %s23
      %p30 = scmp.eq.s32.totalorder %s18, 1
      %p31 = por %p29, %p30
      %p32 = scmp.ne.s32.totalorder %s23, %s24
      %p33 = scmp.eq.s32.totalorder %s18, 0
      %p34 = por %p32, %p33
      %p35 = scmp.ne.s32.totalorder %s23, %s24
      %p36 = scmp.eq.s32.totalorder %s19, 1
      %p37 = por %p35, %p36
      %p39 = scmp.ne.s32.totalorder %s24, %s38
      %p40 = scmp.eq.s32.totalorder %s19, 0
      %p41 = por %p39, %p40
      %s43 = sadd.s32 %s42, 1
      %p46 = scmp.eq.s32.totalorder %s13, 1
      %p47 = scmp.ne.s32.totalorder %s42, %s44
      %p48 = scmp.eq.s32.totalorder %s13, 0
      %p49 = por %p47, %p48
      %p50 = scmp.ne.s32.totalorder %s42, %s44
      %p51 = scmp.eq.s32.totalorder %s18, 1
      %p52 = por %p50, %p51
      %p53 = scmp.ne.s32.totalorder %s44, %s45
      %p54 = scmp.eq.s32.totalorder %s18, 0
      %p55 = por %p53, %p54
      %p56 = scmp.ne.s32.totalorder %s44, %s45
      %p57 = scmp.eq.s32.totalorder %s19, 1
      %p58 = por %p56, %p57
      %p60 = scmp.ne.s32.totalorder %s45, %s59
      %p61 = scmp.eq.s32.totalorder %s19, 0
      %p62 = por %p60, %p61
      %s64 = sadd.s32 %s63, 1
      %p67 = scmp.eq.s32.totalorder %s13, 1
      %p68 = scmp.ne.s32.totalorder %s63, %s65
      %p69 = scmp.eq.s32.totalorder %s13, 0
      %p70 = por %p68, %p69
      %p71 = scmp.ne.s32.totalorder %s63, %s65
      %p72 = scmp.eq.s32.totalorder %s18, 1
      %p73 = por %p71, %p72
      %p74 = scmp.ne.s32.totalorder %s65, %s66
      %p75 = scmp.eq.s32.totalorder %s18, 0
      %p76 = por %p74, %p75
      %p77 = scmp.ne.s32.totalorder %s65, %s66
      %p78 = scmp.eq.s32.totalorder %s19, 1
      %p79 = por %p77, %p78
      %p81 = scmp.ne.s32.totalorder %s66, %s80
      %p82 = scmp.eq.s32.totalorder %s19, 0
      %p83 = por %p81, %p82
      %s84 = ssub.s32 %s13, %s20
      %p85 = scmp.eq.s32.totalorder %s84, 0
      %s87 = sadd.s32 %s86, 1
      %s88 = scalar_select %p85, %s86, %s87
      %p91 = pneg %p85
      %p92 = scmp.eq.s32.totalorder %s13, 1
      %p93 = por %p91, %p92
      %p94 = scmp.ne.s32.totalorder %s86, %s89
      %p95 = scmp.eq.s32.totalorder %s13, 0
      %p96 = por %p94, %p95
      %p97 = scmp.ne.s32.totalorder %s86, %s89
      %p98 = scmp.eq.s32.totalorder %s18, 1
      %p99 = por %p97, %p98
      %p100 = scmp.ne.s32.totalorder %s89, %s90
      %p101 = scmp.eq.s32.totalorder %s18, 0
      %p102 = por %p100, %p101
      %p103 = scmp.ne.s32.totalorder %s89, %s90
      %p104 = scmp.eq.s32.totalorder %s19, 1
      %p105 = por %p103, %p104
      %p107 = scmp.ne.s32.totalorder %s90, %s106
      %p108 = scmp.eq.s32.totalorder %s19, 0
      %p109 = por %p107, %p108
      %s110 = ssub.s32 %s13, %s20
      %p111 = scmp.eq.s32.totalorder %s110, 0
      %s113 = sadd.s32 %s112, 1
      %s114 = scalar_select %p111, %s112, %s113
      %p117 = pneg %p111
      %p118 = scmp.eq.s32.totalorder %s13, 1
      %p119 = por %p117, %p118
      %p120 = scmp.ne.s32.totalorder %s112, %s115
      %p121 = scmp.eq.s32.totalorder %s13, 0
      %p122 = por %p120, %p121
      %p123 = scmp.ne.s32.totalorder %s112, %s115
      %p124 = scmp.eq.s32.totalorder %s18, 1
      %p125 = por %p123, %p124
      %p126 = scmp.ne.s32.totalorder %s115, %s116
      %p127 = scmp.eq.s32.totalorder %s18, 0
      %p128 = por %p126, %p127
      %p129 = scmp.ne.s32.totalorder %s115, %s116
      %p130 = scmp.eq.s32.totalorder %s19, 1
      %p131 = por %p129, %p130
      %p133 = scmp.ne.s32.totalorder %s116, %s132
      %p134 = scmp.eq.s32.totalorder %s19, 0
      %p135 = por %p133, %p134
      %s136 = ssub.s32 %s13, %s20
      %p137 = scmp.eq.s32.totalorder %s136, 0
      %s139 = sadd.s32 %s138, 1
      %s140 = scalar_select %p137, %s138, %s139
      %p143 = pneg %p137
      %p144 = scmp.eq.s32.totalorder %s13, 1
      %p145 = por %p143, %p144
      %p146 = scmp.ne.s32.totalorder %s138, %s141
      %p147 = scmp.eq.s32.totalorder %s13, 0
      %p148 = por %p146, %p147
      %p149 = scmp.ne.s32.totalorder %s138, %s141
      %p150 = scmp.eq.s32.totalorder %s18, 1
      %p151 = por %p149, %p150
      %p152 = scmp.ne.s32.totalorder %s141, %s142
      %p153 = scmp.eq.s32.totalorder %s18, 0
      %p154 = por %p152, %p153
      %p155 = scmp.ne.s32.totalorder %s141, %s142
      %p156 = scmp.eq.s32.totalorder %s19, 1
      %p157 = por %p155, %p156
      %p159 = scmp.ne.s32.totalorder %s142, %s158
      %p160 = scmp.eq.s32.totalorder %s19, 0
      %p161 = por %p159, %p160
      %p162 = scmp.le.s32.totalorder 1, %s13
      %p163 = scmp.lt.s32.totalorder %s13, 3
      %p164 = pnand %p162, %p163
      %p165 = pneg %p164
      // Predicated region
      $region9: #{_lambda_.1} parent=5 // pred_check
        _
      $region10: #{_lambda_.1} parent=5 // pred_check_branch
        %167 = sbr.rel (%p164) target = $region12
      $region11: #{_lambda_.1} parent=5 // pred_region
        %s168 = ssub.s32 %s13, 1
        // Predicated region
        $region13: #{_lambda_.1} parent=11 // pred_check
          %p169 = pneg %p34
        $region14: #{_lambda_.1} parent=11 // pred_check_branch
          %171 = sbr.rel (%p169) target = $region16
        $region15: #{_lambda_.1} parent=11 // pred_region
          _
        $region16: #{_lambda_.1} parent=11 // pred_fallthru
          _
        // Predicated region
        $region17: #{_lambda_.1} parent=11 // pred_check
          %p172 = pneg %p55
        $region18: #{_lambda_.1} parent=11 // pred_check_branch
          %174 = sbr.rel (%p172) target = $region20
        $region19: #{_lambda_.1} parent=11 // pred_region
          %s176 = ssub.s32 81920, 81920
          %177 = vsyncadd [#allocation3], %s176
          %s178 = sshll.u32 [#allocation2], 4
          %s179 = int_to_ptr.vmem [resolvable:$true] %s178
          %184 = dma.hbm_to_vmem [thread:$0]  %s1, 81920, %s179, [#allocation3], 64, 64, 4
        $region20: #{_lambda_.1} parent=11 // pred_fallthru
          _
        // Predicated region
        $region21: #{_lambda_.1} parent=11 // pred_check
          %p185 = pneg %p76
        $region22: #{_lambda_.1} parent=11 // pred_check_branch
          %187 = sbr.rel (%p185) target = $region24
        $region23: #{_lambda_.1} parent=11 // pred_region
          %s189 = ssub.s32 128, 128
          %190 = vsyncadd [#allocation5], %s189
          %s192 = sshll.u32 [#allocation4], 4
          %s193 = int_to_ptr.vmem [resolvable:$true] %s192
          %195 = dma.hbm_to_vmem [thread:$0]  %s2, 128, %s193, [#allocation5]
        $region24: #{_lambda_.1} parent=11 // pred_fallthru
          _
      $region12: #{_lambda_.1} parent=5 // pred_fallthru
        _
      %p196 = scmp.lt.s32.totalorder %s13, 2
      // Predicated region
      $region25: #{_lambda_.1} parent=5 // pred_check
        %p197 = pneg %p196
      $region26: #{_lambda_.1} parent=5 // pred_check_branch
        %199 = sbr.rel (%p197) target = $region28
      $region27: #{_lambda_.1} parent=5 // pred_region
        // Predicated region
        $region29: #{_lambda_.1} parent=27 // pred_check
          %p200 = pneg %p96
        $region30: #{_lambda_.1} parent=27 // pred_check_branch
          %202 = sbr.rel (%p200) target = $region32
        $region31: #{_lambda_.1} parent=27 // pred_region
          %s203 = sand.u32 %s13, 1
          %s204 = scalar_lea.sflag [#allocation3], %s203
          %s205 = sand.u32 %s86, 1
          %s206 = smul.addr %s205, 2560
          %s207 = scalar_lea.vmem [#allocation6], %s206
          %s208 = smul.u32 40, %s13
          %s210 = ssub.s32 40960, 40960
          %211 = vsyncadd %s204, %s210
          %s212 = smul.addr %s208, 64
          %s213 = scalar_lea.hbm %s3, %s212
          %s214 = sshll.u32 %s207, 4
          %s215 = int_to_ptr.vmem [resolvable:$true] %s214
          %220 = dma.hbm_to_vmem [thread:$0]  %s213, 40960, %s215, %s204, 5120, 2560, 160
        $region32: #{_lambda_.1} parent=27 // pred_fallthru
          _
        // Predicated region
        $region33: #{_lambda_.1} parent=27 // pred_check
          %p221 = pneg %p122
        $region34: #{_lambda_.1} parent=27 // pred_check_branch
          %223 = sbr.rel (%p221) target = $region36
        $region35: #{_lambda_.1} parent=27 // pred_region
          %s224 = sand.u32 %s13, 1
          %s225 = scalar_lea.sflag [#allocation3], %s224
          %s226 = sand.u32 %s112, 1
          %s227 = smul.addr %s226, 320
          %s228 = scalar_lea.vmem [#allocation7], %s227
          %s229 = smul.u32 40, %s13
          %s231 = ssub.s32 5120, 5120
          %232 = vsyncadd %s225, %s231
          %s233 = smul.addr %s229, 128
          %s234 = scalar_lea.hbm %s4, %s233
          %s236 = sshll.u32 %s228, 4
          %s237 = int_to_ptr.vmem [resolvable:$true] %s236
          %239 = dma.hbm_to_vmem [thread:$0]  %s234, 5120, %s237, %s225
        $region36: #{_lambda_.1} parent=27 // pred_fallthru
          _
      $region28: #{_lambda_.1} parent=5 // pred_fallthru
        _
      %p240 = scmp.le.s32.totalorder 1, %s13
      %p241 = scmp.lt.s32.totalorder %s13, 3
      %p242 = pnand %p240, %p241
      %p243 = pneg %p242
      // Predicated region
      $region37: #{_lambda_.1} parent=5 // pred_check
        _
      $region38: #{_lambda_.1} parent=5 // pred_check_branch
        %245 = sbr.rel (%p242) target = $region40
      $region39: #{_lambda_.1} parent=5 // pred_region
        %s246 = ssub.s32 %s13, 1
        // Predicated region
        $region41: #{_lambda_.1} parent=39 // pred_check
          %p247 = pneg %p55
        $region42: #{_lambda_.1} parent=39 // pred_check_branch
          %249 = sbr.rel (%p247) target = $region44
        $region43: #{_lambda_.1} parent=39 // pred_region
          %250 = dma.done [#allocation3], 81920
        $region44: #{_lambda_.1} parent=39 // pred_fallthru
          _
        // Predicated region
        $region45: #{_lambda_.1} parent=39 // pred_check
          %p251 = pneg %p76
        $region46: #{_lambda_.1} parent=39 // pred_check_branch
          %253 = sbr.rel (%p251) target = $region48
        $region47: #{_lambda_.1} parent=39 // pred_region
          %254 = dma.done [#allocation5], 128
        $region48: #{_lambda_.1} parent=39 // pred_fallthru
          _
        %s255 = sand.u32 %s18, 1
        %s256 = scalar_lea.sflag [#allocation3], %s255
        %s257 = sand.u32 %s89, 1
        %s258 = smul.addr %s257, 2560
        %s259 = scalar_lea.vmem [#allocation6], %s258
        // Predicated region
        $region49: #{_lambda_.1} parent=39 // pred_check
          %p260 = pneg %p102
        $region50: #{_lambda_.1} parent=39 // pred_check_branch
          %262 = sbr.rel (%p260) target = $region52
        $region51: #{_lambda_.1} parent=39 // pred_region
          %263 = dma.done %s256, 40960
        $region52: #{_lambda_.1} parent=39 // pred_fallthru
          _
        %s264 = sand.u32 %s18, 1
        %s265 = scalar_lea.sflag [#allocation3], %s264
        %s266 = sand.u32 %s115, 1
        %s267 = smul.addr %s266, 320
        %s268 = scalar_lea.vmem [#allocation7], %s267
        // Predicated region
        $region53: #{_lambda_.1} parent=39 // pred_check
          %p269 = pneg %p128
        $region54: #{_lambda_.1} parent=39 // pred_check_branch
          %271 = sbr.rel (%p269) target = $region56
        $region55: #{_lambda_.1} parent=39 // pred_region
          %272 = dma.done %s265, 5120
        $region56: #{_lambda_.1} parent=39 // pred_fallthru
          _
        %p273 = pneg %p34
        %p274 = pneg %p31
        %p275 = pneg %p55
        %p276 = pneg %p52
        %p277 = pneg %p76
        %p278 = pneg %p73
        %s279 = sand.u32 %s18, 1
        %s280 = scalar_lea.sflag [#allocation3], %s279
        %s281 = sand.u32 %s89, 1
        %s282 = smul.addr %s281, 2560
        %s283 = scalar_lea.vmem [#allocation6], %s282
        %p284 = pneg %p102
        %p285 = pneg %p99
        %s286 = sand.u32 %s18, 1
        %s287 = scalar_lea.sflag [#allocation3], %s286
        %s288 = sand.u32 %s115, 1
        %s289 = smul.addr %s288, 320
        %s290 = scalar_lea.vmem [#allocation7], %s289
        %p291 = pneg %p128
        %p292 = pneg %p125
        %p293 = pneg %p154
        %p294 = pneg %p151
        %s295 = smul.u32 40, %s18
        %p296 = scmp.lt.s32.totalorder %s295, 79
        %s297 = scalar_select %p296, %s295, 79
        %s298 = smul.addr %s297, 8
        %s299 = scalar_lea.vmem %s5, %s298
        %s300 = smul.u32 40, %s18
        %s301 = smul.u32 40, %s18
        %s302 = smul.u32 40, %s18
        %p303 = scmp.lt.s32.totalorder %s302, 79
        %s304 = scalar_select %p303, %s302, 79
        %s305 = smul.addr %s304, 8
        %s306 = scalar_lea.vmem %s5, %s305
        %s307 = smul.u32 40, %s18
        %v309 = vld [vmem:[%s0] sm:$0xff]
        %v310 = vld [vmem:[%s0 + $0x8] sm:$0xff]
        %v311 = vld [vmem:[%s0 + $0x10] sm:$0xff]
        %v312 = vld [vmem:[%s0 + $0x18] sm:$0xff]
        %v313 = vld [vmem:[%s0 + $0x20] sm:$0xff]
        %v314 = vld [vmem:[%s0 + $0x28] sm:$0xff]
        %v315 = vld [vmem:[%s0 + $0x30] sm:$0xff]
        %v316 = vld [vmem:[%s0 + $0x38] sm:$0xff]
        %v317 = vld [vmem:[%s0 + $0x40] sm:$0xff]
        %v318 = vld [vmem:[%s0 + $0x48] sm:$0xff]
        %v319 = vld [vmem:[%s0 + $0x50] sm:$0xff]
        %v320 = vld [vmem:[%s0 + $0x58] sm:$0xff]
        %v321 = vld [vmem:[%s0 + $0x60] sm:$0xff]
        %v322 = vld [vmem:[%s0 + $0x68] sm:$0xff]
        %v323 = vld [vmem:[%s0 + $0x70] sm:$0xff]
        %v324 = vld [vmem:[%s0 + $0x78] sm:$0xff]
        %v325 = vld [vmem:[%s0 + $0x80] sm:$0xff]
        %v326 = vld [vmem:[%s0 + $0x88] sm:$0xff]
        %v327 = vld [vmem:[%s0 + $0x90] sm:$0xff]
        %v328 = vld [vmem:[%s0 + $0x98] sm:$0xff]
        %v329 = vld [vmem:[%s0 + $0xa0] sm:$0xff]
        %v330 = vld [vmem:[%s0 + $0xa8] sm:$0xff]
        %v331 = vld [vmem:[%s0 + $0xb0] sm:$0xff]
        %v332 = vld [vmem:[%s0 + $0xb8] sm:$0xff]
        %v333 = vld [vmem:[%s0 + $0xc0] sm:$0xff]
        %v334 = vld [vmem:[%s0 + $0xc8] sm:$0xff]
        %v335 = vld [vmem:[%s0 + $0xd0] sm:$0xff]
        %v336 = vld [vmem:[%s0 + $0xd8] sm:$0xff]
        %v337 = vld [vmem:[%s0 + $0xe0] sm:$0xff]
        %v338 = vld [vmem:[%s0 + $0xe8] sm:$0xff]
        %v339 = vld [vmem:[%s0 + $0xf0] sm:$0xff]
        %v340 = vld [vmem:[%s0 + $0xf8] sm:$0xff]
        %v341 = vld [vmem:[%s0 + $0x100] sm:$0xff]
        %v342 = vld [vmem:[%s0 + $0x108] sm:$0xff]
        %v343 = vld [vmem:[%s0 + $0x110] sm:$0xff]
        %v344 = vld [vmem:[%s0 + $0x118] sm:$0xff]
        %v345 = vld [vmem:[%s0 + $0x120] sm:$0xff]
        %v346 = vld [vmem:[%s0 + $0x128] sm:$0xff]
        %v347 = vld [vmem:[%s0 + $0x130] sm:$0xff]
        %v348 = vld [vmem:[%s0 + $0x138] sm:$0xff]
        %v349 = vld [vmem:[%s0 + $0x140] sm:$0xff]
        %v350 = vld [vmem:[%s0 + $0x148] sm:$0xff]
        %v351 = vld [vmem:[%s0 + $0x150] sm:$0xff]
        %v352 = vld [vmem:[%s0 + $0x158] sm:$0xff]
        %v353 = vld [vmem:[%s0 + $0x160] sm:$0xff]
        %v354 = vld [vmem:[%s0 + $0x168] sm:$0xff]
        %v355 = vld [vmem:[%s0 + $0x170] sm:$0xff]
        %v356 = vld [vmem:[%s0 + $0x178] sm:$0xff]
        %v357 = vld [vmem:[%s0 + $0x180] sm:$0xff]
        %v358 = vld [vmem:[%s0 + $0x188] sm:$0xff]
        %v359 = vld [vmem:[%s0 + $0x190] sm:$0xff]
        %v360 = vld [vmem:[%s0 + $0x198] sm:$0xff]
        %v361 = vld [vmem:[%s0 + $0x1a0] sm:$0xff]
        %v362 = vld [vmem:[%s0 + $0x1a8] sm:$0xff]
        %v363 = vld [vmem:[%s0 + $0x1b0] sm:$0xff]
        %v364 = vld [vmem:[%s0 + $0x1b8] sm:$0xff]
        %v365 = vld [vmem:[%s0 + $0x1c0] sm:$0xff]
        %v366 = vld [vmem:[%s0 + $0x1c8] sm:$0xff]
        %v367 = vld [vmem:[%s0 + $0x1d0] sm:$0xff]
        %v368 = vld [vmem:[%s0 + $0x1d8] sm:$0xff]
        %v369 = vld [vmem:[%s0 + $0x1e0] sm:$0xff]
        %v370 = vld [vmem:[%s0 + $0x1e8] sm:$0xff]
        %v371 = vld [vmem:[%s0 + $0x1f0] sm:$0xff]
        %v372 = vld [vmem:[%s0 + $0x1f8] sm:$0xff]
        %v373 = vld [vmem:[%s0 + $0x200] sm:$0xff]
        %v374 = vld [vmem:[%s0 + $0x208] sm:$0xff]
        %v375 = vld [vmem:[%s0 + $0x210] sm:$0xff]
        %v376 = vld [vmem:[%s0 + $0x218] sm:$0xff]
        %v377 = vld [vmem:[%s0 + $0x220] sm:$0xff]
        %v378 = vld [vmem:[%s0 + $0x228] sm:$0xff]
        %v379 = vld [vmem:[%s0 + $0x230] sm:$0xff]
        %v380 = vld [vmem:[%s0 + $0x238] sm:$0xff]
        %v381 = vld [vmem:[%s0 + $0x240] sm:$0xff]
        %v382 = vld [vmem:[%s0 + $0x248] sm:$0xff]
        %v383 = vld [vmem:[%s0 + $0x250] sm:$0xff]
        %v384 = vld [vmem:[%s0 + $0x258] sm:$0xff]
        %v385 = vld [vmem:[%s0 + $0x260] sm:$0xff]
        %v386 = vld [vmem:[%s0 + $0x268] sm:$0xff]
        %v387 = vld [vmem:[%s0 + $0x270] sm:$0xff]
        %v388 = vld [vmem:[%s0 + $0x278] sm:$0xff]
        %v389 = vpack.c.bf16 %v309, %v309
        %v390 = vpack.c.bf16 %v310, %v310
        %v391 = vpack.c.bf16 %v311, %v311
        %v392 = vpack.c.bf16 %v312, %v312
        %v393 = vpack.c.bf16 %v313, %v313
        %v394 = vpack.c.bf16 %v314, %v314
        %v395 = vpack.c.bf16 %v315, %v315
        %v396 = vpack.c.bf16 %v316, %v316
        %v397 = vpack.c.bf16 %v317, %v317
        %v398 = vpack.c.bf16 %v318, %v318
        %v399 = vpack.c.bf16 %v319, %v319
        %v400 = vpack.c.bf16 %v320, %v320
        %v401 = vpack.c.bf16 %v321, %v321
        %v402 = vpack.c.bf16 %v322, %v322
        %v403 = vpack.c.bf16 %v323, %v323
        %v404 = vpack.c.bf16 %v324, %v324
        %v405 = vpack.c.bf16 %v325, %v325
        %v406 = vpack.c.bf16 %v326, %v326
        %v407 = vpack.c.bf16 %v327, %v327
        %v408 = vpack.c.bf16 %v328, %v328
        %v409 = vpack.c.bf16 %v329, %v329
        %v410 = vpack.c.bf16 %v330, %v330
        %v411 = vpack.c.bf16 %v331, %v331
        %v412 = vpack.c.bf16 %v332, %v332
        %v413 = vpack.c.bf16 %v333, %v333
        %v414 = vpack.c.bf16 %v334, %v334
        %v415 = vpack.c.bf16 %v335, %v335
        %v416 = vpack.c.bf16 %v336, %v336
        %v417 = vpack.c.bf16 %v337, %v337
        %v418 = vpack.c.bf16 %v338, %v338
        %v419 = vpack.c.bf16 %v339, %v339
        %v420 = vpack.c.bf16 %v340, %v340
        %v421 = vpack.c.bf16 %v341, %v341
        %v422 = vpack.c.bf16 %v342, %v342
        %v423 = vpack.c.bf16 %v343, %v343
        %v424 = vpack.c.bf16 %v344, %v344
        %v425 = vpack.c.bf16 %v345, %v345
        %v426 = vpack.c.bf16 %v346, %v346
        %v427 = vpack.c.bf16 %v347, %v347
        %v428 = vpack.c.bf16 %v348, %v348
        %v429 = vpack.c.bf16 %v349, %v349
        %v430 = vpack.c.bf16 %v350, %v350
        %v431 = vpack.c.bf16 %v351, %v351
        %v432 = vpack.c.bf16 %v352, %v352
        %v433 = vpack.c.bf16 %v353, %v353
        %v434 = vpack.c.bf16 %v354, %v354
        %v435 = vpack.c.bf16 %v355, %v355
        %v436 = vpack.c.bf16 %v356, %v356
        %v437 = vpack.c.bf16 %v357, %v357
        %v438 = vpack.c.bf16 %v358, %v358
        %v439 = vpack.c.bf16 %v359, %v359
        %v440 = vpack.c.bf16 %v360, %v360
        %v441 = vpack.c.bf16 %v361, %v361
        %v442 = vpack.c.bf16 %v362, %v362
        %v443 = vpack.c.bf16 %v363, %v363
        %v444 = vpack.c.bf16 %v364, %v364
        %v445 = vpack.c.bf16 %v365, %v365
        %v446 = vpack.c.bf16 %v366, %v366
        %v447 = vpack.c.bf16 %v367, %v367
        %v448 = vpack.c.bf16 %v368, %v368
        %v449 = vpack.c.bf16 %v369, %v369
        %v450 = vpack.c.bf16 %v370, %v370
        %v451 = vpack.c.bf16 %v371, %v371
        %v452 = vpack.c.bf16 %v372, %v372
        %v453 = vpack.c.bf16 %v373, %v373
        %v454 = vpack.c.bf16 %v374, %v374
        %v455 = vpack.c.bf16 %v375, %v375
        %v456 = vpack.c.bf16 %v376, %v376
        %v457 = vpack.c.bf16 %v377, %v377
        %v458 = vpack.c.bf16 %v378, %v378
        %v459 = vpack.c.bf16 %v379, %v379
        %v460 = vpack.c.bf16 %v380, %v380
        %v461 = vpack.c.bf16 %v381, %v381
        %v462 = vpack.c.bf16 %v382, %v382
        %v463 = vpack.c.bf16 %v383, %v383
        %v464 = vpack.c.bf16 %v384, %v384
        %v465 = vpack.c.bf16 %v385, %v385
        %v466 = vpack.c.bf16 %v386, %v386
        %v467 = vpack.c.bf16 %v387, %v387
        %v468 = vpack.c.bf16 %v388, %v388
        %v469 = vld [vmem:[#allocation2] sm:$0xf]
        %v470 = vld [vmem:[#allocation2 + $0x4] sm:$0xf]
        %v471 = vld [vmem:[#allocation2 + $0x8] sm:$0xf]
        %v472 = vld [vmem:[#allocation2 + $0xc] sm:$0xf]
        %v473 = vld [vmem:[#allocation2 + $0x10] sm:$0xf]
        %v474 = vld [vmem:[#allocation2 + $0x14] sm:$0xf]
        %v475 = vld [vmem:[#allocation2 + $0x18] sm:$0xf]
        %v476 = vld [vmem:[#allocation2 + $0x1c] sm:$0xf]
        %v477 = vld [vmem:[#allocation2 + $0x20] sm:$0xf]
        %v478 = vld [vmem:[#allocation2 + $0x24] sm:$0xf]
        %v479 = vld [vmem:[#allocation2 + $0x28] sm:$0xf]
        %v480 = vld [vmem:[#allocation2 + $0x2c] sm:$0xf]
        %v481 = vld [vmem:[#allocation2 + $0x30] sm:$0xf]
        %v482 = vld [vmem:[#allocation2 + $0x34] sm:$0xf]
        %v483 = vld [vmem:[#allocation2 + $0x38] sm:$0xf]
        %v484 = vld [vmem:[#allocation2 + $0x3c] sm:$0xf]
        %v485 = vld [vmem:[#allocation2 + $0x40] sm:$0xf]
        %v486 = vld [vmem:[#allocation2 + $0x44] sm:$0xf]
        %v487 = vld [vmem:[#allocation2 + $0x48] sm:$0xf]
        %v488 = vld [vmem:[#allocation2 + $0x4c] sm:$0xf]
        %v489 = vld [vmem:[#allocation2 + $0x50] sm:$0xf]
        %v490 = vld [vmem:[#allocation2 + $0x54] sm:$0xf]
        %v491 = vld [vmem:[#allocation2 + $0x58] sm:$0xf]
        %v492 = vld [vmem:[#allocation2 + $0x5c] sm:$0xf]
        %v493 = vld [vmem:[#allocation2 + $0x60] sm:$0xf]
        %v494 = vld [vmem:[#allocation2 + $0x64] sm:$0xf]
        %v495 = vld [vmem:[#allocation2 + $0x68] sm:$0xf]
        %v496 = vld [vmem:[#allocation2 + $0x6c] sm:$0xf]
        %v497 = vld [vmem:[#allocation2 + $0x70] sm:$0xf]
        %v498 = vld [vmem:[#allocation2 + $0x74] sm:$0xf]
        %v499 = vld [vmem:[#allocation2 + $0x78] sm:$0xf]
        %v500 = vld [vmem:[#allocation2 + $0x7c] sm:$0xf]
        %v501 = vld [vmem:[#allocation2 + $0x80] sm:$0xf]
        %v502 = vld [vmem:[#allocation2 + $0x84] sm:$0xf]
        %v503 = vld [vmem:[#allocation2 + $0x88] sm:$0xf]
        %v504 = vld [vmem:[#allocation2 + $0x8c] sm:$0xf]
        %v505 = vld [vmem:[#allocation2 + $0x90] sm:$0xf]
        %v506 = vld [vmem:[#allocation2 + $0x94] sm:$0xf]
        %v507 = vld [vmem:[#allocation2 + $0x98] sm:$0xf]
        %v508 = vld [vmem:[#allocation2 + $0x9c] sm:$0xf]
        %v509 = vld [vmem:[#allocation2 + $0xa0] sm:$0xf]
        %v510 = vld [vmem:[#allocation2 + $0xa4] sm:$0xf]
        %v511 = vld [vmem:[#allocation2 + $0xa8] sm:$0xf]
        %v512 = vld [vmem:[#allocation2 + $0xac] sm:$0xf]
        %v513 = vld [vmem:[#allocation2 + $0xb0] sm:$0xf]
        %v514 = vld [vmem:[#allocation2 + $0xb4] sm:$0xf]
        %v515 = vld [vmem:[#allocation2 + $0xb8] sm:$0xf]
        %v516 = vld [vmem:[#allocation2 + $0xbc] sm:$0xf]
        %v517 = vld [vmem:[#allocation2 + $0xc0] sm:$0xf]
        %v518 = vld [vmem:[#allocation2 + $0xc4] sm:$0xf]
        %v519 = vld [vmem:[#allocation2 + $0xc8] sm:$0xf]
        %v520 = vld [vmem:[#allocation2 + $0xcc] sm:$0xf]
        %v521 = vld [vmem:[#allocation2 + $0xd0] sm:$0xf]
        %v522 = vld [vmem:[#allocation2 + $0xd4] sm:$0xf]
        %v523 = vld [vmem:[#allocation2 + $0xd8] sm:$0xf]
        %v524 = vld [vmem:[#allocation2 + $0xdc] sm:$0xf]
        %v525 = vld [vmem:[#allocation2 + $0xe0] sm:$0xf]
        %v526 = vld [vmem:[#allocation2 + $0xe4] sm:$0xf]
        %v527 = vld [vmem:[#allocation2 + $0xe8] sm:$0xf]
        %v528 = vld [vmem:[#allocation2 + $0xec] sm:$0xf]
        %v529 = vld [vmem:[#allocation2 + $0xf0] sm:$0xf]
        %v530 = vld [vmem:[#allocation2 + $0xf4] sm:$0xf]
        %v531 = vld [vmem:[#allocation2 + $0xf8] sm:$0xf]
        %v532 = vld [vmem:[#allocation2 + $0xfc] sm:$0xf]
        %v533 = vld [vmem:[#allocation2 + $0x100] sm:$0xf]
        %v534 = vld [vmem:[#allocation2 + $0x104] sm:$0xf]
        %v535 = vld [vmem:[#allocation2 + $0x108] sm:$0xf]
        %v536 = vld [vmem:[#allocation2 + $0x10c] sm:$0xf]
        %v537 = vld [vmem:[#allocation2 + $0x110] sm:$0xf]
        %v538 = vld [vmem:[#allocation2 + $0x114] sm:$0xf]
        %v539 = vld [vmem:[#allocation2 + $0x118] sm:$0xf]
        %v540 = vld [vmem:[#allocation2 + $0x11c] sm:$0xf]
        %v541 = vld [vmem:[#allocation2 + $0x120] sm:$0xf]
        %v542 = vld [vmem:[#allocation2 + $0x124] sm:$0xf]
        %v543 = vld [vmem:[#allocation2 + $0x128] sm:$0xf]
        %v544 = vld [vmem:[#allocation2 + $0x12c] sm:$0xf]
        %v545 = vld [vmem:[#allocation2 + $0x130] sm:$0xf]
        %v546 = vld [vmem:[#allocation2 + $0x134] sm:$0xf]
        %v547 = vld [vmem:[#allocation2 + $0x138] sm:$0xf]
        %v548 = vld [vmem:[#allocation2 + $0x13c] sm:$0xf]
        %v549 = vld [vmem:[#allocation2 + $0x140] sm:$0xf]
        %v550 = vld [vmem:[#allocation2 + $0x144] sm:$0xf]
        %v551 = vld [vmem:[#allocation2 + $0x148] sm:$0xf]
        %v552 = vld [vmem:[#allocation2 + $0x14c] sm:$0xf]
        %v553 = vld [vmem:[#allocation2 + $0x150] sm:$0xf]
        %v554 = vld [vmem:[#allocation2 + $0x154] sm:$0xf]
        %v555 = vld [vmem:[#allocation2 + $0x158] sm:$0xf]
        %v556 = vld [vmem:[#allocation2 + $0x15c] sm:$0xf]
        %v557 = vld [vmem:[#allocation2 + $0x160] sm:$0xf]
        %v558 = vld [vmem:[#allocation2 + $0x164] sm:$0xf]
        %v559 = vld [vmem:[#allocation2 + $0x168] sm:$0xf]
        %v560 = vld [vmem:[#allocation2 + $0x16c] sm:$0xf]
        %v561 = vld [vmem:[#allocation2 + $0x170] sm:$0xf]
        %v562 = vld [vmem:[#allocation2 + $0x174] sm:$0xf]
        %v563 = vld [vmem:[#allocation2 + $0x178] sm:$0xf]
        %v564 = vld [vmem:[#allocation2 + $0x17c] sm:$0xf]
        %v565 = vld [vmem:[#allocation2 + $0x180] sm:$0xf]
        %v566 = vld [vmem:[#allocation2 + $0x184] sm:$0xf]
        %v567 = vld [vmem:[#allocation2 + $0x188] sm:$0xf]
        %v568 = vld [vmem:[#allocation2 + $0x18c] sm:$0xf]
        %v569 = vld [vmem:[#allocation2 + $0x190] sm:$0xf]
        %v570 = vld [vmem:[#allocation2 + $0x194] sm:$0xf]
        %v571 = vld [vmem:[#allocation2 + $0x198] sm:$0xf]
        %v572 = vld [vmem:[#allocation2 + $0x19c] sm:$0xf]
        %v573 = vld [vmem:[#allocation2 + $0x1a0] sm:$0xf]
        %v574 = vld [vmem:[#allocation2 + $0x1a4] sm:$0xf]
        %v575 = vld [vmem:[#allocation2 + $0x1a8] sm:$0xf]
        %v576 = vld [vmem:[#allocation2 + $0x1ac] sm:$0xf]
        %v577 = vld [vmem:[#allocation2 + $0x1b0] sm:$0xf]
        %v578 = vld [vmem:[#allocation2 + $0x1b4] sm:$0xf]
        %v579 = vld [vmem:[#allocation2 + $0x1b8] sm:$0xf]
        %v580 = vld [vmem:[#allocation2 + $0x1bc] sm:$0xf]
        %v581 = vld [vmem:[#allocation2 + $0x1c0] sm:$0xf]
        %v582 = vld [vmem:[#allocation2 + $0x1c4] sm:$0xf]
        %v583 = vld [vmem:[#allocation2 + $0x1c8] sm:$0xf]
        %v584 = vld [vmem:[#allocation2 + $0x1cc] sm:$0xf]
        %v585 = vld [vmem:[#allocation2 + $0x1d0] sm:$0xf]
        %v586 = vld [vmem:[#allocation2 + $0x1d4] sm:$0xf]
        %v587 = vld [vmem:[#allocation2 + $0x1d8] sm:$0xf]
        %v588 = vld [vmem:[#allocation2 + $0x1dc] sm:$0xf]
        %v589 = vld [vmem:[#allocation2 + $0x1e0] sm:$0xf]
        %v590 = vld [vmem:[#allocation2 + $0x1e4] sm:$0xf]
        %v591 = vld [vmem:[#allocation2 + $0x1e8] sm:$0xf]
        %v592 = vld [vmem:[#allocation2 + $0x1ec] sm:$0xf]
        %v593 = vld [vmem:[#allocation2 + $0x1f0] sm:$0xf]
        %v594 = vld [vmem:[#allocation2 + $0x1f4] sm:$0xf]
        %v595 = vld [vmem:[#allocation2 + $0x1f8] sm:$0xf]
        %v596 = vld [vmem:[#allocation2 + $0x1fc] sm:$0xf]
        %v597 = vld [vmem:[#allocation2 + $0x200] sm:$0xf]
        %v598 = vld [vmem:[#allocation2 + $0x204] sm:$0xf]
        %v599 = vld [vmem:[#allocation2 + $0x208] sm:$0xf]
        %v600 = vld [vmem:[#allocation2 + $0x20c] sm:$0xf]
        %v601 = vld [vmem:[#allocation2 + $0x210] sm:$0xf]
        %v602 = vld [vmem:[#allocation2 + $0x214] sm:$0xf]
        %v603 = vld [vmem:[#allocation2 + $0x218] sm:$0xf]
        %v604 = vld [vmem:[#allocation2 + $0x21c] sm:$0xf]
        %v605 = vld [vmem:[#allocation2 + $0x220] sm:$0xf]
        %v606 = vld [vmem:[#allocation2 + $0x224] sm:$0xf]
        %v607 = vld [vmem:[#allocation2 + $0x228] sm:$0xf]
        %v608 = vld [vmem:[#allocation2 + $0x22c] sm:$0xf]
        %v609 = vld [vmem:[#allocation2 + $0x230] sm:$0xf]
        %v610 = vld [vmem:[#allocation2 + $0x234] sm:$0xf]
        %v611 = vld [vmem:[#allocation2 + $0x238] sm:$0xf]
        %v612 = vld [vmem:[#allocation2 + $0x23c] sm:$0xf]
        %v613 = vld [vmem:[#allocation2 + $0x240] sm:$0xf]
        %v614 = vld [vmem:[#allocation2 + $0x244] sm:$0xf]
        %v615 = vld [vmem:[#allocation2 + $0x248] sm:$0xf]
        %v616 = vld [vmem:[#allocation2 + $0x24c] sm:$0xf]
        %v617 = vld [vmem:[#allocation2 + $0x250] sm:$0xf]
        %v618 = vld [vmem:[#allocation2 + $0x254] sm:$0xf]
        %v619 = vld [vmem:[#allocation2 + $0x258] sm:$0xf]
        %v620 = vld [vmem:[#allocation2 + $0x25c] sm:$0xf]
        %v621 = vld [vmem:[#allocation2 + $0x260] sm:$0xf]
        %v622 = vld [vmem:[#allocation2 + $0x264] sm:$0xf]
        %v623 = vld [vmem:[#allocation2 + $0x268] sm:$0xf]
        %v624 = vld [vmem:[#allocation2 + $0x26c] sm:$0xf]
        %v625 = vld [vmem:[#allocation2 + $0x270] sm:$0xf]
        %v626 = vld [vmem:[#allocation2 + $0x274] sm:$0xf]
        %v627 = vld [vmem:[#allocation2 + $0x278] sm:$0xf]
        %v628 = vld [vmem:[#allocation2 + $0x27c] sm:$0xf]
        %v629 = vld [vmem:[#allocation2 + $0x280] sm:$0xf]
        %v630 = vld [vmem:[#allocation2 + $0x284] sm:$0xf]
        %v631 = vld [vmem:[#allocation2 + $0x288] sm:$0xf]
        %v632 = vld [vmem:[#allocation2 + $0x28c] sm:$0xf]
        %v633 = vld [vmem:[#allocation2 + $0x290] sm:$0xf]
        %v634 = vld [vmem:[#allocation2 + $0x294] sm:$0xf]
        %v635 = vld [vmem:[#allocation2 + $0x298] sm:$0xf]
        %v636 = vld [vmem:[#allocation2 + $0x29c] sm:$0xf]
        %v637 = vld [vmem:[#allocation2 + $0x2a0] sm:$0xf]
        %v638 = vld [vmem:[#allocation2 + $0x2a4] sm:$0xf]
        %v639 = vld [vmem:[#allocation2 + $0x2a8] sm:$0xf]
        %v640 = vld [vmem:[#allocation2 + $0x2ac] sm:$0xf]
        %v641 = vld [vmem:[#allocation2 + $0x2b0] sm:$0xf]
        %v642 = vld [vmem:[#allocation2 + $0x2b4] sm:$0xf]
        %v643 = vld [vmem:[#allocation2 + $0x2b8] sm:$0xf]
        %v644 = vld [vmem:[#allocation2 + $0x2bc] sm:$0xf]
        %v645 = vld [vmem:[#allocation2 + $0x2c0] sm:$0xf]
        %v646 = vld [vmem:[#allocation2 + $0x2c4] sm:$0xf]
        %v647 = vld [vmem:[#allocation2 + $0x2c8] sm:$0xf]
        %v648 = vld [vmem:[#allocation2 + $0x2cc] sm:$0xf]
        %v649 = vld [vmem:[#allocation2 + $0x2d0] sm:$0xf]
        %v650 = vld [vmem:[#allocation2 + $0x2d4] sm:$0xf]
        %v651 = vld [vmem:[#allocation2 + $0x2d8] sm:$0xf]
        %v652 = vld [vmem:[#allocation2 + $0x2dc] sm:$0xf]
        %v653 = vld [vmem:[#allocation2 + $0x2e0] sm:$0xf]
        %v654 = vld [vmem:[#allocation2 + $0x2e4] sm:$0xf]
        %v655 = vld [vmem:[#allocation2 + $0x2e8] sm:$0xf]
        %v656 = vld [vmem:[#allocation2 + $0x2ec] sm:$0xf]
        %v657 = vld [vmem:[#allocation2 + $0x2f0] sm:$0xf]
        %v658 = vld [vmem:[#allocation2 + $0x2f4] sm:$0xf]
        %v659 = vld [vmem:[#allocation2 + $0x2f8] sm:$0xf]
        %v660 = vld [vmem:[#allocation2 + $0x2fc] sm:$0xf]
        %v661 = vld [vmem:[#allocation2 + $0x300] sm:$0xf]
        %v662 = vld [vmem:[#allocation2 + $0x304] sm:$0xf]
        %v663 = vld [vmem:[#allocation2 + $0x308] sm:$0xf]
        %v664 = vld [vmem:[#allocation2 + $0x30c] sm:$0xf]
        %v665 = vld [vmem:[#allocation2 + $0x310] sm:$0xf]
        %v666 = vld [vmem:[#allocation2 + $0x314] sm:$0xf]
        %v667 = vld [vmem:[#allocation2 + $0x318] sm:$0xf]
        %v668 = vld [vmem:[#allocation2 + $0x31c] sm:$0xf]
        %v669 = vld [vmem:[#allocation2 + $0x320] sm:$0xf]
        %v670 = vld [vmem:[#allocation2 + $0x324] sm:$0xf]
        %v671 = vld [vmem:[#allocation2 + $0x328] sm:$0xf]
        %v672 = vld [vmem:[#allocation2 + $0x32c] sm:$0xf]
        %v673 = vld [vmem:[#allocation2 + $0x330] sm:$0xf]
        %v674 = vld [vmem:[#allocation2 + $0x334] sm:$0xf]
        %v675 = vld [vmem:[#allocation2 + $0x338] sm:$0xf]
        %v676 = vld [vmem:[#allocation2 + $0x33c] sm:$0xf]
        %v677 = vld [vmem:[#allocation2 + $0x340] sm:$0xf]
        %v678 = vld [vmem:[#allocation2 + $0x344] sm:$0xf]
        %v679 = vld [vmem:[#allocation2 + $0x348] sm:$0xf]
        %v680 = vld [vmem:[#allocation2 + $0x34c] sm:$0xf]
        %v681 = vld [vmem:[#allocation2 + $0x350] sm:$0xf]
        %v682 = vld [vmem:[#allocation2 + $0x354] sm:$0xf]
        %v683 = vld [vmem:[#allocation2 + $0x358] sm:$0xf]
        %v684 = vld [vmem:[#allocation2 + $0x35c] sm:$0xf]
        %v685 = vld [vmem:[#allocation2 + $0x360] sm:$0xf]
        %v686 = vld [vmem:[#allocation2 + $0x364] sm:$0xf]
        %v687 = vld [vmem:[#allocation2 + $0x368] sm:$0xf]
        %v688 = vld [vmem:[#allocation2 + $0x36c] sm:$0xf]
        %v689 = vld [vmem:[#allocation2 + $0x370] sm:$0xf]
        %v690 = vld [vmem:[#allocation2 + $0x374] sm:$0xf]
        %v691 = vld [vmem:[#allocation2 + $0x378] sm:$0xf]
        %v692 = vld [vmem:[#allocation2 + $0x37c] sm:$0xf]
        %v693 = vld [vmem:[#allocation2 + $0x380] sm:$0xf]
        %v694 = vld [vmem:[#allocation2 + $0x384] sm:$0xf]
        %v695 = vld [vmem:[#allocation2 + $0x388] sm:$0xf]
        %v696 = vld [vmem:[#allocation2 + $0x38c] sm:$0xf]
        %v697 = vld [vmem:[#allocation2 + $0x390] sm:$0xf]
        %v698 = vld [vmem:[#allocation2 + $0x394] sm:$0xf]
        %v699 = vld [vmem:[#allocation2 + $0x398] sm:$0xf]
        %v700 = vld [vmem:[#allocation2 + $0x39c] sm:$0xf]
        %v701 = vld [vmem:[#allocation2 + $0x3a0] sm:$0xf]
        %v702 = vld [vmem:[#allocation2 + $0x3a4] sm:$0xf]
        %v703 = vld [vmem:[#allocation2 + $0x3a8] sm:$0xf]
        %v704 = vld [vmem:[#allocation2 + $0x3ac] sm:$0xf]
        %v705 = vld [vmem:[#allocation2 + $0x3b0] sm:$0xf]
        %v706 = vld [vmem:[#allocation2 + $0x3b4] sm:$0xf]
        %v707 = vld [vmem:[#allocation2 + $0x3b8] sm:$0xf]
        %v708 = vld [vmem:[#allocation2 + $0x3bc] sm:$0xf]
        %v709 = vld [vmem:[#allocation2 + $0x3c0] sm:$0xf]
        %v710 = vld [vmem:[#allocation2 + $0x3c4] sm:$0xf]
        %v711 = vld [vmem:[#allocation2 + $0x3c8] sm:$0xf]
        %v712 = vld [vmem:[#allocation2 + $0x3cc] sm:$0xf]
        %v713 = vld [vmem:[#allocation2 + $0x3d0] sm:$0xf]
        %v714 = vld [vmem:[#allocation2 + $0x3d4] sm:$0xf]
        %v715 = vld [vmem:[#allocation2 + $0x3d8] sm:$0xf]
        %v716 = vld [vmem:[#allocation2 + $0x3dc] sm:$0xf]
        %v717 = vld [vmem:[#allocation2 + $0x3e0] sm:$0xf]
        %v718 = vld [vmem:[#allocation2 + $0x3e4] sm:$0xf]
        %v719 = vld [vmem:[#allocation2 + $0x3e8] sm:$0xf]
        %v720 = vld [vmem:[#allocation2 + $0x3ec] sm:$0xf]
        %v721 = vld [vmem:[#allocation2 + $0x3f0] sm:$0xf]
        %v722 = vld [vmem:[#allocation2 + $0x3f4] sm:$0xf]
        %v723 = vld [vmem:[#allocation2 + $0x3f8] sm:$0xf]
        %v724 = vld [vmem:[#allocation2 + $0x3fc] sm:$0xf]
        %v725 = vld [vmem:[#allocation2 + $0x400] sm:$0xf]
        %v726 = vld [vmem:[#allocation2 + $0x404] sm:$0xf]
        %v727 = vld [vmem:[#allocation2 + $0x408] sm:$0xf]
        %v728 = vld [vmem:[#allocation2 + $0x40c] sm:$0xf]
        %v729 = vld [vmem:[#allocation2 + $0x410] sm:$0xf]
        %v730 = vld [vmem:[#allocation2 + $0x414] sm:$0xf]
        %v731 = vld [vmem:[#allocation2 + $0x418] sm:$0xf]
        %v732 = vld [vmem:[#allocation2 + $0x41c] sm:$0xf]
        %v733 = vld [vmem:[#allocation2 + $0x420] sm:$0xf]
        %v734 = vld [vmem:[#allocation2 + $0x424] sm:$0xf]
        %v735 = vld [vmem:[#allocation2 + $0x428] sm:$0xf]
        %v736 = vld [vmem:[#allocation2 + $0x42c] sm:$0xf]
        %v737 = vld [vmem:[#allocation2 + $0x430] sm:$0xf]
        %v738 = vld [vmem:[#allocation2 + $0x434] sm:$0xf]
        %v739 = vld [vmem:[#allocation2 + $0x438] sm:$0xf]
        %v740 = vld [vmem:[#allocation2 + $0x43c] sm:$0xf]
        %v741 = vld [vmem:[#allocation2 + $0x440] sm:$0xf]
        %v742 = vld [vmem:[#allocation2 + $0x444] sm:$0xf]
        %v743 = vld [vmem:[#allocation2 + $0x448] sm:$0xf]
        %v744 = vld [vmem:[#allocation2 + $0x44c] sm:$0xf]
        %v745 = vld [vmem:[#allocation2 + $0x450] sm:$0xf]
        %v746 = vld [vmem:[#allocation2 + $0x454] sm:$0xf]
        %v747 = vld [vmem:[#allocation2 + $0x458] sm:$0xf]
        %v748 = vld [vmem:[#allocation2 + $0x45c] sm:$0xf]
        %v749 = vld [vmem:[#allocation2 + $0x460] sm:$0xf]
        %v750 = vld [vmem:[#allocation2 + $0x464] sm:$0xf]
        %v751 = vld [vmem:[#allocation2 + $0x468] sm:$0xf]
        %v752 = vld [vmem:[#allocation2 + $0x46c] sm:$0xf]
        %v753 = vld [vmem:[#allocation2 + $0x470] sm:$0xf]
        %v754 = vld [vmem:[#allocation2 + $0x474] sm:$0xf]
        %v755 = vld [vmem:[#allocation2 + $0x478] sm:$0xf]
        %v756 = vld [vmem:[#allocation2 + $0x47c] sm:$0xf]
        %v757 = vld [vmem:[#allocation2 + $0x480] sm:$0xf]
        %v758 = vld [vmem:[#allocation2 + $0x484] sm:$0xf]
        %v759 = vld [vmem:[#allocation2 + $0x488] sm:$0xf]
        %v760 = vld [vmem:[#allocation2 + $0x48c] sm:$0xf]
        %v761 = vld [vmem:[#allocation2 + $0x490] sm:$0xf]
        %v762 = vld [vmem:[#allocation2 + $0x494] sm:$0xf]
        %v763 = vld [vmem:[#allocation2 + $0x498] sm:$0xf]
        %v764 = vld [vmem:[#allocation2 + $0x49c] sm:$0xf]
        %v765 = vld [vmem:[#allocation2 + $0x4a0] sm:$0xf]
        %v766 = vld [vmem:[#allocation2 + $0x4a4] sm:$0xf]
        %v767 = vld [vmem:[#allocation2 + $0x4a8] sm:$0xf]
        %v768 = vld [vmem:[#allocation2 + $0x4ac] sm:$0xf]
        %v769 = vld [vmem:[#allocation2 + $0x4b0] sm:$0xf]
        %v770 = vld [vmem:[#allocation2 + $0x4b4] sm:$0xf]
        %v771 = vld [vmem:[#allocation2 + $0x4b8] sm:$0xf]
        %v772 = vld [vmem:[#allocation2 + $0x4bc] sm:$0xf]
        %v773 = vld [vmem:[#allocation2 + $0x4c0] sm:$0xf]
        %v774 = vld [vmem:[#allocation2 + $0x4c4] sm:$0xf]
        %v775 = vld [vmem:[#allocation2 + $0x4c8] sm:$0xf]
        %v776 = vld [vmem:[#allocation2 + $0x4cc] sm:$0xf]
        %v777 = vld [vmem:[#allocation2 + $0x4d0] sm:$0xf]
        %v778 = vld [vmem:[#allocation2 + $0x4d4] sm:$0xf]
        %v779 = vld [vmem:[#allocation2 + $0x4d8] sm:$0xf]
        %v780 = vld [vmem:[#allocation2 + $0x4dc] sm:$0xf]
        %v781 = vld [vmem:[#allocation2 + $0x4e0] sm:$0xf]
        %v782 = vld [vmem:[#allocation2 + $0x4e4] sm:$0xf]
        %v783 = vld [vmem:[#allocation2 + $0x4e8] sm:$0xf]
        %v784 = vld [vmem:[#allocation2 + $0x4ec] sm:$0xf]
        %v785 = vld [vmem:[#allocation2 + $0x4f0] sm:$0xf]
        %v786 = vld [vmem:[#allocation2 + $0x4f4] sm:$0xf]
        %v787 = vld [vmem:[#allocation2 + $0x4f8] sm:$0xf]
        %v788 = vld [vmem:[#allocation2 + $0x4fc] sm:$0xf]
        %v789 = vld [vmem:[#allocation2 + $0x500] sm:$0xf]
        %v790 = vld [vmem:[#allocation2 + $0x504] sm:$0xf]
        %v791 = vld [vmem:[#allocation2 + $0x508] sm:$0xf]
        %v792 = vld [vmem:[#allocation2 + $0x50c] sm:$0xf]
        %v793 = vld [vmem:[#allocation2 + $0x510] sm:$0xf]
        %v794 = vld [vmem:[#allocation2 + $0x514] sm:$0xf]
        %v795 = vld [vmem:[#allocation2 + $0x518] sm:$0xf]
        %v796 = vld [vmem:[#allocation2 + $0x51c] sm:$0xf]
        %v797 = vld [vmem:[#allocation2 + $0x520] sm:$0xf]
        %v798 = vld [vmem:[#allocation2 + $0x524] sm:$0xf]
        %v799 = vld [vmem:[#allocation2 + $0x528] sm:$0xf]
        %v800 = vld [vmem:[#allocation2 + $0x52c] sm:$0xf]
        %v801 = vld [vmem:[#allocation2 + $0x530] sm:$0xf]
        %v802 = vld [vmem:[#allocation2 + $0x534] sm:$0xf]
        %v803 = vld [vmem:[#allocation2 + $0x538] sm:$0xf]
        %v804 = vld [vmem:[#allocation2 + $0x53c] sm:$0xf]
        %v805 = vld [vmem:[#allocation2 + $0x540] sm:$0xf]
        %v806 = vld [vmem:[#allocation2 + $0x544] sm:$0xf]
        %v807 = vld [vmem:[#allocation2 + $0x548] sm:$0xf]
        %v808 = vld [vmem:[#allocation2 + $0x54c] sm:$0xf]
        %v809 = vld [vmem:[#allocation2 + $0x550] sm:$0xf]
        %v810 = vld [vmem:[#allocation2 + $0x554] sm:$0xf]
        %v811 = vld [vmem:[#allocation2 + $0x558] sm:$0xf]
        %v812 = vld [vmem:[#allocation2 + $0x55c] sm:$0xf]
        %v813 = vld [vmem:[#allocation2 + $0x560] sm:$0xf]
        %v814 = vld [vmem:[#allocation2 + $0x564] sm:$0xf]
        %v815 = vld [vmem:[#allocation2 + $0x568] sm:$0xf]
        %v816 = vld [vmem:[#allocation2 + $0x56c] sm:$0xf]
        %v817 = vld [vmem:[#allocation2 + $0x570] sm:$0xf]
        %v818 = vld [vmem:[#allocation2 + $0x574] sm:$0xf]
        %v819 = vld [vmem:[#allocation2 + $0x578] sm:$0xf]
        %v820 = vld [vmem:[#allocation2 + $0x57c] sm:$0xf]
        %v821 = vld [vmem:[#allocation2 + $0x580] sm:$0xf]
        %v822 = vld [vmem:[#allocation2 + $0x584] sm:$0xf]
        %v823 = vld [vmem:[#allocation2 + $0x588] sm:$0xf]
        %v824 = vld [vmem:[#allocation2 + $0x58c] sm:$0xf]
        %v825 = vld [vmem:[#allocation2 + $0x590] sm:$0xf]
        %v826 = vld [vmem:[#allocation2 + $0x594] sm:$0xf]
        %v827 = vld [vmem:[#allocation2 + $0x598] sm:$0xf]
        %v828 = vld [vmem:[#allocation2 + $0x59c] sm:$0xf]
        %v829 = vld [vmem:[#allocation2 + $0x5a0] sm:$0xf]
        %v830 = vld [vmem:[#allocation2 + $0x5a4] sm:$0xf]
        %v831 = vld [vmem:[#allocation2 + $0x5a8] sm:$0xf]
        %v832 = vld [vmem:[#allocation2 + $0x5ac] sm:$0xf]
        %v833 = vld [vmem:[#allocation2 + $0x5b0] sm:$0xf]
        %v834 = vld [vmem:[#allocation2 + $0x5b4] sm:$0xf]
        %v835 = vld [vmem:[#allocation2 + $0x5b8] sm:$0xf]
        %v836 = vld [vmem:[#allocation2 + $0x5bc] sm:$0xf]
        %v837 = vld [vmem:[#allocation2 + $0x5c0] sm:$0xf]
        %v838 = vld [vmem:[#allocation2 + $0x5c4] sm:$0xf]
        %v839 = vld [vmem:[#allocation2 + $0x5c8] sm:$0xf]
        %v840 = vld [vmem:[#allocation2 + $0x5cc] sm:$0xf]
        %v841 = vld [vmem:[#allocation2 + $0x5d0] sm:$0xf]
        %v842 = vld [vmem:[#allocation2 + $0x5d4] sm:$0xf]
        %v843 = vld [vmem:[#allocation2 + $0x5d8] sm:$0xf]
        %v844 = vld [vmem:[#allocation2 + $0x5dc] sm:$0xf]
        %v845 = vld [vmem:[#allocation2 + $0x5e0] sm:$0xf]
        %v846 = vld [vmem:[#allocation2 + $0x5e4] sm:$0xf]
        %v847 = vld [vmem:[#allocation2 + $0x5e8] sm:$0xf]
        %v848 = vld [vmem:[#allocation2 + $0x5ec] sm:$0xf]
        %v849 = vld [vmem:[#allocation2 + $0x5f0] sm:$0xf]
        %v850 = vld [vmem:[#allocation2 + $0x5f4] sm:$0xf]
        %v851 = vld [vmem:[#allocation2 + $0x5f8] sm:$0xf]
        %v852 = vld [vmem:[#allocation2 + $0x5fc] sm:$0xf]
        %v853 = vld [vmem:[#allocation2 + $0x600] sm:$0xf]
        %v854 = vld [vmem:[#allocation2 + $0x604] sm:$0xf]
        %v855 = vld [vmem:[#allocation2 + $0x608] sm:$0xf]
        %v856 = vld [vmem:[#allocation2 + $0x60c] sm:$0xf]
        %v857 = vld [vmem:[#allocation2 + $0x610] sm:$0xf]
        %v858 = vld [vmem:[#allocation2 + $0x614] sm:$0xf]
        %v859 = vld [vmem:[#allocation2 + $0x618] sm:$0xf]
        %v860 = vld [vmem:[#allocation2 + $0x61c] sm:$0xf]
        %v861 = vld [vmem:[#allocation2 + $0x620] sm:$0xf]
        %v862 = vld [vmem:[#allocation2 + $0x624] sm:$0xf]
        %v863 = vld [vmem:[#allocation2 + $0x628] sm:$0xf]
        %v864 = vld [vmem:[#allocation2 + $0x62c] sm:$0xf]
        %v865 = vld [vmem:[#allocation2 + $0x630] sm:$0xf]
        %v866 = vld [vmem:[#allocation2 + $0x634] sm:$0xf]
        %v867 = vld [vmem:[#allocation2 + $0x638] sm:$0xf]
        %v868 = vld [vmem:[#allocation2 + $0x63c] sm:$0xf]
        %v869 = vld [vmem:[#allocation2 + $0x640] sm:$0xf]
        %v870 = vld [vmem:[#allocation2 + $0x644] sm:$0xf]
        %v871 = vld [vmem:[#allocation2 + $0x648] sm:$0xf]
        %v872 = vld [vmem:[#allocation2 + $0x64c] sm:$0xf]
        %v873 = vld [vmem:[#allocation2 + $0x650] sm:$0xf]
        %v874 = vld [vmem:[#allocation2 + $0x654] sm:$0xf]
        %v875 = vld [vmem:[#allocation2 + $0x658] sm:$0xf]
        %v876 = vld [vmem:[#allocation2 + $0x65c] sm:$0xf]
        %v877 = vld [vmem:[#allocation2 + $0x660] sm:$0xf]
        %v878 = vld [vmem:[#allocation2 + $0x664] sm:$0xf]
        %v879 = vld [vmem:[#allocation2 + $0x668] sm:$0xf]
        %v880 = vld [vmem:[#allocation2 + $0x66c] sm:$0xf]
        %v881 = vld [vmem:[#allocation2 + $0x670] sm:$0xf]
        %v882 = vld [vmem:[#allocation2 + $0x674] sm:$0xf]
        %v883 = vld [vmem:[#allocation2 + $0x678] sm:$0xf]
        %v884 = vld [vmem:[#allocation2 + $0x67c] sm:$0xf]
        %v885 = vld [vmem:[#allocation2 + $0x680] sm:$0xf]
        %v886 = vld [vmem:[#allocation2 + $0x684] sm:$0xf]
        %v887 = vld [vmem:[#allocation2 + $0x688] sm:$0xf]
        %v888 = vld [vmem:[#allocation2 + $0x68c] sm:$0xf]
        %v889 = vld [vmem:[#allocation2 + $0x690] sm:$0xf]
        %v890 = vld [vmem:[#allocation2 + $0x694] sm:$0xf]
        %v891 = vld [vmem:[#allocation2 + $0x698] sm:$0xf]
        %v892 = vld [vmem:[#allocation2 + $0x69c] sm:$0xf]
        %v893 = vld [vmem:[#allocation2 + $0x6a0] sm:$0xf]
        %v894 = vld [vmem:[#allocation2 + $0x6a4] sm:$0xf]
        %v895 = vld [vmem:[#allocation2 + $0x6a8] sm:$0xf]
        %v896 = vld [vmem:[#allocation2 + $0x6ac] sm:$0xf]
        %v897 = vld [vmem:[#allocation2 + $0x6b0] sm:$0xf]
        %v898 = vld [vmem:[#allocation2 + $0x6b4] sm:$0xf]
        %v899 = vld [vmem:[#allocation2 + $0x6b8] sm:$0xf]
        %v900 = vld [vmem:[#allocation2 + $0x6bc] sm:$0xf]
        %v901 = vld [vmem:[#allocation2 + $0x6c0] sm:$0xf]
        %v902 = vld [vmem:[#allocation2 + $0x6c4] sm:$0xf]
        %v903 = vld [vmem:[#allocation2 + $0x6c8] sm:$0xf]
        %v904 = vld [vmem:[#allocation2 + $0x6cc] sm:$0xf]
        %v905 = vld [vmem:[#allocation2 + $0x6d0] sm:$0xf]
        %v906 = vld [vmem:[#allocation2 + $0x6d4] sm:$0xf]
        %v907 = vld [vmem:[#allocation2 + $0x6d8] sm:$0xf]
        %v908 = vld [vmem:[#allocation2 + $0x6dc] sm:$0xf]
        %v909 = vld [vmem:[#allocation2 + $0x6e0] sm:$0xf]
        %v910 = vld [vmem:[#allocation2 + $0x6e4] sm:$0xf]
        %v911 = vld [vmem:[#allocation2 + $0x6e8] sm:$0xf]
        %v912 = vld [vmem:[#allocation2 + $0x6ec] sm:$0xf]
        %v913 = vld [vmem:[#allocation2 + $0x6f0] sm:$0xf]
        %v914 = vld [vmem:[#allocation2 + $0x6f4] sm:$0xf]
        %v915 = vld [vmem:[#allocation2 + $0x6f8] sm:$0xf]
        %v916 = vld [vmem:[#allocation2 + $0x6fc] sm:$0xf]
        %v917 = vld [vmem:[#allocation2 + $0x700] sm:$0xf]
        %v918 = vld [vmem:[#allocation2 + $0x704] sm:$0xf]
        %v919 = vld [vmem:[#allocation2 + $0x708] sm:$0xf]
        %v920 = vld [vmem:[#allocation2 + $0x70c] sm:$0xf]
        %v921 = vld [vmem:[#allocation2 + $0x710] sm:$0xf]
        %v922 = vld [vmem:[#allocation2 + $0x714] sm:$0xf]
        %v923 = vld [vmem:[#allocation2 + $0x718] sm:$0xf]
        %v924 = vld [vmem:[#allocation2 + $0x71c] sm:$0xf]
        %v925 = vld [vmem:[#allocation2 + $0x720] sm:$0xf]
        %v926 = vld [vmem:[#allocation2 + $0x724] sm:$0xf]
        %v927 = vld [vmem:[#allocation2 + $0x728] sm:$0xf]
        %v928 = vld [vmem:[#allocation2 + $0x72c] sm:$0xf]
        %v929 = vld [vmem:[#allocation2 + $0x730] sm:$0xf]
        %v930 = vld [vmem:[#allocation2 + $0x734] sm:$0xf]
        %v931 = vld [vmem:[#allocation2 + $0x738] sm:$0xf]
        %v932 = vld [vmem:[#allocation2 + $0x73c] sm:$0xf]
        %v933 = vld [vmem:[#allocation2 + $0x740] sm:$0xf]
        %v934 = vld [vmem:[#allocation2 + $0x744] sm:$0xf]
        %v935 = vld [vmem:[#allocation2 + $0x748] sm:$0xf]
        %v936 = vld [vmem:[#allocation2 + $0x74c] sm:$0xf]
        %v937 = vld [vmem:[#allocation2 + $0x750] sm:$0xf]
        %v938 = vld [vmem:[#allocation2 + $0x754] sm:$0xf]
        %v939 = vld [vmem:[#allocation2 + $0x758] sm:$0xf]
        %v940 = vld [vmem:[#allocation2 + $0x75c] sm:$0xf]
        %v941 = vld [vmem:[#allocation2 + $0x760] sm:$0xf]
        %v942 = vld [vmem:[#allocation2 + $0x764] sm:$0xf]
        %v943 = vld [vmem:[#allocation2 + $0x768] sm:$0xf]
        %v944 = vld [vmem:[#allocation2 + $0x76c] sm:$0xf]
        %v945 = vld [vmem:[#allocation2 + $0x770] sm:$0xf]
        %v946 = vld [vmem:[#allocation2 + $0x774] sm:$0xf]
        %v947 = vld [vmem:[#allocation2 + $0x778] sm:$0xf]
        %v948 = vld [vmem:[#allocation2 + $0x77c] sm:$0xf]
        %v949 = vld [vmem:[#allocation2 + $0x780] sm:$0xf]
        %v950 = vld [vmem:[#allocation2 + $0x784] sm:$0xf]
        %v951 = vld [vmem:[#allocation2 + $0x788] sm:$0xf]
        %v952 = vld [vmem:[#allocation2 + $0x78c] sm:$0xf]
        %v953 = vld [vmem:[#allocation2 + $0x790] sm:$0xf]
        %v954 = vld [vmem:[#allocation2 + $0x794] sm:$0xf]
        %v955 = vld [vmem:[#allocation2 + $0x798] sm:$0xf]
        %v956 = vld [vmem:[#allocation2 + $0x79c] sm:$0xf]
        %v957 = vld [vmem:[#allocation2 + $0x7a0] sm:$0xf]
        %v958 = vld [vmem:[#allocation2 + $0x7a4] sm:$0xf]
        %v959 = vld [vmem:[#allocation2 + $0x7a8] sm:$0xf]
        %v960 = vld [vmem:[#allocation2 + $0x7ac] sm:$0xf]
        %v961 = vld [vmem:[#allocation2 + $0x7b0] sm:$0xf]
        %v962 = vld [vmem:[#allocation2 + $0x7b4] sm:$0xf]
        %v963 = vld [vmem:[#allocation2 + $0x7b8] sm:$0xf]
        %v964 = vld [vmem:[#allocation2 + $0x7bc] sm:$0xf]
        %v965 = vld [vmem:[#allocation2 + $0x7c0] sm:$0xf]
        %v966 = vld [vmem:[#allocation2 + $0x7c4] sm:$0xf]
        %v967 = vld [vmem:[#allocation2 + $0x7c8] sm:$0xf]
        %v968 = vld [vmem:[#allocation2 + $0x7cc] sm:$0xf]
        %v969 = vld [vmem:[#allocation2 + $0x7d0] sm:$0xf]
        %v970 = vld [vmem:[#allocation2 + $0x7d4] sm:$0xf]
        %v971 = vld [vmem:[#allocation2 + $0x7d8] sm:$0xf]
        %v972 = vld [vmem:[#allocation2 + $0x7dc] sm:$0xf]
        %v973 = vld [vmem:[#allocation2 + $0x7e0] sm:$0xf]
        %v974 = vld [vmem:[#allocation2 + $0x7e4] sm:$0xf]
        %v975 = vld [vmem:[#allocation2 + $0x7e8] sm:$0xf]
        %v976 = vld [vmem:[#allocation2 + $0x7ec] sm:$0xf]
        %v977 = vld [vmem:[#allocation2 + $0x7f0] sm:$0xf]
        %v978 = vld [vmem:[#allocation2 + $0x7f4] sm:$0xf]
        %v979 = vld [vmem:[#allocation2 + $0x7f8] sm:$0xf]
        %v980 = vld [vmem:[#allocation2 + $0x7fc] sm:$0xf]
        %v981 = vld [vmem:[#allocation2 + $0x800] sm:$0xf]
        %v982 = vld [vmem:[#allocation2 + $0x804] sm:$0xf]
        %v983 = vld [vmem:[#allocation2 + $0x808] sm:$0xf]
        %v984 = vld [vmem:[#allocation2 + $0x80c] sm:$0xf]
        %v985 = vld [vmem:[#allocation2 + $0x810] sm:$0xf]
        %v986 = vld [vmem:[#allocation2 + $0x814] sm:$0xf]
        %v987 = vld [vmem:[#allocation2 + $0x818] sm:$0xf]
        %v988 = vld [vmem:[#allocation2 + $0x81c] sm:$0xf]
        %v989 = vld [vmem:[#allocation2 + $0x820] sm:$0xf]
        %v990 = vld [vmem:[#allocation2 + $0x824] sm:$0xf]
        %v991 = vld [vmem:[#allocation2 + $0x828] sm:$0xf]
        %v992 = vld [vmem:[#allocation2 + $0x82c] sm:$0xf]
        %v993 = vld [vmem:[#allocation2 + $0x830] sm:$0xf]
        %v994 = vld [vmem:[#allocation2 + $0x834] sm:$0xf]
        %v995 = vld [vmem:[#allocation2 + $0x838] sm:$0xf]
        %v996 = vld [vmem:[#allocation2 + $0x83c] sm:$0xf]
        %v997 = vld [vmem:[#allocation2 + $0x840] sm:$0xf]
        %v998 = vld [vmem:[#allocation2 + $0x844] sm:$0xf]
        %v999 = vld [vmem:[#allocation2 + $0x848] sm:$0xf]
        %v1000 = vld [vmem:[#allocation2 + $0x84c] sm:$0xf]
        %v1001 = vld [vmem:[#allocation2 + $0x850] sm:$0xf]
        %v1002 = vld [vmem:[#allocation2 + $0x854] sm:$0xf]
        %v1003 = vld [vmem:[#allocation2 + $0x858] sm:$0xf]
        %v1004 = vld [vmem:[#allocation2 + $0x85c] sm:$0xf]
        %v1005 = vld [vmem:[#allocation2 + $0x860] sm:$0xf]
        %v1006 = vld [vmem:[#allocation2 + $0x864] sm:$0xf]
        %v1007 = vld [vmem:[#allocation2 + $0x868] sm:$0xf]
        %v1008 = vld [vmem:[#allocation2 + $0x86c] sm:$0xf]
        %v1009 = vld [vmem:[#allocation2 + $0x870] sm:$0xf]
        %v1010 = vld [vmem:[#allocation2 + $0x874] sm:$0xf]
        %v1011 = vld [vmem:[#allocation2 + $0x878] sm:$0xf]
        %v1012 = vld [vmem:[#allocation2 + $0x87c] sm:$0xf]
        %v1013 = vld [vmem:[#allocation2 + $0x880] sm:$0xf]
        %v1014 = vld [vmem:[#allocation2 + $0x884] sm:$0xf]
        %v1015 = vld [vmem:[#allocation2 + $0x888] sm:$0xf]
        %v1016 = vld [vmem:[#allocation2 + $0x88c] sm:$0xf]
        %v1017 = vld [vmem:[#allocation2 + $0x890] sm:$0xf]
        %v1018 = vld [vmem:[#allocation2 + $0x894] sm:$0xf]
        %v1019 = vld [vmem:[#allocation2 + $0x898] sm:$0xf]
        %v1020 = vld [vmem:[#allocation2 + $0x89c] sm:$0xf]
        %v1021 = vld [vmem:[#allocation2 + $0x8a0] sm:$0xf]
        %v1022 = vld [vmem:[#allocation2 + $0x8a4] sm:$0xf]
        %v1023 = vld [vmem:[#allocation2 + $0x8a8] sm:$0xf]
        %v1024 = vld [vmem:[#allocation2 + $0x8ac] sm:$0xf]
        %v1025 = vld [vmem:[#allocation2 + $0x8b0] sm:$0xf]
        %v1026 = vld [vmem:[#allocation2 + $0x8b4] sm:$0xf]
        %v1027 = vld [vmem:[#allocation2 + $0x8b8] sm:$0xf]
        %v1028 = vld [vmem:[#allocation2 + $0x8bc] sm:$0xf]
        %v1029 = vld [vmem:[#allocation2 + $0x8c0] sm:$0xf]
        %v1030 = vld [vmem:[#allocation2 + $0x8c4] sm:$0xf]
        %v1031 = vld [vmem:[#allocation2 + $0x8c8] sm:$0xf]
        %v1032 = vld [vmem:[#allocation2 + $0x8cc] sm:$0xf]
        %v1033 = vld [vmem:[#allocation2 + $0x8d0] sm:$0xf]
        %v1034 = vld [vmem:[#allocation2 + $0x8d4] sm:$0xf]
        %v1035 = vld [vmem:[#allocation2 + $0x8d8] sm:$0xf]
        %v1036 = vld [vmem:[#allocation2 + $0x8dc] sm:$0xf]
        %v1037 = vld [vmem:[#allocation2 + $0x8e0] sm:$0xf]
        %v1038 = vld [vmem:[#allocation2 + $0x8e4] sm:$0xf]
        %v1039 = vld [vmem:[#allocation2 + $0x8e8] sm:$0xf]
        %v1040 = vld [vmem:[#allocation2 + $0x8ec] sm:$0xf]
        %v1041 = vld [vmem:[#allocation2 + $0x8f0] sm:$0xf]
        %v1042 = vld [vmem:[#allocation2 + $0x8f4] sm:$0xf]
        %v1043 = vld [vmem:[#allocation2 + $0x8f8] sm:$0xf]
        %v1044 = vld [vmem:[#allocation2 + $0x8fc] sm:$0xf]
        %v1045 = vld [vmem:[#allocation2 + $0x900] sm:$0xf]
        %v1046 = vld [vmem:[#allocation2 + $0x904] sm:$0xf]
        %v1047 = vld [vmem:[#allocation2 + $0x908] sm:$0xf]
        %v1048 = vld [vmem:[#allocation2 + $0x90c] sm:$0xf]
        %v1049 = vld [vmem:[#allocation2 + $0x910] sm:$0xf]
        %v1050 = vld [vmem:[#allocation2 + $0x914] sm:$0xf]
        %v1051 = vld [vmem:[#allocation2 + $0x918] sm:$0xf]
        %v1052 = vld [vmem:[#allocation2 + $0x91c] sm:$0xf]
        %v1053 = vld [vmem:[#allocation2 + $0x920] sm:$0xf]
        %v1054 = vld [vmem:[#allocation2 + $0x924] sm:$0xf]
        %v1055 = vld [vmem:[#allocation2 + $0x928] sm:$0xf]
        %v1056 = vld [vmem:[#allocation2 + $0x92c] sm:$0xf]
        %v1057 = vld [vmem:[#allocation2 + $0x930] sm:$0xf]
        %v1058 = vld [vmem:[#allocation2 + $0x934] sm:$0xf]
        %v1059 = vld [vmem:[#allocation2 + $0x938] sm:$0xf]
        %v1060 = vld [vmem:[#allocation2 + $0x93c] sm:$0xf]
        %v1061 = vld [vmem:[#allocation2 + $0x940] sm:$0xf]
        %v1062 = vld [vmem:[#allocation2 + $0x944] sm:$0xf]
        %v1063 = vld [vmem:[#allocation2 + $0x948] sm:$0xf]
        %v1064 = vld [vmem:[#allocation2 + $0x94c] sm:$0xf]
        %v1065 = vld [vmem:[#allocation2 + $0x950] sm:$0xf]
        %v1066 = vld [vmem:[#allocation2 + $0x954] sm:$0xf]
        %v1067 = vld [vmem:[#allocation2 + $0x958] sm:$0xf]
        %v1068 = vld [vmem:[#allocation2 + $0x95c] sm:$0xf]
        %v1069 = vld [vmem:[#allocation2 + $0x960] sm:$0xf]
        %v1070 = vld [vmem:[#allocation2 + $0x964] sm:$0xf]
        %v1071 = vld [vmem:[#allocation2 + $0x968] sm:$0xf]
        %v1072 = vld [vmem:[#allocation2 + $0x96c] sm:$0xf]
        %v1073 = vld [vmem:[#allocation2 + $0x970] sm:$0xf]
        %v1074 = vld [vmem:[#allocation2 + $0x974] sm:$0xf]
        %v1075 = vld [vmem:[#allocation2 + $0x978] sm:$0xf]
        %v1076 = vld [vmem:[#allocation2 + $0x97c] sm:$0xf]
        %v1077 = vld [vmem:[#allocation2 + $0x980] sm:$0xf]
        %v1078 = vld [vmem:[#allocation2 + $0x984] sm:$0xf]
        %v1079 = vld [vmem:[#allocation2 + $0x988] sm:$0xf]
        %v1080 = vld [vmem:[#allocation2 + $0x98c] sm:$0xf]
        %v1081 = vld [vmem:[#allocation2 + $0x990] sm:$0xf]
        %v1082 = vld [vmem:[#allocation2 + $0x994] sm:$0xf]
        %v1083 = vld [vmem:[#allocation2 + $0x998] sm:$0xf]
        %v1084 = vld [vmem:[#allocation2 + $0x99c] sm:$0xf]
        %v1085 = vld [vmem:[#allocation2 + $0x9a0] sm:$0xf]
        %v1086 = vld [vmem:[#allocation2 + $0x9a4] sm:$0xf]
        %v1087 = vld [vmem:[#allocation2 + $0x9a8] sm:$0xf]
        %v1088 = vld [vmem:[#allocation2 + $0x9ac] sm:$0xf]
        %v1089 = vld [vmem:[#allocation2 + $0x9b0] sm:$0xf]
        %v1090 = vld [vmem:[#allocation2 + $0x9b4] sm:$0xf]
        %v1091 = vld [vmem:[#allocation2 + $0x9b8] sm:$0xf]
        %v1092 = vld [vmem:[#allocation2 + $0x9bc] sm:$0xf]
        %v1093 = vld [vmem:[#allocation2 + $0x9c0] sm:$0xf]
        %v1094 = vld [vmem:[#allocation2 + $0x9c4] sm:$0xf]
        %v1095 = vld [vmem:[#allocation2 + $0x9c8] sm:$0xf]
        %v1096 = vld [vmem:[#allocation2 + $0x9cc] sm:$0xf]
        %v1097 = vld [vmem:[#allocation2 + $0x9d0] sm:$0xf]
        %v1098 = vld [vmem:[#allocation2 + $0x9d4] sm:$0xf]
        %v1099 = vld [vmem:[#allocation2 + $0x9d8] sm:$0xf]
        %v1100 = vld [vmem:[#allocation2 + $0x9dc] sm:$0xf]
        %v1101 = vld [vmem:[#allocation2 + $0x9e0] sm:$0xf]
        %v1102 = vld [vmem:[#allocation2 + $0x9e4] sm:$0xf]
        %v1103 = vld [vmem:[#allocation2 + $0x9e8] sm:$0xf]
        %v1104 = vld [vmem:[#allocation2 + $0x9ec] sm:$0xf]
        %v1105 = vld [vmem:[#allocation2 + $0x9f0] sm:$0xf]
        %v1106 = vld [vmem:[#allocation2 + $0x9f4] sm:$0xf]
        %v1107 = vld [vmem:[#allocation2 + $0x9f8] sm:$0xf]
        %v1108 = vld [vmem:[#allocation2 + $0x9fc] sm:$0xf]
        %v1109 = vld [vmem:[#allocation2 + $0xa00] sm:$0xf]
        %v1110 = vld [vmem:[#allocation2 + $0xa04] sm:$0xf]
        %v1111 = vld [vmem:[#allocation2 + $0xa08] sm:$0xf]
        %v1112 = vld [vmem:[#allocation2 + $0xa0c] sm:$0xf]
        %v1113 = vld [vmem:[#allocation2 + $0xa10] sm:$0xf]
        %v1114 = vld [vmem:[#allocation2 + $0xa14] sm:$0xf]
        %v1115 = vld [vmem:[#allocation2 + $0xa18] sm:$0xf]
        %v1116 = vld [vmem:[#allocation2 + $0xa1c] sm:$0xf]
        %v1117 = vld [vmem:[#allocation2 + $0xa20] sm:$0xf]
        %v1118 = vld [vmem:[#allocation2 + $0xa24] sm:$0xf]
        %v1119 = vld [vmem:[#allocation2 + $0xa28] sm:$0xf]
        %v1120 = vld [vmem:[#allocation2 + $0xa2c] sm:$0xf]
        %v1121 = vld [vmem:[#allocation2 + $0xa30] sm:$0xf]
        %v1122 = vld [vmem:[#allocation2 + $0xa34] sm:$0xf]
        %v1123 = vld [vmem:[#allocation2 + $0xa38] sm:$0xf]
        %v1124 = vld [vmem:[#allocation2 + $0xa3c] sm:$0xf]
        %v1125 = vld [vmem:[#allocation2 + $0xa40] sm:$0xf]
        %v1126 = vld [vmem:[#allocation2 + $0xa44] sm:$0xf]
        %v1127 = vld [vmem:[#allocation2 + $0xa48] sm:$0xf]
        %v1128 = vld [vmem:[#allocation2 + $0xa4c] sm:$0xf]
        %v1129 = vld [vmem:[#allocation2 + $0xa50] sm:$0xf]
        %v1130 = vld [vmem:[#allocation2 + $0xa54] sm:$0xf]
        %v1131 = vld [vmem:[#allocation2 + $0xa58] sm:$0xf]
        %v1132 = vld [vmem:[#allocation2 + $0xa5c] sm:$0xf]
        %v1133 = vld [vmem:[#allocation2 + $0xa60] sm:$0xf]
        %v1134 = vld [vmem:[#allocation2 + $0xa64] sm:$0xf]
        %v1135 = vld [vmem:[#allocation2 + $0xa68] sm:$0xf]
        %v1136 = vld [vmem:[#allocation2 + $0xa6c] sm:$0xf]
        %v1137 = vld [vmem:[#allocation2 + $0xa70] sm:$0xf]
        %v1138 = vld [vmem:[#allocation2 + $0xa74] sm:$0xf]
        %v1139 = vld [vmem:[#allocation2 + $0xa78] sm:$0xf]
        %v1140 = vld [vmem:[#allocation2 + $0xa7c] sm:$0xf]
        %v1141 = vld [vmem:[#allocation2 + $0xa80] sm:$0xf]
        %v1142 = vld [vmem:[#allocation2 + $0xa84] sm:$0xf]
        %v1143 = vld [vmem:[#allocation2 + $0xa88] sm:$0xf]
        %v1144 = vld [vmem:[#allocation2 + $0xa8c] sm:$0xf]
        %v1145 = vld [vmem:[#allocation2 + $0xa90] sm:$0xf]
        %v1146 = vld [vmem:[#allocation2 + $0xa94] sm:$0xf]
        %v1147 = vld [vmem:[#allocation2 + $0xa98] sm:$0xf]
        %v1148 = vld [vmem:[#allocation2 + $0xa9c] sm:$0xf]
        %v1149 = vld [vmem:[#allocation2 + $0xaa0] sm:$0xf]
        %v1150 = vld [vmem:[#allocation2 + $0xaa4] sm:$0xf]
        %v1151 = vld [vmem:[#allocation2 + $0xaa8] sm:$0xf]
        %v1152 = vld [vmem:[#allocation2 + $0xaac] sm:$0xf]
        %v1153 = vld [vmem:[#allocation2 + $0xab0] sm:$0xf]
        %v1154 = vld [vmem:[#allocation2 + $0xab4] sm:$0xf]
        %v1155 = vld [vmem:[#allocation2 + $0xab8] sm:$0xf]
        %v1156 = vld [vmem:[#allocation2 + $0xabc] sm:$0xf]
        %v1157 = vld [vmem:[#allocation2 + $0xac0] sm:$0xf]
        %v1158 = vld [vmem:[#allocation2 + $0xac4] sm:$0xf]
        %v1159 = vld [vmem:[#allocation2 + $0xac8] sm:$0xf]
        %v1160 = vld [vmem:[#allocation2 + $0xacc] sm:$0xf]
        %v1161 = vld [vmem:[#allocation2 + $0xad0] sm:$0xf]
        %v1162 = vld [vmem:[#allocation2 + $0xad4] sm:$0xf]
        %v1163 = vld [vmem:[#allocation2 + $0xad8] sm:$0xf]
        %v1164 = vld [vmem:[#allocation2 + $0xadc] sm:$0xf]
        %v1165 = vld [vmem:[#allocation2 + $0xae0] sm:$0xf]
        %v1166 = vld [vmem:[#allocation2 + $0xae4] sm:$0xf]
        %v1167 = vld [vmem:[#allocation2 + $0xae8] sm:$0xf]
        %v1168 = vld [vmem:[#allocation2 + $0xaec] sm:$0xf]
        %v1169 = vld [vmem:[#allocation2 + $0xaf0] sm:$0xf]
        %v1170 = vld [vmem:[#allocation2 + $0xaf4] sm:$0xf]
        %v1171 = vld [vmem:[#allocation2 + $0xaf8] sm:$0xf]
        %v1172 = vld [vmem:[#allocation2 + $0xafc] sm:$0xf]
        %v1173 = vld [vmem:[#allocation2 + $0xb00] sm:$0xf]
        %v1174 = vld [vmem:[#allocation2 + $0xb04] sm:$0xf]
        %v1175 = vld [vmem:[#allocation2 + $0xb08] sm:$0xf]
        %v1176 = vld [vmem:[#allocation2 + $0xb0c] sm:$0xf]
        %v1177 = vld [vmem:[#allocation2 + $0xb10] sm:$0xf]
        %v1178 = vld [vmem:[#allocation2 + $0xb14] sm:$0xf]
        %v1179 = vld [vmem:[#allocation2 + $0xb18] sm:$0xf]
        %v1180 = vld [vmem:[#allocation2 + $0xb1c] sm:$0xf]
        %v1181 = vld [vmem:[#allocation2 + $0xb20] sm:$0xf]
        %v1182 = vld [vmem:[#allocation2 + $0xb24] sm:$0xf]
        %v1183 = vld [vmem:[#allocation2 + $0xb28] sm:$0xf]
        %v1184 = vld [vmem:[#allocation2 + $0xb2c] sm:$0xf]
        %v1185 = vld [vmem:[#allocation2 + $0xb30] sm:$0xf]
        %v1186 = vld [vmem:[#allocation2 + $0xb34] sm:$0xf]
        %v1187 = vld [vmem:[#allocation2 + $0xb38] sm:$0xf]
        %v1188 = vld [vmem:[#allocation2 + $0xb3c] sm:$0xf]
        %v1189 = vld [vmem:[#allocation2 + $0xb40] sm:$0xf]
        %v1190 = vld [vmem:[#allocation2 + $0xb44] sm:$0xf]
        %v1191 = vld [vmem:[#allocation2 + $0xb48] sm:$0xf]
        %v1192 = vld [vmem:[#allocation2 + $0xb4c] sm:$0xf]
        %v1193 = vld [vmem:[#allocation2 + $0xb50] sm:$0xf]
        %v1194 = vld [vmem:[#allocation2 + $0xb54] sm:$0xf]
        %v1195 = vld [vmem:[#allocation2 + $0xb58] sm:$0xf]
        %v1196 = vld [vmem:[#allocation2 + $0xb5c] sm:$0xf]
        %v1197 = vld [vmem:[#allocation2 + $0xb60] sm:$0xf]
        %v1198 = vld [vmem:[#allocation2 + $0xb64] sm:$0xf]
        %v1199 = vld [vmem:[#allocation2 + $0xb68] sm:$0xf]
        %v1200 = vld [vmem:[#allocation2 + $0xb6c] sm:$0xf]
        %v1201 = vld [vmem:[#allocation2 + $0xb70] sm:$0xf]
        %v1202 = vld [vmem:[#allocation2 + $0xb74] sm:$0xf]
        %v1203 = vld [vmem:[#allocation2 + $0xb78] sm:$0xf]
        %v1204 = vld [vmem:[#allocation2 + $0xb7c] sm:$0xf]
        %v1205 = vld [vmem:[#allocation2 + $0xb80] sm:$0xf]
        %v1206 = vld [vmem:[#allocation2 + $0xb84] sm:$0xf]
        %v1207 = vld [vmem:[#allocation2 + $0xb88] sm:$0xf]
        %v1208 = vld [vmem:[#allocation2 + $0xb8c] sm:$0xf]
        %v1209 = vld [vmem:[#allocation2 + $0xb90] sm:$0xf]
        %v1210 = vld [vmem:[#allocation2 + $0xb94] sm:$0xf]
        %v1211 = vld [vmem:[#allocation2 + $0xb98] sm:$0xf]
        %v1212 = vld [vmem:[#allocation2 + $0xb9c] sm:$0xf]
        %v1213 = vld [vmem:[#allocation2 + $0xba0] sm:$0xf]
        %v1214 = vld [vmem:[#allocation2 + $0xba4] sm:$0xf]
        %v1215 = vld [vmem:[#allocation2 + $0xba8] sm:$0xf]
        %v1216 = vld [vmem:[#allocation2 + $0xbac] sm:$0xf]
        %v1217 = vld [vmem:[#allocation2 + $0xbb0] sm:$0xf]
        %v1218 = vld [vmem:[#allocation2 + $0xbb4] sm:$0xf]
        %v1219 = vld [vmem:[#allocation2 + $0xbb8] sm:$0xf]
        %v1220 = vld [vmem:[#allocation2 + $0xbbc] sm:$0xf]
        %v1221 = vld [vmem:[#allocation2 + $0xbc0] sm:$0xf]
        %v1222 = vld [vmem:[#allocation2 + $0xbc4] sm:$0xf]
        %v1223 = vld [vmem:[#allocation2 + $0xbc8] sm:$0xf]
        %v1224 = vld [vmem:[#allocation2 + $0xbcc] sm:$0xf]
        %v1225 = vld [vmem:[#allocation2 + $0xbd0] sm:$0xf]
        %v1226 = vld [vmem:[#allocation2 + $0xbd4] sm:$0xf]
        %v1227 = vld [vmem:[#allocation2 + $0xbd8] sm:$0xf]
        %v1228 = vld [vmem:[#allocation2 + $0xbdc] sm:$0xf]
        %v1229 = vld [vmem:[#allocation2 + $0xbe0] sm:$0xf]
        %v1230 = vld [vmem:[#allocation2 + $0xbe4] sm:$0xf]
        %v1231 = vld [vmem:[#allocation2 + $0xbe8] sm:$0xf]
        %v1232 = vld [vmem:[#allocation2 + $0xbec] sm:$0xf]
        %v1233 = vld [vmem:[#allocation2 + $0xbf0] sm:$0xf]
        %v1234 = vld [vmem:[#allocation2 + $0xbf4] sm:$0xf]
        %v1235 = vld [vmem:[#allocation2 + $0xbf8] sm:$0xf]
        %v1236 = vld [vmem:[#allocation2 + $0xbfc] sm:$0xf]
        %v1237 = vld [vmem:[#allocation2 + $0xc00] sm:$0xf]
        %v1238 = vld [vmem:[#allocation2 + $0xc04] sm:$0xf]
        %v1239 = vld [vmem:[#allocation2 + $0xc08] sm:$0xf]
        %v1240 = vld [vmem:[#allocation2 + $0xc0c] sm:$0xf]
        %v1241 = vld [vmem:[#allocation2 + $0xc10] sm:$0xf]
        %v1242 = vld [vmem:[#allocation2 + $0xc14] sm:$0xf]
        %v1243 = vld [vmem:[#allocation2 + $0xc18] sm:$0xf]
        %v1244 = vld [vmem:[#allocation2 + $0xc1c] sm:$0xf]
        %v1245 = vld [vmem:[#allocation2 + $0xc20] sm:$0xf]
        %v1246 = vld [vmem:[#allocation2 + $0xc24] sm:$0xf]
        %v1247 = vld [vmem:[#allocation2 + $0xc28] sm:$0xf]
        %v1248 = vld [vmem:[#allocation2 + $0xc2c] sm:$0xf]
        %v1249 = vld [vmem:[#allocation2 + $0xc30] sm:$0xf]
        %v1250 = vld [vmem:[#allocation2 + $0xc34] sm:$0xf]
        %v1251 = vld [vmem:[#allocation2 + $0xc38] sm:$0xf]
        %v1252 = vld [vmem:[#allocation2 + $0xc3c] sm:$0xf]
        %v1253 = vld [vmem:[#allocation2 + $0xc40] sm:$0xf]
        %v1254 = vld [vmem:[#allocation2 + $0xc44] sm:$0xf]
        %v1255 = vld [vmem:[#allocation2 + $0xc48] sm:$0xf]
        %v1256 = vld [vmem:[#allocation2 + $0xc4c] sm:$0xf]
        %v1257 = vld [vmem:[#allocation2 + $0xc50] sm:$0xf]
        %v1258 = vld [vmem:[#allocation2 + $0xc54] sm:$0xf]
        %v1259 = vld [vmem:[#allocation2 + $0xc58] sm:$0xf]
        %v1260 = vld [vmem:[#allocation2 + $0xc5c] sm:$0xf]
        %v1261 = vld [vmem:[#allocation2 + $0xc60] sm:$0xf]
        %v1262 = vld [vmem:[#allocation2 + $0xc64] sm:$0xf]
        %v1263 = vld [vmem:[#allocation2 + $0xc68] sm:$0xf]
        %v1264 = vld [vmem:[#allocation2 + $0xc6c] sm:$0xf]
        %v1265 = vld [vmem:[#allocation2 + $0xc70] sm:$0xf]
        %v1266 = vld [vmem:[#allocation2 + $0xc74] sm:$0xf]
        %v1267 = vld [vmem:[#allocation2 + $0xc78] sm:$0xf]
        %v1268 = vld [vmem:[#allocation2 + $0xc7c] sm:$0xf]
        %v1269 = vld [vmem:[#allocation2 + $0xc80] sm:$0xf]
        %v1270 = vld [vmem:[#allocation2 + $0xc84] sm:$0xf]
        %v1271 = vld [vmem:[#allocation2 + $0xc88] sm:$0xf]
        %v1272 = vld [vmem:[#allocation2 + $0xc8c] sm:$0xf]
        %v1273 = vld [vmem:[#allocation2 + $0xc90] sm:$0xf]
        %v1274 = vld [vmem:[#allocation2 + $0xc94] sm:$0xf]
        %v1275 = vld [vmem:[#allocation2 + $0xc98] sm:$0xf]
        %v1276 = vld [vmem:[#allocation2 + $0xc9c] sm:$0xf]
        %v1277 = vld [vmem:[#allocation2 + $0xca0] sm:$0xf]
        %v1278 = vld [vmem:[#allocation2 + $0xca4] sm:$0xf]
        %v1279 = vld [vmem:[#allocation2 + $0xca8] sm:$0xf]
        %v1280 = vld [vmem:[#allocation2 + $0xcac] sm:$0xf]
        %v1281 = vld [vmem:[#allocation2 + $0xcb0] sm:$0xf]
        %v1282 = vld [vmem:[#allocation2 + $0xcb4] sm:$0xf]
        %v1283 = vld [vmem:[#allocation2 + $0xcb8] sm:$0xf]
        %v1284 = vld [vmem:[#allocation2 + $0xcbc] sm:$0xf]
        %v1285 = vld [vmem:[#allocation2 + $0xcc0] sm:$0xf]
        %v1286 = vld [vmem:[#allocation2 + $0xcc4] sm:$0xf]
        %v1287 = vld [vmem:[#allocation2 + $0xcc8] sm:$0xf]
        %v1288 = vld [vmem:[#allocation2 + $0xccc] sm:$0xf]
        %v1289 = vld [vmem:[#allocation2 + $0xcd0] sm:$0xf]
        %v1290 = vld [vmem:[#allocation2 + $0xcd4] sm:$0xf]
        %v1291 = vld [vmem:[#allocation2 + $0xcd8] sm:$0xf]
        %v1292 = vld [vmem:[#allocation2 + $0xcdc] sm:$0xf]
        %v1293 = vld [vmem:[#allocation2 + $0xce0] sm:$0xf]
        %v1294 = vld [vmem:[#allocation2 + $0xce4] sm:$0xf]
        %v1295 = vld [vmem:[#allocation2 + $0xce8] sm:$0xf]
        %v1296 = vld [vmem:[#allocation2 + $0xcec] sm:$0xf]
        %v1297 = vld [vmem:[#allocation2 + $0xcf0] sm:$0xf]
        %v1298 = vld [vmem:[#allocation2 + $0xcf4] sm:$0xf]
        %v1299 = vld [vmem:[#allocation2 + $0xcf8] sm:$0xf]
        %v1300 = vld [vmem:[#allocation2 + $0xcfc] sm:$0xf]
        %v1301 = vld [vmem:[#allocation2 + $0xd00] sm:$0xf]
        %v1302 = vld [vmem:[#allocation2 + $0xd04] sm:$0xf]
        %v1303 = vld [vmem:[#allocation2 + $0xd08] sm:$0xf]
        %v1304 = vld [vmem:[#allocation2 + $0xd0c] sm:$0xf]
        %v1305 = vld [vmem:[#allocation2 + $0xd10] sm:$0xf]
        %v1306 = vld [vmem:[#allocation2 + $0xd14] sm:$0xf]
        %v1307 = vld [vmem:[#allocation2 + $0xd18] sm:$0xf]
        %v1308 = vld [vmem:[#allocation2 + $0xd1c] sm:$0xf]
        %v1309 = vld [vmem:[#allocation2 + $0xd20] sm:$0xf]
        %v1310 = vld [vmem:[#allocation2 + $0xd24] sm:$0xf]
        %v1311 = vld [vmem:[#allocation2 + $0xd28] sm:$0xf]
        %v1312 = vld [vmem:[#allocation2 + $0xd2c] sm:$0xf]
        %v1313 = vld [vmem:[#allocation2 + $0xd30] sm:$0xf]
        %v1314 = vld [vmem:[#allocation2 + $0xd34] sm:$0xf]
        %v1315 = vld [vmem:[#allocation2 + $0xd38] sm:$0xf]
        %v1316 = vld [vmem:[#allocation2 + $0xd3c] sm:$0xf]
        %v1317 = vld [vmem:[#allocation2 + $0xd40] sm:$0xf]
        %v1318 = vld [vmem:[#allocation2 + $0xd44] sm:$0xf]
        %v1319 = vld [vmem:[#allocation2 + $0xd48] sm:$0xf]
        %v1320 = vld [vmem:[#allocation2 + $0xd4c] sm:$0xf]
        %v1321 = vld [vmem:[#allocation2 + $0xd50] sm:$0xf]
        %v1322 = vld [vmem:[#allocation2 + $0xd54] sm:$0xf]
        %v1323 = vld [vmem:[#allocation2 + $0xd58] sm:$0xf]
        %v1324 = vld [vmem:[#allocation2 + $0xd5c] sm:$0xf]
        %v1325 = vld [vmem:[#allocation2 + $0xd60] sm:$0xf]
        %v1326 = vld [vmem:[#allocation2 + $0xd64] sm:$0xf]
        %v1327 = vld [vmem:[#allocation2 + $0xd68] sm:$0xf]
        %v1328 = vld [vmem:[#allocation2 + $0xd6c] sm:$0xf]
        %v1329 = vld [vmem:[#allocation2 + $0xd70] sm:$0xf]
        %v1330 = vld [vmem:[#allocation2 + $0xd74] sm:$0xf]
        %v1331 = vld [vmem:[#allocation2 + $0xd78] sm:$0xf]
        %v1332 = vld [vmem:[#allocation2 + $0xd7c] sm:$0xf]
        %v1333 = vld [vmem:[#allocation2 + $0xd80] sm:$0xf]
        %v1334 = vld [vmem:[#allocation2 + $0xd84] sm:$0xf]
        %v1335 = vld [vmem:[#allocation2 + $0xd88] sm:$0xf]
        %v1336 = vld [vmem:[#allocation2 + $0xd8c] sm:$0xf]
        %v1337 = vld [vmem:[#allocation2 + $0xd90] sm:$0xf]
        %v1338 = vld [vmem:[#allocation2 + $0xd94] sm:$0xf]
        %v1339 = vld [vmem:[#allocation2 + $0xd98] sm:$0xf]
        %v1340 = vld [vmem:[#allocation2 + $0xd9c] sm:$0xf]
        %v1341 = vld [vmem:[#allocation2 + $0xda0] sm:$0xf]
        %v1342 = vld [vmem:[#allocation2 + $0xda4] sm:$0xf]
        %v1343 = vld [vmem:[#allocation2 + $0xda8] sm:$0xf]
        %v1344 = vld [vmem:[#allocation2 + $0xdac] sm:$0xf]
        %v1345 = vld [vmem:[#allocation2 + $0xdb0] sm:$0xf]
        %v1346 = vld [vmem:[#allocation2 + $0xdb4] sm:$0xf]
        %v1347 = vld [vmem:[#allocation2 + $0xdb8] sm:$0xf]
        %v1348 = vld [vmem:[#allocation2 + $0xdbc] sm:$0xf]
        %v1349 = vld [vmem:[#allocation2 + $0xdc0] sm:$0xf]
        %v1350 = vld [vmem:[#allocation2 + $0xdc4] sm:$0xf]
        %v1351 = vld [vmem:[#allocation2 + $0xdc8] sm:$0xf]
        %v1352 = vld [vmem:[#allocation2 + $0xdcc] sm:$0xf]
        %v1353 = vld [vmem:[#allocation2 + $0xdd0] sm:$0xf]
        %v1354 = vld [vmem:[#allocation2 + $0xdd4] sm:$0xf]
        %v1355 = vld [vmem:[#allocation2 + $0xdd8] sm:$0xf]
        %v1356 = vld [vmem:[#allocation2 + $0xddc] sm:$0xf]
        %v1357 = vld [vmem:[#allocation2 + $0xde0] sm:$0xf]
        %v1358 = vld [vmem:[#allocation2 + $0xde4] sm:$0xf]
        %v1359 = vld [vmem:[#allocation2 + $0xde8] sm:$0xf]
        %v1360 = vld [vmem:[#allocation2 + $0xdec] sm:$0xf]
        %v1361 = vld [vmem:[#allocation2 + $0xdf0] sm:$0xf]
        %v1362 = vld [vmem:[#allocation2 + $0xdf4] sm:$0xf]
        %v1363 = vld [vmem:[#allocation2 + $0xdf8] sm:$0xf]
        %v1364 = vld [vmem:[#allocation2 + $0xdfc] sm:$0xf]
        %v1365 = vld [vmem:[#allocation2 + $0xe00] sm:$0xf]
        %v1366 = vld [vmem:[#allocation2 + $0xe04] sm:$0xf]
        %v1367 = vld [vmem:[#allocation2 + $0xe08] sm:$0xf]
        %v1368 = vld [vmem:[#allocation2 + $0xe0c] sm:$0xf]
        %v1369 = vld [vmem:[#allocation2 + $0xe10] sm:$0xf]
        %v1370 = vld [vmem:[#allocation2 + $0xe14] sm:$0xf]
        %v1371 = vld [vmem:[#allocation2 + $0xe18] sm:$0xf]
        %v1372 = vld [vmem:[#allocation2 + $0xe1c] sm:$0xf]
        %v1373 = vld [vmem:[#allocation2 + $0xe20] sm:$0xf]
        %v1374 = vld [vmem:[#allocation2 + $0xe24] sm:$0xf]
        %v1375 = vld [vmem:[#allocation2 + $0xe28] sm:$0xf]
        %v1376 = vld [vmem:[#allocation2 + $0xe2c] sm:$0xf]
        %v1377 = vld [vmem:[#allocation2 + $0xe30] sm:$0xf]
        %v1378 = vld [vmem:[#allocation2 + $0xe34] sm:$0xf]
        %v1379 = vld [vmem:[#allocation2 + $0xe38] sm:$0xf]
        %v1380 = vld [vmem:[#allocation2 + $0xe3c] sm:$0xf]
        %v1381 = vld [vmem:[#allocation2 + $0xe40] sm:$0xf]
        %v1382 = vld [vmem:[#allocation2 + $0xe44] sm:$0xf]
        %v1383 = vld [vmem:[#allocation2 + $0xe48] sm:$0xf]
        %v1384 = vld [vmem:[#allocation2 + $0xe4c] sm:$0xf]
        %v1385 = vld [vmem:[#allocation2 + $0xe50] sm:$0xf]
        %v1386 = vld [vmem:[#allocation2 + $0xe54] sm:$0xf]
        %v1387 = vld [vmem:[#allocation2 + $0xe58] sm:$0xf]
        %v1388 = vld [vmem:[#allocation2 + $0xe5c] sm:$0xf]
        %v1389 = vld [vmem:[#allocation2 + $0xe60] sm:$0xf]
        %v1390 = vld [vmem:[#allocation2 + $0xe64] sm:$0xf]
        %v1391 = vld [vmem:[#allocation2 + $0xe68] sm:$0xf]
        %v1392 = vld [vmem:[#allocation2 + $0xe6c] sm:$0xf]
        %v1393 = vld [vmem:[#allocation2 + $0xe70] sm:$0xf]
        %v1394 = vld [vmem:[#allocation2 + $0xe74] sm:$0xf]
        %v1395 = vld [vmem:[#allocation2 + $0xe78] sm:$0xf]
        %v1396 = vld [vmem:[#allocation2 + $0xe7c] sm:$0xf]
        %v1397 = vld [vmem:[#allocation2 + $0xe80] sm:$0xf]
        %v1398 = vld [vmem:[#allocation2 + $0xe84] sm:$0xf]
        %v1399 = vld [vmem:[#allocation2 + $0xe88] sm:$0xf]
        %v1400 = vld [vmem:[#allocation2 + $0xe8c] sm:$0xf]
        %v1401 = vld [vmem:[#allocation2 + $0xe90] sm:$0xf]
        %v1402 = vld [vmem:[#allocation2 + $0xe94] sm:$0xf]
        %v1403 = vld [vmem:[#allocation2 + $0xe98] sm:$0xf]
        %v1404 = vld [vmem:[#allocation2 + $0xe9c] sm:$0xf]
        %v1405 = vld [vmem:[#allocation2 + $0xea0] sm:$0xf]
        %v1406 = vld [vmem:[#allocation2 + $0xea4] sm:$0xf]
        %v1407 = vld [vmem:[#allocation2 + $0xea8] sm:$0xf]
        %v1408 = vld [vmem:[#allocation2 + $0xeac] sm:$0xf]
        %v1409 = vld [vmem:[#allocation2 + $0xeb0] sm:$0xf]
        %v1410 = vld [vmem:[#allocation2 + $0xeb4] sm:$0xf]
        %v1411 = vld [vmem:[#allocation2 + $0xeb8] sm:$0xf]
        %v1412 = vld [vmem:[#allocation2 + $0xebc] sm:$0xf]
        %v1413 = vld [vmem:[#allocation2 + $0xec0] sm:$0xf]
        %v1414 = vld [vmem:[#allocation2 + $0xec4] sm:$0xf]
        %v1415 = vld [vmem:[#allocation2 + $0xec8] sm:$0xf]
        %v1416 = vld [vmem:[#allocation2 + $0xecc] sm:$0xf]
        %v1417 = vld [vmem:[#allocation2 + $0xed0] sm:$0xf]
        %v1418 = vld [vmem:[#allocation2 + $0xed4] sm:$0xf]
        %v1419 = vld [vmem:[#allocation2 + $0xed8] sm:$0xf]
        %v1420 = vld [vmem:[#allocation2 + $0xedc] sm:$0xf]
        %v1421 = vld [vmem:[#allocation2 + $0xee0] sm:$0xf]
        %v1422 = vld [vmem:[#allocation2 + $0xee4] sm:$0xf]
        %v1423 = vld [vmem:[#allocation2 + $0xee8] sm:$0xf]
        %v1424 = vld [vmem:[#allocation2 + $0xeec] sm:$0xf]
        %v1425 = vld [vmem:[#allocation2 + $0xef0] sm:$0xf]
        %v1426 = vld [vmem:[#allocation2 + $0xef4] sm:$0xf]
        %v1427 = vld [vmem:[#allocation2 + $0xef8] sm:$0xf]
        %v1428 = vld [vmem:[#allocation2 + $0xefc] sm:$0xf]
        %v1429 = vld [vmem:[#allocation2 + $0xf00] sm:$0xf]
        %v1430 = vld [vmem:[#allocation2 + $0xf04] sm:$0xf]
        %v1431 = vld [vmem:[#allocation2 + $0xf08] sm:$0xf]
        %v1432 = vld [vmem:[#allocation2 + $0xf0c] sm:$0xf]
        %v1433 = vld [vmem:[#allocation2 + $0xf10] sm:$0xf]
        %v1434 = vld [vmem:[#allocation2 + $0xf14] sm:$0xf]
        %v1435 = vld [vmem:[#allocation2 + $0xf18] sm:$0xf]
        %v1436 = vld [vmem:[#allocation2 + $0xf1c] sm:$0xf]
        %v1437 = vld [vmem:[#allocation2 + $0xf20] sm:$0xf]
        %v1438 = vld [vmem:[#allocation2 + $0xf24] sm:$0xf]
        %v1439 = vld [vmem:[#allocation2 + $0xf28] sm:$0xf]
        %v1440 = vld [vmem:[#allocation2 + $0xf2c] sm:$0xf]
        %v1441 = vld [vmem:[#allocation2 + $0xf30] sm:$0xf]
        %v1442 = vld [vmem:[#allocation2 + $0xf34] sm:$0xf]
        %v1443 = vld [vmem:[#allocation2 + $0xf38] sm:$0xf]
        %v1444 = vld [vmem:[#allocation2 + $0xf3c] sm:$0xf]
        %v1445 = vld [vmem:[#allocation2 + $0xf40] sm:$0xf]
        %v1446 = vld [vmem:[#allocation2 + $0xf44] sm:$0xf]
        %v1447 = vld [vmem:[#allocation2 + $0xf48] sm:$0xf]
        %v1448 = vld [vmem:[#allocation2 + $0xf4c] sm:$0xf]
        %v1449 = vld [vmem:[#allocation2 + $0xf50] sm:$0xf]
        %v1450 = vld [vmem:[#allocation2 + $0xf54] sm:$0xf]
        %v1451 = vld [vmem:[#allocation2 + $0xf58] sm:$0xf]
        %v1452 = vld [vmem:[#allocation2 + $0xf5c] sm:$0xf]
        %v1453 = vld [vmem:[#allocation2 + $0xf60] sm:$0xf]
        %v1454 = vld [vmem:[#allocation2 + $0xf64] sm:$0xf]
        %v1455 = vld [vmem:[#allocation2 + $0xf68] sm:$0xf]
        %v1456 = vld [vmem:[#allocation2 + $0xf6c] sm:$0xf]
        %v1457 = vld [vmem:[#allocation2 + $0xf70] sm:$0xf]
        %v1458 = vld [vmem:[#allocation2 + $0xf74] sm:$0xf]
        %v1459 = vld [vmem:[#allocation2 + $0xf78] sm:$0xf]
        %v1460 = vld [vmem:[#allocation2 + $0xf7c] sm:$0xf]
        %v1461 = vld [vmem:[#allocation2 + $0xf80] sm:$0xf]
        %v1462 = vld [vmem:[#allocation2 + $0xf84] sm:$0xf]
        %v1463 = vld [vmem:[#allocation2 + $0xf88] sm:$0xf]
        %v1464 = vld [vmem:[#allocation2 + $0xf8c] sm:$0xf]
        %v1465 = vld [vmem:[#allocation2 + $0xf90] sm:$0xf]
        %v1466 = vld [vmem:[#allocation2 + $0xf94] sm:$0xf]
        %v1467 = vld [vmem:[#allocation2 + $0xf98] sm:$0xf]
        %v1468 = vld [vmem:[#allocation2 + $0xf9c] sm:$0xf]
        %v1469 = vld [vmem:[#allocation2 + $0xfa0] sm:$0xf]
        %v1470 = vld [vmem:[#allocation2 + $0xfa4] sm:$0xf]
        %v1471 = vld [vmem:[#allocation2 + $0xfa8] sm:$0xf]
        %v1472 = vld [vmem:[#allocation2 + $0xfac] sm:$0xf]
        %v1473 = vld [vmem:[#allocation2 + $0xfb0] sm:$0xf]
        %v1474 = vld [vmem:[#allocation2 + $0xfb4] sm:$0xf]
        %v1475 = vld [vmem:[#allocation2 + $0xfb8] sm:$0xf]
        %v1476 = vld [vmem:[#allocation2 + $0xfbc] sm:$0xf]
        %v1477 = vld [vmem:[#allocation2 + $0xfc0] sm:$0xf]
        %v1478 = vld [vmem:[#allocation2 + $0xfc4] sm:$0xf]
        %v1479 = vld [vmem:[#allocation2 + $0xfc8] sm:$0xf]
        %v1480 = vld [vmem:[#allocation2 + $0xfcc] sm:$0xf]
        %v1481 = vld [vmem:[#allocation2 + $0xfd0] sm:$0xf]
        %v1482 = vld [vmem:[#allocation2 + $0xfd4] sm:$0xf]
        %v1483 = vld [vmem:[#allocation2 + $0xfd8] sm:$0xf]
        %v1484 = vld [vmem:[#allocation2 + $0xfdc] sm:$0xf]
        %v1485 = vld [vmem:[#allocation2 + $0xfe0] sm:$0xf]
        %v1486 = vld [vmem:[#allocation2 + $0xfe4] sm:$0xf]
        %v1487 = vld [vmem:[#allocation2 + $0xfe8] sm:$0xf]
        %v1488 = vld [vmem:[#allocation2 + $0xfec] sm:$0xf]
        %v1489 = vld [vmem:[#allocation2 + $0xff0] sm:$0xf]
        %v1490 = vld [vmem:[#allocation2 + $0xff4] sm:$0xf]
        %v1491 = vld [vmem:[#allocation2 + $0xff8] sm:$0xf]
        %v1492 = vld [vmem:[#allocation2 + $0xffc] sm:$0xf]
        %v1493 = vld [vmem:[#allocation2 + $0x1000] sm:$0xf]
        %v1494 = vld [vmem:[#allocation2 + $0x1004] sm:$0xf]
        %v1495 = vld [vmem:[#allocation2 + $0x1008] sm:$0xf]
        %v1496 = vld [vmem:[#allocation2 + $0x100c] sm:$0xf]
        %v1497 = vld [vmem:[#allocation2 + $0x1010] sm:$0xf]
        %v1498 = vld [vmem:[#allocation2 + $0x1014] sm:$0xf]
        %v1499 = vld [vmem:[#allocation2 + $0x1018] sm:$0xf]
        %v1500 = vld [vmem:[#allocation2 + $0x101c] sm:$0xf]
        %v1501 = vld [vmem:[#allocation2 + $0x1020] sm:$0xf]
        %v1502 = vld [vmem:[#allocation2 + $0x1024] sm:$0xf]
        %v1503 = vld [vmem:[#allocation2 + $0x1028] sm:$0xf]
        %v1504 = vld [vmem:[#allocation2 + $0x102c] sm:$0xf]
        %v1505 = vld [vmem:[#allocation2 + $0x1030] sm:$0xf]
        %v1506 = vld [vmem:[#allocation2 + $0x1034] sm:$0xf]
        %v1507 = vld [vmem:[#allocation2 + $0x1038] sm:$0xf]
        %v1508 = vld [vmem:[#allocation2 + $0x103c] sm:$0xf]
        %v1509 = vld [vmem:[#allocation2 + $0x1040] sm:$0xf]
        %v1510 = vld [vmem:[#allocation2 + $0x1044] sm:$0xf]
        %v1511 = vld [vmem:[#allocation2 + $0x1048] sm:$0xf]
        %v1512 = vld [vmem:[#allocation2 + $0x104c] sm:$0xf]
        %v1513 = vld [vmem:[#allocation2 + $0x1050] sm:$0xf]
        %v1514 = vld [vmem:[#allocation2 + $0x1054] sm:$0xf]
        %v1515 = vld [vmem:[#allocation2 + $0x1058] sm:$0xf]
        %v1516 = vld [vmem:[#allocation2 + $0x105c] sm:$0xf]
        %v1517 = vld [vmem:[#allocation2 + $0x1060] sm:$0xf]
        %v1518 = vld [vmem:[#allocation2 + $0x1064] sm:$0xf]
        %v1519 = vld [vmem:[#allocation2 + $0x1068] sm:$0xf]
        %v1520 = vld [vmem:[#allocation2 + $0x106c] sm:$0xf]
        %v1521 = vld [vmem:[#allocation2 + $0x1070] sm:$0xf]
        %v1522 = vld [vmem:[#allocation2 + $0x1074] sm:$0xf]
        %v1523 = vld [vmem:[#allocation2 + $0x1078] sm:$0xf]
        %v1524 = vld [vmem:[#allocation2 + $0x107c] sm:$0xf]
        %v1525 = vld [vmem:[#allocation2 + $0x1080] sm:$0xf]
        %v1526 = vld [vmem:[#allocation2 + $0x1084] sm:$0xf]
        %v1527 = vld [vmem:[#allocation2 + $0x1088] sm:$0xf]
        %v1528 = vld [vmem:[#allocation2 + $0x108c] sm:$0xf]
        %v1529 = vld [vmem:[#allocation2 + $0x1090] sm:$0xf]
        %v1530 = vld [vmem:[#allocation2 + $0x1094] sm:$0xf]
        %v1531 = vld [vmem:[#allocation2 + $0x1098] sm:$0xf]
        %v1532 = vld [vmem:[#allocation2 + $0x109c] sm:$0xf]
        %v1533 = vld [vmem:[#allocation2 + $0x10a0] sm:$0xf]
        %v1534 = vld [vmem:[#allocation2 + $0x10a4] sm:$0xf]
        %v1535 = vld [vmem:[#allocation2 + $0x10a8] sm:$0xf]
        %v1536 = vld [vmem:[#allocation2 + $0x10ac] sm:$0xf]
        %v1537 = vld [vmem:[#allocation2 + $0x10b0] sm:$0xf]
        %v1538 = vld [vmem:[#allocation2 + $0x10b4] sm:$0xf]
        %v1539 = vld [vmem:[#allocation2 + $0x10b8] sm:$0xf]
        %v1540 = vld [vmem:[#allocation2 + $0x10bc] sm:$0xf]
        %v1541 = vld [vmem:[#allocation2 + $0x10c0] sm:$0xf]
        %v1542 = vld [vmem:[#allocation2 + $0x10c4] sm:$0xf]
        %v1543 = vld [vmem:[#allocation2 + $0x10c8] sm:$0xf]
        %v1544 = vld [vmem:[#allocation2 + $0x10cc] sm:$0xf]
        %v1545 = vld [vmem:[#allocation2 + $0x10d0] sm:$0xf]
        %v1546 = vld [vmem:[#allocation2 + $0x10d4] sm:$0xf]
        %v1547 = vld [vmem:[#allocation2 + $0x10d8] sm:$0xf]
        %v1548 = vld [vmem:[#allocation2 + $0x10dc] sm:$0xf]
        %v1549 = vld [vmem:[#allocation2 + $0x10e0] sm:$0xf]
        %v1550 = vld [vmem:[#allocation2 + $0x10e4] sm:$0xf]
        %v1551 = vld [vmem:[#allocation2 + $0x10e8] sm:$0xf]
        %v1552 = vld [vmem:[#allocation2 + $0x10ec] sm:$0xf]
        %v1553 = vld [vmem:[#allocation2 + $0x10f0] sm:$0xf]
        %v1554 = vld [vmem:[#allocation2 + $0x10f4] sm:$0xf]
        %v1555 = vld [vmem:[#allocation2 + $0x10f8] sm:$0xf]
        %v1556 = vld [vmem:[#allocation2 + $0x10fc] sm:$0xf]
        %v1557 = vld [vmem:[#allocation2 + $0x1100] sm:$0xf]
        %v1558 = vld [vmem:[#allocation2 + $0x1104] sm:$0xf]
        %v1559 = vld [vmem:[#allocation2 + $0x1108] sm:$0xf]
        %v1560 = vld [vmem:[#allocation2 + $0x110c] sm:$0xf]
        %v1561 = vld [vmem:[#allocation2 + $0x1110] sm:$0xf]
        %v1562 = vld [vmem:[#allocation2 + $0x1114] sm:$0xf]
        %v1563 = vld [vmem:[#allocation2 + $0x1118] sm:$0xf]
        %v1564 = vld [vmem:[#allocation2 + $0x111c] sm:$0xf]
        %v1565 = vld [vmem:[#allocation2 + $0x1120] sm:$0xf]
        %v1566 = vld [vmem:[#allocation2 + $0x1124] sm:$0xf]
        %v1567 = vld [vmem:[#allocation2 + $0x1128] sm:$0xf]
        %v1568 = vld [vmem:[#allocation2 + $0x112c] sm:$0xf]
        %v1569 = vld [vmem:[#allocation2 + $0x1130] sm:$0xf]
        %v1570 = vld [vmem:[#allocation2 + $0x1134] sm:$0xf]
        %v1571 = vld [vmem:[#allocation2 + $0x1138] sm:$0xf]
        %v1572 = vld [vmem:[#allocation2 + $0x113c] sm:$0xf]
        %v1573 = vld [vmem:[#allocation2 + $0x1140] sm:$0xf]
        %v1574 = vld [vmem:[#allocation2 + $0x1144] sm:$0xf]
        %v1575 = vld [vmem:[#allocation2 + $0x1148] sm:$0xf]
        %v1576 = vld [vmem:[#allocation2 + $0x114c] sm:$0xf]
        %v1577 = vld [vmem:[#allocation2 + $0x1150] sm:$0xf]
        %v1578 = vld [vmem:[#allocation2 + $0x1154] sm:$0xf]
        %v1579 = vld [vmem:[#allocation2 + $0x1158] sm:$0xf]
        %v1580 = vld [vmem:[#allocation2 + $0x115c] sm:$0xf]
        %v1581 = vld [vmem:[#allocation2 + $0x1160] sm:$0xf]
        %v1582 = vld [vmem:[#allocation2 + $0x1164] sm:$0xf]
        %v1583 = vld [vmem:[#allocation2 + $0x1168] sm:$0xf]
        %v1584 = vld [vmem:[#allocation2 + $0x116c] sm:$0xf]
        %v1585 = vld [vmem:[#allocation2 + $0x1170] sm:$0xf]
        %v1586 = vld [vmem:[#allocation2 + $0x1174] sm:$0xf]
        %v1587 = vld [vmem:[#allocation2 + $0x1178] sm:$0xf]
        %v1588 = vld [vmem:[#allocation2 + $0x117c] sm:$0xf]
        %v1589 = vld [vmem:[#allocation2 + $0x1180] sm:$0xf]
        %v1590 = vld [vmem:[#allocation2 + $0x1184] sm:$0xf]
        %v1591 = vld [vmem:[#allocation2 + $0x1188] sm:$0xf]
        %v1592 = vld [vmem:[#allocation2 + $0x118c] sm:$0xf]
        %v1593 = vld [vmem:[#allocation2 + $0x1190] sm:$0xf]
        %v1594 = vld [vmem:[#allocation2 + $0x1194] sm:$0xf]
        %v1595 = vld [vmem:[#allocation2 + $0x1198] sm:$0xf]
        %v1596 = vld [vmem:[#allocation2 + $0x119c] sm:$0xf]
        %v1597 = vld [vmem:[#allocation2 + $0x11a0] sm:$0xf]
        %v1598 = vld [vmem:[#allocation2 + $0x11a4] sm:$0xf]
        %v1599 = vld [vmem:[#allocation2 + $0x11a8] sm:$0xf]
        %v1600 = vld [vmem:[#allocation2 + $0x11ac] sm:$0xf]
        %v1601 = vld [vmem:[#allocation2 + $0x11b0] sm:$0xf]
        %v1602 = vld [vmem:[#allocation2 + $0x11b4] sm:$0xf]
        %v1603 = vld [vmem:[#allocation2 + $0x11b8] sm:$0xf]
        %v1604 = vld [vmem:[#allocation2 + $0x11bc] sm:$0xf]
        %v1605 = vld [vmem:[#allocation2 + $0x11c0] sm:$0xf]
        %v1606 = vld [vmem:[#allocation2 + $0x11c4] sm:$0xf]
        %v1607 = vld [vmem:[#allocation2 + $0x11c8] sm:$0xf]
        %v1608 = vld [vmem:[#allocation2 + $0x11cc] sm:$0xf]
        %v1609 = vld [vmem:[#allocation2 + $0x11d0] sm:$0xf]
        %v1610 = vld [vmem:[#allocation2 + $0x11d4] sm:$0xf]
        %v1611 = vld [vmem:[#allocation2 + $0x11d8] sm:$0xf]
        %v1612 = vld [vmem:[#allocation2 + $0x11dc] sm:$0xf]
        %v1613 = vld [vmem:[#allocation2 + $0x11e0] sm:$0xf]
        %v1614 = vld [vmem:[#allocation2 + $0x11e4] sm:$0xf]
        %v1615 = vld [vmem:[#allocation2 + $0x11e8] sm:$0xf]
        %v1616 = vld [vmem:[#allocation2 + $0x11ec] sm:$0xf]
        %v1617 = vld [vmem:[#allocation2 + $0x11f0] sm:$0xf]
        %v1618 = vld [vmem:[#allocation2 + $0x11f4] sm:$0xf]
        %v1619 = vld [vmem:[#allocation2 + $0x11f8] sm:$0xf]
        %v1620 = vld [vmem:[#allocation2 + $0x11fc] sm:$0xf]
        %v1621 = vld [vmem:[#allocation2 + $0x1200] sm:$0xf]
        %v1622 = vld [vmem:[#allocation2 + $0x1204] sm:$0xf]
        %v1623 = vld [vmem:[#allocation2 + $0x1208] sm:$0xf]
        %v1624 = vld [vmem:[#allocation2 + $0x120c] sm:$0xf]
        %v1625 = vld [vmem:[#allocation2 + $0x1210] sm:$0xf]
        %v1626 = vld [vmem:[#allocation2 + $0x1214] sm:$0xf]
        %v1627 = vld [vmem:[#allocation2 + $0x1218] sm:$0xf]
        %v1628 = vld [vmem:[#allocation2 + $0x121c] sm:$0xf]
        %v1629 = vld [vmem:[#allocation2 + $0x1220] sm:$0xf]
        %v1630 = vld [vmem:[#allocation2 + $0x1224] sm:$0xf]
        %v1631 = vld [vmem:[#allocation2 + $0x1228] sm:$0xf]
        %v1632 = vld [vmem:[#allocation2 + $0x122c] sm:$0xf]
        %v1633 = vld [vmem:[#allocation2 + $0x1230] sm:$0xf]
        %v1634 = vld [vmem:[#allocation2 + $0x1234] sm:$0xf]
        %v1635 = vld [vmem:[#allocation2 + $0x1238] sm:$0xf]
        %v1636 = vld [vmem:[#allocation2 + $0x123c] sm:$0xf]
        %v1637 = vld [vmem:[#allocation2 + $0x1240] sm:$0xf]
        %v1638 = vld [vmem:[#allocation2 + $0x1244] sm:$0xf]
        %v1639 = vld [vmem:[#allocation2 + $0x1248] sm:$0xf]
        %v1640 = vld [vmem:[#allocation2 + $0x124c] sm:$0xf]
        %v1641 = vld [vmem:[#allocation2 + $0x1250] sm:$0xf]
        %v1642 = vld [vmem:[#allocation2 + $0x1254] sm:$0xf]
        %v1643 = vld [vmem:[#allocation2 + $0x1258] sm:$0xf]
        %v1644 = vld [vmem:[#allocation2 + $0x125c] sm:$0xf]
        %v1645 = vld [vmem:[#allocation2 + $0x1260] sm:$0xf]
        %v1646 = vld [vmem:[#allocation2 + $0x1264] sm:$0xf]
        %v1647 = vld [vmem:[#allocation2 + $0x1268] sm:$0xf]
        %v1648 = vld [vmem:[#allocation2 + $0x126c] sm:$0xf]
        %v1649 = vld [vmem:[#allocation2 + $0x1270] sm:$0xf]
        %v1650 = vld [vmem:[#allocation2 + $0x1274] sm:$0xf]
        %v1651 = vld [vmem:[#allocation2 + $0x1278] sm:$0xf]
        %v1652 = vld [vmem:[#allocation2 + $0x127c] sm:$0xf]
        %v1653 = vld [vmem:[#allocation2 + $0x1280] sm:$0xf]
        %v1654 = vld [vmem:[#allocation2 + $0x1284] sm:$0xf]
        %v1655 = vld [vmem:[#allocation2 + $0x1288] sm:$0xf]
        %v1656 = vld [vmem:[#allocation2 + $0x128c] sm:$0xf]
        %v1657 = vld [vmem:[#allocation2 + $0x1290] sm:$0xf]
        %v1658 = vld [vmem:[#allocation2 + $0x1294] sm:$0xf]
        %v1659 = vld [vmem:[#allocation2 + $0x1298] sm:$0xf]
        %v1660 = vld [vmem:[#allocation2 + $0x129c] sm:$0xf]
        %v1661 = vld [vmem:[#allocation2 + $0x12a0] sm:$0xf]
        %v1662 = vld [vmem:[#allocation2 + $0x12a4] sm:$0xf]
        %v1663 = vld [vmem:[#allocation2 + $0x12a8] sm:$0xf]
        %v1664 = vld [vmem:[#allocation2 + $0x12ac] sm:$0xf]
        %v1665 = vld [vmem:[#allocation2 + $0x12b0] sm:$0xf]
        %v1666 = vld [vmem:[#allocation2 + $0x12b4] sm:$0xf]
        %v1667 = vld [vmem:[#allocation2 + $0x12b8] sm:$0xf]
        %v1668 = vld [vmem:[#allocation2 + $0x12bc] sm:$0xf]
        %v1669 = vld [vmem:[#allocation2 + $0x12c0] sm:$0xf]
        %v1670 = vld [vmem:[#allocation2 + $0x12c4] sm:$0xf]
        %v1671 = vld [vmem:[#allocation2 + $0x12c8] sm:$0xf]
        %v1672 = vld [vmem:[#allocation2 + $0x12cc] sm:$0xf]
        %v1673 = vld [vmem:[#allocation2 + $0x12d0] sm:$0xf]
        %v1674 = vld [vmem:[#allocation2 + $0x12d4] sm:$0xf]
        %v1675 = vld [vmem:[#allocation2 + $0x12d8] sm:$0xf]
        %v1676 = vld [vmem:[#allocation2 + $0x12dc] sm:$0xf]
        %v1677 = vld [vmem:[#allocation2 + $0x12e0] sm:$0xf]
        %v1678 = vld [vmem:[#allocation2 + $0x12e4] sm:$0xf]
        %v1679 = vld [vmem:[#allocation2 + $0x12e8] sm:$0xf]
        %v1680 = vld [vmem:[#allocation2 + $0x12ec] sm:$0xf]
        %v1681 = vld [vmem:[#allocation2 + $0x12f0] sm:$0xf]
        %v1682 = vld [vmem:[#allocation2 + $0x12f4] sm:$0xf]
        %v1683 = vld [vmem:[#allocation2 + $0x12f8] sm:$0xf]
        %v1684 = vld [vmem:[#allocation2 + $0x12fc] sm:$0xf]
        %v1685 = vld [vmem:[#allocation2 + $0x1300] sm:$0xf]
        %v1686 = vld [vmem:[#allocation2 + $0x1304] sm:$0xf]
        %v1687 = vld [vmem:[#allocation2 + $0x1308] sm:$0xf]
        %v1688 = vld [vmem:[#allocation2 + $0x130c] sm:$0xf]
        %v1689 = vld [vmem:[#allocation2 + $0x1310] sm:$0xf]
        %v1690 = vld [vmem:[#allocation2 + $0x1314] sm:$0xf]
        %v1691 = vld [vmem:[#allocation2 + $0x1318] sm:$0xf]
        %v1692 = vld [vmem:[#allocation2 + $0x131c] sm:$0xf]
        %v1693 = vld [vmem:[#allocation2 + $0x1320] sm:$0xf]
        %v1694 = vld [vmem:[#allocation2 + $0x1324] sm:$0xf]
        %v1695 = vld [vmem:[#allocation2 + $0x1328] sm:$0xf]
        %v1696 = vld [vmem:[#allocation2 + $0x132c] sm:$0xf]
        %v1697 = vld [vmem:[#allocation2 + $0x1330] sm:$0xf]
        %v1698 = vld [vmem:[#allocation2 + $0x1334] sm:$0xf]
        %v1699 = vld [vmem:[#allocation2 + $0x1338] sm:$0xf]
        %v1700 = vld [vmem:[#allocation2 + $0x133c] sm:$0xf]
        %v1701 = vld [vmem:[#allocation2 + $0x1340] sm:$0xf]
        %v1702 = vld [vmem:[#allocation2 + $0x1344] sm:$0xf]
        %v1703 = vld [vmem:[#allocation2 + $0x1348] sm:$0xf]
        %v1704 = vld [vmem:[#allocation2 + $0x134c] sm:$0xf]
        %v1705 = vld [vmem:[#allocation2 + $0x1350] sm:$0xf]
        %v1706 = vld [vmem:[#allocation2 + $0x1354] sm:$0xf]
        %v1707 = vld [vmem:[#allocation2 + $0x1358] sm:$0xf]
        %v1708 = vld [vmem:[#allocation2 + $0x135c] sm:$0xf]
        %v1709 = vld [vmem:[#allocation2 + $0x1360] sm:$0xf]
        %v1710 = vld [vmem:[#allocation2 + $0x1364] sm:$0xf]
        %v1711 = vld [vmem:[#allocation2 + $0x1368] sm:$0xf]
        %v1712 = vld [vmem:[#allocation2 + $0x136c] sm:$0xf]
        %v1713 = vld [vmem:[#allocation2 + $0x1370] sm:$0xf]
        %v1714 = vld [vmem:[#allocation2 + $0x1374] sm:$0xf]
        %v1715 = vld [vmem:[#allocation2 + $0x1378] sm:$0xf]
        %v1716 = vld [vmem:[#allocation2 + $0x137c] sm:$0xf]
        %v1717 = vld [vmem:[#allocation2 + $0x1380] sm:$0xf]
        %v1718 = vld [vmem:[#allocation2 + $0x1384] sm:$0xf]
        %v1719 = vld [vmem:[#allocation2 + $0x1388] sm:$0xf]
        %v1720 = vld [vmem:[#allocation2 + $0x138c] sm:$0xf]
        %v1721 = vld [vmem:[#allocation2 + $0x1390] sm:$0xf]
        %v1722 = vld [vmem:[#allocation2 + $0x1394] sm:$0xf]
        %v1723 = vld [vmem:[#allocation2 + $0x1398] sm:$0xf]
        %v1724 = vld [vmem:[#allocation2 + $0x139c] sm:$0xf]
        %v1725 = vld [vmem:[#allocation2 + $0x13a0] sm:$0xf]
        %v1726 = vld [vmem:[#allocation2 + $0x13a4] sm:$0xf]
        %v1727 = vld [vmem:[#allocation2 + $0x13a8] sm:$0xf]
        %v1728 = vld [vmem:[#allocation2 + $0x13ac] sm:$0xf]
        %v1729 = vld [vmem:[#allocation2 + $0x13b0] sm:$0xf]
        %v1730 = vld [vmem:[#allocation2 + $0x13b4] sm:$0xf]
        %v1731 = vld [vmem:[#allocation2 + $0x13b8] sm:$0xf]
        %v1732 = vld [vmem:[#allocation2 + $0x13bc] sm:$0xf]
        %v1733 = vld [vmem:[#allocation2 + $0x13c0] sm:$0xf]
        %v1734 = vld [vmem:[#allocation2 + $0x13c4] sm:$0xf]
        %v1735 = vld [vmem:[#allocation2 + $0x13c8] sm:$0xf]
        %v1736 = vld [vmem:[#allocation2 + $0x13cc] sm:$0xf]
        %v1737 = vld [vmem:[#allocation2 + $0x13d0] sm:$0xf]
        %v1738 = vld [vmem:[#allocation2 + $0x13d4] sm:$0xf]
        %v1739 = vld [vmem:[#allocation2 + $0x13d8] sm:$0xf]
        %v1740 = vld [vmem:[#allocation2 + $0x13dc] sm:$0xf]
        %v1741 = vld [vmem:[#allocation2 + $0x13e0] sm:$0xf]
        %v1742 = vld [vmem:[#allocation2 + $0x13e4] sm:$0xf]
        %v1743 = vld [vmem:[#allocation2 + $0x13e8] sm:$0xf]
        %v1744 = vld [vmem:[#allocation2 + $0x13ec] sm:$0xf]
        %v1745 = vld [vmem:[#allocation2 + $0x13f0] sm:$0xf]
        %v1746 = vld [vmem:[#allocation2 + $0x13f4] sm:$0xf]
        %v1747 = vld [vmem:[#allocation2 + $0x13f8] sm:$0xf]
        %v1748 = vld [vmem:[#allocation2 + $0x13fc] sm:$0xf]
        %v1749 = vld [vmem:[#allocation4] sm:$0xff]
        %v3030 = vunpack.c.l.b16 %v469
        %v3031 = vunpack.c.l.b16 %v470
        %v3032 = vunpack.c.l.b16 %v471
        %v3033 = vunpack.c.l.b16 %v472
        %v3034 = vunpack.c.l.b16 %v473
        %v3035 = vunpack.c.l.b16 %v474
        %v3036 = vunpack.c.l.b16 %v475
        %v3037 = vunpack.c.l.b16 %v476
        %v3038 = vunpack.c.l.b16 %v477
        %v3039 = vunpack.c.l.b16 %v478
        %v3040 = vunpack.c.l.b16 %v479
        %v3041 = vunpack.c.l.b16 %v480
        %v3042 = vunpack.c.l.b16 %v481
        %v3043 = vunpack.c.l.b16 %v482
        %v3044 = vunpack.c.l.b16 %v483
        %v3045 = vunpack.c.l.b16 %v484
        %v3046 = vunpack.c.l.b16 %v485
        %v3047 = vunpack.c.l.b16 %v486
        %v3048 = vunpack.c.l.b16 %v487
        %v3049 = vunpack.c.l.b16 %v488
        %v3050 = vunpack.c.l.b16 %v489
        %v3051 = vunpack.c.l.b16 %v490
        %v3052 = vunpack.c.l.b16 %v491
        %v3053 = vunpack.c.l.b16 %v492
        %v3054 = vunpack.c.l.b16 %v493
        %v3055 = vunpack.c.l.b16 %v494
        %v3056 = vunpack.c.l.b16 %v495
        %v3057 = vunpack.c.l.b16 %v496
        %v3058 = vunpack.c.l.b16 %v497
        %v3059 = vunpack.c.l.b16 %v498
        %v3060 = vunpack.c.l.b16 %v499
        %v3061 = vunpack.c.l.b16 %v500
        %v3062 = vunpack.c.l.b16 %v501
        %v3063 = vunpack.c.l.b16 %v502
        %v3064 = vunpack.c.l.b16 %v503
        %v3065 = vunpack.c.l.b16 %v504
        %v3066 = vunpack.c.l.b16 %v505
        %v3067 = vunpack.c.l.b16 %v506
        %v3068 = vunpack.c.l.b16 %v507
        %v3069 = vunpack.c.l.b16 %v508
        %v3070 = vunpack.c.l.b16 %v509
        %v3071 = vunpack.c.l.b16 %v510
        %v3072 = vunpack.c.l.b16 %v511
        %v3073 = vunpack.c.l.b16 %v512
        %v3074 = vunpack.c.l.b16 %v513
        %v3075 = vunpack.c.l.b16 %v514
        %v3076 = vunpack.c.l.b16 %v515
        %v3077 = vunpack.c.l.b16 %v516
        %v3078 = vunpack.c.l.b16 %v517
        %v3079 = vunpack.c.l.b16 %v518
        %v3080 = vunpack.c.l.b16 %v519
        %v3081 = vunpack.c.l.b16 %v520
        %v3082 = vunpack.c.l.b16 %v521
        %v3083 = vunpack.c.l.b16 %v522
        %v3084 = vunpack.c.l.b16 %v523
        %v3085 = vunpack.c.l.b16 %v524
        %v3086 = vunpack.c.l.b16 %v525
        %v3087 = vunpack.c.l.b16 %v526
        %v3088 = vunpack.c.l.b16 %v527
        %v3089 = vunpack.c.l.b16 %v528
        %v3090 = vunpack.c.l.b16 %v529
        %v3091 = vunpack.c.l.b16 %v530
        %v3092 = vunpack.c.l.b16 %v531
        %v3093 = vunpack.c.l.b16 %v532
        %v3094 = vunpack.c.l.b16 %v533
        %v3095 = vunpack.c.l.b16 %v534
        %v3096 = vunpack.c.l.b16 %v535
        %v3097 = vunpack.c.l.b16 %v536
        %v3098 = vunpack.c.l.b16 %v537
        %v3099 = vunpack.c.l.b16 %v538
        %v3100 = vunpack.c.l.b16 %v539
        %v3101 = vunpack.c.l.b16 %v540
        %v3102 = vunpack.c.l.b16 %v541
        %v3103 = vunpack.c.l.b16 %v542
        %v3104 = vunpack.c.l.b16 %v543
        %v3105 = vunpack.c.l.b16 %v544
        %v3106 = vunpack.c.l.b16 %v545
        %v3107 = vunpack.c.l.b16 %v546
        %v3108 = vunpack.c.l.b16 %v547
        %v3109 = vunpack.c.l.b16 %v548
        %v3110 = vunpack.c.l.b16 %v549
        %v3111 = vunpack.c.l.b16 %v550
        %v3112 = vunpack.c.l.b16 %v551
        %v3113 = vunpack.c.l.b16 %v552
        %v3114 = vunpack.c.l.b16 %v553
        %v3115 = vunpack.c.l.b16 %v554
        %v3116 = vunpack.c.l.b16 %v555
        %v3117 = vunpack.c.l.b16 %v556
        %v3118 = vunpack.c.l.b16 %v557
        %v3119 = vunpack.c.l.b16 %v558
        %v3120 = vunpack.c.l.b16 %v559
        %v3121 = vunpack.c.l.b16 %v560
        %v3122 = vunpack.c.l.b16 %v561
        %v3123 = vunpack.c.l.b16 %v562
        %v3124 = vunpack.c.l.b16 %v563
        %v3125 = vunpack.c.l.b16 %v564
        %v3126 = vunpack.c.l.b16 %v565
        %v3127 = vunpack.c.l.b16 %v566
        %v3128 = vunpack.c.l.b16 %v567
        %v3129 = vunpack.c.l.b16 %v568
        %v3130 = vunpack.c.l.b16 %v569
        %v3131 = vunpack.c.l.b16 %v570
        %v3132 = vunpack.c.l.b16 %v571
        %v3133 = vunpack.c.l.b16 %v572
        %v3134 = vunpack.c.l.b16 %v573
        %v3135 = vunpack.c.l.b16 %v574
        %v3136 = vunpack.c.l.b16 %v575
        %v3137 = vunpack.c.l.b16 %v576
        %v3138 = vunpack.c.l.b16 %v577
        %v3139 = vunpack.c.l.b16 %v578
        %v3140 = vunpack.c.l.b16 %v579
        %v3141 = vunpack.c.l.b16 %v580
        %v3142 = vunpack.c.l.b16 %v581
        %v3143 = vunpack.c.l.b16 %v582
        %v3144 = vunpack.c.l.b16 %v583
        %v3145 = vunpack.c.l.b16 %v584
        %v3146 = vunpack.c.l.b16 %v585
        %v3147 = vunpack.c.l.b16 %v586
        %v3148 = vunpack.c.l.b16 %v587
        %v3149 = vunpack.c.l.b16 %v588
        %v3150 = vunpack.c.l.b16 %v589
        %v3151 = vunpack.c.l.b16 %v590
        %v3152 = vunpack.c.l.b16 %v591
        %v3153 = vunpack.c.l.b16 %v592
        %v3154 = vunpack.c.l.b16 %v593
        %v3155 = vunpack.c.l.b16 %v594
        %v3156 = vunpack.c.l.b16 %v595
        %v3157 = vunpack.c.l.b16 %v596
        %v3158 = vunpack.c.l.b16 %v597
        %v3159 = vunpack.c.l.b16 %v598
        %v3160 = vunpack.c.l.b16 %v599
        %v3161 = vunpack.c.l.b16 %v600
        %v3162 = vunpack.c.l.b16 %v601
        %v3163 = vunpack.c.l.b16 %v602
        %v3164 = vunpack.c.l.b16 %v603
        %v3165 = vunpack.c.l.b16 %v604
        %v3166 = vunpack.c.l.b16 %v605
        %v3167 = vunpack.c.l.b16 %v606
        %v3168 = vunpack.c.l.b16 %v607
        %v3169 = vunpack.c.l.b16 %v608
        %v3170 = vunpack.c.l.b16 %v609
        %v3171 = vunpack.c.l.b16 %v610
        %v3172 = vunpack.c.l.b16 %v611
        %v3173 = vunpack.c.l.b16 %v612
        %v3174 = vunpack.c.l.b16 %v613
        %v3175 = vunpack.c.l.b16 %v614
        %v3176 = vunpack.c.l.b16 %v615
        %v3177 = vunpack.c.l.b16 %v616
        %v3178 = vunpack.c.l.b16 %v617
        %v3179 = vunpack.c.l.b16 %v618
        %v3180 = vunpack.c.l.b16 %v619
        %v3181 = vunpack.c.l.b16 %v620
        %v3182 = vunpack.c.l.b16 %v621
        %v3183 = vunpack.c.l.b16 %v622
        %v3184 = vunpack.c.l.b16 %v623
        %v3185 = vunpack.c.l.b16 %v624
        %v3186 = vunpack.c.l.b16 %v625
        %v3187 = vunpack.c.l.b16 %v626
        %v3188 = vunpack.c.l.b16 %v627
        %v3189 = vunpack.c.l.b16 %v628
        %v3190 = vunpack.c.l.b16 %v629
        %v3191 = vunpack.c.l.b16 %v630
        %v3192 = vunpack.c.l.b16 %v631
        %v3193 = vunpack.c.l.b16 %v632
        %v3194 = vunpack.c.l.b16 %v633
        %v3195 = vunpack.c.l.b16 %v634
        %v3196 = vunpack.c.l.b16 %v635
        %v3197 = vunpack.c.l.b16 %v636
        %v3198 = vunpack.c.l.b16 %v637
        %v3199 = vunpack.c.l.b16 %v638
        %v3200 = vunpack.c.l.b16 %v639
        %v3201 = vunpack.c.l.b16 %v640
        %v3202 = vunpack.c.l.b16 %v641
        %v3203 = vunpack.c.l.b16 %v642
        %v3204 = vunpack.c.l.b16 %v643
        %v3205 = vunpack.c.l.b16 %v644
        %v3206 = vunpack.c.l.b16 %v645
        %v3207 = vunpack.c.l.b16 %v646
        %v3208 = vunpack.c.l.b16 %v647
        %v3209 = vunpack.c.l.b16 %v648
        %v3210 = vunpack.c.l.b16 %v649
        %v3211 = vunpack.c.l.b16 %v650
        %v3212 = vunpack.c.l.b16 %v651
        %v3213 = vunpack.c.l.b16 %v652
        %v3214 = vunpack.c.l.b16 %v653
        %v3215 = vunpack.c.l.b16 %v654
        %v3216 = vunpack.c.l.b16 %v655
        %v3217 = vunpack.c.l.b16 %v656
        %v3218 = vunpack.c.l.b16 %v657
        %v3219 = vunpack.c.l.b16 %v658
        %v3220 = vunpack.c.l.b16 %v659
        %v3221 = vunpack.c.l.b16 %v660
        %v3222 = vunpack.c.l.b16 %v661
        %v3223 = vunpack.c.l.b16 %v662
        %v3224 = vunpack.c.l.b16 %v663
        %v3225 = vunpack.c.l.b16 %v664
        %v3226 = vunpack.c.l.b16 %v665
        %v3227 = vunpack.c.l.b16 %v666
        %v3228 = vunpack.c.l.b16 %v667
        %v3229 = vunpack.c.l.b16 %v668
        %v3230 = vunpack.c.l.b16 %v669
        %v3231 = vunpack.c.l.b16 %v670
        %v3232 = vunpack.c.l.b16 %v671
        %v3233 = vunpack.c.l.b16 %v672
        %v3234 = vunpack.c.l.b16 %v673
        %v3235 = vunpack.c.l.b16 %v674
        %v3236 = vunpack.c.l.b16 %v675
        %v3237 = vunpack.c.l.b16 %v676
        %v3238 = vunpack.c.l.b16 %v677
        %v3239 = vunpack.c.l.b16 %v678
        %v3240 = vunpack.c.l.b16 %v679
        %v3241 = vunpack.c.l.b16 %v680
        %v3242 = vunpack.c.l.b16 %v681
        %v3243 = vunpack.c.l.b16 %v682
        %v3244 = vunpack.c.l.b16 %v683
        %v3245 = vunpack.c.l.b16 %v684
        %v3246 = vunpack.c.l.b16 %v685
        %v3247 = vunpack.c.l.b16 %v686
        %v3248 = vunpack.c.l.b16 %v687
        %v3249 = vunpack.c.l.b16 %v688
        %v3250 = vunpack.c.l.b16 %v689
        %v3251 = vunpack.c.l.b16 %v690
        %v3252 = vunpack.c.l.b16 %v691
        %v3253 = vunpack.c.l.b16 %v692
        %v3254 = vunpack.c.l.b16 %v693
        %v3255 = vunpack.c.l.b16 %v694
        %v3256 = vunpack.c.l.b16 %v695
        %v3257 = vunpack.c.l.b16 %v696
        %v3258 = vunpack.c.l.b16 %v697
        %v3259 = vunpack.c.l.b16 %v698
        %v3260 = vunpack.c.l.b16 %v699
        %v3261 = vunpack.c.l.b16 %v700
        %v3262 = vunpack.c.l.b16 %v701
        %v3263 = vunpack.c.l.b16 %v702
        %v3264 = vunpack.c.l.b16 %v703
        %v3265 = vunpack.c.l.b16 %v704
        %v3266 = vunpack.c.l.b16 %v705
        %v3267 = vunpack.c.l.b16 %v706
        %v3268 = vunpack.c.l.b16 %v707
        %v3269 = vunpack.c.l.b16 %v708
        %v3270 = vunpack.c.l.b16 %v709
        %v3271 = vunpack.c.l.b16 %v710
        %v3272 = vunpack.c.l.b16 %v711
        %v3273 = vunpack.c.l.b16 %v712
        %v3274 = vunpack.c.l.b16 %v713
        %v3275 = vunpack.c.l.b16 %v714
        %v3276 = vunpack.c.l.b16 %v715
        %v3277 = vunpack.c.l.b16 %v716
        %v3278 = vunpack.c.l.b16 %v717
        %v3279 = vunpack.c.l.b16 %v718
        %v3280 = vunpack.c.l.b16 %v719
        %v3281 = vunpack.c.l.b16 %v720
        %v3282 = vunpack.c.l.b16 %v721
        %v3283 = vunpack.c.l.b16 %v722
        %v3284 = vunpack.c.l.b16 %v723
        %v3285 = vunpack.c.l.b16 %v724
        %v3286 = vunpack.c.l.b16 %v725
        %v3287 = vunpack.c.l.b16 %v726
        %v3288 = vunpack.c.l.b16 %v727
        %v3289 = vunpack.c.l.b16 %v728
        %v3290 = vunpack.c.l.b16 %v729
        %v3291 = vunpack.c.l.b16 %v730
        %v3292 = vunpack.c.l.b16 %v731
        %v3293 = vunpack.c.l.b16 %v732
        %v3294 = vunpack.c.l.b16 %v733
        %v3295 = vunpack.c.l.b16 %v734
        %v3296 = vunpack.c.l.b16 %v735
        %v3297 = vunpack.c.l.b16 %v736
        %v3298 = vunpack.c.l.b16 %v737
        %v3299 = vunpack.c.l.b16 %v738
        %v3300 = vunpack.c.l.b16 %v739
        %v3301 = vunpack.c.l.b16 %v740
        %v3302 = vunpack.c.l.b16 %v741
        %v3303 = vunpack.c.l.b16 %v742
        %v3304 = vunpack.c.l.b16 %v743
        %v3305 = vunpack.c.l.b16 %v744
        %v3306 = vunpack.c.l.b16 %v745
        %v3307 = vunpack.c.l.b16 %v746
        %v3308 = vunpack.c.l.b16 %v747
        %v3309 = vunpack.c.l.b16 %v748
        %v3310 = vunpack.c.l.b16 %v749
        %v3311 = vunpack.c.l.b16 %v750
        %v3312 = vunpack.c.l.b16 %v751
        %v3313 = vunpack.c.l.b16 %v752
        %v3314 = vunpack.c.l.b16 %v753
        %v3315 = vunpack.c.l.b16 %v754
        %v3316 = vunpack.c.l.b16 %v755
        %v3317 = vunpack.c.l.b16 %v756
        %v3318 = vunpack.c.l.b16 %v757
        %v3319 = vunpack.c.l.b16 %v758
        %v3320 = vunpack.c.l.b16 %v759
        %v3321 = vunpack.c.l.b16 %v760
        %v3322 = vunpack.c.l.b16 %v761
        %v3323 = vunpack.c.l.b16 %v762
        %v3324 = vunpack.c.l.b16 %v763
        %v3325 = vunpack.c.l.b16 %v764
        %v3326 = vunpack.c.l.b16 %v765
        %v3327 = vunpack.c.l.b16 %v766
        %v3328 = vunpack.c.l.b16 %v767
        %v3329 = vunpack.c.l.b16 %v768
        %v3330 = vunpack.c.l.b16 %v769
        %v3331 = vunpack.c.l.b16 %v770
        %v3332 = vunpack.c.l.b16 %v771
        %v3333 = vunpack.c.l.b16 %v772
        %v3334 = vunpack.c.l.b16 %v773
        %v3335 = vunpack.c.l.b16 %v774
        %v3336 = vunpack.c.l.b16 %v775
        %v3337 = vunpack.c.l.b16 %v776
        %v3338 = vunpack.c.l.b16 %v777
        %v3339 = vunpack.c.l.b16 %v778
        %v3340 = vunpack.c.l.b16 %v779
        %v3341 = vunpack.c.l.b16 %v780
        %v3342 = vunpack.c.l.b16 %v781
        %v3343 = vunpack.c.l.b16 %v782
        %v3344 = vunpack.c.l.b16 %v783
        %v3345 = vunpack.c.l.b16 %v784
        %v3346 = vunpack.c.l.b16 %v785
        %v3347 = vunpack.c.l.b16 %v786
        %v3348 = vunpack.c.l.b16 %v787
        %v3349 = vunpack.c.l.b16 %v788
        %v3350 = vunpack.c.l.b16 %v789
        %v3351 = vunpack.c.l.b16 %v790
        %v3352 = vunpack.c.l.b16 %v791
        %v3353 = vunpack.c.l.b16 %v792
        %v3354 = vunpack.c.l.b16 %v793
        %v3355 = vunpack.c.l.b16 %v794
        %v3356 = vunpack.c.l.b16 %v795
        %v3357 = vunpack.c.l.b16 %v796
        %v3358 = vunpack.c.l.b16 %v797
        %v3359 = vunpack.c.l.b16 %v798
        %v3360 = vunpack.c.l.b16 %v799
        %v3361 = vunpack.c.l.b16 %v800
        %v3362 = vunpack.c.l.b16 %v801
        %v3363 = vunpack.c.l.b16 %v802
        %v3364 = vunpack.c.l.b16 %v803
        %v3365 = vunpack.c.l.b16 %v804
        %v3366 = vunpack.c.l.b16 %v805
        %v3367 = vunpack.c.l.b16 %v806
        %v3368 = vunpack.c.l.b16 %v807
        %v3369 = vunpack.c.l.b16 %v808
        %v3370 = vunpack.c.l.b16 %v809
        %v3371 = vunpack.c.l.b16 %v810
        %v3372 = vunpack.c.l.b16 %v811
        %v3373 = vunpack.c.l.b16 %v812
        %v3374 = vunpack.c.l.b16 %v813
        %v3375 = vunpack.c.l.b16 %v814
        %v3376 = vunpack.c.l.b16 %v815
        %v3377 = vunpack.c.l.b16 %v816
        %v3378 = vunpack.c.l.b16 %v817
        %v3379 = vunpack.c.l.b16 %v818
        %v3380 = vunpack.c.l.b16 %v819
        %v3381 = vunpack.c.l.b16 %v820
        %v3382 = vunpack.c.l.b16 %v821
        %v3383 = vunpack.c.l.b16 %v822
        %v3384 = vunpack.c.l.b16 %v823
        %v3385 = vunpack.c.l.b16 %v824
        %v3386 = vunpack.c.l.b16 %v825
        %v3387 = vunpack.c.l.b16 %v826
        %v3388 = vunpack.c.l.b16 %v827
        %v3389 = vunpack.c.l.b16 %v828
        %v3390 = vunpack.c.l.b16 %v829
        %v3391 = vunpack.c.l.b16 %v830
        %v3392 = vunpack.c.l.b16 %v831
        %v3393 = vunpack.c.l.b16 %v832
        %v3394 = vunpack.c.l.b16 %v833
        %v3395 = vunpack.c.l.b16 %v834
        %v3396 = vunpack.c.l.b16 %v835
        %v3397 = vunpack.c.l.b16 %v836
        %v3398 = vunpack.c.l.b16 %v837
        %v3399 = vunpack.c.l.b16 %v838
        %v3400 = vunpack.c.l.b16 %v839
        %v3401 = vunpack.c.l.b16 %v840
        %v3402 = vunpack.c.l.b16 %v841
        %v3403 = vunpack.c.l.b16 %v842
        %v3404 = vunpack.c.l.b16 %v843
        %v3405 = vunpack.c.l.b16 %v844
        %v3406 = vunpack.c.l.b16 %v845
        %v3407 = vunpack.c.l.b16 %v846
        %v3408 = vunpack.c.l.b16 %v847
        %v3409 = vunpack.c.l.b16 %v848
        %v3410 = vunpack.c.l.b16 %v849
        %v3411 = vunpack.c.l.b16 %v850
        %v3412 = vunpack.c.l.b16 %v851
        %v3413 = vunpack.c.l.b16 %v852
        %v3414 = vunpack.c.l.b16 %v853
        %v3415 = vunpack.c.l.b16 %v854
        %v3416 = vunpack.c.l.b16 %v855
        %v3417 = vunpack.c.l.b16 %v856
        %v3418 = vunpack.c.l.b16 %v857
        %v3419 = vunpack.c.l.b16 %v858
        %v3420 = vunpack.c.l.b16 %v859
        %v3421 = vunpack.c.l.b16 %v860
        %v3422 = vunpack.c.l.b16 %v861
        %v3423 = vunpack.c.l.b16 %v862
        %v3424 = vunpack.c.l.b16 %v863
        %v3425 = vunpack.c.l.b16 %v864
        %v3426 = vunpack.c.l.b16 %v865
        %v3427 = vunpack.c.l.b16 %v866
        %v3428 = vunpack.c.l.b16 %v867
        %v3429 = vunpack.c.l.b16 %v868
        %v3430 = vunpack.c.l.b16 %v869
        %v3431 = vunpack.c.l.b16 %v870
        %v3432 = vunpack.c.l.b16 %v871
        %v3433 = vunpack.c.l.b16 %v872
        %v3434 = vunpack.c.l.b16 %v873
        %v3435 = vunpack.c.l.b16 %v874
        %v3436 = vunpack.c.l.b16 %v875
        %v3437 = vunpack.c.l.b16 %v876
        %v3438 = vunpack.c.l.b16 %v877
        %v3439 = vunpack.c.l.b16 %v878
        %v3440 = vunpack.c.l.b16 %v879
        %v3441 = vunpack.c.l.b16 %v880
        %v3442 = vunpack.c.l.b16 %v881
        %v3443 = vunpack.c.l.b16 %v882
        %v3444 = vunpack.c.l.b16 %v883
        %v3445 = vunpack.c.l.b16 %v884
        %v3446 = vunpack.c.l.b16 %v885
        %v3447 = vunpack.c.l.b16 %v886
        %v3448 = vunpack.c.l.b16 %v887
        %v3449 = vunpack.c.l.b16 %v888
        %v3450 = vunpack.c.l.b16 %v889
        %v3451 = vunpack.c.l.b16 %v890
        %v3452 = vunpack.c.l.b16 %v891
        %v3453 = vunpack.c.l.b16 %v892
        %v3454 = vunpack.c.l.b16 %v893
        %v3455 = vunpack.c.l.b16 %v894
        %v3456 = vunpack.c.l.b16 %v895
        %v3457 = vunpack.c.l.b16 %v896
        %v3458 = vunpack.c.l.b16 %v897
        %v3459 = vunpack.c.l.b16 %v898
        %v3460 = vunpack.c.l.b16 %v899
        %v3461 = vunpack.c.l.b16 %v900
        %v3462 = vunpack.c.l.b16 %v901
        %v3463 = vunpack.c.l.b16 %v902
        %v3464 = vunpack.c.l.b16 %v903
        %v3465 = vunpack.c.l.b16 %v904
        %v3466 = vunpack.c.l.b16 %v905
        %v3467 = vunpack.c.l.b16 %v906
        %v3468 = vunpack.c.l.b16 %v907
        %v3469 = vunpack.c.l.b16 %v908
        %v3470 = vunpack.c.l.b16 %v909
        %v3471 = vunpack.c.l.b16 %v910
        %v3472 = vunpack.c.l.b16 %v911
        %v3473 = vunpack.c.l.b16 %v912
        %v3474 = vunpack.c.l.b16 %v913
        %v3475 = vunpack.c.l.b16 %v914
        %v3476 = vunpack.c.l.b16 %v915
        %v3477 = vunpack.c.l.b16 %v916
        %v3478 = vunpack.c.l.b16 %v917
        %v3479 = vunpack.c.l.b16 %v918
        %v3480 = vunpack.c.l.b16 %v919
        %v3481 = vunpack.c.l.b16 %v920
        %v3482 = vunpack.c.l.b16 %v921
        %v3483 = vunpack.c.l.b16 %v922
        %v3484 = vunpack.c.l.b16 %v923
        %v3485 = vunpack.c.l.b16 %v924
        %v3486 = vunpack.c.l.b16 %v925
        %v3487 = vunpack.c.l.b16 %v926
        %v3488 = vunpack.c.l.b16 %v927
        %v3489 = vunpack.c.l.b16 %v928
        %v3490 = vunpack.c.l.b16 %v929
        %v3491 = vunpack.c.l.b16 %v930
        %v3492 = vunpack.c.l.b16 %v931
        %v3493 = vunpack.c.l.b16 %v932
        %v3494 = vunpack.c.l.b16 %v933
        %v3495 = vunpack.c.l.b16 %v934
        %v3496 = vunpack.c.l.b16 %v935
        %v3497 = vunpack.c.l.b16 %v936
        %v3498 = vunpack.c.l.b16 %v937
        %v3499 = vunpack.c.l.b16 %v938
        %v3500 = vunpack.c.l.b16 %v939
        %v3501 = vunpack.c.l.b16 %v940
        %v3502 = vunpack.c.l.b16 %v941
        %v3503 = vunpack.c.l.b16 %v942
        %v3504 = vunpack.c.l.b16 %v943
        %v3505 = vunpack.c.l.b16 %v944
        %v3506 = vunpack.c.l.b16 %v945
        %v3507 = vunpack.c.l.b16 %v946
        %v3508 = vunpack.c.l.b16 %v947
        %v3509 = vunpack.c.l.b16 %v948
        %v3510 = vunpack.c.l.b16 %v949
        %v3511 = vunpack.c.l.b16 %v950
        %v3512 = vunpack.c.l.b16 %v951
        %v3513 = vunpack.c.l.b16 %v952
        %v3514 = vunpack.c.l.b16 %v953
        %v3515 = vunpack.c.l.b16 %v954
        %v3516 = vunpack.c.l.b16 %v955
        %v3517 = vunpack.c.l.b16 %v956
        %v3518 = vunpack.c.l.b16 %v957
        %v3519 = vunpack.c.l.b16 %v958
        %v3520 = vunpack.c.l.b16 %v959
        %v3521 = vunpack.c.l.b16 %v960
        %v3522 = vunpack.c.l.b16 %v961
        %v3523 = vunpack.c.l.b16 %v962
        %v3524 = vunpack.c.l.b16 %v963
        %v3525 = vunpack.c.l.b16 %v964
        %v3526 = vunpack.c.l.b16 %v965
        %v3527 = vunpack.c.l.b16 %v966
        %v3528 = vunpack.c.l.b16 %v967
        %v3529 = vunpack.c.l.b16 %v968
        %v3530 = vunpack.c.l.b16 %v969
        %v3531 = vunpack.c.l.b16 %v970
        %v3532 = vunpack.c.l.b16 %v971
        %v3533 = vunpack.c.l.b16 %v972
        %v3534 = vunpack.c.l.b16 %v973
        %v3535 = vunpack.c.l.b16 %v974
        %v3536 = vunpack.c.l.b16 %v975
        %v3537 = vunpack.c.l.b16 %v976
        %v3538 = vunpack.c.l.b16 %v977
        %v3539 = vunpack.c.l.b16 %v978
        %v3540 = vunpack.c.l.b16 %v979
        %v3541 = vunpack.c.l.b16 %v980
        %v3542 = vunpack.c.l.b16 %v981
        %v3543 = vunpack.c.l.b16 %v982
        %v3544 = vunpack.c.l.b16 %v983
        %v3545 = vunpack.c.l.b16 %v984
        %v3546 = vunpack.c.l.b16 %v985
        %v3547 = vunpack.c.l.b16 %v986
        %v3548 = vunpack.c.l.b16 %v987
        %v3549 = vunpack.c.l.b16 %v988
        %v3550 = vunpack.c.l.b16 %v989
        %v3551 = vunpack.c.l.b16 %v990
        %v3552 = vunpack.c.l.b16 %v991
        %v3553 = vunpack.c.l.b16 %v992
        %v3554 = vunpack.c.l.b16 %v993
        %v3555 = vunpack.c.l.b16 %v994
        %v3556 = vunpack.c.l.b16 %v995
        %v3557 = vunpack.c.l.b16 %v996
        %v3558 = vunpack.c.l.b16 %v997
        %v3559 = vunpack.c.l.b16 %v998
        %v3560 = vunpack.c.l.b16 %v999
        %v3561 = vunpack.c.l.b16 %v1000
        %v3562 = vunpack.c.l.b16 %v1001
        %v3563 = vunpack.c.l.b16 %v1002
        %v3564 = vunpack.c.l.b16 %v1003
        %v3565 = vunpack.c.l.b16 %v1004
        %v3566 = vunpack.c.l.b16 %v1005
        %v3567 = vunpack.c.l.b16 %v1006
        %v3568 = vunpack.c.l.b16 %v1007
        %v3569 = vunpack.c.l.b16 %v1008
        %v3570 = vunpack.c.l.b16 %v1009
        %v3571 = vunpack.c.l.b16 %v1010
        %v3572 = vunpack.c.l.b16 %v1011
        %v3573 = vunpack.c.l.b16 %v1012
        %v3574 = vunpack.c.l.b16 %v1013
        %v3575 = vunpack.c.l.b16 %v1014
        %v3576 = vunpack.c.l.b16 %v1015
        %v3577 = vunpack.c.l.b16 %v1016
        %v3578 = vunpack.c.l.b16 %v1017
        %v3579 = vunpack.c.l.b16 %v1018
        %v3580 = vunpack.c.l.b16 %v1019
        %v3581 = vunpack.c.l.b16 %v1020
        %v3582 = vunpack.c.l.b16 %v1021
        %v3583 = vunpack.c.l.b16 %v1022
        %v3584 = vunpack.c.l.b16 %v1023
        %v3585 = vunpack.c.l.b16 %v1024
        %v3586 = vunpack.c.l.b16 %v1025
        %v3587 = vunpack.c.l.b16 %v1026
        %v3588 = vunpack.c.l.b16 %v1027
        %v3589 = vunpack.c.l.b16 %v1028
        %v3590 = vunpack.c.l.b16 %v1029
        %v3591 = vunpack.c.l.b16 %v1030
        %v3592 = vunpack.c.l.b16 %v1031
        %v3593 = vunpack.c.l.b16 %v1032
        %v3594 = vunpack.c.l.b16 %v1033
        %v3595 = vunpack.c.l.b16 %v1034
        %v3596 = vunpack.c.l.b16 %v1035
        %v3597 = vunpack.c.l.b16 %v1036
        %v3598 = vunpack.c.l.b16 %v1037
        %v3599 = vunpack.c.l.b16 %v1038
        %v3600 = vunpack.c.l.b16 %v1039
        %v3601 = vunpack.c.l.b16 %v1040
        %v3602 = vunpack.c.l.b16 %v1041
        %v3603 = vunpack.c.l.b16 %v1042
        %v3604 = vunpack.c.l.b16 %v1043
        %v3605 = vunpack.c.l.b16 %v1044
        %v3606 = vunpack.c.l.b16 %v1045
        %v3607 = vunpack.c.l.b16 %v1046
        %v3608 = vunpack.c.l.b16 %v1047
        %v3609 = vunpack.c.l.b16 %v1048
        %v3610 = vunpack.c.l.b16 %v1049
        %v3611 = vunpack.c.l.b16 %v1050
        %v3612 = vunpack.c.l.b16 %v1051
        %v3613 = vunpack.c.l.b16 %v1052
        %v3614 = vunpack.c.l.b16 %v1053
        %v3615 = vunpack.c.l.b16 %v1054
        %v3616 = vunpack.c.l.b16 %v1055
        %v3617 = vunpack.c.l.b16 %v1056
        %v3618 = vunpack.c.l.b16 %v1057
        %v3619 = vunpack.c.l.b16 %v1058
        %v3620 = vunpack.c.l.b16 %v1059
        %v3621 = vunpack.c.l.b16 %v1060
        %v3622 = vunpack.c.l.b16 %v1061
        %v3623 = vunpack.c.l.b16 %v1062
        %v3624 = vunpack.c.l.b16 %v1063
        %v3625 = vunpack.c.l.b16 %v1064
        %v3626 = vunpack.c.l.b16 %v1065
        %v3627 = vunpack.c.l.b16 %v1066
        %v3628 = vunpack.c.l.b16 %v1067
        %v3629 = vunpack.c.l.b16 %v1068
        %v3630 = vunpack.c.l.b16 %v1069
        %v3631 = vunpack.c.l.b16 %v1070
        %v3632 = vunpack.c.l.b16 %v1071
        %v3633 = vunpack.c.l.b16 %v1072
        %v3634 = vunpack.c.l.b16 %v1073
        %v3635 = vunpack.c.l.b16 %v1074
        %v3636 = vunpack.c.l.b16 %v1075
        %v3637 = vunpack.c.l.b16 %v1076
        %v3638 = vunpack.c.l.b16 %v1077
        %v3639 = vunpack.c.l.b16 %v1078
        %v3640 = vunpack.c.l.b16 %v1079
        %v3641 = vunpack.c.l.b16 %v1080
        %v3642 = vunpack.c.l.b16 %v1081
        %v3643 = vunpack.c.l.b16 %v1082
        %v3644 = vunpack.c.l.b16 %v1083
        %v3645 = vunpack.c.l.b16 %v1084
        %v3646 = vunpack.c.l.b16 %v1085
        %v3647 = vunpack.c.l.b16 %v1086
        %v3648 = vunpack.c.l.b16 %v1087
        %v3649 = vunpack.c.l.b16 %v1088
        %v3650 = vunpack.c.l.b16 %v1089
        %v3651 = vunpack.c.l.b16 %v1090
        %v3652 = vunpack.c.l.b16 %v1091
        %v3653 = vunpack.c.l.b16 %v1092
        %v3654 = vunpack.c.l.b16 %v1093
        %v3655 = vunpack.c.l.b16 %v1094
        %v3656 = vunpack.c.l.b16 %v1095
        %v3657 = vunpack.c.l.b16 %v1096
        %v3658 = vunpack.c.l.b16 %v1097
        %v3659 = vunpack.c.l.b16 %v1098
        %v3660 = vunpack.c.l.b16 %v1099
        %v3661 = vunpack.c.l.b16 %v1100
        %v3662 = vunpack.c.l.b16 %v1101
        %v3663 = vunpack.c.l.b16 %v1102
        %v3664 = vunpack.c.l.b16 %v1103
        %v3665 = vunpack.c.l.b16 %v1104
        %v3666 = vunpack.c.l.b16 %v1105
        %v3667 = vunpack.c.l.b16 %v1106
        %v3668 = vunpack.c.l.b16 %v1107
        %v3669 = vunpack.c.l.b16 %v1108
        %v3670 = vunpack.c.l.b16 %v1109
        %v3671 = vunpack.c.l.b16 %v1110
        %v3672 = vunpack.c.l.b16 %v1111
        %v3673 = vunpack.c.l.b16 %v1112
        %v3674 = vunpack.c.l.b16 %v1113
        %v3675 = vunpack.c.l.b16 %v1114
        %v3676 = vunpack.c.l.b16 %v1115
        %v3677 = vunpack.c.l.b16 %v1116
        %v3678 = vunpack.c.l.b16 %v1117
        %v3679 = vunpack.c.l.b16 %v1118
        %v3680 = vunpack.c.l.b16 %v1119
        %v3681 = vunpack.c.l.b16 %v1120
        %v3682 = vunpack.c.l.b16 %v1121
        %v3683 = vunpack.c.l.b16 %v1122
        %v3684 = vunpack.c.l.b16 %v1123
        %v3685 = vunpack.c.l.b16 %v1124
        %v3686 = vunpack.c.l.b16 %v1125
        %v3687 = vunpack.c.l.b16 %v1126
        %v3688 = vunpack.c.l.b16 %v1127
        %v3689 = vunpack.c.l.b16 %v1128
        %v3690 = vunpack.c.l.b16 %v1129
        %v3691 = vunpack.c.l.b16 %v1130
        %v3692 = vunpack.c.l.b16 %v1131
        %v3693 = vunpack.c.l.b16 %v1132
        %v3694 = vunpack.c.l.b16 %v1133
        %v3695 = vunpack.c.l.b16 %v1134
        %v3696 = vunpack.c.l.b16 %v1135
        %v3697 = vunpack.c.l.b16 %v1136
        %v3698 = vunpack.c.l.b16 %v1137
        %v3699 = vunpack.c.l.b16 %v1138
        %v3700 = vunpack.c.l.b16 %v1139
        %v3701 = vunpack.c.l.b16 %v1140
        %v3702 = vunpack.c.l.b16 %v1141
        %v3703 = vunpack.c.l.b16 %v1142
        %v3704 = vunpack.c.l.b16 %v1143
        %v3705 = vunpack.c.l.b16 %v1144
        %v3706 = vunpack.c.l.b16 %v1145
        %v3707 = vunpack.c.l.b16 %v1146
        %v3708 = vunpack.c.l.b16 %v1147
        %v3709 = vunpack.c.l.b16 %v1148
        %v3710 = vunpack.c.l.b16 %v1149
        %v3711 = vunpack.c.l.b16 %v1150
        %v3712 = vunpack.c.l.b16 %v1151
        %v3713 = vunpack.c.l.b16 %v1152
        %v3714 = vunpack.c.l.b16 %v1153
        %v3715 = vunpack.c.l.b16 %v1154
        %v3716 = vunpack.c.l.b16 %v1155
        %v3717 = vunpack.c.l.b16 %v1156
        %v3718 = vunpack.c.l.b16 %v1157
        %v3719 = vunpack.c.l.b16 %v1158
        %v3720 = vunpack.c.l.b16 %v1159
        %v3721 = vunpack.c.l.b16 %v1160
        %v3722 = vunpack.c.l.b16 %v1161
        %v3723 = vunpack.c.l.b16 %v1162
        %v3724 = vunpack.c.l.b16 %v1163
        %v3725 = vunpack.c.l.b16 %v1164
        %v3726 = vunpack.c.l.b16 %v1165
        %v3727 = vunpack.c.l.b16 %v1166
        %v3728 = vunpack.c.l.b16 %v1167
        %v3729 = vunpack.c.l.b16 %v1168
        %v3730 = vunpack.c.l.b16 %v1169
        %v3731 = vunpack.c.l.b16 %v1170
        %v3732 = vunpack.c.l.b16 %v1171
        %v3733 = vunpack.c.l.b16 %v1172
        %v3734 = vunpack.c.l.b16 %v1173
        %v3735 = vunpack.c.l.b16 %v1174
        %v3736 = vunpack.c.l.b16 %v1175
        %v3737 = vunpack.c.l.b16 %v1176
        %v3738 = vunpack.c.l.b16 %v1177
        %v3739 = vunpack.c.l.b16 %v1178
        %v3740 = vunpack.c.l.b16 %v1179
        %v3741 = vunpack.c.l.b16 %v1180
        %v3742 = vunpack.c.l.b16 %v1181
        %v3743 = vunpack.c.l.b16 %v1182
        %v3744 = vunpack.c.l.b16 %v1183
        %v3745 = vunpack.c.l.b16 %v1184
        %v3746 = vunpack.c.l.b16 %v1185
        %v3747 = vunpack.c.l.b16 %v1186
        %v3748 = vunpack.c.l.b16 %v1187
        %v3749 = vunpack.c.l.b16 %v1188
        %v3750 = vunpack.c.l.b16 %v1189
        %v3751 = vunpack.c.l.b16 %v1190
        %v3752 = vunpack.c.l.b16 %v1191
        %v3753 = vunpack.c.l.b16 %v1192
        %v3754 = vunpack.c.l.b16 %v1193
        %v3755 = vunpack.c.l.b16 %v1194
        %v3756 = vunpack.c.l.b16 %v1195
        %v3757 = vunpack.c.l.b16 %v1196
        %v3758 = vunpack.c.l.b16 %v1197
        %v3759 = vunpack.c.l.b16 %v1198
        %v3760 = vunpack.c.l.b16 %v1199
        %v3761 = vunpack.c.l.b16 %v1200
        %v3762 = vunpack.c.l.b16 %v1201
        %v3763 = vunpack.c.l.b16 %v1202
        %v3764 = vunpack.c.l.b16 %v1203
        %v3765 = vunpack.c.l.b16 %v1204
        %v3766 = vunpack.c.l.b16 %v1205
        %v3767 = vunpack.c.l.b16 %v1206
        %v3768 = vunpack.c.l.b16 %v1207
        %v3769 = vunpack.c.l.b16 %v1208
        %v3770 = vunpack.c.l.b16 %v1209
        %v3771 = vunpack.c.l.b16 %v1210
        %v3772 = vunpack.c.l.b16 %v1211
        %v3773 = vunpack.c.l.b16 %v1212
        %v3774 = vunpack.c.l.b16 %v1213
        %v3775 = vunpack.c.l.b16 %v1214
        %v3776 = vunpack.c.l.b16 %v1215
        %v3777 = vunpack.c.l.b16 %v1216
        %v3778 = vunpack.c.l.b16 %v1217
        %v3779 = vunpack.c.l.b16 %v1218
        %v3780 = vunpack.c.l.b16 %v1219
        %v3781 = vunpack.c.l.b16 %v1220
        %v3782 = vunpack.c.l.b16 %v1221
        %v3783 = vunpack.c.l.b16 %v1222
        %v3784 = vunpack.c.l.b16 %v1223
        %v3785 = vunpack.c.l.b16 %v1224
        %v3786 = vunpack.c.l.b16 %v1225
        %v3787 = vunpack.c.l.b16 %v1226
        %v3788 = vunpack.c.l.b16 %v1227
        %v3789 = vunpack.c.l.b16 %v1228
        %v3790 = vunpack.c.l.b16 %v1229
        %v3791 = vunpack.c.l.b16 %v1230
        %v3792 = vunpack.c.l.b16 %v1231
        %v3793 = vunpack.c.l.b16 %v1232
        %v3794 = vunpack.c.l.b16 %v1233
        %v3795 = vunpack.c.l.b16 %v1234
        %v3796 = vunpack.c.l.b16 %v1235
        %v3797 = vunpack.c.l.b16 %v1236
        %v3798 = vunpack.c.l.b16 %v1237
        %v3799 = vunpack.c.l.b16 %v1238
        %v3800 = vunpack.c.l.b16 %v1239
        %v3801 = vunpack.c.l.b16 %v1240
        %v3802 = vunpack.c.l.b16 %v1241
        %v3803 = vunpack.c.l.b16 %v1242
        %v3804 = vunpack.c.l.b16 %v1243
        %v3805 = vunpack.c.l.b16 %v1244
        %v3806 = vunpack.c.l.b16 %v1245
        %v3807 = vunpack.c.l.b16 %v1246
        %v3808 = vunpack.c.l.b16 %v1247
        %v3809 = vunpack.c.l.b16 %v1248
        %v3810 = vunpack.c.l.b16 %v1249
        %v3811 = vunpack.c.l.b16 %v1250
        %v3812 = vunpack.c.l.b16 %v1251
        %v3813 = vunpack.c.l.b16 %v1252
        %v3814 = vunpack.c.l.b16 %v1253
        %v3815 = vunpack.c.l.b16 %v1254
        %v3816 = vunpack.c.l.b16 %v1255
        %v3817 = vunpack.c.l.b16 %v1256
        %v3818 = vunpack.c.l.b16 %v1257
        %v3819 = vunpack.c.l.b16 %v1258
        %v3820 = vunpack.c.l.b16 %v1259
        %v3821 = vunpack.c.l.b16 %v1260
        %v3822 = vunpack.c.l.b16 %v1261
        %v3823 = vunpack.c.l.b16 %v1262
        %v3824 = vunpack.c.l.b16 %v1263
        %v3825 = vunpack.c.l.b16 %v1264
        %v3826 = vunpack.c.l.b16 %v1265
        %v3827 = vunpack.c.l.b16 %v1266
        %v3828 = vunpack.c.l.b16 %v1267
        %v3829 = vunpack.c.l.b16 %v1268
        %v3830 = vunpack.c.l.b16 %v1269
        %v3831 = vunpack.c.l.b16 %v1270
        %v3832 = vunpack.c.l.b16 %v1271
        %v3833 = vunpack.c.l.b16 %v1272
        %v3834 = vunpack.c.l.b16 %v1273
        %v3835 = vunpack.c.l.b16 %v1274
        %v3836 = vunpack.c.l.b16 %v1275
        %v3837 = vunpack.c.l.b16 %v1276
        %v3838 = vunpack.c.l.b16 %v1277
        %v3839 = vunpack.c.l.b16 %v1278
        %v3840 = vunpack.c.l.b16 %v1279
        %v3841 = vunpack.c.l.b16 %v1280
        %v3842 = vunpack.c.l.b16 %v1281
        %v3843 = vunpack.c.l.b16 %v1282
        %v3844 = vunpack.c.l.b16 %v1283
        %v3845 = vunpack.c.l.b16 %v1284
        %v3846 = vunpack.c.l.b16 %v1285
        %v3847 = vunpack.c.l.b16 %v1286
        %v3848 = vunpack.c.l.b16 %v1287
        %v3849 = vunpack.c.l.b16 %v1288
        %v3850 = vunpack.c.l.b16 %v1289
        %v3851 = vunpack.c.l.b16 %v1290
        %v3852 = vunpack.c.l.b16 %v1291
        %v3853 = vunpack.c.l.b16 %v1292
        %v3854 = vunpack.c.l.b16 %v1293
        %v3855 = vunpack.c.l.b16 %v1294
        %v3856 = vunpack.c.l.b16 %v1295
        %v3857 = vunpack.c.l.b16 %v1296
        %v3858 = vunpack.c.l.b16 %v1297
        %v3859 = vunpack.c.l.b16 %v1298
        %v3860 = vunpack.c.l.b16 %v1299
        %v3861 = vunpack.c.l.b16 %v1300
        %v3862 = vunpack.c.l.b16 %v1301
        %v3863 = vunpack.c.l.b16 %v1302
        %v3864 = vunpack.c.l.b16 %v1303
        %v3865 = vunpack.c.l.b16 %v1304
        %v3866 = vunpack.c.l.b16 %v1305
        %v3867 = vunpack.c.l.b16 %v1306
        %v3868 = vunpack.c.l.b16 %v1307
        %v3869 = vunpack.c.l.b16 %v1308
        %v3870 = vunpack.c.l.b16 %v1309
        %v3871 = vunpack.c.l.b16 %v1310
        %v3872 = vunpack.c.l.b16 %v1311
        %v3873 = vunpack.c.l.b16 %v1312
        %v3874 = vunpack.c.l.b16 %v1313
        %v3875 = vunpack.c.l.b16 %v1314
        %v3876 = vunpack.c.l.b16 %v1315
        %v3877 = vunpack.c.l.b16 %v1316
        %v3878 = vunpack.c.l.b16 %v1317
        %v3879 = vunpack.c.l.b16 %v1318
        %v3880 = vunpack.c.l.b16 %v1319
        %v3881 = vunpack.c.l.b16 %v1320
        %v3882 = vunpack.c.l.b16 %v1321
        %v3883 = vunpack.c.l.b16 %v1322
        %v3884 = vunpack.c.l.b16 %v1323
        %v3885 = vunpack.c.l.b16 %v1324
        %v3886 = vunpack.c.l.b16 %v1325
        %v3887 = vunpack.c.l.b16 %v1326
        %v3888 = vunpack.c.l.b16 %v1327
        %v3889 = vunpack.c.l.b16 %v1328
        %v3890 = vunpack.c.l.b16 %v1329
        %v3891 = vunpack.c.l.b16 %v1330
        %v3892 = vunpack.c.l.b16 %v1331
        %v3893 = vunpack.c.l.b16 %v1332
        %v3894 = vunpack.c.l.b16 %v1333
        %v3895 = vunpack.c.l.b16 %v1334
        %v3896 = vunpack.c.l.b16 %v1335
        %v3897 = vunpack.c.l.b16 %v1336
        %v3898 = vunpack.c.l.b16 %v1337
        %v3899 = vunpack.c.l.b16 %v1338
        %v3900 = vunpack.c.l.b16 %v1339
        %v3901 = vunpack.c.l.b16 %v1340
        %v3902 = vunpack.c.l.b16 %v1341
        %v3903 = vunpack.c.l.b16 %v1342
        %v3904 = vunpack.c.l.b16 %v1343
        %v3905 = vunpack.c.l.b16 %v1344
        %v3906 = vunpack.c.l.b16 %v1345
        %v3907 = vunpack.c.l.b16 %v1346
        %v3908 = vunpack.c.l.b16 %v1347
        %v3909 = vunpack.c.l.b16 %v1348
        %v3910 = vunpack.c.l.b16 %v1349
        %v3911 = vunpack.c.l.b16 %v1350
        %v3912 = vunpack.c.l.b16 %v1351
        %v3913 = vunpack.c.l.b16 %v1352
        %v3914 = vunpack.c.l.b16 %v1353
        %v3915 = vunpack.c.l.b16 %v1354
        %v3916 = vunpack.c.l.b16 %v1355
        %v3917 = vunpack.c.l.b16 %v1356
        %v3918 = vunpack.c.l.b16 %v1357
        %v3919 = vunpack.c.l.b16 %v1358
        %v3920 = vunpack.c.l.b16 %v1359
        %v3921 = vunpack.c.l.b16 %v1360
        %v3922 = vunpack.c.l.b16 %v1361
        %v3923 = vunpack.c.l.b16 %v1362
        %v3924 = vunpack.c.l.b16 %v1363
        %v3925 = vunpack.c.l.b16 %v1364
        %v3926 = vunpack.c.l.b16 %v1365
        %v3927 = vunpack.c.l.b16 %v1366
        %v3928 = vunpack.c.l.b16 %v1367
        %v3929 = vunpack.c.l.b16 %v1368
        %v3930 = vunpack.c.l.b16 %v1369
        %v3931 = vunpack.c.l.b16 %v1370
        %v3932 = vunpack.c.l.b16 %v1371
        %v3933 = vunpack.c.l.b16 %v1372
        %v3934 = vunpack.c.l.b16 %v1373
        %v3935 = vunpack.c.l.b16 %v1374
        %v3936 = vunpack.c.l.b16 %v1375
        %v3937 = vunpack.c.l.b16 %v1376
        %v3938 = vunpack.c.l.b16 %v1377
        %v3939 = vunpack.c.l.b16 %v1378
        %v3940 = vunpack.c.l.b16 %v1379
        %v3941 = vunpack.c.l.b16 %v1380
        %v3942 = vunpack.c.l.b16 %v1381
        %v3943 = vunpack.c.l.b16 %v1382
        %v3944 = vunpack.c.l.b16 %v1383
        %v3945 = vunpack.c.l.b16 %v1384
        %v3946 = vunpack.c.l.b16 %v1385
        %v3947 = vunpack.c.l.b16 %v1386
        %v3948 = vunpack.c.l.b16 %v1387
        %v3949 = vunpack.c.l.b16 %v1388
        %v3950 = vunpack.c.l.b16 %v1389
        %v3951 = vunpack.c.l.b16 %v1390
        %v3952 = vunpack.c.l.b16 %v1391
        %v3953 = vunpack.c.l.b16 %v1392
        %v3954 = vunpack.c.l.b16 %v1393
        %v3955 = vunpack.c.l.b16 %v1394
        %v3956 = vunpack.c.l.b16 %v1395
        %v3957 = vunpack.c.l.b16 %v1396
        %v3958 = vunpack.c.l.b16 %v1397
        %v3959 = vunpack.c.l.b16 %v1398
        %v3960 = vunpack.c.l.b16 %v1399
        %v3961 = vunpack.c.l.b16 %v1400
        %v3962 = vunpack.c.l.b16 %v1401
        %v3963 = vunpack.c.l.b16 %v1402
        %v3964 = vunpack.c.l.b16 %v1403
        %v3965 = vunpack.c.l.b16 %v1404
        %v3966 = vunpack.c.l.b16 %v1405
        %v3967 = vunpack.c.l.b16 %v1406
        %v3968 = vunpack.c.l.b16 %v1407
        %v3969 = vunpack.c.l.b16 %v1408
        %v3970 = vunpack.c.l.b16 %v1409
        %v3971 = vunpack.c.l.b16 %v1410
        %v3972 = vunpack.c.l.b16 %v1411
        %v3973 = vunpack.c.l.b16 %v1412
        %v3974 = vunpack.c.l.b16 %v1413
        %v3975 = vunpack.c.l.b16 %v1414
        %v3976 = vunpack.c.l.b16 %v1415
        %v3977 = vunpack.c.l.b16 %v1416
        %v3978 = vunpack.c.l.b16 %v1417
        %v3979 = vunpack.c.l.b16 %v1418
        %v3980 = vunpack.c.l.b16 %v1419
        %v3981 = vunpack.c.l.b16 %v1420
        %v3982 = vunpack.c.l.b16 %v1421
        %v3983 = vunpack.c.l.b16 %v1422
        %v3984 = vunpack.c.l.b16 %v1423
        %v3985 = vunpack.c.l.b16 %v1424
        %v3986 = vunpack.c.l.b16 %v1425
        %v3987 = vunpack.c.l.b16 %v1426
        %v3988 = vunpack.c.l.b16 %v1427
        %v3989 = vunpack.c.l.b16 %v1428
        %v3990 = vunpack.c.l.b16 %v1429
        %v3991 = vunpack.c.l.b16 %v1430
        %v3992 = vunpack.c.l.b16 %v1431
        %v3993 = vunpack.c.l.b16 %v1432
        %v3994 = vunpack.c.l.b16 %v1433
        %v3995 = vunpack.c.l.b16 %v1434
        %v3996 = vunpack.c.l.b16 %v1435
        %v3997 = vunpack.c.l.b16 %v1436
        %v3998 = vunpack.c.l.b16 %v1437
        %v3999 = vunpack.c.l.b16 %v1438
        %v4000 = vunpack.c.l.b16 %v1439
        %v4001 = vunpack.c.l.b16 %v1440
        %v4002 = vunpack.c.l.b16 %v1441
        %v4003 = vunpack.c.l.b16 %v1442
        %v4004 = vunpack.c.l.b16 %v1443
        %v4005 = vunpack.c.l.b16 %v1444
        %v4006 = vunpack.c.l.b16 %v1445
        %v4007 = vunpack.c.l.b16 %v1446
        %v4008 = vunpack.c.l.b16 %v1447
        %v4009 = vunpack.c.l.b16 %v1448
        %v4010 = vunpack.c.l.b16 %v1449
        %v4011 = vunpack.c.l.b16 %v1450
        %v4012 = vunpack.c.l.b16 %v1451
        %v4013 = vunpack.c.l.b16 %v1452
        %v4014 = vunpack.c.l.b16 %v1453
        %v4015 = vunpack.c.l.b16 %v1454
        %v4016 = vunpack.c.l.b16 %v1455
        %v4017 = vunpack.c.l.b16 %v1456
        %v4018 = vunpack.c.l.b16 %v1457
        %v4019 = vunpack.c.l.b16 %v1458
        %v4020 = vunpack.c.l.b16 %v1459
        %v4021 = vunpack.c.l.b16 %v1460
        %v4022 = vunpack.c.l.b16 %v1461
        %v4023 = vunpack.c.l.b16 %v1462
        %v4024 = vunpack.c.l.b16 %v1463
        %v4025 = vunpack.c.l.b16 %v1464
        %v4026 = vunpack.c.l.b16 %v1465
        %v4027 = vunpack.c.l.b16 %v1466
        %v4028 = vunpack.c.l.b16 %v1467
        %v4029 = vunpack.c.l.b16 %v1468
        %v4030 = vunpack.c.l.b16 %v1469
        %v4031 = vunpack.c.l.b16 %v1470
        %v4032 = vunpack.c.l.b16 %v1471
        %v4033 = vunpack.c.l.b16 %v1472
        %v4034 = vunpack.c.l.b16 %v1473
        %v4035 = vunpack.c.l.b16 %v1474
        %v4036 = vunpack.c.l.b16 %v1475
        %v4037 = vunpack.c.l.b16 %v1476
        %v4038 = vunpack.c.l.b16 %v1477
        %v4039 = vunpack.c.l.b16 %v1478
        %v4040 = vunpack.c.l.b16 %v1479
        %v4041 = vunpack.c.l.b16 %v1480
        %v4042 = vunpack.c.l.b16 %v1481
        %v4043 = vunpack.c.l.b16 %v1482
        %v4044 = vunpack.c.l.b16 %v1483
        %v4045 = vunpack.c.l.b16 %v1484
        %v4046 = vunpack.c.l.b16 %v1485
        %v4047 = vunpack.c.l.b16 %v1486
        %v4048 = vunpack.c.l.b16 %v1487
        %v4049 = vunpack.c.l.b16 %v1488
        %v4050 = vunpack.c.l.b16 %v1489
        %v4051 = vunpack.c.l.b16 %v1490
        %v4052 = vunpack.c.l.b16 %v1491
        %v4053 = vunpack.c.l.b16 %v1492
        %v4054 = vunpack.c.l.b16 %v1493
        %v4055 = vunpack.c.l.b16 %v1494
        %v4056 = vunpack.c.l.b16 %v1495
        %v4057 = vunpack.c.l.b16 %v1496
        %v4058 = vunpack.c.l.b16 %v1497
        %v4059 = vunpack.c.l.b16 %v1498
        %v4060 = vunpack.c.l.b16 %v1499
        %v4061 = vunpack.c.l.b16 %v1500
        %v4062 = vunpack.c.l.b16 %v1501
        %v4063 = vunpack.c.l.b16 %v1502
        %v4064 = vunpack.c.l.b16 %v1503
        %v4065 = vunpack.c.l.b16 %v1504
        %v4066 = vunpack.c.l.b16 %v1505
        %v4067 = vunpack.c.l.b16 %v1506
        %v4068 = vunpack.c.l.b16 %v1507
        %v4069 = vunpack.c.l.b16 %v1508
        %v4070 = vunpack.c.l.b16 %v1509
        %v4071 = vunpack.c.l.b16 %v1510
        %v4072 = vunpack.c.l.b16 %v1511
        %v4073 = vunpack.c.l.b16 %v1512
        %v4074 = vunpack.c.l.b16 %v1513
        %v4075 = vunpack.c.l.b16 %v1514
        %v4076 = vunpack.c.l.b16 %v1515
        %v4077 = vunpack.c.l.b16 %v1516
        %v4078 = vunpack.c.l.b16 %v1517
        %v4079 = vunpack.c.l.b16 %v1518
        %v4080 = vunpack.c.l.b16 %v1519
        %v4081 = vunpack.c.l.b16 %v1520
        %v4082 = vunpack.c.l.b16 %v1521
        %v4083 = vunpack.c.l.b16 %v1522
        %v4084 = vunpack.c.l.b16 %v1523
        %v4085 = vunpack.c.l.b16 %v1524
        %v4086 = vunpack.c.l.b16 %v1525
        %v4087 = vunpack.c.l.b16 %v1526
        %v4088 = vunpack.c.l.b16 %v1527
        %v4089 = vunpack.c.l.b16 %v1528
        %v4090 = vunpack.c.l.b16 %v1529
        %v4091 = vunpack.c.l.b16 %v1530
        %v4092 = vunpack.c.l.b16 %v1531
        %v4093 = vunpack.c.l.b16 %v1532
        %v4094 = vunpack.c.l.b16 %v1533
        %v4095 = vunpack.c.l.b16 %v1534
        %v4096 = vunpack.c.l.b16 %v1535
        %v4097 = vunpack.c.l.b16 %v1536
        %v4098 = vunpack.c.l.b16 %v1537
        %v4099 = vunpack.c.l.b16 %v1538
        %v4100 = vunpack.c.l.b16 %v1539
        %v4101 = vunpack.c.l.b16 %v1540
        %v4102 = vunpack.c.l.b16 %v1541
        %v4103 = vunpack.c.l.b16 %v1542
        %v4104 = vunpack.c.l.b16 %v1543
        %v4105 = vunpack.c.l.b16 %v1544
        %v4106 = vunpack.c.l.b16 %v1545
        %v4107 = vunpack.c.l.b16 %v1546
        %v4108 = vunpack.c.l.b16 %v1547
        %v4109 = vunpack.c.l.b16 %v1548
        %v4110 = vunpack.c.l.b16 %v1549
        %v4111 = vunpack.c.l.b16 %v1550
        %v4112 = vunpack.c.l.b16 %v1551
        %v4113 = vunpack.c.l.b16 %v1552
        %v4114 = vunpack.c.l.b16 %v1553
        %v4115 = vunpack.c.l.b16 %v1554
        %v4116 = vunpack.c.l.b16 %v1555
        %v4117 = vunpack.c.l.b16 %v1556
        %v4118 = vunpack.c.l.b16 %v1557
        %v4119 = vunpack.c.l.b16 %v1558
        %v4120 = vunpack.c.l.b16 %v1559
        %v4121 = vunpack.c.l.b16 %v1560
        %v4122 = vunpack.c.l.b16 %v1561
        %v4123 = vunpack.c.l.b16 %v1562
        %v4124 = vunpack.c.l.b16 %v1563
        %v4125 = vunpack.c.l.b16 %v1564
        %v4126 = vunpack.c.l.b16 %v1565
        %v4127 = vunpack.c.l.b16 %v1566
        %v4128 = vunpack.c.l.b16 %v1567
        %v4129 = vunpack.c.l.b16 %v1568
        %v4130 = vunpack.c.l.b16 %v1569
        %v4131 = vunpack.c.l.b16 %v1570
        %v4132 = vunpack.c.l.b16 %v1571
        %v4133 = vunpack.c.l.b16 %v1572
        %v4134 = vunpack.c.l.b16 %v1573
        %v4135 = vunpack.c.l.b16 %v1574
        %v4136 = vunpack.c.l.b16 %v1575
        %v4137 = vunpack.c.l.b16 %v1576
        %v4138 = vunpack.c.l.b16 %v1577
        %v4139 = vunpack.c.l.b16 %v1578
        %v4140 = vunpack.c.l.b16 %v1579
        %v4141 = vunpack.c.l.b16 %v1580
        %v4142 = vunpack.c.l.b16 %v1581
        %v4143 = vunpack.c.l.b16 %v1582
        %v4144 = vunpack.c.l.b16 %v1583
        %v4145 = vunpack.c.l.b16 %v1584
        %v4146 = vunpack.c.l.b16 %v1585
        %v4147 = vunpack.c.l.b16 %v1586
        %v4148 = vunpack.c.l.b16 %v1587
        %v4149 = vunpack.c.l.b16 %v1588
        %v4150 = vunpack.c.l.b16 %v1589
        %v4151 = vunpack.c.l.b16 %v1590
        %v4152 = vunpack.c.l.b16 %v1591
        %v4153 = vunpack.c.l.b16 %v1592
        %v4154 = vunpack.c.l.b16 %v1593
        %v4155 = vunpack.c.l.b16 %v1594
        %v4156 = vunpack.c.l.b16 %v1595
        %v4157 = vunpack.c.l.b16 %v1596
        %v4158 = vunpack.c.l.b16 %v1597
        %v4159 = vunpack.c.l.b16 %v1598
        %v4160 = vunpack.c.l.b16 %v1599
        %v4161 = vunpack.c.l.b16 %v1600
        %v4162 = vunpack.c.l.b16 %v1601
        %v4163 = vunpack.c.l.b16 %v1602
        %v4164 = vunpack.c.l.b16 %v1603
        %v4165 = vunpack.c.l.b16 %v1604
        %v4166 = vunpack.c.l.b16 %v1605
        %v4167 = vunpack.c.l.b16 %v1606
        %v4168 = vunpack.c.l.b16 %v1607
        %v4169 = vunpack.c.l.b16 %v1608
        %v4170 = vunpack.c.l.b16 %v1609
        %v4171 = vunpack.c.l.b16 %v1610
        %v4172 = vunpack.c.l.b16 %v1611
        %v4173 = vunpack.c.l.b16 %v1612
        %v4174 = vunpack.c.l.b16 %v1613
        %v4175 = vunpack.c.l.b16 %v1614
        %v4176 = vunpack.c.l.b16 %v1615
        %v4177 = vunpack.c.l.b16 %v1616
        %v4178 = vunpack.c.l.b16 %v1617
        %v4179 = vunpack.c.l.b16 %v1618
        %v4180 = vunpack.c.l.b16 %v1619
        %v4181 = vunpack.c.l.b16 %v1620
        %v4182 = vunpack.c.l.b16 %v1621
        %v4183 = vunpack.c.l.b16 %v1622
        %v4184 = vunpack.c.l.b16 %v1623
        %v4185 = vunpack.c.l.b16 %v1624
        %v4186 = vunpack.c.l.b16 %v1625
        %v4187 = vunpack.c.l.b16 %v1626
        %v4188 = vunpack.c.l.b16 %v1627
        %v4189 = vunpack.c.l.b16 %v1628
        %v4190 = vunpack.c.l.b16 %v1629
        %v4191 = vunpack.c.l.b16 %v1630
        %v4192 = vunpack.c.l.b16 %v1631
        %v4193 = vunpack.c.l.b16 %v1632
        %v4194 = vunpack.c.l.b16 %v1633
        %v4195 = vunpack.c.l.b16 %v1634
        %v4196 = vunpack.c.l.b16 %v1635
        %v4197 = vunpack.c.l.b16 %v1636
        %v4198 = vunpack.c.l.b16 %v1637
        %v4199 = vunpack.c.l.b16 %v1638
        %v4200 = vunpack.c.l.b16 %v1639
        %v4201 = vunpack.c.l.b16 %v1640
        %v4202 = vunpack.c.l.b16 %v1641
        %v4203 = vunpack.c.l.b16 %v1642
        %v4204 = vunpack.c.l.b16 %v1643
        %v4205 = vunpack.c.l.b16 %v1644
        %v4206 = vunpack.c.l.b16 %v1645
        %v4207 = vunpack.c.l.b16 %v1646
        %v4208 = vunpack.c.l.b16 %v1647
        %v4209 = vunpack.c.l.b16 %v1648
        %v4210 = vunpack.c.l.b16 %v1649
        %v4211 = vunpack.c.l.b16 %v1650
        %v4212 = vunpack.c.l.b16 %v1651
        %v4213 = vunpack.c.l.b16 %v1652
        %v4214 = vunpack.c.l.b16 %v1653
        %v4215 = vunpack.c.l.b16 %v1654
        %v4216 = vunpack.c.l.b16 %v1655
        %v4217 = vunpack.c.l.b16 %v1656
        %v4218 = vunpack.c.l.b16 %v1657
        %v4219 = vunpack.c.l.b16 %v1658
        %v4220 = vunpack.c.l.b16 %v1659
        %v4221 = vunpack.c.l.b16 %v1660
        %v4222 = vunpack.c.l.b16 %v1661
        %v4223 = vunpack.c.l.b16 %v1662
        %v4224 = vunpack.c.l.b16 %v1663
        %v4225 = vunpack.c.l.b16 %v1664
        %v4226 = vunpack.c.l.b16 %v1665
        %v4227 = vunpack.c.l.b16 %v1666
        %v4228 = vunpack.c.l.b16 %v1667
        %v4229 = vunpack.c.l.b16 %v1668
        %v4230 = vunpack.c.l.b16 %v1669
        %v4231 = vunpack.c.l.b16 %v1670
        %v4232 = vunpack.c.l.b16 %v1671
        %v4233 = vunpack.c.l.b16 %v1672
        %v4234 = vunpack.c.l.b16 %v1673
        %v4235 = vunpack.c.l.b16 %v1674
        %v4236 = vunpack.c.l.b16 %v1675
        %v4237 = vunpack.c.l.b16 %v1676
        %v4238 = vunpack.c.l.b16 %v1677
        %v4239 = vunpack.c.l.b16 %v1678
        %v4240 = vunpack.c.l.b16 %v1679
        %v4241 = vunpack.c.l.b16 %v1680
        %v4242 = vunpack.c.l.b16 %v1681
        %v4243 = vunpack.c.l.b16 %v1682
        %v4244 = vunpack.c.l.b16 %v1683
        %v4245 = vunpack.c.l.b16 %v1684
        %v4246 = vunpack.c.l.b16 %v1685
        %v4247 = vunpack.c.l.b16 %v1686
        %v4248 = vunpack.c.l.b16 %v1687
        %v4249 = vunpack.c.l.b16 %v1688
        %v4250 = vunpack.c.l.b16 %v1689
        %v4251 = vunpack.c.l.b16 %v1690
        %v4252 = vunpack.c.l.b16 %v1691
        %v4253 = vunpack.c.l.b16 %v1692
        %v4254 = vunpack.c.l.b16 %v1693
        %v4255 = vunpack.c.l.b16 %v1694
        %v4256 = vunpack.c.l.b16 %v1695
        %v4257 = vunpack.c.l.b16 %v1696
        %v4258 = vunpack.c.l.b16 %v1697
        %v4259 = vunpack.c.l.b16 %v1698
        %v4260 = vunpack.c.l.b16 %v1699
        %v4261 = vunpack.c.l.b16 %v1700
        %v4262 = vunpack.c.l.b16 %v1701
        %v4263 = vunpack.c.l.b16 %v1702
        %v4264 = vunpack.c.l.b16 %v1703
        %v4265 = vunpack.c.l.b16 %v1704
        %v4266 = vunpack.c.l.b16 %v1705
        %v4267 = vunpack.c.l.b16 %v1706
        %v4268 = vunpack.c.l.b16 %v1707
        %v4269 = vunpack.c.l.b16 %v1708
        %v4270 = vunpack.c.l.b16 %v1709
        %v4271 = vunpack.c.l.b16 %v1710
        %v4272 = vunpack.c.l.b16 %v1711
        %v4273 = vunpack.c.l.b16 %v1712
        %v4274 = vunpack.c.l.b16 %v1713
        %v4275 = vunpack.c.l.b16 %v1714
        %v4276 = vunpack.c.l.b16 %v1715
        %v4277 = vunpack.c.l.b16 %v1716
        %v4278 = vunpack.c.l.b16 %v1717
        %v4279 = vunpack.c.l.b16 %v1718
        %v4280 = vunpack.c.l.b16 %v1719
        %v4281 = vunpack.c.l.b16 %v1720
        %v4282 = vunpack.c.l.b16 %v1721
        %v4283 = vunpack.c.l.b16 %v1722
        %v4284 = vunpack.c.l.b16 %v1723
        %v4285 = vunpack.c.l.b16 %v1724
        %v4286 = vunpack.c.l.b16 %v1725
        %v4287 = vunpack.c.l.b16 %v1726
        %v4288 = vunpack.c.l.b16 %v1727
        %v4289 = vunpack.c.l.b16 %v1728
        %v4290 = vunpack.c.l.b16 %v1729
        %v4291 = vunpack.c.l.b16 %v1730
        %v4292 = vunpack.c.l.b16 %v1731
        %v4293 = vunpack.c.l.b16 %v1732
        %v4294 = vunpack.c.l.b16 %v1733
        %v4295 = vunpack.c.l.b16 %v1734
        %v4296 = vunpack.c.l.b16 %v1735
        %v4297 = vunpack.c.l.b16 %v1736
        %v4298 = vunpack.c.l.b16 %v1737
        %v4299 = vunpack.c.l.b16 %v1738
        %v4300 = vunpack.c.l.b16 %v1739
        %v4301 = vunpack.c.l.b16 %v1740
        %v4302 = vunpack.c.l.b16 %v1741
        %v4303 = vunpack.c.l.b16 %v1742
        %v4304 = vunpack.c.l.b16 %v1743
        %v4305 = vunpack.c.l.b16 %v1744
        %v4306 = vunpack.c.l.b16 %v1745
        %v4307 = vunpack.c.l.b16 %v1746
        %v4308 = vunpack.c.l.b16 %v1747
        %v4309 = vunpack.c.l.b16 %v1748
        %v4310 = vpack.c.b16 %v3031, %v3030
        %v4311 = vpack.c.b16 %v3033, %v3032
        %v4312 = vpack.c.b16 %v3035, %v3034
        %v4313 = vpack.c.b16 %v3037, %v3036
        %v4314 = vpack.c.b16 %v3039, %v3038
        %v4315 = vpack.c.b16 %v3041, %v3040
        %v4316 = vpack.c.b16 %v3043, %v3042
        %v4317 = vpack.c.b16 %v3045, %v3044
        %v4318 = vpack.c.b16 %v3047, %v3046
        %v4319 = vpack.c.b16 %v3049, %v3048
        %v4320 = vpack.c.b16 %v3051, %v3050
        %v4321 = vpack.c.b16 %v3053, %v3052
        %v4322 = vpack.c.b16 %v3055, %v3054
        %v4323 = vpack.c.b16 %v3057, %v3056
        %v4324 = vpack.c.b16 %v3059, %v3058
        %v4325 = vpack.c.b16 %v3061, %v3060
        %v4326 = vpack.c.b16 %v3063, %v3062
        %v4327 = vpack.c.b16 %v3065, %v3064
        %v4328 = vpack.c.b16 %v3067, %v3066
        %v4329 = vpack.c.b16 %v3069, %v3068
        %v4330 = vpack.c.b16 %v3071, %v3070
        %v4331 = vpack.c.b16 %v3073, %v3072
        %v4332 = vpack.c.b16 %v3075, %v3074
        %v4333 = vpack.c.b16 %v3077, %v3076
        %v4334 = vpack.c.b16 %v3079, %v3078
        %v4335 = vpack.c.b16 %v3081, %v3080
        %v4336 = vpack.c.b16 %v3083, %v3082
        %v4337 = vpack.c.b16 %v3085, %v3084
        %v4338 = vpack.c.b16 %v3087, %v3086
        %v4339 = vpack.c.b16 %v3089, %v3088
        %v4340 = vpack.c.b16 %v3091, %v3090
        %v4341 = vpack.c.b16 %v3093, %v3092
        %v4342 = vpack.c.b16 %v3095, %v3094
        %v4343 = vpack.c.b16 %v3097, %v3096
        %v4344 = vpack.c.b16 %v3099, %v3098
        %v4345 = vpack.c.b16 %v3101, %v3100
        %v4346 = vpack.c.b16 %v3103, %v3102
        %v4347 = vpack.c.b16 %v3105, %v3104
        %v4348 = vpack.c.b16 %v3107, %v3106
        %v4349 = vpack.c.b16 %v3109, %v3108
        %v4350 = vpack.c.b16 %v3111, %v3110
        %v4351 = vpack.c.b16 %v3113, %v3112
        %v4352 = vpack.c.b16 %v3115, %v3114
        %v4353 = vpack.c.b16 %v3117, %v3116
        %v4354 = vpack.c.b16 %v3119, %v3118
        %v4355 = vpack.c.b16 %v3121, %v3120
        %v4356 = vpack.c.b16 %v3123, %v3122
        %v4357 = vpack.c.b16 %v3125, %v3124
        %v4358 = vpack.c.b16 %v3127, %v3126
        %v4359 = vpack.c.b16 %v3129, %v3128
        %v4360 = vpack.c.b16 %v3131, %v3130
        %v4361 = vpack.c.b16 %v3133, %v3132
        %v4362 = vpack.c.b16 %v3135, %v3134
        %v4363 = vpack.c.b16 %v3137, %v3136
        %v4364 = vpack.c.b16 %v3139, %v3138
        %v4365 = vpack.c.b16 %v3141, %v3140
        %v4366 = vpack.c.b16 %v3143, %v3142
        %v4367 = vpack.c.b16 %v3145, %v3144
        %v4368 = vpack.c.b16 %v3147, %v3146
        %v4369 = vpack.c.b16 %v3149, %v3148
        %v4370 = vpack.c.b16 %v3151, %v3150
        %v4371 = vpack.c.b16 %v3153, %v3152
        %v4372 = vpack.c.b16 %v3155, %v3154
        %v4373 = vpack.c.b16 %v3157, %v3156
        %v4374 = vpack.c.b16 %v3159, %v3158
        %v4375 = vpack.c.b16 %v3161, %v3160
        %v4376 = vpack.c.b16 %v3163, %v3162
        %v4377 = vpack.c.b16 %v3165, %v3164
        %v4378 = vpack.c.b16 %v3167, %v3166
        %v4379 = vpack.c.b16 %v3169, %v3168
        %v4380 = vpack.c.b16 %v3171, %v3170
        %v4381 = vpack.c.b16 %v3173, %v3172
        %v4382 = vpack.c.b16 %v3175, %v3174
        %v4383 = vpack.c.b16 %v3177, %v3176
        %v4384 = vpack.c.b16 %v3179, %v3178
        %v4385 = vpack.c.b16 %v3181, %v3180
        %v4386 = vpack.c.b16 %v3183, %v3182
        %v4387 = vpack.c.b16 %v3185, %v3184
        %v4388 = vpack.c.b16 %v3187, %v3186
        %v4389 = vpack.c.b16 %v3189, %v3188
        %v4390 = vpack.c.b16 %v3191, %v3190
        %v4391 = vpack.c.b16 %v3193, %v3192
        %v4392 = vpack.c.b16 %v3195, %v3194
        %v4393 = vpack.c.b16 %v3197, %v3196
        %v4394 = vpack.c.b16 %v3199, %v3198
        %v4395 = vpack.c.b16 %v3201, %v3200
        %v4396 = vpack.c.b16 %v3203, %v3202
        %v4397 = vpack.c.b16 %v3205, %v3204
        %v4398 = vpack.c.b16 %v3207, %v3206
        %v4399 = vpack.c.b16 %v3209, %v3208
        %v4400 = vpack.c.b16 %v3211, %v3210
        %v4401 = vpack.c.b16 %v3213, %v3212
        %v4402 = vpack.c.b16 %v3215, %v3214
        %v4403 = vpack.c.b16 %v3217, %v3216
        %v4404 = vpack.c.b16 %v3219, %v3218
        %v4405 = vpack.c.b16 %v3221, %v3220
        %v4406 = vpack.c.b16 %v3223, %v3222
        %v4407 = vpack.c.b16 %v3225, %v3224
        %v4408 = vpack.c.b16 %v3227, %v3226
        %v4409 = vpack.c.b16 %v3229, %v3228
        %v4410 = vpack.c.b16 %v3231, %v3230
        %v4411 = vpack.c.b16 %v3233, %v3232
        %v4412 = vpack.c.b16 %v3235, %v3234
        %v4413 = vpack.c.b16 %v3237, %v3236
        %v4414 = vpack.c.b16 %v3239, %v3238
        %v4415 = vpack.c.b16 %v3241, %v3240
        %v4416 = vpack.c.b16 %v3243, %v3242
        %v4417 = vpack.c.b16 %v3245, %v3244
        %v4418 = vpack.c.b16 %v3247, %v3246
        %v4419 = vpack.c.b16 %v3249, %v3248
        %v4420 = vpack.c.b16 %v3251, %v3250
        %v4421 = vpack.c.b16 %v3253, %v3252
        %v4422 = vpack.c.b16 %v3255, %v3254
        %v4423 = vpack.c.b16 %v3257, %v3256
        %v4424 = vpack.c.b16 %v3259, %v3258
        %v4425 = vpack.c.b16 %v3261, %v3260
        %v4426 = vpack.c.b16 %v3263, %v3262
        %v4427 = vpack.c.b16 %v3265, %v3264
        %v4428 = vpack.c.b16 %v3267, %v3266
        %v4429 = vpack.c.b16 %v3269, %v3268
        %v4430 = vpack.c.b16 %v3271, %v3270
        %v4431 = vpack.c.b16 %v3273, %v3272
        %v4432 = vpack.c.b16 %v3275, %v3274
        %v4433 = vpack.c.b16 %v3277, %v3276
        %v4434 = vpack.c.b16 %v3279, %v3278
        %v4435 = vpack.c.b16 %v3281, %v3280
        %v4436 = vpack.c.b16 %v3283, %v3282
        %v4437 = vpack.c.b16 %v3285, %v3284
        %v4438 = vpack.c.b16 %v3287, %v3286
        %v4439 = vpack.c.b16 %v3289, %v3288
        %v4440 = vpack.c.b16 %v3291, %v3290
        %v4441 = vpack.c.b16 %v3293, %v3292
        %v4442 = vpack.c.b16 %v3295, %v3294
        %v4443 = vpack.c.b16 %v3297, %v3296
        %v4444 = vpack.c.b16 %v3299, %v3298
        %v4445 = vpack.c.b16 %v3301, %v3300
        %v4446 = vpack.c.b16 %v3303, %v3302
        %v4447 = vpack.c.b16 %v3305, %v3304
        %v4448 = vpack.c.b16 %v3307, %v3306
        %v4449 = vpack.c.b16 %v3309, %v3308
        %v4450 = vpack.c.b16 %v3311, %v3310
        %v4451 = vpack.c.b16 %v3313, %v3312
        %v4452 = vpack.c.b16 %v3315, %v3314
        %v4453 = vpack.c.b16 %v3317, %v3316
        %v4454 = vpack.c.b16 %v3319, %v3318
        %v4455 = vpack.c.b16 %v3321, %v3320
        %v4456 = vpack.c.b16 %v3323, %v3322
        %v4457 = vpack.c.b16 %v3325, %v3324
        %v4458 = vpack.c.b16 %v3327, %v3326
        %v4459 = vpack.c.b16 %v3329, %v3328
        %v4460 = vpack.c.b16 %v3331, %v3330
        %v4461 = vpack.c.b16 %v3333, %v3332
        %v4462 = vpack.c.b16 %v3335, %v3334
        %v4463 = vpack.c.b16 %v3337, %v3336
        %v4464 = vpack.c.b16 %v3339, %v3338
        %v4465 = vpack.c.b16 %v3341, %v3340
        %v4466 = vpack.c.b16 %v3343, %v3342
        %v4467 = vpack.c.b16 %v3345, %v3344
        %v4468 = vpack.c.b16 %v3347, %v3346
        %v4469 = vpack.c.b16 %v3349, %v3348
        %v4470 = vpack.c.b16 %v3351, %v3350
        %v4471 = vpack.c.b16 %v3353, %v3352
        %v4472 = vpack.c.b16 %v3355, %v3354
        %v4473 = vpack.c.b16 %v3357, %v3356
        %v4474 = vpack.c.b16 %v3359, %v3358
        %v4475 = vpack.c.b16 %v3361, %v3360
        %v4476 = vpack.c.b16 %v3363, %v3362
        %v4477 = vpack.c.b16 %v3365, %v3364
        %v4478 = vpack.c.b16 %v3367, %v3366
        %v4479 = vpack.c.b16 %v3369, %v3368
        %v4480 = vpack.c.b16 %v3371, %v3370
        %v4481 = vpack.c.b16 %v3373, %v3372
        %v4482 = vpack.c.b16 %v3375, %v3374
        %v4483 = vpack.c.b16 %v3377, %v3376
        %v4484 = vpack.c.b16 %v3379, %v3378
        %v4485 = vpack.c.b16 %v3381, %v3380
        %v4486 = vpack.c.b16 %v3383, %v3382
        %v4487 = vpack.c.b16 %v3385, %v3384
        %v4488 = vpack.c.b16 %v3387, %v3386
        %v4489 = vpack.c.b16 %v3389, %v3388
        %v4490 = vpack.c.b16 %v3391, %v3390
        %v4491 = vpack.c.b16 %v3393, %v3392
        %v4492 = vpack.c.b16 %v3395, %v3394
        %v4493 = vpack.c.b16 %v3397, %v3396
        %v4494 = vpack.c.b16 %v3399, %v3398
        %v4495 = vpack.c.b16 %v3401, %v3400
        %v4496 = vpack.c.b16 %v3403, %v3402
        %v4497 = vpack.c.b16 %v3405, %v3404
        %v4498 = vpack.c.b16 %v3407, %v3406
        %v4499 = vpack.c.b16 %v3409, %v3408
        %v4500 = vpack.c.b16 %v3411, %v3410
        %v4501 = vpack.c.b16 %v3413, %v3412
        %v4502 = vpack.c.b16 %v3415, %v3414
        %v4503 = vpack.c.b16 %v3417, %v3416
        %v4504 = vpack.c.b16 %v3419, %v3418
        %v4505 = vpack.c.b16 %v3421, %v3420
        %v4506 = vpack.c.b16 %v3423, %v3422
        %v4507 = vpack.c.b16 %v3425, %v3424
        %v4508 = vpack.c.b16 %v3427, %v3426
        %v4509 = vpack.c.b16 %v3429, %v3428
        %v4510 = vpack.c.b16 %v3431, %v3430
        %v4511 = vpack.c.b16 %v3433, %v3432
        %v4512 = vpack.c.b16 %v3435, %v3434
        %v4513 = vpack.c.b16 %v3437, %v3436
        %v4514 = vpack.c.b16 %v3439, %v3438
        %v4515 = vpack.c.b16 %v3441, %v3440
        %v4516 = vpack.c.b16 %v3443, %v3442
        %v4517 = vpack.c.b16 %v3445, %v3444
        %v4518 = vpack.c.b16 %v3447, %v3446
        %v4519 = vpack.c.b16 %v3449, %v3448
        %v4520 = vpack.c.b16 %v3451, %v3450
        %v4521 = vpack.c.b16 %v3453, %v3452
        %v4522 = vpack.c.b16 %v3455, %v3454
        %v4523 = vpack.c.b16 %v3457, %v3456
        %v4524 = vpack.c.b16 %v3459, %v3458
        %v4525 = vpack.c.b16 %v3461, %v3460
        %v4526 = vpack.c.b16 %v3463, %v3462
        %v4527 = vpack.c.b16 %v3465, %v3464
        %v4528 = vpack.c.b16 %v3467, %v3466
        %v4529 = vpack.c.b16 %v3469, %v3468
        %v4530 = vpack.c.b16 %v3471, %v3470
        %v4531 = vpack.c.b16 %v3473, %v3472
        %v4532 = vpack.c.b16 %v3475, %v3474
        %v4533 = vpack.c.b16 %v3477, %v3476
        %v4534 = vpack.c.b16 %v3479, %v3478
        %v4535 = vpack.c.b16 %v3481, %v3480
        %v4536 = vpack.c.b16 %v3483, %v3482
        %v4537 = vpack.c.b16 %v3485, %v3484
        %v4538 = vpack.c.b16 %v3487, %v3486
        %v4539 = vpack.c.b16 %v3489, %v3488
        %v4540 = vpack.c.b16 %v3491, %v3490
        %v4541 = vpack.c.b16 %v3493, %v3492
        %v4542 = vpack.c.b16 %v3495, %v3494
        %v4543 = vpack.c.b16 %v3497, %v3496
        %v4544 = vpack.c.b16 %v3499, %v3498
        %v4545 = vpack.c.b16 %v3501, %v3500
        %v4546 = vpack.c.b16 %v3503, %v3502
        %v4547 = vpack.c.b16 %v3505, %v3504
        %v4548 = vpack.c.b16 %v3507, %v3506
        %v4549 = vpack.c.b16 %v3509, %v3508
        %v4550 = vpack.c.b16 %v3511, %v3510
        %v4551 = vpack.c.b16 %v3513, %v3512
        %v4552 = vpack.c.b16 %v3515, %v3514
        %v4553 = vpack.c.b16 %v3517, %v3516
        %v4554 = vpack.c.b16 %v3519, %v3518
        %v4555 = vpack.c.b16 %v3521, %v3520
        %v4556 = vpack.c.b16 %v3523, %v3522
        %v4557 = vpack.c.b16 %v3525, %v3524
        %v4558 = vpack.c.b16 %v3527, %v3526
        %v4559 = vpack.c.b16 %v3529, %v3528
        %v4560 = vpack.c.b16 %v3531, %v3530
        %v4561 = vpack.c.b16 %v3533, %v3532
        %v4562 = vpack.c.b16 %v3535, %v3534
        %v4563 = vpack.c.b16 %v3537, %v3536
        %v4564 = vpack.c.b16 %v3539, %v3538
        %v4565 = vpack.c.b16 %v3541, %v3540
        %v4566 = vpack.c.b16 %v3543, %v3542
        %v4567 = vpack.c.b16 %v3545, %v3544
        %v4568 = vpack.c.b16 %v3547, %v3546
        %v4569 = vpack.c.b16 %v3549, %v3548
        %v4570 = vpack.c.b16 %v3551, %v3550
        %v4571 = vpack.c.b16 %v3553, %v3552
        %v4572 = vpack.c.b16 %v3555, %v3554
        %v4573 = vpack.c.b16 %v3557, %v3556
        %v4574 = vpack.c.b16 %v3559, %v3558
        %v4575 = vpack.c.b16 %v3561, %v3560
        %v4576 = vpack.c.b16 %v3563, %v3562
        %v4577 = vpack.c.b16 %v3565, %v3564
        %v4578 = vpack.c.b16 %v3567, %v3566
        %v4579 = vpack.c.b16 %v3569, %v3568
        %v4580 = vpack.c.b16 %v3571, %v3570
        %v4581 = vpack.c.b16 %v3573, %v3572
        %v4582 = vpack.c.b16 %v3575, %v3574
        %v4583 = vpack.c.b16 %v3577, %v3576
        %v4584 = vpack.c.b16 %v3579, %v3578
        %v4585 = vpack.c.b16 %v3581, %v3580
        %v4586 = vpack.c.b16 %v3583, %v3582
        %v4587 = vpack.c.b16 %v3585, %v3584
        %v4588 = vpack.c.b16 %v3587, %v3586
        %v4589 = vpack.c.b16 %v3589, %v3588
        %v4590 = vpack.c.b16 %v3591, %v3590
        %v4591 = vpack.c.b16 %v3593, %v3592
        %v4592 = vpack.c.b16 %v3595, %v3594
        %v4593 = vpack.c.b16 %v3597, %v3596
        %v4594 = vpack.c.b16 %v3599, %v3598
        %v4595 = vpack.c.b16 %v3601, %v3600
        %v4596 = vpack.c.b16 %v3603, %v3602
        %v4597 = vpack.c.b16 %v3605, %v3604
        %v4598 = vpack.c.b16 %v3607, %v3606
        %v4599 = vpack.c.b16 %v3609, %v3608
        %v4600 = vpack.c.b16 %v3611, %v3610
        %v4601 = vpack.c.b16 %v3613, %v3612
        %v4602 = vpack.c.b16 %v3615, %v3614
        %v4603 = vpack.c.b16 %v3617, %v3616
        %v4604 = vpack.c.b16 %v3619, %v3618
        %v4605 = vpack.c.b16 %v3621, %v3620
        %v4606 = vpack.c.b16 %v3623, %v3622
        %v4607 = vpack.c.b16 %v3625, %v3624
        %v4608 = vpack.c.b16 %v3627, %v3626
        %v4609 = vpack.c.b16 %v3629, %v3628
        %v4610 = vpack.c.b16 %v3631, %v3630
        %v4611 = vpack.c.b16 %v3633, %v3632
        %v4612 = vpack.c.b16 %v3635, %v3634
        %v4613 = vpack.c.b16 %v3637, %v3636
        %v4614 = vpack.c.b16 %v3639, %v3638
        %v4615 = vpack.c.b16 %v3641, %v3640
        %v4616 = vpack.c.b16 %v3643, %v3642
        %v4617 = vpack.c.b16 %v3645, %v3644
        %v4618 = vpack.c.b16 %v3647, %v3646
        %v4619 = vpack.c.b16 %v3649, %v3648
        %v4620 = vpack.c.b16 %v3651, %v3650
        %v4621 = vpack.c.b16 %v3653, %v3652
        %v4622 = vpack.c.b16 %v3655, %v3654
        %v4623 = vpack.c.b16 %v3657, %v3656
        %v4624 = vpack.c.b16 %v3659, %v3658
        %v4625 = vpack.c.b16 %v3661, %v3660
        %v4626 = vpack.c.b16 %v3663, %v3662
        %v4627 = vpack.c.b16 %v3665, %v3664
        %v4628 = vpack.c.b16 %v3667, %v3666
        %v4629 = vpack.c.b16 %v3669, %v3668
        %v4630 = vpack.c.b16 %v3671, %v3670
        %v4631 = vpack.c.b16 %v3673, %v3672
        %v4632 = vpack.c.b16 %v3675, %v3674
        %v4633 = vpack.c.b16 %v3677, %v3676
        %v4634 = vpack.c.b16 %v3679, %v3678
        %v4635 = vpack.c.b16 %v3681, %v3680
        %v4636 = vpack.c.b16 %v3683, %v3682
        %v4637 = vpack.c.b16 %v3685, %v3684
        %v4638 = vpack.c.b16 %v3687, %v3686
        %v4639 = vpack.c.b16 %v3689, %v3688
        %v4640 = vpack.c.b16 %v3691, %v3690
        %v4641 = vpack.c.b16 %v3693, %v3692
        %v4642 = vpack.c.b16 %v3695, %v3694
        %v4643 = vpack.c.b16 %v3697, %v3696
        %v4644 = vpack.c.b16 %v3699, %v3698
        %v4645 = vpack.c.b16 %v3701, %v3700
        %v4646 = vpack.c.b16 %v3703, %v3702
        %v4647 = vpack.c.b16 %v3705, %v3704
        %v4648 = vpack.c.b16 %v3707, %v3706
        %v4649 = vpack.c.b16 %v3709, %v3708
        %v4650 = vpack.c.b16 %v3711, %v3710
        %v4651 = vpack.c.b16 %v3713, %v3712
        %v4652 = vpack.c.b16 %v3715, %v3714
        %v4653 = vpack.c.b16 %v3717, %v3716
        %v4654 = vpack.c.b16 %v3719, %v3718
        %v4655 = vpack.c.b16 %v3721, %v3720
        %v4656 = vpack.c.b16 %v3723, %v3722
        %v4657 = vpack.c.b16 %v3725, %v3724
        %v4658 = vpack.c.b16 %v3727, %v3726
        %v4659 = vpack.c.b16 %v3729, %v3728
        %v4660 = vpack.c.b16 %v3731, %v3730
        %v4661 = vpack.c.b16 %v3733, %v3732
        %v4662 = vpack.c.b16 %v3735, %v3734
        %v4663 = vpack.c.b16 %v3737, %v3736
        %v4664 = vpack.c.b16 %v3739, %v3738
        %v4665 = vpack.c.b16 %v3741, %v3740
        %v4666 = vpack.c.b16 %v3743, %v3742
        %v4667 = vpack.c.b16 %v3745, %v3744
        %v4668 = vpack.c.b16 %v3747, %v3746
        %v4669 = vpack.c.b16 %v3749, %v3748
        %v4670 = vpack.c.b16 %v3751, %v3750
        %v4671 = vpack.c.b16 %v3753, %v3752
        %v4672 = vpack.c.b16 %v3755, %v3754
        %v4673 = vpack.c.b16 %v3757, %v3756
        %v4674 = vpack.c.b16 %v3759, %v3758
        %v4675 = vpack.c.b16 %v3761, %v3760
        %v4676 = vpack.c.b16 %v3763, %v3762
        %v4677 = vpack.c.b16 %v3765, %v3764
        %v4678 = vpack.c.b16 %v3767, %v3766
        %v4679 = vpack.c.b16 %v3769, %v3768
        %v4680 = vpack.c.b16 %v3771, %v3770
        %v4681 = vpack.c.b16 %v3773, %v3772
        %v4682 = vpack.c.b16 %v3775, %v3774
        %v4683 = vpack.c.b16 %v3777, %v3776
        %v4684 = vpack.c.b16 %v3779, %v3778
        %v4685 = vpack.c.b16 %v3781, %v3780
        %v4686 = vpack.c.b16 %v3783, %v3782
        %v4687 = vpack.c.b16 %v3785, %v3784
        %v4688 = vpack.c.b16 %v3787, %v3786
        %v4689 = vpack.c.b16 %v3789, %v3788
        %v4690 = vpack.c.b16 %v3791, %v3790
        %v4691 = vpack.c.b16 %v3793, %v3792
        %v4692 = vpack.c.b16 %v3795, %v3794
        %v4693 = vpack.c.b16 %v3797, %v3796
        %v4694 = vpack.c.b16 %v3799, %v3798
        %v4695 = vpack.c.b16 %v3801, %v3800
        %v4696 = vpack.c.b16 %v3803, %v3802
        %v4697 = vpack.c.b16 %v3805, %v3804
        %v4698 = vpack.c.b16 %v3807, %v3806
        %v4699 = vpack.c.b16 %v3809, %v3808
        %v4700 = vpack.c.b16 %v3811, %v3810
        %v4701 = vpack.c.b16 %v3813, %v3812
        %v4702 = vpack.c.b16 %v3815, %v3814
        %v4703 = vpack.c.b16 %v3817, %v3816
        %v4704 = vpack.c.b16 %v3819, %v3818
        %v4705 = vpack.c.b16 %v3821, %v3820
        %v4706 = vpack.c.b16 %v3823, %v3822
        %v4707 = vpack.c.b16 %v3825, %v3824
        %v4708 = vpack.c.b16 %v3827, %v3826
        %v4709 = vpack.c.b16 %v3829, %v3828
        %v4710 = vpack.c.b16 %v3831, %v3830
        %v4711 = vpack.c.b16 %v3833, %v3832
        %v4712 = vpack.c.b16 %v3835, %v3834
        %v4713 = vpack.c.b16 %v3837, %v3836
        %v4714 = vpack.c.b16 %v3839, %v3838
        %v4715 = vpack.c.b16 %v3841, %v3840
        %v4716 = vpack.c.b16 %v3843, %v3842
        %v4717 = vpack.c.b16 %v3845, %v3844
        %v4718 = vpack.c.b16 %v3847, %v3846
        %v4719 = vpack.c.b16 %v3849, %v3848
        %v4720 = vpack.c.b16 %v3851, %v3850
        %v4721 = vpack.c.b16 %v3853, %v3852
        %v4722 = vpack.c.b16 %v3855, %v3854
        %v4723 = vpack.c.b16 %v3857, %v3856
        %v4724 = vpack.c.b16 %v3859, %v3858
        %v4725 = vpack.c.b16 %v3861, %v3860
        %v4726 = vpack.c.b16 %v3863, %v3862
        %v4727 = vpack.c.b16 %v3865, %v3864
        %v4728 = vpack.c.b16 %v3867, %v3866
        %v4729 = vpack.c.b16 %v3869, %v3868
        %v4730 = vpack.c.b16 %v3871, %v3870
        %v4731 = vpack.c.b16 %v3873, %v3872
        %v4732 = vpack.c.b16 %v3875, %v3874
        %v4733 = vpack.c.b16 %v3877, %v3876
        %v4734 = vpack.c.b16 %v3879, %v3878
        %v4735 = vpack.c.b16 %v3881, %v3880
        %v4736 = vpack.c.b16 %v3883, %v3882
        %v4737 = vpack.c.b16 %v3885, %v3884
        %v4738 = vpack.c.b16 %v3887, %v3886
        %v4739 = vpack.c.b16 %v3889, %v3888
        %v4740 = vpack.c.b16 %v3891, %v3890
        %v4741 = vpack.c.b16 %v3893, %v3892
        %v4742 = vpack.c.b16 %v3895, %v3894
        %v4743 = vpack.c.b16 %v3897, %v3896
        %v4744 = vpack.c.b16 %v3899, %v3898
        %v4745 = vpack.c.b16 %v3901, %v3900
        %v4746 = vpack.c.b16 %v3903, %v3902
        %v4747 = vpack.c.b16 %v3905, %v3904
        %v4748 = vpack.c.b16 %v3907, %v3906
        %v4749 = vpack.c.b16 %v3909, %v3908
        %v4750 = vpack.c.b16 %v3911, %v3910
        %v4751 = vpack.c.b16 %v3913, %v3912
        %v4752 = vpack.c.b16 %v3915, %v3914
        %v4753 = vpack.c.b16 %v3917, %v3916
        %v4754 = vpack.c.b16 %v3919, %v3918
        %v4755 = vpack.c.b16 %v3921, %v3920
        %v4756 = vpack.c.b16 %v3923, %v3922
        %v4757 = vpack.c.b16 %v3925, %v3924
        %v4758 = vpack.c.b16 %v3927, %v3926
        %v4759 = vpack.c.b16 %v3929, %v3928
        %v4760 = vpack.c.b16 %v3931, %v3930
        %v4761 = vpack.c.b16 %v3933, %v3932
        %v4762 = vpack.c.b16 %v3935, %v3934
        %v4763 = vpack.c.b16 %v3937, %v3936
        %v4764 = vpack.c.b16 %v3939, %v3938
        %v4765 = vpack.c.b16 %v3941, %v3940
        %v4766 = vpack.c.b16 %v3943, %v3942
        %v4767 = vpack.c.b16 %v3945, %v3944
        %v4768 = vpack.c.b16 %v3947, %v3946
        %v4769 = vpack.c.b16 %v3949, %v3948
        %v4770 = vpack.c.b16 %v3951, %v3950
        %v4771 = vpack.c.b16 %v3953, %v3952
        %v4772 = vpack.c.b16 %v3955, %v3954
        %v4773 = vpack.c.b16 %v3957, %v3956
        %v4774 = vpack.c.b16 %v3959, %v3958
        %v4775 = vpack.c.b16 %v3961, %v3960
        %v4776 = vpack.c.b16 %v3963, %v3962
        %v4777 = vpack.c.b16 %v3965, %v3964
        %v4778 = vpack.c.b16 %v3967, %v3966
        %v4779 = vpack.c.b16 %v3969, %v3968
        %v4780 = vpack.c.b16 %v3971, %v3970
        %v4781 = vpack.c.b16 %v3973, %v3972
        %v4782 = vpack.c.b16 %v3975, %v3974
        %v4783 = vpack.c.b16 %v3977, %v3976
        %v4784 = vpack.c.b16 %v3979, %v3978
        %v4785 = vpack.c.b16 %v3981, %v3980
        %v4786 = vpack.c.b16 %v3983, %v3982
        %v4787 = vpack.c.b16 %v3985, %v3984
        %v4788 = vpack.c.b16 %v3987, %v3986
        %v4789 = vpack.c.b16 %v3989, %v3988
        %v4790 = vpack.c.b16 %v3991, %v3990
        %v4791 = vpack.c.b16 %v3993, %v3992
        %v4792 = vpack.c.b16 %v3995, %v3994
        %v4793 = vpack.c.b16 %v3997, %v3996
        %v4794 = vpack.c.b16 %v3999, %v3998
        %v4795 = vpack.c.b16 %v4001, %v4000
        %v4796 = vpack.c.b16 %v4003, %v4002
        %v4797 = vpack.c.b16 %v4005, %v4004
        %v4798 = vpack.c.b16 %v4007, %v4006
        %v4799 = vpack.c.b16 %v4009, %v4008
        %v4800 = vpack.c.b16 %v4011, %v4010
        %v4801 = vpack.c.b16 %v4013, %v4012
        %v4802 = vpack.c.b16 %v4015, %v4014
        %v4803 = vpack.c.b16 %v4017, %v4016
        %v4804 = vpack.c.b16 %v4019, %v4018
        %v4805 = vpack.c.b16 %v4021, %v4020
        %v4806 = vpack.c.b16 %v4023, %v4022
        %v4807 = vpack.c.b16 %v4025, %v4024
        %v4808 = vpack.c.b16 %v4027, %v4026
        %v4809 = vpack.c.b16 %v4029, %v4028
        %v4810 = vpack.c.b16 %v4031, %v4030
        %v4811 = vpack.c.b16 %v4033, %v4032
        %v4812 = vpack.c.b16 %v4035, %v4034
        %v4813 = vpack.c.b16 %v4037, %v4036
        %v4814 = vpack.c.b16 %v4039, %v4038
        %v4815 = vpack.c.b16 %v4041, %v4040
        %v4816 = vpack.c.b16 %v4043, %v4042
        %v4817 = vpack.c.b16 %v4045, %v4044
        %v4818 = vpack.c.b16 %v4047, %v4046
        %v4819 = vpack.c.b16 %v4049, %v4048
        %v4820 = vpack.c.b16 %v4051, %v4050
        %v4821 = vpack.c.b16 %v4053, %v4052
        %v4822 = vpack.c.b16 %v4055, %v4054
        %v4823 = vpack.c.b16 %v4057, %v4056
        %v4824 = vpack.c.b16 %v4059, %v4058
        %v4825 = vpack.c.b16 %v4061, %v4060
        %v4826 = vpack.c.b16 %v4063, %v4062
        %v4827 = vpack.c.b16 %v4065, %v4064
        %v4828 = vpack.c.b16 %v4067, %v4066
        %v4829 = vpack.c.b16 %v4069, %v4068
        %v4830 = vpack.c.b16 %v4071, %v4070
        %v4831 = vpack.c.b16 %v4073, %v4072
        %v4832 = vpack.c.b16 %v4075, %v4074
        %v4833 = vpack.c.b16 %v4077, %v4076
        %v4834 = vpack.c.b16 %v4079, %v4078
        %v4835 = vpack.c.b16 %v4081, %v4080
        %v4836 = vpack.c.b16 %v4083, %v4082
        %v4837 = vpack.c.b16 %v4085, %v4084
        %v4838 = vpack.c.b16 %v4087, %v4086
        %v4839 = vpack.c.b16 %v4089, %v4088
        %v4840 = vpack.c.b16 %v4091, %v4090
        %v4841 = vpack.c.b16 %v4093, %v4092
        %v4842 = vpack.c.b16 %v4095, %v4094
        %v4843 = vpack.c.b16 %v4097, %v4096
        %v4844 = vpack.c.b16 %v4099, %v4098
        %v4845 = vpack.c.b16 %v4101, %v4100
        %v4846 = vpack.c.b16 %v4103, %v4102
        %v4847 = vpack.c.b16 %v4105, %v4104
        %v4848 = vpack.c.b16 %v4107, %v4106
        %v4849 = vpack.c.b16 %v4109, %v4108
        %v4850 = vpack.c.b16 %v4111, %v4110
        %v4851 = vpack.c.b16 %v4113, %v4112
        %v4852 = vpack.c.b16 %v4115, %v4114
        %v4853 = vpack.c.b16 %v4117, %v4116
        %v4854 = vpack.c.b16 %v4119, %v4118
        %v4855 = vpack.c.b16 %v4121, %v4120
        %v4856 = vpack.c.b16 %v4123, %v4122
        %v4857 = vpack.c.b16 %v4125, %v4124
        %v4858 = vpack.c.b16 %v4127, %v4126
        %v4859 = vpack.c.b16 %v4129, %v4128
        %v4860 = vpack.c.b16 %v4131, %v4130
        %v4861 = vpack.c.b16 %v4133, %v4132
        %v4862 = vpack.c.b16 %v4135, %v4134
        %v4863 = vpack.c.b16 %v4137, %v4136
        %v4864 = vpack.c.b16 %v4139, %v4138
        %v4865 = vpack.c.b16 %v4141, %v4140
        %v4866 = vpack.c.b16 %v4143, %v4142
        %v4867 = vpack.c.b16 %v4145, %v4144
        %v4868 = vpack.c.b16 %v4147, %v4146
        %v4869 = vpack.c.b16 %v4149, %v4148
        %v4870 = vpack.c.b16 %v4151, %v4150
        %v4871 = vpack.c.b16 %v4153, %v4152
        %v4872 = vpack.c.b16 %v4155, %v4154
        %v4873 = vpack.c.b16 %v4157, %v4156
        %v4874 = vpack.c.b16 %v4159, %v4158
        %v4875 = vpack.c.b16 %v4161, %v4160
        %v4876 = vpack.c.b16 %v4163, %v4162
        %v4877 = vpack.c.b16 %v4165, %v4164
        %v4878 = vpack.c.b16 %v4167, %v4166
        %v4879 = vpack.c.b16 %v4169, %v4168
        %v4880 = vpack.c.b16 %v4171, %v4170
        %v4881 = vpack.c.b16 %v4173, %v4172
        %v4882 = vpack.c.b16 %v4175, %v4174
        %v4883 = vpack.c.b16 %v4177, %v4176
        %v4884 = vpack.c.b16 %v4179, %v4178
        %v4885 = vpack.c.b16 %v4181, %v4180
        %v4886 = vpack.c.b16 %v4183, %v4182
        %v4887 = vpack.c.b16 %v4185, %v4184
        %v4888 = vpack.c.b16 %v4187, %v4186
        %v4889 = vpack.c.b16 %v4189, %v4188
        %v4890 = vpack.c.b16 %v4191, %v4190
        %v4891 = vpack.c.b16 %v4193, %v4192
        %v4892 = vpack.c.b16 %v4195, %v4194
        %v4893 = vpack.c.b16 %v4197, %v4196
        %v4894 = vpack.c.b16 %v4199, %v4198
        %v4895 = vpack.c.b16 %v4201, %v4200
        %v4896 = vpack.c.b16 %v4203, %v4202
        %v4897 = vpack.c.b16 %v4205, %v4204
        %v4898 = vpack.c.b16 %v4207, %v4206
        %v4899 = vpack.c.b16 %v4209, %v4208
        %v4900 = vpack.c.b16 %v4211, %v4210
        %v4901 = vpack.c.b16 %v4213, %v4212
        %v4902 = vpack.c.b16 %v4215, %v4214
        %v4903 = vpack.c.b16 %v4217, %v4216
        %v4904 = vpack.c.b16 %v4219, %v4218
        %v4905 = vpack.c.b16 %v4221, %v4220
        %v4906 = vpack.c.b16 %v4223, %v4222
        %v4907 = vpack.c.b16 %v4225, %v4224
        %v4908 = vpack.c.b16 %v4227, %v4226
        %v4909 = vpack.c.b16 %v4229, %v4228
        %v4910 = vpack.c.b16 %v4231, %v4230
        %v4911 = vpack.c.b16 %v4233, %v4232
        %v4912 = vpack.c.b16 %v4235, %v4234
        %v4913 = vpack.c.b16 %v4237, %v4236
        %v4914 = vpack.c.b16 %v4239, %v4238
        %v4915 = vpack.c.b16 %v4241, %v4240
        %v4916 = vpack.c.b16 %v4243, %v4242
        %v4917 = vpack.c.b16 %v4245, %v4244
        %v4918 = vpack.c.b16 %v4247, %v4246
        %v4919 = vpack.c.b16 %v4249, %v4248
        %v4920 = vpack.c.b16 %v4251, %v4250
        %v4921 = vpack.c.b16 %v4253, %v4252
        %v4922 = vpack.c.b16 %v4255, %v4254
        %v4923 = vpack.c.b16 %v4257, %v4256
        %v4924 = vpack.c.b16 %v4259, %v4258
        %v4925 = vpack.c.b16 %v4261, %v4260
        %v4926 = vpack.c.b16 %v4263, %v4262
        %v4927 = vpack.c.b16 %v4265, %v4264
        %v4928 = vpack.c.b16 %v4267, %v4266
        %v4929 = vpack.c.b16 %v4269, %v4268
        %v4930 = vpack.c.b16 %v4271, %v4270
        %v4931 = vpack.c.b16 %v4273, %v4272
        %v4932 = vpack.c.b16 %v4275, %v4274
        %v4933 = vpack.c.b16 %v4277, %v4276
        %v4934 = vpack.c.b16 %v4279, %v4278
        %v4935 = vpack.c.b16 %v4281, %v4280
        %v4936 = vpack.c.b16 %v4283, %v4282
        %v4937 = vpack.c.b16 %v4285, %v4284
        %v4938 = vpack.c.b16 %v4287, %v4286
        %v4939 = vpack.c.b16 %v4289, %v4288
        %v4940 = vpack.c.b16 %v4291, %v4290
        %v4941 = vpack.c.b16 %v4293, %v4292
        %v4942 = vpack.c.b16 %v4295, %v4294
        %v4943 = vpack.c.b16 %v4297, %v4296
        %v4944 = vpack.c.b16 %v4299, %v4298
        %v4945 = vpack.c.b16 %v4301, %v4300
        %v4946 = vpack.c.b16 %v4303, %v4302
        %v4947 = vpack.c.b16 %v4305, %v4304
        %v4948 = vpack.c.b16 %v4307, %v4306
        %v4949 = vpack.c.b16 %v4309, %v4308
        %5590 = vmatprep.subr.bf16.mxu0 0
        %5591 = vmatpush1.bf16.msra.mxu0 %v4317
        %5592 = vmatprep.subr.bf16.mxu0 0
        %5593 = vmatpush1.bf16.msra.mxu0 %v4316
        %5594 = vmatprep.subr.bf16.mxu0 0
        %5595 = vmatpush1.bf16.msra.mxu0 %v4315
        %5596 = vmatprep.subr.bf16.mxu0 0
        %5597 = vmatpush1.bf16.msra.mxu0 %v4314
        %5598 = vmatprep.subr.bf16.mxu0 0
        %5599 = vmatpush1.bf16.msra.mxu0 %v4313
        %5600 = vmatprep.subr.bf16.mxu0 0
        %5601 = vmatpush1.bf16.msra.mxu0 %v4312
        %5602 = vmatprep.subr.bf16.mxu0 0
        %5603 = vmatpush1.bf16.msra.mxu0 %v4311
        %5604 = vmatprep.subr.bf16.mxu0 0
        %5605 = vmatpush1.bf16.msra.mxu0 %v4310
        %5606 = vmatprep.subr.bf16.mxu0 0
        %5607 = vmatpush2.bf16.msra.mxu0 %v4325
        %5608 = vmatprep.subr.bf16.mxu0 0
        %5609 = vmatpush2.bf16.msra.mxu0 %v4324
        %5610 = vmatprep.subr.bf16.mxu0 0
        %5611 = vmatpush2.bf16.msra.mxu0 %v4323
        %5612 = vmatprep.subr.bf16.mxu0 0
        %5613 = vmatpush2.bf16.msra.mxu0 %v4322
        %5614 = vmatprep.subr.bf16.mxu0 0
        %5615 = vmatpush2.bf16.msra.mxu0 %v4321
        %5616 = vmatprep.subr.bf16.mxu0 0
        %5617 = vmatpush2.bf16.msra.mxu0 %v4320
        %5618 = vmatprep.subr.bf16.mxu0 0
        %5619 = vmatpush2.bf16.msra.mxu0 %v4319
        %5620 = vmatprep.subr.bf16.mxu0 0
        %5621 = vmatpush2.bf16.msra.mxu0 %v4318
        %5622 = vmatprep.mubr.bf16.mxu0 %v390
        %5623 = vmatmul.mubr.bf16.gmra.mxu0 %v389
        %v5624 = vpop.f32.mrf.mxu0
        %v5625 = vadd.f32 %v1749, %v5624
        %v5626 = vpop.f32.mrf.mxu0
        %v5627 = vpop.f32.mrf.mxu0
        %v5628 = vpop.f32.mrf.mxu0
        %5629 = vdwg.mxu0
        %5630 = vmatprep.subr.bf16.mxu0 0
        %5631 = vmatpush1.bf16.msra.mxu0 %v4333
        %5632 = vmatprep.subr.bf16.mxu0 0
        %5633 = vmatpush1.bf16.msra.mxu0 %v4332
        %5634 = vmatprep.subr.bf16.mxu0 0
        %5635 = vmatpush1.bf16.msra.mxu0 %v4331
        %5636 = vmatprep.subr.bf16.mxu0 0
        %5637 = vmatpush1.bf16.msra.mxu0 %v4330
        %5638 = vmatprep.subr.bf16.mxu0 0
        %5639 = vmatpush1.bf16.msra.mxu0 %v4329
        %5640 = vmatprep.subr.bf16.mxu0 0
        %5641 = vmatpush1.bf16.msra.mxu0 %v4328
        %5642 = vmatprep.subr.bf16.mxu0 0
        %5643 = vmatpush1.bf16.msra.mxu0 %v4327
        %5644 = vmatprep.subr.bf16.mxu0 0
        %5645 = vmatpush1.bf16.msra.mxu0 %v4326
        %5646 = vmatprep.subr.bf16.mxu0 0
        %5647 = vmatpush2.bf16.msra.mxu0 %v4341
        %5648 = vmatprep.subr.bf16.mxu0 0
        %5649 = vmatpush2.bf16.msra.mxu0 %v4340
        %5650 = vmatprep.subr.bf16.mxu0 0
        %5651 = vmatpush2.bf16.msra.mxu0 %v4339
        %5652 = vmatprep.subr.bf16.mxu0 0
        %5653 = vmatpush2.bf16.msra.mxu0 %v4338
        %5654 = vmatprep.subr.bf16.mxu0 0
        %5655 = vmatpush2.bf16.msra.mxu0 %v4337
        %5656 = vmatprep.subr.bf16.mxu0 0
        %5657 = vmatpush2.bf16.msra.mxu0 %v4336
        %5658 = vmatprep.subr.bf16.mxu0 0
        %5659 = vmatpush2.bf16.msra.mxu0 %v4335
        %5660 = vmatprep.subr.bf16.mxu0 0
        %5661 = vmatpush2.bf16.msra.mxu0 %v4334
        %5662 = vmatprep.mubr.bf16.mxu0 %v392
        %5663 = vmatmul.mubr.bf16.gmra.mxu0 %v391
        %v5664 = vpop.f32.mrf.mxu0
        %v5665 = vadd.f32 %v5625, %v5664
        %v5666 = vpop.f32.mrf.mxu0
        %v5667 = vpop.f32.mrf.mxu0
        %v5668 = vpop.f32.mrf.mxu0
        %5669 = vdwg.mxu0
        %5670 = vmatprep.subr.bf16.mxu0 0
        %5671 = vmatpush1.bf16.msra.mxu0 %v4349
        %5672 = vmatprep.subr.bf16.mxu0 0
        %5673 = vmatpush1.bf16.msra.mxu0 %v4348
        %5674 = vmatprep.subr.bf16.mxu0 0
        %5675 = vmatpush1.bf16.msra.mxu0 %v4347
        %5676 = vmatprep.subr.bf16.mxu0 0
        %5677 = vmatpush1.bf16.msra.mxu0 %v4346
        %5678 = vmatprep.subr.bf16.mxu0 0
        %5679 = vmatpush1.bf16.msra.mxu0 %v4345
        %5680 = vmatprep.subr.bf16.mxu0 0
        %5681 = vmatpush1.bf16.msra.mxu0 %v4344
        %5682 = vmatprep.subr.bf16.mxu0 0
        %5683 = vmatpush1.bf16.msra.mxu0 %v4343
        %5684 = vmatprep.subr.bf16.mxu0 0
        %5685 = vmatpush1.bf16.msra.mxu0 %v4342
        %5686 = vmatprep.subr.bf16.mxu0 0
        %5687 = vmatpush2.bf16.msra.mxu0 %v4357
        %5688 = vmatprep.subr.bf16.mxu0 0
        %5689 = vmatpush2.bf16.msra.mxu0 %v4356
        %5690 = vmatprep.subr.bf16.mxu0 0
        %5691 = vmatpush2.bf16.msra.mxu0 %v4355
        %5692 = vmatprep.subr.bf16.mxu0 0
        %5693 = vmatpush2.bf16.msra.mxu0 %v4354
        %5694 = vmatprep.subr.bf16.mxu0 0
        %5695 = vmatpush2.bf16.msra.mxu0 %v4353
        %5696 = vmatprep.subr.bf16.mxu0 0
        %5697 = vmatpush2.bf16.msra.mxu0 %v4352
        %5698 = vmatprep.subr.bf16.mxu0 0
        %5699 = vmatpush2.bf16.msra.mxu0 %v4351
        %5700 = vmatprep.subr.bf16.mxu0 0
        %5701 = vmatpush2.bf16.msra.mxu0 %v4350
        %5702 = vmatprep.mubr.bf16.mxu0 %v394
        %5703 = vmatmul.mubr.bf16.gmra.mxu0 %v393
        %v5704 = vpop.f32.mrf.mxu0
        %v5705 = vadd.f32 %v5665, %v5704
        %v5706 = vpop.f32.mrf.mxu0
        %v5707 = vpop.f32.mrf.mxu0
        %v5708 = vpop.f32.mrf.mxu0
        %5709 = vdwg.mxu0
        %5710 = vmatprep.subr.bf16.mxu0 0
        %5711 = vmatpush1.bf16.msra.mxu0 %v4365
        %5712 = vmatprep.subr.bf16.mxu0 0
        %5713 = vmatpush1.bf16.msra.mxu0 %v4364
        %5714 = vmatprep.subr.bf16.mxu0 0
        %5715 = vmatpush1.bf16.msra.mxu0 %v4363
        %5716 = vmatprep.subr.bf16.mxu0 0
        %5717 = vmatpush1.bf16.msra.mxu0 %v4362
        %5718 = vmatprep.subr.bf16.mxu0 0
        %5719 = vmatpush1.bf16.msra.mxu0 %v4361
        %5720 = vmatprep.subr.bf16.mxu0 0
        %5721 = vmatpush1.bf16.msra.mxu0 %v4360
        %5722 = vmatprep.subr.bf16.mxu0 0
        %5723 = vmatpush1.bf16.msra.mxu0 %v4359
        %5724 = vmatprep.subr.bf16.mxu0 0
        %5725 = vmatpush1.bf16.msra.mxu0 %v4358
        %5726 = vmatprep.subr.bf16.mxu0 0
        %5727 = vmatpush2.bf16.msra.mxu0 %v4373
        %5728 = vmatprep.subr.bf16.mxu0 0
        %5729 = vmatpush2.bf16.msra.mxu0 %v4372
        %5730 = vmatprep.subr.bf16.mxu0 0
        %5731 = vmatpush2.bf16.msra.mxu0 %v4371
        %5732 = vmatprep.subr.bf16.mxu0 0
        %5733 = vmatpush2.bf16.msra.mxu0 %v4370
        %5734 = vmatprep.subr.bf16.mxu0 0
        %5735 = vmatpush2.bf16.msra.mxu0 %v4369
        %5736 = vmatprep.subr.bf16.mxu0 0
        %5737 = vmatpush2.bf16.msra.mxu0 %v4368
        %5738 = vmatprep.subr.bf16.mxu0 0
        %5739 = vmatpush2.bf16.msra.mxu0 %v4367
        %5740 = vmatprep.subr.bf16.mxu0 0
        %5741 = vmatpush2.bf16.msra.mxu0 %v4366
        %5742 = vmatprep.mubr.bf16.mxu0 %v396
        %5743 = vmatmul.mubr.bf16.gmra.mxu0 %v395
        %v5744 = vpop.f32.mrf.mxu0
        %v5745 = vadd.f32 %v5705, %v5744
        %v5746 = vpop.f32.mrf.mxu0
        %v5747 = vpop.f32.mrf.mxu0
        %v5748 = vpop.f32.mrf.mxu0
        %5749 = vdwg.mxu0
        %5750 = vmatprep.subr.bf16.mxu0 0
        %5751 = vmatpush1.bf16.msra.mxu0 %v4381
        %5752 = vmatprep.subr.bf16.mxu0 0
        %5753 = vmatpush1.bf16.msra.mxu0 %v4380
        %5754 = vmatprep.subr.bf16.mxu0 0
        %5755 = vmatpush1.bf16.msra.mxu0 %v4379
        %5756 = vmatprep.subr.bf16.mxu0 0
        %5757 = vmatpush1.bf16.msra.mxu0 %v4378
        %5758 = vmatprep.subr.bf16.mxu0 0
        %5759 = vmatpush1.bf16.msra.mxu0 %v4377
        %5760 = vmatprep.subr.bf16.mxu0 0
        %5761 = vmatpush1.bf16.msra.mxu0 %v4376
        %5762 = vmatprep.subr.bf16.mxu0 0
        %5763 = vmatpush1.bf16.msra.mxu0 %v4375
        %5764 = vmatprep.subr.bf16.mxu0 0
        %5765 = vmatpush1.bf16.msra.mxu0 %v4374
        %5766 = vmatprep.subr.bf16.mxu0 0
        %5767 = vmatpush2.bf16.msra.mxu0 %v4389
        %5768 = vmatprep.subr.bf16.mxu0 0
        %5769 = vmatpush2.bf16.msra.mxu0 %v4388
        %5770 = vmatprep.subr.bf16.mxu0 0
        %5771 = vmatpush2.bf16.msra.mxu0 %v4387
        %5772 = vmatprep.subr.bf16.mxu0 0
        %5773 = vmatpush2.bf16.msra.mxu0 %v4386
        %5774 = vmatprep.subr.bf16.mxu0 0
        %5775 = vmatpush2.bf16.msra.mxu0 %v4385
        %5776 = vmatprep.subr.bf16.mxu0 0
        %5777 = vmatpush2.bf16.msra.mxu0 %v4384
        %5778 = vmatprep.subr.bf16.mxu0 0
        %5779 = vmatpush2.bf16.msra.mxu0 %v4383
        %5780 = vmatprep.subr.bf16.mxu0 0
        %5781 = vmatpush2.bf16.msra.mxu0 %v4382
        %5782 = vmatprep.mubr.bf16.mxu0 %v398
        %5783 = vmatmul.mubr.bf16.gmra.mxu0 %v397
        %v5784 = vpop.f32.mrf.mxu0
        %v5785 = vadd.f32 %v5745, %v5784
        %v5786 = vpop.f32.mrf.mxu0
        %v5787 = vpop.f32.mrf.mxu0
        %v5788 = vpop.f32.mrf.mxu0
        %5789 = vdwg.mxu0
        %5790 = vmatprep.subr.bf16.mxu0 0
        %5791 = vmatpush1.bf16.msra.mxu0 %v4397
        %5792 = vmatprep.subr.bf16.mxu0 0
        %5793 = vmatpush1.bf16.msra.mxu0 %v4396
        %5794 = vmatprep.subr.bf16.mxu0 0
        %5795 = vmatpush1.bf16.msra.mxu0 %v4395
        %5796 = vmatprep.subr.bf16.mxu0 0
        %5797 = vmatpush1.bf16.msra.mxu0 %v4394
        %5798 = vmatprep.subr.bf16.mxu0 0
        %5799 = vmatpush1.bf16.msra.mxu0 %v4393
        %5800 = vmatprep.subr.bf16.mxu0 0
        %5801 = vmatpush1.bf16.msra.mxu0 %v4392
        %5802 = vmatprep.subr.bf16.mxu0 0
        %5803 = vmatpush1.bf16.msra.mxu0 %v4391
        %5804 = vmatprep.subr.bf16.mxu0 0
        %5805 = vmatpush1.bf16.msra.mxu0 %v4390
        %5806 = vmatprep.subr.bf16.mxu0 0
        %5807 = vmatpush2.bf16.msra.mxu0 %v4405
        %5808 = vmatprep.subr.bf16.mxu0 0
        %5809 = vmatpush2.bf16.msra.mxu0 %v4404
        %5810 = vmatprep.subr.bf16.mxu0 0
        %5811 = vmatpush2.bf16.msra.mxu0 %v4403
        %5812 = vmatprep.subr.bf16.mxu0 0
        %5813 = vmatpush2.bf16.msra.mxu0 %v4402
        %5814 = vmatprep.subr.bf16.mxu0 0
        %5815 = vmatpush2.bf16.msra.mxu0 %v4401
        %5816 = vmatprep.subr.bf16.mxu0 0
        %5817 = vmatpush2.bf16.msra.mxu0 %v4400
        %5818 = vmatprep.subr.bf16.mxu0 0
        %5819 = vmatpush2.bf16.msra.mxu0 %v4399
        %5820 = vmatprep.subr.bf16.mxu0 0
        %5821 = vmatpush2.bf16.msra.mxu0 %v4398
        %5822 = vmatprep.mubr.bf16.mxu0 %v400
        %5823 = vmatmul.mubr.bf16.gmra.mxu0 %v399
        %v5824 = vpop.f32.mrf.mxu0
        %v5825 = vadd.f32 %v5785, %v5824
        %v5826 = vpop.f32.mrf.mxu0
        %v5827 = vpop.f32.mrf.mxu0
        %v5828 = vpop.f32.mrf.mxu0
        %5829 = vdwg.mxu0
        %5830 = vmatprep.subr.bf16.mxu0 0
        %5831 = vmatpush1.bf16.msra.mxu0 %v4413
        %5832 = vmatprep.subr.bf16.mxu0 0
        %5833 = vmatpush1.bf16.msra.mxu0 %v4412
        %5834 = vmatprep.subr.bf16.mxu0 0
        %5835 = vmatpush1.bf16.msra.mxu0 %v4411
        %5836 = vmatprep.subr.bf16.mxu0 0
        %5837 = vmatpush1.bf16.msra.mxu0 %v4410
        %5838 = vmatprep.subr.bf16.mxu0 0
        %5839 = vmatpush1.bf16.msra.mxu0 %v4409
        %5840 = vmatprep.subr.bf16.mxu0 0
        %5841 = vmatpush1.bf16.msra.mxu0 %v4408
        %5842 = vmatprep.subr.bf16.mxu0 0
        %5843 = vmatpush1.bf16.msra.mxu0 %v4407
        %5844 = vmatprep.subr.bf16.mxu0 0
        %5845 = vmatpush1.bf16.msra.mxu0 %v4406
        %5846 = vmatprep.subr.bf16.mxu0 0
        %5847 = vmatpush2.bf16.msra.mxu0 %v4421
        %5848 = vmatprep.subr.bf16.mxu0 0
        %5849 = vmatpush2.bf16.msra.mxu0 %v4420
        %5850 = vmatprep.subr.bf16.mxu0 0
        %5851 = vmatpush2.bf16.msra.mxu0 %v4419
        %5852 = vmatprep.subr.bf16.mxu0 0
        %5853 = vmatpush2.bf16.msra.mxu0 %v4418
        %5854 = vmatprep.subr.bf16.mxu0 0
        %5855 = vmatpush2.bf16.msra.mxu0 %v4417
        %5856 = vmatprep.subr.bf16.mxu0 0
        %5857 = vmatpush2.bf16.msra.mxu0 %v4416
        %5858 = vmatprep.subr.bf16.mxu0 0
        %5859 = vmatpush2.bf16.msra.mxu0 %v4415
        %5860 = vmatprep.subr.bf16.mxu0 0
        %5861 = vmatpush2.bf16.msra.mxu0 %v4414
        %5862 = vmatprep.mubr.bf16.mxu0 %v402
        %5863 = vmatmul.mubr.bf16.gmra.mxu0 %v401
        %v5864 = vpop.f32.mrf.mxu0
        %v5865 = vadd.f32 %v5825, %v5864
        %v5866 = vpop.f32.mrf.mxu0
        %v5867 = vpop.f32.mrf.mxu0
        %v5868 = vpop.f32.mrf.mxu0
        %5869 = vdwg.mxu0
        %5870 = vmatprep.subr.bf16.mxu0 0
        %5871 = vmatpush1.bf16.msra.mxu0 %v4429
        %5872 = vmatprep.subr.bf16.mxu0 0
        %5873 = vmatpush1.bf16.msra.mxu0 %v4428
        %5874 = vmatprep.subr.bf16.mxu0 0
        %5875 = vmatpush1.bf16.msra.mxu0 %v4427
        %5876 = vmatprep.subr.bf16.mxu0 0
        %5877 = vmatpush1.bf16.msra.mxu0 %v4426
        %5878 = vmatprep.subr.bf16.mxu0 0
        %5879 = vmatpush1.bf16.msra.mxu0 %v4425
        %5880 = vmatprep.subr.bf16.mxu0 0
        %5881 = vmatpush1.bf16.msra.mxu0 %v4424
        %5882 = vmatprep.subr.bf16.mxu0 0
        %5883 = vmatpush1.bf16.msra.mxu0 %v4423
        %5884 = vmatprep.subr.bf16.mxu0 0
        %5885 = vmatpush1.bf16.msra.mxu0 %v4422
        %5886 = vmatprep.subr.bf16.mxu0 0
        %5887 = vmatpush2.bf16.msra.mxu0 %v4437
        %5888 = vmatprep.subr.bf16.mxu0 0
        %5889 = vmatpush2.bf16.msra.mxu0 %v4436
        %5890 = vmatprep.subr.bf16.mxu0 0
        %5891 = vmatpush2.bf16.msra.mxu0 %v4435
        %5892 = vmatprep.subr.bf16.mxu0 0
        %5893 = vmatpush2.bf16.msra.mxu0 %v4434
        %5894 = vmatprep.subr.bf16.mxu0 0
        %5895 = vmatpush2.bf16.msra.mxu0 %v4433
        %5896 = vmatprep.subr.bf16.mxu0 0
        %5897 = vmatpush2.bf16.msra.mxu0 %v4432
        %5898 = vmatprep.subr.bf16.mxu0 0
        %5899 = vmatpush2.bf16.msra.mxu0 %v4431
        %5900 = vmatprep.subr.bf16.mxu0 0
        %5901 = vmatpush2.bf16.msra.mxu0 %v4430
        %5902 = vmatprep.mubr.bf16.mxu0 %v404
        %5903 = vmatmul.mubr.bf16.gmra.mxu0 %v403
        %v5904 = vpop.f32.mrf.mxu0
        %v5905 = vadd.f32 %v5865, %v5904
        %v5906 = vpop.f32.mrf.mxu0
        %v5907 = vpop.f32.mrf.mxu0
        %v5908 = vpop.f32.mrf.mxu0
        %5909 = vdwg.mxu0
        %5910 = vmatprep.subr.bf16.mxu0 0
        %5911 = vmatpush1.bf16.msra.mxu0 %v4445
        %5912 = vmatprep.subr.bf16.mxu0 0
        %5913 = vmatpush1.bf16.msra.mxu0 %v4444
        %5914 = vmatprep.subr.bf16.mxu0 0
        %5915 = vmatpush1.bf16.msra.mxu0 %v4443
        %5916 = vmatprep.subr.bf16.mxu0 0
        %5917 = vmatpush1.bf16.msra.mxu0 %v4442
        %5918 = vmatprep.subr.bf16.mxu0 0
        %5919 = vmatpush1.bf16.msra.mxu0 %v4441
        %5920 = vmatprep.subr.bf16.mxu0 0
        %5921 = vmatpush1.bf16.msra.mxu0 %v4440
        %5922 = vmatprep.subr.bf16.mxu0 0
        %5923 = vmatpush1.bf16.msra.mxu0 %v4439
        %5924 = vmatprep.subr.bf16.mxu0 0
        %5925 = vmatpush1.bf16.msra.mxu0 %v4438
        %5926 = vmatprep.subr.bf16.mxu0 0
        %5927 = vmatpush2.bf16.msra.mxu0 %v4453
        %5928 = vmatprep.subr.bf16.mxu0 0
        %5929 = vmatpush2.bf16.msra.mxu0 %v4452
        %5930 = vmatprep.subr.bf16.mxu0 0
        %5931 = vmatpush2.bf16.msra.mxu0 %v4451
        %5932 = vmatprep.subr.bf16.mxu0 0
        %5933 = vmatpush2.bf16.msra.mxu0 %v4450
        %5934 = vmatprep.subr.bf16.mxu0 0
        %5935 = vmatpush2.bf16.msra.mxu0 %v4449
        %5936 = vmatprep.subr.bf16.mxu0 0
        %5937 = vmatpush2.bf16.msra.mxu0 %v4448
        %5938 = vmatprep.subr.bf16.mxu0 0
        %5939 = vmatpush2.bf16.msra.mxu0 %v4447
        %5940 = vmatprep.subr.bf16.mxu0 0
        %5941 = vmatpush2.bf16.msra.mxu0 %v4446
        %5942 = vmatprep.mubr.bf16.mxu0 %v406
        %5943 = vmatmul.mubr.bf16.gmra.mxu0 %v405
        %v5944 = vpop.f32.mrf.mxu0
        %v5945 = vadd.f32 %v5905, %v5944
        %v5946 = vpop.f32.mrf.mxu0
        %v5947 = vpop.f32.mrf.mxu0
        %v5948 = vpop.f32.mrf.mxu0
        %5949 = vdwg.mxu0
        %5950 = vmatprep.subr.bf16.mxu0 0
        %5951 = vmatpush1.bf16.msra.mxu0 %v4461
        %5952 = vmatprep.subr.bf16.mxu0 0
        %5953 = vmatpush1.bf16.msra.mxu0 %v4460
        %5954 = vmatprep.subr.bf16.mxu0 0
        %5955 = vmatpush1.bf16.msra.mxu0 %v4459
        %5956 = vmatprep.subr.bf16.mxu0 0
        %5957 = vmatpush1.bf16.msra.mxu0 %v4458
        %5958 = vmatprep.subr.bf16.mxu0 0
        %5959 = vmatpush1.bf16.msra.mxu0 %v4457
        %5960 = vmatprep.subr.bf16.mxu0 0
        %5961 = vmatpush1.bf16.msra.mxu0 %v4456
        %5962 = vmatprep.subr.bf16.mxu0 0
        %5963 = vmatpush1.bf16.msra.mxu0 %v4455
        %5964 = vmatprep.subr.bf16.mxu0 0
        %5965 = vmatpush1.bf16.msra.mxu0 %v4454
        %5966 = vmatprep.subr.bf16.mxu0 0
        %5967 = vmatpush2.bf16.msra.mxu0 %v4469
        %5968 = vmatprep.subr.bf16.mxu0 0
        %5969 = vmatpush2.bf16.msra.mxu0 %v4468
        %5970 = vmatprep.subr.bf16.mxu0 0
        %5971 = vmatpush2.bf16.msra.mxu0 %v4467
        %5972 = vmatprep.subr.bf16.mxu0 0
        %5973 = vmatpush2.bf16.msra.mxu0 %v4466
        %5974 = vmatprep.subr.bf16.mxu0 0
        %5975 = vmatpush2.bf16.msra.mxu0 %v4465
        %5976 = vmatprep.subr.bf16.mxu0 0
        %5977 = vmatpush2.bf16.msra.mxu0 %v4464
        %5978 = vmatprep.subr.bf16.mxu0 0
        %5979 = vmatpush2.bf16.msra.mxu0 %v4463
        %5980 = vmatprep.subr.bf16.mxu0 0
        %5981 = vmatpush2.bf16.msra.mxu0 %v4462
        %5982 = vmatprep.mubr.bf16.mxu0 %v408
        %5983 = vmatmul.mubr.bf16.gmra.mxu0 %v407
        %v5984 = vpop.f32.mrf.mxu0
        %v5985 = vadd.f32 %v5945, %v5984
        %v5986 = vpop.f32.mrf.mxu0
        %v5987 = vpop.f32.mrf.mxu0
        %v5988 = vpop.f32.mrf.mxu0
        %5989 = vdwg.mxu0
        %5990 = vmatprep.subr.bf16.mxu0 0
        %5991 = vmatpush1.bf16.msra.mxu0 %v4477
        %5992 = vmatprep.subr.bf16.mxu0 0
        %5993 = vmatpush1.bf16.msra.mxu0 %v4476
        %5994 = vmatprep.subr.bf16.mxu0 0
        %5995 = vmatpush1.bf16.msra.mxu0 %v4475
        %5996 = vmatprep.subr.bf16.mxu0 0
        %5997 = vmatpush1.bf16.msra.mxu0 %v4474
        %5998 = vmatprep.subr.bf16.mxu0 0
        %5999 = vmatpush1.bf16.msra.mxu0 %v4473
        %6000 = vmatprep.subr.bf16.mxu0 0
        %6001 = vmatpush1.bf16.msra.mxu0 %v4472
        %6002 = vmatprep.subr.bf16.mxu0 0
        %6003 = vmatpush1.bf16.msra.mxu0 %v4471
        %6004 = vmatprep.subr.bf16.mxu0 0
        %6005 = vmatpush1.bf16.msra.mxu0 %v4470
        %6006 = vmatprep.subr.bf16.mxu0 0
        %6007 = vmatpush2.bf16.msra.mxu0 %v4485
        %6008 = vmatprep.subr.bf16.mxu0 0
        %6009 = vmatpush2.bf16.msra.mxu0 %v4484
        %6010 = vmatprep.subr.bf16.mxu0 0
        %6011 = vmatpush2.bf16.msra.mxu0 %v4483
        %6012 = vmatprep.subr.bf16.mxu0 0
        %6013 = vmatpush2.bf16.msra.mxu0 %v4482
        %6014 = vmatprep.subr.bf16.mxu0 0
        %6015 = vmatpush2.bf16.msra.mxu0 %v4481
        %6016 = vmatprep.subr.bf16.mxu0 0
        %6017 = vmatpush2.bf16.msra.mxu0 %v4480
        %6018 = vmatprep.subr.bf16.mxu0 0
        %6019 = vmatpush2.bf16.msra.mxu0 %v4479
        %6020 = vmatprep.subr.bf16.mxu0 0
        %6021 = vmatpush2.bf16.msra.mxu0 %v4478
        %6022 = vmatprep.mubr.bf16.mxu0 %v410
        %6023 = vmatmul.mubr.bf16.gmra.mxu0 %v409
        %v6024 = vpop.f32.mrf.mxu0
        %v6025 = vadd.f32 %v5985, %v6024
        %v6026 = vpop.f32.mrf.mxu0
        %v6027 = vpop.f32.mrf.mxu0
        %v6028 = vpop.f32.mrf.mxu0
        %6029 = vdwg.mxu0
        %6030 = vmatprep.subr.bf16.mxu0 0
        %6031 = vmatpush1.bf16.msra.mxu0 %v4493
        %6032 = vmatprep.subr.bf16.mxu0 0
        %6033 = vmatpush1.bf16.msra.mxu0 %v4492
        %6034 = vmatprep.subr.bf16.mxu0 0
        %6035 = vmatpush1.bf16.msra.mxu0 %v4491
        %6036 = vmatprep.subr.bf16.mxu0 0
        %6037 = vmatpush1.bf16.msra.mxu0 %v4490
        %6038 = vmatprep.subr.bf16.mxu0 0
        %6039 = vmatpush1.bf16.msra.mxu0 %v4489
        %6040 = vmatprep.subr.bf16.mxu0 0
        %6041 = vmatpush1.bf16.msra.mxu0 %v4488
        %6042 = vmatprep.subr.bf16.mxu0 0
        %6043 = vmatpush1.bf16.msra.mxu0 %v4487
        %6044 = vmatprep.subr.bf16.mxu0 0
        %6045 = vmatpush1.bf16.msra.mxu0 %v4486
        %6046 = vmatprep.subr.bf16.mxu0 0
        %6047 = vmatpush2.bf16.msra.mxu0 %v4501
        %6048 = vmatprep.subr.bf16.mxu0 0
        %6049 = vmatpush2.bf16.msra.mxu0 %v4500
        %6050 = vmatprep.subr.bf16.mxu0 0
        %6051 = vmatpush2.bf16.msra.mxu0 %v4499
        %6052 = vmatprep.subr.bf16.mxu0 0
        %6053 = vmatpush2.bf16.msra.mxu0 %v4498
        %6054 = vmatprep.subr.bf16.mxu0 0
        %6055 = vmatpush2.bf16.msra.mxu0 %v4497
        %6056 = vmatprep.subr.bf16.mxu0 0
        %6057 = vmatpush2.bf16.msra.mxu0 %v4496
        %6058 = vmatprep.subr.bf16.mxu0 0
        %6059 = vmatpush2.bf16.msra.mxu0 %v4495
        %6060 = vmatprep.subr.bf16.mxu0 0
        %6061 = vmatpush2.bf16.msra.mxu0 %v4494
        %6062 = vmatprep.mubr.bf16.mxu0 %v412
        %6063 = vmatmul.mubr.bf16.gmra.mxu0 %v411
        %v6064 = vpop.f32.mrf.mxu0
        %v6065 = vadd.f32 %v6025, %v6064
        %v6066 = vpop.f32.mrf.mxu0
        %v6067 = vpop.f32.mrf.mxu0
        %v6068 = vpop.f32.mrf.mxu0
        %6069 = vdwg.mxu0
        %6070 = vmatprep.subr.bf16.mxu0 0
        %6071 = vmatpush1.bf16.msra.mxu0 %v4509
        %6072 = vmatprep.subr.bf16.mxu0 0
        %6073 = vmatpush1.bf16.msra.mxu0 %v4508
        %6074 = vmatprep.subr.bf16.mxu0 0
        %6075 = vmatpush1.bf16.msra.mxu0 %v4507
        %6076 = vmatprep.subr.bf16.mxu0 0
        %6077 = vmatpush1.bf16.msra.mxu0 %v4506
        %6078 = vmatprep.subr.bf16.mxu0 0
        %6079 = vmatpush1.bf16.msra.mxu0 %v4505
        %6080 = vmatprep.subr.bf16.mxu0 0
        %6081 = vmatpush1.bf16.msra.mxu0 %v4504
        %6082 = vmatprep.subr.bf16.mxu0 0
        %6083 = vmatpush1.bf16.msra.mxu0 %v4503
        %6084 = vmatprep.subr.bf16.mxu0 0
        %6085 = vmatpush1.bf16.msra.mxu0 %v4502
        %6086 = vmatprep.subr.bf16.mxu0 0
        %6087 = vmatpush2.bf16.msra.mxu0 %v4517
        %6088 = vmatprep.subr.bf16.mxu0 0
        %6089 = vmatpush2.bf16.msra.mxu0 %v4516
        %6090 = vmatprep.subr.bf16.mxu0 0
        %6091 = vmatpush2.bf16.msra.mxu0 %v4515
        %6092 = vmatprep.subr.bf16.mxu0 0
        %6093 = vmatpush2.bf16.msra.mxu0 %v4514
        %6094 = vmatprep.subr.bf16.mxu0 0
        %6095 = vmatpush2.bf16.msra.mxu0 %v4513
        %6096 = vmatprep.subr.bf16.mxu0 0
        %6097 = vmatpush2.bf16.msra.mxu0 %v4512
        %6098 = vmatprep.subr.bf16.mxu0 0
        %6099 = vmatpush2.bf16.msra.mxu0 %v4511
        %6100 = vmatprep.subr.bf16.mxu0 0
        %6101 = vmatpush2.bf16.msra.mxu0 %v4510
        %6102 = vmatprep.mubr.bf16.mxu0 %v414
        %6103 = vmatmul.mubr.bf16.gmra.mxu0 %v413
        %v6104 = vpop.f32.mrf.mxu0
        %v6105 = vadd.f32 %v6065, %v6104
        %v6106 = vpop.f32.mrf.mxu0
        %v6107 = vpop.f32.mrf.mxu0
        %v6108 = vpop.f32.mrf.mxu0
        %6109 = vdwg.mxu0
        %6110 = vmatprep.subr.bf16.mxu0 0
        %6111 = vmatpush1.bf16.msra.mxu0 %v4525
        %6112 = vmatprep.subr.bf16.mxu0 0
        %6113 = vmatpush1.bf16.msra.mxu0 %v4524
        %6114 = vmatprep.subr.bf16.mxu0 0
        %6115 = vmatpush1.bf16.msra.mxu0 %v4523
        %6116 = vmatprep.subr.bf16.mxu0 0
        %6117 = vmatpush1.bf16.msra.mxu0 %v4522
        %6118 = vmatprep.subr.bf16.mxu0 0
        %6119 = vmatpush1.bf16.msra.mxu0 %v4521
        %6120 = vmatprep.subr.bf16.mxu0 0
        %6121 = vmatpush1.bf16.msra.mxu0 %v4520
        %6122 = vmatprep.subr.bf16.mxu0 0
        %6123 = vmatpush1.bf16.msra.mxu0 %v4519
        %6124 = vmatprep.subr.bf16.mxu0 0
        %6125 = vmatpush1.bf16.msra.mxu0 %v4518
        %6126 = vmatprep.subr.bf16.mxu0 0
        %6127 = vmatpush2.bf16.msra.mxu0 %v4533
        %6128 = vmatprep.subr.bf16.mxu0 0
        %6129 = vmatpush2.bf16.msra.mxu0 %v4532
        %6130 = vmatprep.subr.bf16.mxu0 0
        %6131 = vmatpush2.bf16.msra.mxu0 %v4531
        %6132 = vmatprep.subr.bf16.mxu0 0
        %6133 = vmatpush2.bf16.msra.mxu0 %v4530
        %6134 = vmatprep.subr.bf16.mxu0 0
        %6135 = vmatpush2.bf16.msra.mxu0 %v4529
        %6136 = vmatprep.subr.bf16.mxu0 0
        %6137 = vmatpush2.bf16.msra.mxu0 %v4528
        %6138 = vmatprep.subr.bf16.mxu0 0
        %6139 = vmatpush2.bf16.msra.mxu0 %v4527
        %6140 = vmatprep.subr.bf16.mxu0 0
        %6141 = vmatpush2.bf16.msra.mxu0 %v4526
        %6142 = vmatprep.mubr.bf16.mxu0 %v416
        %6143 = vmatmul.mubr.bf16.gmra.mxu0 %v415
        %v6144 = vpop.f32.mrf.mxu0
        %v6145 = vadd.f32 %v6105, %v6144
        %v6146 = vpop.f32.mrf.mxu0
        %v6147 = vpop.f32.mrf.mxu0
        %v6148 = vpop.f32.mrf.mxu0
        %6149 = vdwg.mxu0
        %6150 = vmatprep.subr.bf16.mxu0 0
        %6151 = vmatpush1.bf16.msra.mxu0 %v4541
        %6152 = vmatprep.subr.bf16.mxu0 0
        %6153 = vmatpush1.bf16.msra.mxu0 %v4540
        %6154 = vmatprep.subr.bf16.mxu0 0
        %6155 = vmatpush1.bf16.msra.mxu0 %v4539
        %6156 = vmatprep.subr.bf16.mxu0 0
        %6157 = vmatpush1.bf16.msra.mxu0 %v4538
        %6158 = vmatprep.subr.bf16.mxu0 0
        %6159 = vmatpush1.bf16.msra.mxu0 %v4537
        %6160 = vmatprep.subr.bf16.mxu0 0
        %6161 = vmatpush1.bf16.msra.mxu0 %v4536
        %6162 = vmatprep.subr.bf16.mxu0 0
        %6163 = vmatpush1.bf16.msra.mxu0 %v4535
        %6164 = vmatprep.subr.bf16.mxu0 0
        %6165 = vmatpush1.bf16.msra.mxu0 %v4534
        %6166 = vmatprep.subr.bf16.mxu0 0
        %6167 = vmatpush2.bf16.msra.mxu0 %v4549
        %6168 = vmatprep.subr.bf16.mxu0 0
        %6169 = vmatpush2.bf16.msra.mxu0 %v4548
        %6170 = vmatprep.subr.bf16.mxu0 0
        %6171 = vmatpush2.bf16.msra.mxu0 %v4547
        %6172 = vmatprep.subr.bf16.mxu0 0
        %6173 = vmatpush2.bf16.msra.mxu0 %v4546
        %6174 = vmatprep.subr.bf16.mxu0 0
        %6175 = vmatpush2.bf16.msra.mxu0 %v4545
        %6176 = vmatprep.subr.bf16.mxu0 0
        %6177 = vmatpush2.bf16.msra.mxu0 %v4544
        %6178 = vmatprep.subr.bf16.mxu0 0
        %6179 = vmatpush2.bf16.msra.mxu0 %v4543
        %6180 = vmatprep.subr.bf16.mxu0 0
        %6181 = vmatpush2.bf16.msra.mxu0 %v4542
        %6182 = vmatprep.mubr.bf16.mxu0 %v418
        %6183 = vmatmul.mubr.bf16.gmra.mxu0 %v417
        %v6184 = vpop.f32.mrf.mxu0
        %v6185 = vadd.f32 %v6145, %v6184
        %v6186 = vpop.f32.mrf.mxu0
        %v6187 = vpop.f32.mrf.mxu0
        %v6188 = vpop.f32.mrf.mxu0
        %6189 = vdwg.mxu0
        %6190 = vmatprep.subr.bf16.mxu0 0
        %6191 = vmatpush1.bf16.msra.mxu0 %v4557
        %6192 = vmatprep.subr.bf16.mxu0 0
        %6193 = vmatpush1.bf16.msra.mxu0 %v4556
        %6194 = vmatprep.subr.bf16.mxu0 0
        %6195 = vmatpush1.bf16.msra.mxu0 %v4555
        %6196 = vmatprep.subr.bf16.mxu0 0
        %6197 = vmatpush1.bf16.msra.mxu0 %v4554
        %6198 = vmatprep.subr.bf16.mxu0 0
        %6199 = vmatpush1.bf16.msra.mxu0 %v4553
        %6200 = vmatprep.subr.bf16.mxu0 0
        %6201 = vmatpush1.bf16.msra.mxu0 %v4552
        %6202 = vmatprep.subr.bf16.mxu0 0
        %6203 = vmatpush1.bf16.msra.mxu0 %v4551
        %6204 = vmatprep.subr.bf16.mxu0 0
        %6205 = vmatpush1.bf16.msra.mxu0 %v4550
        %6206 = vmatprep.subr.bf16.mxu0 0
        %6207 = vmatpush2.bf16.msra.mxu0 %v4565
        %6208 = vmatprep.subr.bf16.mxu0 0
        %6209 = vmatpush2.bf16.msra.mxu0 %v4564
        %6210 = vmatprep.subr.bf16.mxu0 0
        %6211 = vmatpush2.bf16.msra.mxu0 %v4563
        %6212 = vmatprep.subr.bf16.mxu0 0
        %6213 = vmatpush2.bf16.msra.mxu0 %v4562
        %6214 = vmatprep.subr.bf16.mxu0 0
        %6215 = vmatpush2.bf16.msra.mxu0 %v4561
        %6216 = vmatprep.subr.bf16.mxu0 0
        %6217 = vmatpush2.bf16.msra.mxu0 %v4560
        %6218 = vmatprep.subr.bf16.mxu0 0
        %6219 = vmatpush2.bf16.msra.mxu0 %v4559
        %6220 = vmatprep.subr.bf16.mxu0 0
        %6221 = vmatpush2.bf16.msra.mxu0 %v4558
        %6222 = vmatprep.mubr.bf16.mxu0 %v420
        %6223 = vmatmul.mubr.bf16.gmra.mxu0 %v419
        %v6224 = vpop.f32.mrf.mxu0
        %v6225 = vadd.f32 %v6185, %v6224
        %v6226 = vpop.f32.mrf.mxu0
        %v6227 = vpop.f32.mrf.mxu0
        %v6228 = vpop.f32.mrf.mxu0
        %6229 = vdwg.mxu0
        %6230 = vmatprep.subr.bf16.mxu0 0
        %6231 = vmatpush1.bf16.msra.mxu0 %v4573
        %6232 = vmatprep.subr.bf16.mxu0 0
        %6233 = vmatpush1.bf16.msra.mxu0 %v4572
        %6234 = vmatprep.subr.bf16.mxu0 0
        %6235 = vmatpush1.bf16.msra.mxu0 %v4571
        %6236 = vmatprep.subr.bf16.mxu0 0
        %6237 = vmatpush1.bf16.msra.mxu0 %v4570
        %6238 = vmatprep.subr.bf16.mxu0 0
        %6239 = vmatpush1.bf16.msra.mxu0 %v4569
        %6240 = vmatprep.subr.bf16.mxu0 0
        %6241 = vmatpush1.bf16.msra.mxu0 %v4568
        %6242 = vmatprep.subr.bf16.mxu0 0
        %6243 = vmatpush1.bf16.msra.mxu0 %v4567
        %6244 = vmatprep.subr.bf16.mxu0 0
        %6245 = vmatpush1.bf16.msra.mxu0 %v4566
        %6246 = vmatprep.subr.bf16.mxu0 0
        %6247 = vmatpush2.bf16.msra.mxu0 %v4581
        %6248 = vmatprep.subr.bf16.mxu0 0
        %6249 = vmatpush2.bf16.msra.mxu0 %v4580
        %6250 = vmatprep.subr.bf16.mxu0 0
        %6251 = vmatpush2.bf16.msra.mxu0 %v4579
        %6252 = vmatprep.subr.bf16.mxu0 0
        %6253 = vmatpush2.bf16.msra.mxu0 %v4578
        %6254 = vmatprep.subr.bf16.mxu0 0
        %6255 = vmatpush2.bf16.msra.mxu0 %v4577
        %6256 = vmatprep.subr.bf16.mxu0 0
        %6257 = vmatpush2.bf16.msra.mxu0 %v4576
        %6258 = vmatprep.subr.bf16.mxu0 0
        %6259 = vmatpush2.bf16.msra.mxu0 %v4575
        %6260 = vmatprep.subr.bf16.mxu0 0
        %6261 = vmatpush2.bf16.msra.mxu0 %v4574
        %6262 = vmatprep.mubr.bf16.mxu0 %v422
        %6263 = vmatmul.mubr.bf16.gmra.mxu0 %v421
        %v6264 = vpop.f32.mrf.mxu0
        %v6265 = vadd.f32 %v6225, %v6264
        %v6266 = vpop.f32.mrf.mxu0
        %v6267 = vpop.f32.mrf.mxu0
        %v6268 = vpop.f32.mrf.mxu0
        %6269 = vdwg.mxu0
        %6270 = vmatprep.subr.bf16.mxu0 0
        %6271 = vmatpush1.bf16.msra.mxu0 %v4589
        %6272 = vmatprep.subr.bf16.mxu0 0
        %6273 = vmatpush1.bf16.msra.mxu0 %v4588
        %6274 = vmatprep.subr.bf16.mxu0 0
        %6275 = vmatpush1.bf16.msra.mxu0 %v4587
        %6276 = vmatprep.subr.bf16.mxu0 0
        %6277 = vmatpush1.bf16.msra.mxu0 %v4586
        %6278 = vmatprep.subr.bf16.mxu0 0
        %6279 = vmatpush1.bf16.msra.mxu0 %v4585
        %6280 = vmatprep.subr.bf16.mxu0 0
        %6281 = vmatpush1.bf16.msra.mxu0 %v4584
        %6282 = vmatprep.subr.bf16.mxu0 0
        %6283 = vmatpush1.bf16.msra.mxu0 %v4583
        %6284 = vmatprep.subr.bf16.mxu0 0
        %6285 = vmatpush1.bf16.msra.mxu0 %v4582
        %6286 = vmatprep.subr.bf16.mxu0 0
        %6287 = vmatpush2.bf16.msra.mxu0 %v4597
        %6288 = vmatprep.subr.bf16.mxu0 0
        %6289 = vmatpush2.bf16.msra.mxu0 %v4596
        %6290 = vmatprep.subr.bf16.mxu0 0
        %6291 = vmatpush2.bf16.msra.mxu0 %v4595
        %6292 = vmatprep.subr.bf16.mxu0 0
        %6293 = vmatpush2.bf16.msra.mxu0 %v4594
        %6294 = vmatprep.subr.bf16.mxu0 0
        %6295 = vmatpush2.bf16.msra.mxu0 %v4593
        %6296 = vmatprep.subr.bf16.mxu0 0
        %6297 = vmatpush2.bf16.msra.mxu0 %v4592
        %6298 = vmatprep.subr.bf16.mxu0 0
        %6299 = vmatpush2.bf16.msra.mxu0 %v4591
        %6300 = vmatprep.subr.bf16.mxu0 0
        %6301 = vmatpush2.bf16.msra.mxu0 %v4590
        %6302 = vmatprep.mubr.bf16.mxu0 %v424
        %6303 = vmatmul.mubr.bf16.gmra.mxu0 %v423
        %v6304 = vpop.f32.mrf.mxu0
        %v6305 = vadd.f32 %v6265, %v6304
        %v6306 = vpop.f32.mrf.mxu0
        %v6307 = vpop.f32.mrf.mxu0
        %v6308 = vpop.f32.mrf.mxu0
        %6309 = vdwg.mxu0
        %6310 = vmatprep.subr.bf16.mxu0 0
        %6311 = vmatpush1.bf16.msra.mxu0 %v4605
        %6312 = vmatprep.subr.bf16.mxu0 0
        %6313 = vmatpush1.bf16.msra.mxu0 %v4604
        %6314 = vmatprep.subr.bf16.mxu0 0
        %6315 = vmatpush1.bf16.msra.mxu0 %v4603
        %6316 = vmatprep.subr.bf16.mxu0 0
        %6317 = vmatpush1.bf16.msra.mxu0 %v4602
        %6318 = vmatprep.subr.bf16.mxu0 0
        %6319 = vmatpush1.bf16.msra.mxu0 %v4601
        %6320 = vmatprep.subr.bf16.mxu0 0
        %6321 = vmatpush1.bf16.msra.mxu0 %v4600
        %6322 = vmatprep.subr.bf16.mxu0 0
        %6323 = vmatpush1.bf16.msra.mxu0 %v4599
        %6324 = vmatprep.subr.bf16.mxu0 0
        %6325 = vmatpush1.bf16.msra.mxu0 %v4598
        %6326 = vmatprep.subr.bf16.mxu0 0
        %6327 = vmatpush2.bf16.msra.mxu0 %v4613
        %6328 = vmatprep.subr.bf16.mxu0 0
        %6329 = vmatpush2.bf16.msra.mxu0 %v4612
        %6330 = vmatprep.subr.bf16.mxu0 0
        %6331 = vmatpush2.bf16.msra.mxu0 %v4611
        %6332 = vmatprep.subr.bf16.mxu0 0
        %6333 = vmatpush2.bf16.msra.mxu0 %v4610
        %6334 = vmatprep.subr.bf16.mxu0 0
        %6335 = vmatpush2.bf16.msra.mxu0 %v4609
        %6336 = vmatprep.subr.bf16.mxu0 0
        %6337 = vmatpush2.bf16.msra.mxu0 %v4608
        %6338 = vmatprep.subr.bf16.mxu0 0
        %6339 = vmatpush2.bf16.msra.mxu0 %v4607
        %6340 = vmatprep.subr.bf16.mxu0 0
        %6341 = vmatpush2.bf16.msra.mxu0 %v4606
        %6342 = vmatprep.mubr.bf16.mxu0 %v426
        %6343 = vmatmul.mubr.bf16.gmra.mxu0 %v425
        %v6344 = vpop.f32.mrf.mxu0
        %v6345 = vadd.f32 %v6305, %v6344
        %v6346 = vpop.f32.mrf.mxu0
        %v6347 = vpop.f32.mrf.mxu0
        %v6348 = vpop.f32.mrf.mxu0
        %6349 = vdwg.mxu0
        %6350 = vmatprep.subr.bf16.mxu0 0
        %6351 = vmatpush1.bf16.msra.mxu0 %v4621
        %6352 = vmatprep.subr.bf16.mxu0 0
        %6353 = vmatpush1.bf16.msra.mxu0 %v4620
        %6354 = vmatprep.subr.bf16.mxu0 0
        %6355 = vmatpush1.bf16.msra.mxu0 %v4619
        %6356 = vmatprep.subr.bf16.mxu0 0
        %6357 = vmatpush1.bf16.msra.mxu0 %v4618
        %6358 = vmatprep.subr.bf16.mxu0 0
        %6359 = vmatpush1.bf16.msra.mxu0 %v4617
        %6360 = vmatprep.subr.bf16.mxu0 0
        %6361 = vmatpush1.bf16.msra.mxu0 %v4616
        %6362 = vmatprep.subr.bf16.mxu0 0
        %6363 = vmatpush1.bf16.msra.mxu0 %v4615
        %6364 = vmatprep.subr.bf16.mxu0 0
        %6365 = vmatpush1.bf16.msra.mxu0 %v4614
        %6366 = vmatprep.subr.bf16.mxu0 0
        %6367 = vmatpush2.bf16.msra.mxu0 %v4629
        %6368 = vmatprep.subr.bf16.mxu0 0
        %6369 = vmatpush2.bf16.msra.mxu0 %v4628
        %6370 = vmatprep.subr.bf16.mxu0 0
        %6371 = vmatpush2.bf16.msra.mxu0 %v4627
        %6372 = vmatprep.subr.bf16.mxu0 0
        %6373 = vmatpush2.bf16.msra.mxu0 %v4626
        %6374 = vmatprep.subr.bf16.mxu0 0
        %6375 = vmatpush2.bf16.msra.mxu0 %v4625
        %6376 = vmatprep.subr.bf16.mxu0 0
        %6377 = vmatpush2.bf16.msra.mxu0 %v4624
        %6378 = vmatprep.subr.bf16.mxu0 0
        %6379 = vmatpush2.bf16.msra.mxu0 %v4623
        %6380 = vmatprep.subr.bf16.mxu0 0
        %6381 = vmatpush2.bf16.msra.mxu0 %v4622
        %6382 = vmatprep.mubr.bf16.mxu0 %v428
        %6383 = vmatmul.mubr.bf16.gmra.mxu0 %v427
        %v6384 = vpop.f32.mrf.mxu0
        %v6385 = vadd.f32 %v6345, %v6384
        %v6386 = vpop.f32.mrf.mxu0
        %v6387 = vpop.f32.mrf.mxu0
        %v6388 = vpop.f32.mrf.mxu0
        %6389 = vdwg.mxu0
        %6390 = vmatprep.subr.bf16.mxu0 0
        %6391 = vmatpush1.bf16.msra.mxu0 %v4637
        %6392 = vmatprep.subr.bf16.mxu0 0
        %6393 = vmatpush1.bf16.msra.mxu0 %v4636
        %6394 = vmatprep.subr.bf16.mxu0 0
        %6395 = vmatpush1.bf16.msra.mxu0 %v4635
        %6396 = vmatprep.subr.bf16.mxu0 0
        %6397 = vmatpush1.bf16.msra.mxu0 %v4634
        %6398 = vmatprep.subr.bf16.mxu0 0
        %6399 = vmatpush1.bf16.msra.mxu0 %v4633
        %6400 = vmatprep.subr.bf16.mxu0 0
        %6401 = vmatpush1.bf16.msra.mxu0 %v4632
        %6402 = vmatprep.subr.bf16.mxu0 0
        %6403 = vmatpush1.bf16.msra.mxu0 %v4631
        %6404 = vmatprep.subr.bf16.mxu0 0
        %6405 = vmatpush1.bf16.msra.mxu0 %v4630
        %6406 = vmatprep.subr.bf16.mxu0 0
        %6407 = vmatpush2.bf16.msra.mxu0 %v4645
        %6408 = vmatprep.subr.bf16.mxu0 0
        %6409 = vmatpush2.bf16.msra.mxu0 %v4644
        %6410 = vmatprep.subr.bf16.mxu0 0
        %6411 = vmatpush2.bf16.msra.mxu0 %v4643
        %6412 = vmatprep.subr.bf16.mxu0 0
        %6413 = vmatpush2.bf16.msra.mxu0 %v4642
        %6414 = vmatprep.subr.bf16.mxu0 0
        %6415 = vmatpush2.bf16.msra.mxu0 %v4641
        %6416 = vmatprep.subr.bf16.mxu0 0
        %6417 = vmatpush2.bf16.msra.mxu0 %v4640
        %6418 = vmatprep.subr.bf16.mxu0 0
        %6419 = vmatpush2.bf16.msra.mxu0 %v4639
        %6420 = vmatprep.subr.bf16.mxu0 0
        %6421 = vmatpush2.bf16.msra.mxu0 %v4638
        %6422 = vmatprep.mubr.bf16.mxu0 %v430
        %6423 = vmatmul.mubr.bf16.gmra.mxu0 %v429
        %v6424 = vpop.f32.mrf.mxu0
        %v6425 = vadd.f32 %v6385, %v6424
        %v6426 = vpop.f32.mrf.mxu0
        %v6427 = vpop.f32.mrf.mxu0
        %v6428 = vpop.f32.mrf.mxu0
        %6429 = vdwg.mxu0
        %6430 = vmatprep.subr.bf16.mxu0 0
        %6431 = vmatpush1.bf16.msra.mxu0 %v4653
        %6432 = vmatprep.subr.bf16.mxu0 0
        %6433 = vmatpush1.bf16.msra.mxu0 %v4652
        %6434 = vmatprep.subr.bf16.mxu0 0
        %6435 = vmatpush1.bf16.msra.mxu0 %v4651
        %6436 = vmatprep.subr.bf16.mxu0 0
        %6437 = vmatpush1.bf16.msra.mxu0 %v4650
        %6438 = vmatprep.subr.bf16.mxu0 0
        %6439 = vmatpush1.bf16.msra.mxu0 %v4649
        %6440 = vmatprep.subr.bf16.mxu0 0
        %6441 = vmatpush1.bf16.msra.mxu0 %v4648
        %6442 = vmatprep.subr.bf16.mxu0 0
        %6443 = vmatpush1.bf16.msra.mxu0 %v4647
        %6444 = vmatprep.subr.bf16.mxu0 0
        %6445 = vmatpush1.bf16.msra.mxu0 %v4646
        %6446 = vmatprep.subr.bf16.mxu0 0
        %6447 = vmatpush2.bf16.msra.mxu0 %v4661
        %6448 = vmatprep.subr.bf16.mxu0 0
        %6449 = vmatpush2.bf16.msra.mxu0 %v4660
        %6450 = vmatprep.subr.bf16.mxu0 0
        %6451 = vmatpush2.bf16.msra.mxu0 %v4659
        %6452 = vmatprep.subr.bf16.mxu0 0
        %6453 = vmatpush2.bf16.msra.mxu0 %v4658
        %6454 = vmatprep.subr.bf16.mxu0 0
        %6455 = vmatpush2.bf16.msra.mxu0 %v4657
        %6456 = vmatprep.subr.bf16.mxu0 0
        %6457 = vmatpush2.bf16.msra.mxu0 %v4656
        %6458 = vmatprep.subr.bf16.mxu0 0
        %6459 = vmatpush2.bf16.msra.mxu0 %v4655
        %6460 = vmatprep.subr.bf16.mxu0 0
        %6461 = vmatpush2.bf16.msra.mxu0 %v4654
        %6462 = vmatprep.mubr.bf16.mxu0 %v432
        %6463 = vmatmul.mubr.bf16.gmra.mxu0 %v431
        %v6464 = vpop.f32.mrf.mxu0
        %v6465 = vadd.f32 %v6425, %v6464
        %v6466 = vpop.f32.mrf.mxu0
        %v6467 = vpop.f32.mrf.mxu0
        %v6468 = vpop.f32.mrf.mxu0
        %6469 = vdwg.mxu0
        %6470 = vmatprep.subr.bf16.mxu0 0
        %6471 = vmatpush1.bf16.msra.mxu0 %v4669
        %6472 = vmatprep.subr.bf16.mxu0 0
        %6473 = vmatpush1.bf16.msra.mxu0 %v4668
        %6474 = vmatprep.subr.bf16.mxu0 0
        %6475 = vmatpush1.bf16.msra.mxu0 %v4667
        %6476 = vmatprep.subr.bf16.mxu0 0
        %6477 = vmatpush1.bf16.msra.mxu0 %v4666
        %6478 = vmatprep.subr.bf16.mxu0 0
        %6479 = vmatpush1.bf16.msra.mxu0 %v4665
        %6480 = vmatprep.subr.bf16.mxu0 0
        %6481 = vmatpush1.bf16.msra.mxu0 %v4664
        %6482 = vmatprep.subr.bf16.mxu0 0
        %6483 = vmatpush1.bf16.msra.mxu0 %v4663
        %6484 = vmatprep.subr.bf16.mxu0 0
        %6485 = vmatpush1.bf16.msra.mxu0 %v4662
        %6486 = vmatprep.subr.bf16.mxu0 0
        %6487 = vmatpush2.bf16.msra.mxu0 %v4677
        %6488 = vmatprep.subr.bf16.mxu0 0
        %6489 = vmatpush2.bf16.msra.mxu0 %v4676
        %6490 = vmatprep.subr.bf16.mxu0 0
        %6491 = vmatpush2.bf16.msra.mxu0 %v4675
        %6492 = vmatprep.subr.bf16.mxu0 0
        %6493 = vmatpush2.bf16.msra.mxu0 %v4674
        %6494 = vmatprep.subr.bf16.mxu0 0
        %6495 = vmatpush2.bf16.msra.mxu0 %v4673
        %6496 = vmatprep.subr.bf16.mxu0 0
        %6497 = vmatpush2.bf16.msra.mxu0 %v4672
        %6498 = vmatprep.subr.bf16.mxu0 0
        %6499 = vmatpush2.bf16.msra.mxu0 %v4671
        %6500 = vmatprep.subr.bf16.mxu0 0
        %6501 = vmatpush2.bf16.msra.mxu0 %v4670
        %6502 = vmatprep.mubr.bf16.mxu0 %v434
        %6503 = vmatmul.mubr.bf16.gmra.mxu0 %v433
        %v6504 = vpop.f32.mrf.mxu0
        %v6505 = vadd.f32 %v6465, %v6504
        %v6506 = vpop.f32.mrf.mxu0
        %v6507 = vpop.f32.mrf.mxu0
        %v6508 = vpop.f32.mrf.mxu0
        %6509 = vdwg.mxu0
        %6510 = vmatprep.subr.bf16.mxu0 0
        %6511 = vmatpush1.bf16.msra.mxu0 %v4685
        %6512 = vmatprep.subr.bf16.mxu0 0
        %6513 = vmatpush1.bf16.msra.mxu0 %v4684
        %6514 = vmatprep.subr.bf16.mxu0 0
        %6515 = vmatpush1.bf16.msra.mxu0 %v4683
        %6516 = vmatprep.subr.bf16.mxu0 0
        %6517 = vmatpush1.bf16.msra.mxu0 %v4682
        %6518 = vmatprep.subr.bf16.mxu0 0
        %6519 = vmatpush1.bf16.msra.mxu0 %v4681
        %6520 = vmatprep.subr.bf16.mxu0 0
        %6521 = vmatpush1.bf16.msra.mxu0 %v4680
        %6522 = vmatprep.subr.bf16.mxu0 0
        %6523 = vmatpush1.bf16.msra.mxu0 %v4679
        %6524 = vmatprep.subr.bf16.mxu0 0
        %6525 = vmatpush1.bf16.msra.mxu0 %v4678
        %6526 = vmatprep.subr.bf16.mxu0 0
        %6527 = vmatpush2.bf16.msra.mxu0 %v4693
        %6528 = vmatprep.subr.bf16.mxu0 0
        %6529 = vmatpush2.bf16.msra.mxu0 %v4692
        %6530 = vmatprep.subr.bf16.mxu0 0
        %6531 = vmatpush2.bf16.msra.mxu0 %v4691
        %6532 = vmatprep.subr.bf16.mxu0 0
        %6533 = vmatpush2.bf16.msra.mxu0 %v4690
        %6534 = vmatprep.subr.bf16.mxu0 0
        %6535 = vmatpush2.bf16.msra.mxu0 %v4689
        %6536 = vmatprep.subr.bf16.mxu0 0
        %6537 = vmatpush2.bf16.msra.mxu0 %v4688
        %6538 = vmatprep.subr.bf16.mxu0 0
        %6539 = vmatpush2.bf16.msra.mxu0 %v4687
        %6540 = vmatprep.subr.bf16.mxu0 0
        %6541 = vmatpush2.bf16.msra.mxu0 %v4686
        %6542 = vmatprep.mubr.bf16.mxu0 %v436
        %6543 = vmatmul.mubr.bf16.gmra.mxu0 %v435
        %v6544 = vpop.f32.mrf.mxu0
        %v6545 = vadd.f32 %v6505, %v6544
        %v6546 = vpop.f32.mrf.mxu0
        %v6547 = vpop.f32.mrf.mxu0
        %v6548 = vpop.f32.mrf.mxu0
        %6549 = vdwg.mxu0
        %6550 = vmatprep.subr.bf16.mxu0 0
        %6551 = vmatpush1.bf16.msra.mxu0 %v4701
        %6552 = vmatprep.subr.bf16.mxu0 0
        %6553 = vmatpush1.bf16.msra.mxu0 %v4700
        %6554 = vmatprep.subr.bf16.mxu0 0
        %6555 = vmatpush1.bf16.msra.mxu0 %v4699
        %6556 = vmatprep.subr.bf16.mxu0 0
        %6557 = vmatpush1.bf16.msra.mxu0 %v4698
        %6558 = vmatprep.subr.bf16.mxu0 0
        %6559 = vmatpush1.bf16.msra.mxu0 %v4697
        %6560 = vmatprep.subr.bf16.mxu0 0
        %6561 = vmatpush1.bf16.msra.mxu0 %v4696
        %6562 = vmatprep.subr.bf16.mxu0 0
        %6563 = vmatpush1.bf16.msra.mxu0 %v4695
        %6564 = vmatprep.subr.bf16.mxu0 0
        %6565 = vmatpush1.bf16.msra.mxu0 %v4694
        %6566 = vmatprep.subr.bf16.mxu0 0
        %6567 = vmatpush2.bf16.msra.mxu0 %v4709
        %6568 = vmatprep.subr.bf16.mxu0 0
        %6569 = vmatpush2.bf16.msra.mxu0 %v4708
        %6570 = vmatprep.subr.bf16.mxu0 0
        %6571 = vmatpush2.bf16.msra.mxu0 %v4707
        %6572 = vmatprep.subr.bf16.mxu0 0
        %6573 = vmatpush2.bf16.msra.mxu0 %v4706
        %6574 = vmatprep.subr.bf16.mxu0 0
        %6575 = vmatpush2.bf16.msra.mxu0 %v4705
        %6576 = vmatprep.subr.bf16.mxu0 0
        %6577 = vmatpush2.bf16.msra.mxu0 %v4704
        %6578 = vmatprep.subr.bf16.mxu0 0
        %6579 = vmatpush2.bf16.msra.mxu0 %v4703
        %6580 = vmatprep.subr.bf16.mxu0 0
        %6581 = vmatpush2.bf16.msra.mxu0 %v4702
        %6582 = vmatprep.mubr.bf16.mxu0 %v438
        %6583 = vmatmul.mubr.bf16.gmra.mxu0 %v437
        %v6584 = vpop.f32.mrf.mxu0
        %v6585 = vadd.f32 %v6545, %v6584
        %v6586 = vpop.f32.mrf.mxu0
        %v6587 = vpop.f32.mrf.mxu0
        %v6588 = vpop.f32.mrf.mxu0
        %6589 = vdwg.mxu0
        %6590 = vmatprep.subr.bf16.mxu0 0
        %6591 = vmatpush1.bf16.msra.mxu0 %v4717
        %6592 = vmatprep.subr.bf16.mxu0 0
        %6593 = vmatpush1.bf16.msra.mxu0 %v4716
        %6594 = vmatprep.subr.bf16.mxu0 0
        %6595 = vmatpush1.bf16.msra.mxu0 %v4715
        %6596 = vmatprep.subr.bf16.mxu0 0
        %6597 = vmatpush1.bf16.msra.mxu0 %v4714
        %6598 = vmatprep.subr.bf16.mxu0 0
        %6599 = vmatpush1.bf16.msra.mxu0 %v4713
        %6600 = vmatprep.subr.bf16.mxu0 0
        %6601 = vmatpush1.bf16.msra.mxu0 %v4712
        %6602 = vmatprep.subr.bf16.mxu0 0
        %6603 = vmatpush1.bf16.msra.mxu0 %v4711
        %6604 = vmatprep.subr.bf16.mxu0 0
        %6605 = vmatpush1.bf16.msra.mxu0 %v4710
        %6606 = vmatprep.subr.bf16.mxu0 0
        %6607 = vmatpush2.bf16.msra.mxu0 %v4725
        %6608 = vmatprep.subr.bf16.mxu0 0
        %6609 = vmatpush2.bf16.msra.mxu0 %v4724
        %6610 = vmatprep.subr.bf16.mxu0 0
        %6611 = vmatpush2.bf16.msra.mxu0 %v4723
        %6612 = vmatprep.subr.bf16.mxu0 0
        %6613 = vmatpush2.bf16.msra.mxu0 %v4722
        %6614 = vmatprep.subr.bf16.mxu0 0
        %6615 = vmatpush2.bf16.msra.mxu0 %v4721
        %6616 = vmatprep.subr.bf16.mxu0 0
        %6617 = vmatpush2.bf16.msra.mxu0 %v4720
        %6618 = vmatprep.subr.bf16.mxu0 0
        %6619 = vmatpush2.bf16.msra.mxu0 %v4719
        %6620 = vmatprep.subr.bf16.mxu0 0
        %6621 = vmatpush2.bf16.msra.mxu0 %v4718
        %6622 = vmatprep.mubr.bf16.mxu0 %v440
        %6623 = vmatmul.mubr.bf16.gmra.mxu0 %v439
        %v6624 = vpop.f32.mrf.mxu0
        %v6625 = vadd.f32 %v6585, %v6624
        %v6626 = vpop.f32.mrf.mxu0
        %v6627 = vpop.f32.mrf.mxu0
        %v6628 = vpop.f32.mrf.mxu0
        %6629 = vdwg.mxu0
        %6630 = vmatprep.subr.bf16.mxu0 0
        %6631 = vmatpush1.bf16.msra.mxu0 %v4733
        %6632 = vmatprep.subr.bf16.mxu0 0
        %6633 = vmatpush1.bf16.msra.mxu0 %v4732
        %6634 = vmatprep.subr.bf16.mxu0 0
        %6635 = vmatpush1.bf16.msra.mxu0 %v4731
        %6636 = vmatprep.subr.bf16.mxu0 0
        %6637 = vmatpush1.bf16.msra.mxu0 %v4730
        %6638 = vmatprep.subr.bf16.mxu0 0
        %6639 = vmatpush1.bf16.msra.mxu0 %v4729
        %6640 = vmatprep.subr.bf16.mxu0 0
        %6641 = vmatpush1.bf16.msra.mxu0 %v4728
        %6642 = vmatprep.subr.bf16.mxu0 0
        %6643 = vmatpush1.bf16.msra.mxu0 %v4727
        %6644 = vmatprep.subr.bf16.mxu0 0
        %6645 = vmatpush1.bf16.msra.mxu0 %v4726
        %6646 = vmatprep.subr.bf16.mxu0 0
        %6647 = vmatpush2.bf16.msra.mxu0 %v4741
        %6648 = vmatprep.subr.bf16.mxu0 0
        %6649 = vmatpush2.bf16.msra.mxu0 %v4740
        %6650 = vmatprep.subr.bf16.mxu0 0
        %6651 = vmatpush2.bf16.msra.mxu0 %v4739
        %6652 = vmatprep.subr.bf16.mxu0 0
        %6653 = vmatpush2.bf16.msra.mxu0 %v4738
        %6654 = vmatprep.subr.bf16.mxu0 0
        %6655 = vmatpush2.bf16.msra.mxu0 %v4737
        %6656 = vmatprep.subr.bf16.mxu0 0
        %6657 = vmatpush2.bf16.msra.mxu0 %v4736
        %6658 = vmatprep.subr.bf16.mxu0 0
        %6659 = vmatpush2.bf16.msra.mxu0 %v4735
        %6660 = vmatprep.subr.bf16.mxu0 0
        %6661 = vmatpush2.bf16.msra.mxu0 %v4734
        %6662 = vmatprep.mubr.bf16.mxu0 %v442
        %6663 = vmatmul.mubr.bf16.gmra.mxu0 %v441
        %v6664 = vpop.f32.mrf.mxu0
        %v6665 = vadd.f32 %v6625, %v6664
        %v6666 = vpop.f32.mrf.mxu0
        %v6667 = vpop.f32.mrf.mxu0
        %v6668 = vpop.f32.mrf.mxu0
        %6669 = vdwg.mxu0
        %6670 = vmatprep.subr.bf16.mxu0 0
        %6671 = vmatpush1.bf16.msra.mxu0 %v4749
        %6672 = vmatprep.subr.bf16.mxu0 0
        %6673 = vmatpush1.bf16.msra.mxu0 %v4748
        %6674 = vmatprep.subr.bf16.mxu0 0
        %6675 = vmatpush1.bf16.msra.mxu0 %v4747
        %6676 = vmatprep.subr.bf16.mxu0 0
        %6677 = vmatpush1.bf16.msra.mxu0 %v4746
        %6678 = vmatprep.subr.bf16.mxu0 0
        %6679 = vmatpush1.bf16.msra.mxu0 %v4745
        %6680 = vmatprep.subr.bf16.mxu0 0
        %6681 = vmatpush1.bf16.msra.mxu0 %v4744
        %6682 = vmatprep.subr.bf16.mxu0 0
        %6683 = vmatpush1.bf16.msra.mxu0 %v4743
        %6684 = vmatprep.subr.bf16.mxu0 0
        %6685 = vmatpush1.bf16.msra.mxu0 %v4742
        %6686 = vmatprep.subr.bf16.mxu0 0
        %6687 = vmatpush2.bf16.msra.mxu0 %v4757
        %6688 = vmatprep.subr.bf16.mxu0 0
        %6689 = vmatpush2.bf16.msra.mxu0 %v4756
        %6690 = vmatprep.subr.bf16.mxu0 0
        %6691 = vmatpush2.bf16.msra.mxu0 %v4755
        %6692 = vmatprep.subr.bf16.mxu0 0
        %6693 = vmatpush2.bf16.msra.mxu0 %v4754
        %6694 = vmatprep.subr.bf16.mxu0 0
        %6695 = vmatpush2.bf16.msra.mxu0 %v4753
        %6696 = vmatprep.subr.bf16.mxu0 0
        %6697 = vmatpush2.bf16.msra.mxu0 %v4752
        %6698 = vmatprep.subr.bf16.mxu0 0
        %6699 = vmatpush2.bf16.msra.mxu0 %v4751
        %6700 = vmatprep.subr.bf16.mxu0 0
        %6701 = vmatpush2.bf16.msra.mxu0 %v4750
        %6702 = vmatprep.mubr.bf16.mxu0 %v444
        %6703 = vmatmul.mubr.bf16.gmra.mxu0 %v443
        %v6704 = vpop.f32.mrf.mxu0
        %v6705 = vadd.f32 %v6665, %v6704
        %v6706 = vpop.f32.mrf.mxu0
        %v6707 = vpop.f32.mrf.mxu0
        %v6708 = vpop.f32.mrf.mxu0
        %6709 = vdwg.mxu0
        %6710 = vmatprep.subr.bf16.mxu0 0
        %6711 = vmatpush1.bf16.msra.mxu0 %v4765
        %6712 = vmatprep.subr.bf16.mxu0 0
        %6713 = vmatpush1.bf16.msra.mxu0 %v4764
        %6714 = vmatprep.subr.bf16.mxu0 0
        %6715 = vmatpush1.bf16.msra.mxu0 %v4763
        %6716 = vmatprep.subr.bf16.mxu0 0
        %6717 = vmatpush1.bf16.msra.mxu0 %v4762
        %6718 = vmatprep.subr.bf16.mxu0 0
        %6719 = vmatpush1.bf16.msra.mxu0 %v4761
        %6720 = vmatprep.subr.bf16.mxu0 0
        %6721 = vmatpush1.bf16.msra.mxu0 %v4760
        %6722 = vmatprep.subr.bf16.mxu0 0
        %6723 = vmatpush1.bf16.msra.mxu0 %v4759
        %6724 = vmatprep.subr.bf16.mxu0 0
        %6725 = vmatpush1.bf16.msra.mxu0 %v4758
        %6726 = vmatprep.subr.bf16.mxu0 0
        %6727 = vmatpush2.bf16.msra.mxu0 %v4773
        %6728 = vmatprep.subr.bf16.mxu0 0
        %6729 = vmatpush2.bf16.msra.mxu0 %v4772
        %6730 = vmatprep.subr.bf16.mxu0 0
        %6731 = vmatpush2.bf16.msra.mxu0 %v4771
        %6732 = vmatprep.subr.bf16.mxu0 0
        %6733 = vmatpush2.bf16.msra.mxu0 %v4770
        %6734 = vmatprep.subr.bf16.mxu0 0
        %6735 = vmatpush2.bf16.msra.mxu0 %v4769
        %6736 = vmatprep.subr.bf16.mxu0 0
        %6737 = vmatpush2.bf16.msra.mxu0 %v4768
        %6738 = vmatprep.subr.bf16.mxu0 0
        %6739 = vmatpush2.bf16.msra.mxu0 %v4767
        %6740 = vmatprep.subr.bf16.mxu0 0
        %6741 = vmatpush2.bf16.msra.mxu0 %v4766
        %6742 = vmatprep.mubr.bf16.mxu0 %v446
        %6743 = vmatmul.mubr.bf16.gmra.mxu0 %v445
        %v6744 = vpop.f32.mrf.mxu0
        %v6745 = vadd.f32 %v6705, %v6744
        %v6746 = vpop.f32.mrf.mxu0
        %v6747 = vpop.f32.mrf.mxu0
        %v6748 = vpop.f32.mrf.mxu0
        %6749 = vdwg.mxu0
        %6750 = vmatprep.subr.bf16.mxu0 0
        %6751 = vmatpush1.bf16.msra.mxu0 %v4781
        %6752 = vmatprep.subr.bf16.mxu0 0
        %6753 = vmatpush1.bf16.msra.mxu0 %v4780
        %6754 = vmatprep.subr.bf16.mxu0 0
        %6755 = vmatpush1.bf16.msra.mxu0 %v4779
        %6756 = vmatprep.subr.bf16.mxu0 0
        %6757 = vmatpush1.bf16.msra.mxu0 %v4778
        %6758 = vmatprep.subr.bf16.mxu0 0
        %6759 = vmatpush1.bf16.msra.mxu0 %v4777
        %6760 = vmatprep.subr.bf16.mxu0 0
        %6761 = vmatpush1.bf16.msra.mxu0 %v4776
        %6762 = vmatprep.subr.bf16.mxu0 0
        %6763 = vmatpush1.bf16.msra.mxu0 %v4775
        %6764 = vmatprep.subr.bf16.mxu0 0
        %6765 = vmatpush1.bf16.msra.mxu0 %v4774
        %6766 = vmatprep.subr.bf16.mxu0 0
        %6767 = vmatpush2.bf16.msra.mxu0 %v4789
        %6768 = vmatprep.subr.bf16.mxu0 0
        %6769 = vmatpush2.bf16.msra.mxu0 %v4788
        %6770 = vmatprep.subr.bf16.mxu0 0
        %6771 = vmatpush2.bf16.msra.mxu0 %v4787
        %6772 = vmatprep.subr.bf16.mxu0 0
        %6773 = vmatpush2.bf16.msra.mxu0 %v4786
        %6774 = vmatprep.subr.bf16.mxu0 0
        %6775 = vmatpush2.bf16.msra.mxu0 %v4785
        %6776 = vmatprep.subr.bf16.mxu0 0
        %6777 = vmatpush2.bf16.msra.mxu0 %v4784
        %6778 = vmatprep.subr.bf16.mxu0 0
        %6779 = vmatpush2.bf16.msra.mxu0 %v4783
        %6780 = vmatprep.subr.bf16.mxu0 0
        %6781 = vmatpush2.bf16.msra.mxu0 %v4782
        %6782 = vmatprep.mubr.bf16.mxu0 %v448
        %6783 = vmatmul.mubr.bf16.gmra.mxu0 %v447
        %v6784 = vpop.f32.mrf.mxu0
        %v6785 = vadd.f32 %v6745, %v6784
        %v6786 = vpop.f32.mrf.mxu0
        %v6787 = vpop.f32.mrf.mxu0
        %v6788 = vpop.f32.mrf.mxu0
        %6789 = vdwg.mxu0
        %6790 = vmatprep.subr.bf16.mxu0 0
        %6791 = vmatpush1.bf16.msra.mxu0 %v4797
        %6792 = vmatprep.subr.bf16.mxu0 0
        %6793 = vmatpush1.bf16.msra.mxu0 %v4796
        %6794 = vmatprep.subr.bf16.mxu0 0
        %6795 = vmatpush1.bf16.msra.mxu0 %v4795
        %6796 = vmatprep.subr.bf16.mxu0 0
        %6797 = vmatpush1.bf16.msra.mxu0 %v4794
        %6798 = vmatprep.subr.bf16.mxu0 0
        %6799 = vmatpush1.bf16.msra.mxu0 %v4793
        %6800 = vmatprep.subr.bf16.mxu0 0
        %6801 = vmatpush1.bf16.msra.mxu0 %v4792
        %6802 = vmatprep.subr.bf16.mxu0 0
        %6803 = vmatpush1.bf16.msra.mxu0 %v4791
        %6804 = vmatprep.subr.bf16.mxu0 0
        %6805 = vmatpush1.bf16.msra.mxu0 %v4790
        %6806 = vmatprep.subr.bf16.mxu0 0
        %6807 = vmatpush2.bf16.msra.mxu0 %v4805
        %6808 = vmatprep.subr.bf16.mxu0 0
        %6809 = vmatpush2.bf16.msra.mxu0 %v4804
        %6810 = vmatprep.subr.bf16.mxu0 0
        %6811 = vmatpush2.bf16.msra.mxu0 %v4803
        %6812 = vmatprep.subr.bf16.mxu0 0
        %6813 = vmatpush2.bf16.msra.mxu0 %v4802
        %6814 = vmatprep.subr.bf16.mxu0 0
        %6815 = vmatpush2.bf16.msra.mxu0 %v4801
        %6816 = vmatprep.subr.bf16.mxu0 0
        %6817 = vmatpush2.bf16.msra.mxu0 %v4800
        %6818 = vmatprep.subr.bf16.mxu0 0
        %6819 = vmatpush2.bf16.msra.mxu0 %v4799
        %6820 = vmatprep.subr.bf16.mxu0 0
        %6821 = vmatpush2.bf16.msra.mxu0 %v4798
        %6822 = vmatprep.mubr.bf16.mxu0 %v450
        %6823 = vmatmul.mubr.bf16.gmra.mxu0 %v449
        %v6824 = vpop.f32.mrf.mxu0
        %v6825 = vadd.f32 %v6785, %v6824
        %v6826 = vpop.f32.mrf.mxu0
        %v6827 = vpop.f32.mrf.mxu0
        %v6828 = vpop.f32.mrf.mxu0
        %6829 = vdwg.mxu0
        %6830 = vmatprep.subr.bf16.mxu0 0
        %6831 = vmatpush1.bf16.msra.mxu0 %v4813
        %6832 = vmatprep.subr.bf16.mxu0 0
        %6833 = vmatpush1.bf16.msra.mxu0 %v4812
        %6834 = vmatprep.subr.bf16.mxu0 0
        %6835 = vmatpush1.bf16.msra.mxu0 %v4811
        %6836 = vmatprep.subr.bf16.mxu0 0
        %6837 = vmatpush1.bf16.msra.mxu0 %v4810
        %6838 = vmatprep.subr.bf16.mxu0 0
        %6839 = vmatpush1.bf16.msra.mxu0 %v4809
        %6840 = vmatprep.subr.bf16.mxu0 0
        %6841 = vmatpush1.bf16.msra.mxu0 %v4808
        %6842 = vmatprep.subr.bf16.mxu0 0
        %6843 = vmatpush1.bf16.msra.mxu0 %v4807
        %6844 = vmatprep.subr.bf16.mxu0 0
        %6845 = vmatpush1.bf16.msra.mxu0 %v4806
        %6846 = vmatprep.subr.bf16.mxu0 0
        %6847 = vmatpush2.bf16.msra.mxu0 %v4821
        %6848 = vmatprep.subr.bf16.mxu0 0
        %6849 = vmatpush2.bf16.msra.mxu0 %v4820
        %6850 = vmatprep.subr.bf16.mxu0 0
        %6851 = vmatpush2.bf16.msra.mxu0 %v4819
        %6852 = vmatprep.subr.bf16.mxu0 0
        %6853 = vmatpush2.bf16.msra.mxu0 %v4818
        %6854 = vmatprep.subr.bf16.mxu0 0
        %6855 = vmatpush2.bf16.msra.mxu0 %v4817
        %6856 = vmatprep.subr.bf16.mxu0 0
        %6857 = vmatpush2.bf16.msra.mxu0 %v4816
        %6858 = vmatprep.subr.bf16.mxu0 0
        %6859 = vmatpush2.bf16.msra.mxu0 %v4815
        %6860 = vmatprep.subr.bf16.mxu0 0
        %6861 = vmatpush2.bf16.msra.mxu0 %v4814
        %6862 = vmatprep.mubr.bf16.mxu0 %v452
        %6863 = vmatmul.mubr.bf16.gmra.mxu0 %v451
        %v6864 = vpop.f32.mrf.mxu0
        %v6865 = vadd.f32 %v6825, %v6864
        %v6866 = vpop.f32.mrf.mxu0
        %v6867 = vpop.f32.mrf.mxu0
        %v6868 = vpop.f32.mrf.mxu0
        %6869 = vdwg.mxu0
        %6870 = vmatprep.subr.bf16.mxu0 0
        %6871 = vmatpush1.bf16.msra.mxu0 %v4829
        %6872 = vmatprep.subr.bf16.mxu0 0
        %6873 = vmatpush1.bf16.msra.mxu0 %v4828
        %6874 = vmatprep.subr.bf16.mxu0 0
        %6875 = vmatpush1.bf16.msra.mxu0 %v4827
        %6876 = vmatprep.subr.bf16.mxu0 0
        %6877 = vmatpush1.bf16.msra.mxu0 %v4826
        %6878 = vmatprep.subr.bf16.mxu0 0
        %6879 = vmatpush1.bf16.msra.mxu0 %v4825
        %6880 = vmatprep.subr.bf16.mxu0 0
        %6881 = vmatpush1.bf16.msra.mxu0 %v4824
        %6882 = vmatprep.subr.bf16.mxu0 0
        %6883 = vmatpush1.bf16.msra.mxu0 %v4823
        %6884 = vmatprep.subr.bf16.mxu0 0
        %6885 = vmatpush1.bf16.msra.mxu0 %v4822
        %6886 = vmatprep.subr.bf16.mxu0 0
        %6887 = vmatpush2.bf16.msra.mxu0 %v4837
        %6888 = vmatprep.subr.bf16.mxu0 0
        %6889 = vmatpush2.bf16.msra.mxu0 %v4836
        %6890 = vmatprep.subr.bf16.mxu0 0
        %6891 = vmatpush2.bf16.msra.mxu0 %v4835
        %6892 = vmatprep.subr.bf16.mxu0 0
        %6893 = vmatpush2.bf16.msra.mxu0 %v4834
        %6894 = vmatprep.subr.bf16.mxu0 0
        %6895 = vmatpush2.bf16.msra.mxu0 %v4833
        %6896 = vmatprep.subr.bf16.mxu0 0
        %6897 = vmatpush2.bf16.msra.mxu0 %v4832
        %6898 = vmatprep.subr.bf16.mxu0 0
        %6899 = vmatpush2.bf16.msra.mxu0 %v4831
        %6900 = vmatprep.subr.bf16.mxu0 0
        %6901 = vmatpush2.bf16.msra.mxu0 %v4830
        %6902 = vmatprep.mubr.bf16.mxu0 %v454
        %6903 = vmatmul.mubr.bf16.gmra.mxu0 %v453
        %v6904 = vpop.f32.mrf.mxu0
        %v6905 = vadd.f32 %v6865, %v6904
        %v6906 = vpop.f32.mrf.mxu0
        %v6907 = vpop.f32.mrf.mxu0
        %v6908 = vpop.f32.mrf.mxu0
        %6909 = vdwg.mxu0
        %6910 = vmatprep.subr.bf16.mxu0 0
        %6911 = vmatpush1.bf16.msra.mxu0 %v4845
        %6912 = vmatprep.subr.bf16.mxu0 0
        %6913 = vmatpush1.bf16.msra.mxu0 %v4844
        %6914 = vmatprep.subr.bf16.mxu0 0
        %6915 = vmatpush1.bf16.msra.mxu0 %v4843
        %6916 = vmatprep.subr.bf16.mxu0 0
        %6917 = vmatpush1.bf16.msra.mxu0 %v4842
        %6918 = vmatprep.subr.bf16.mxu0 0
        %6919 = vmatpush1.bf16.msra.mxu0 %v4841
        %6920 = vmatprep.subr.bf16.mxu0 0
        %6921 = vmatpush1.bf16.msra.mxu0 %v4840
        %6922 = vmatprep.subr.bf16.mxu0 0
        %6923 = vmatpush1.bf16.msra.mxu0 %v4839
        %6924 = vmatprep.subr.bf16.mxu0 0
        %6925 = vmatpush1.bf16.msra.mxu0 %v4838
        %6926 = vmatprep.subr.bf16.mxu0 0
        %6927 = vmatpush2.bf16.msra.mxu0 %v4853
        %6928 = vmatprep.subr.bf16.mxu0 0
        %6929 = vmatpush2.bf16.msra.mxu0 %v4852
        %6930 = vmatprep.subr.bf16.mxu0 0
        %6931 = vmatpush2.bf16.msra.mxu0 %v4851
        %6932 = vmatprep.subr.bf16.mxu0 0
        %6933 = vmatpush2.bf16.msra.mxu0 %v4850
        %6934 = vmatprep.subr.bf16.mxu0 0
        %6935 = vmatpush2.bf16.msra.mxu0 %v4849
        %6936 = vmatprep.subr.bf16.mxu0 0
        %6937 = vmatpush2.bf16.msra.mxu0 %v4848
        %6938 = vmatprep.subr.bf16.mxu0 0
        %6939 = vmatpush2.bf16.msra.mxu0 %v4847
        %6940 = vmatprep.subr.bf16.mxu0 0
        %6941 = vmatpush2.bf16.msra.mxu0 %v4846
        %6942 = vmatprep.mubr.bf16.mxu0 %v456
        %6943 = vmatmul.mubr.bf16.gmra.mxu0 %v455
        %v6944 = vpop.f32.mrf.mxu0
        %v6945 = vadd.f32 %v6905, %v6944
        %v6946 = vpop.f32.mrf.mxu0
        %v6947 = vpop.f32.mrf.mxu0
        %v6948 = vpop.f32.mrf.mxu0
        %6949 = vdwg.mxu0
        %6950 = vmatprep.subr.bf16.mxu0 0
        %6951 = vmatpush1.bf16.msra.mxu0 %v4861
        %6952 = vmatprep.subr.bf16.mxu0 0
        %6953 = vmatpush1.bf16.msra.mxu0 %v4860
        %6954 = vmatprep.subr.bf16.mxu0 0
        %6955 = vmatpush1.bf16.msra.mxu0 %v4859
        %6956 = vmatprep.subr.bf16.mxu0 0
        %6957 = vmatpush1.bf16.msra.mxu0 %v4858
        %6958 = vmatprep.subr.bf16.mxu0 0
        %6959 = vmatpush1.bf16.msra.mxu0 %v4857
        %6960 = vmatprep.subr.bf16.mxu0 0
        %6961 = vmatpush1.bf16.msra.mxu0 %v4856
        %6962 = vmatprep.subr.bf16.mxu0 0
        %6963 = vmatpush1.bf16.msra.mxu0 %v4855
        %6964 = vmatprep.subr.bf16.mxu0 0
        %6965 = vmatpush1.bf16.msra.mxu0 %v4854
        %6966 = vmatprep.subr.bf16.mxu0 0
        %6967 = vmatpush2.bf16.msra.mxu0 %v4869
        %6968 = vmatprep.subr.bf16.mxu0 0
        %6969 = vmatpush2.bf16.msra.mxu0 %v4868
        %6970 = vmatprep.subr.bf16.mxu0 0
        %6971 = vmatpush2.bf16.msra.mxu0 %v4867
        %6972 = vmatprep.subr.bf16.mxu0 0
        %6973 = vmatpush2.bf16.msra.mxu0 %v4866
        %6974 = vmatprep.subr.bf16.mxu0 0
        %6975 = vmatpush2.bf16.msra.mxu0 %v4865
        %6976 = vmatprep.subr.bf16.mxu0 0
        %6977 = vmatpush2.bf16.msra.mxu0 %v4864
        %6978 = vmatprep.subr.bf16.mxu0 0
        %6979 = vmatpush2.bf16.msra.mxu0 %v4863
        %6980 = vmatprep.subr.bf16.mxu0 0
        %6981 = vmatpush2.bf16.msra.mxu0 %v4862
        %6982 = vmatprep.mubr.bf16.mxu0 %v458
        %6983 = vmatmul.mubr.bf16.gmra.mxu0 %v457
        %v6984 = vpop.f32.mrf.mxu0
        %v6985 = vadd.f32 %v6945, %v6984
        %v6986 = vpop.f32.mrf.mxu0
        %v6987 = vpop.f32.mrf.mxu0
        %v6988 = vpop.f32.mrf.mxu0
        %6989 = vdwg.mxu0
        %6990 = vmatprep.subr.bf16.mxu0 0
        %6991 = vmatpush1.bf16.msra.mxu0 %v4877
        %6992 = vmatprep.subr.bf16.mxu0 0
        %6993 = vmatpush1.bf16.msra.mxu0 %v4876
        %6994 = vmatprep.subr.bf16.mxu0 0
        %6995 = vmatpush1.bf16.msra.mxu0 %v4875
        %6996 = vmatprep.subr.bf16.mxu0 0
        %6997 = vmatpush1.bf16.msra.mxu0 %v4874
        %6998 = vmatprep.subr.bf16.mxu0 0
        %6999 = vmatpush1.bf16.msra.mxu0 %v4873
        %7000 = vmatprep.subr.bf16.mxu0 0
        %7001 = vmatpush1.bf16.msra.mxu0 %v4872
        %7002 = vmatprep.subr.bf16.mxu0 0
        %7003 = vmatpush1.bf16.msra.mxu0 %v4871
        %7004 = vmatprep.subr.bf16.mxu0 0
        %7005 = vmatpush1.bf16.msra.mxu0 %v4870
        %7006 = vmatprep.subr.bf16.mxu0 0
        %7007 = vmatpush2.bf16.msra.mxu0 %v4885
        %7008 = vmatprep.subr.bf16.mxu0 0
        %7009 = vmatpush2.bf16.msra.mxu0 %v4884
        %7010 = vmatprep.subr.bf16.mxu0 0
        %7011 = vmatpush2.bf16.msra.mxu0 %v4883
        %7012 = vmatprep.subr.bf16.mxu0 0
        %7013 = vmatpush2.bf16.msra.mxu0 %v4882
        %7014 = vmatprep.subr.bf16.mxu0 0
        %7015 = vmatpush2.bf16.msra.mxu0 %v4881
        %7016 = vmatprep.subr.bf16.mxu0 0
        %7017 = vmatpush2.bf16.msra.mxu0 %v4880
        %7018 = vmatprep.subr.bf16.mxu0 0
        %7019 = vmatpush2.bf16.msra.mxu0 %v4879
        %7020 = vmatprep.subr.bf16.mxu0 0
        %7021 = vmatpush2.bf16.msra.mxu0 %v4878
        %7022 = vmatprep.mubr.bf16.mxu0 %v460
        %7023 = vmatmul.mubr.bf16.gmra.mxu0 %v459
        %v7024 = vpop.f32.mrf.mxu0
        %v7025 = vadd.f32 %v6985, %v7024
        %v7026 = vpop.f32.mrf.mxu0
        %v7027 = vpop.f32.mrf.mxu0
        %v7028 = vpop.f32.mrf.mxu0
        %7029 = vdwg.mxu0
        %7030 = vmatprep.subr.bf16.mxu0 0
        %7031 = vmatpush1.bf16.msra.mxu0 %v4893
        %7032 = vmatprep.subr.bf16.mxu0 0
        %7033 = vmatpush1.bf16.msra.mxu0 %v4892
        %7034 = vmatprep.subr.bf16.mxu0 0
        %7035 = vmatpush1.bf16.msra.mxu0 %v4891
        %7036 = vmatprep.subr.bf16.mxu0 0
        %7037 = vmatpush1.bf16.msra.mxu0 %v4890
        %7038 = vmatprep.subr.bf16.mxu0 0
        %7039 = vmatpush1.bf16.msra.mxu0 %v4889
        %7040 = vmatprep.subr.bf16.mxu0 0
        %7041 = vmatpush1.bf16.msra.mxu0 %v4888
        %7042 = vmatprep.subr.bf16.mxu0 0
        %7043 = vmatpush1.bf16.msra.mxu0 %v4887
        %7044 = vmatprep.subr.bf16.mxu0 0
        %7045 = vmatpush1.bf16.msra.mxu0 %v4886
        %7046 = vmatprep.subr.bf16.mxu0 0
        %7047 = vmatpush2.bf16.msra.mxu0 %v4901
        %7048 = vmatprep.subr.bf16.mxu0 0
        %7049 = vmatpush2.bf16.msra.mxu0 %v4900
        %7050 = vmatprep.subr.bf16.mxu0 0
        %7051 = vmatpush2.bf16.msra.mxu0 %v4899
        %7052 = vmatprep.subr.bf16.mxu0 0
        %7053 = vmatpush2.bf16.msra.mxu0 %v4898
        %7054 = vmatprep.subr.bf16.mxu0 0
        %7055 = vmatpush2.bf16.msra.mxu0 %v4897
        %7056 = vmatprep.subr.bf16.mxu0 0
        %7057 = vmatpush2.bf16.msra.mxu0 %v4896
        %7058 = vmatprep.subr.bf16.mxu0 0
        %7059 = vmatpush2.bf16.msra.mxu0 %v4895
        %7060 = vmatprep.subr.bf16.mxu0 0
        %7061 = vmatpush2.bf16.msra.mxu0 %v4894
        %7062 = vmatprep.mubr.bf16.mxu0 %v462
        %7063 = vmatmul.mubr.bf16.gmra.mxu0 %v461
        %v7064 = vpop.f32.mrf.mxu0
        %v7065 = vadd.f32 %v7025, %v7064
        %v7066 = vpop.f32.mrf.mxu0
        %v7067 = vpop.f32.mrf.mxu0
        %v7068 = vpop.f32.mrf.mxu0
        %7069 = vdwg.mxu0
        %7070 = vmatprep.subr.bf16.mxu0 0
        %7071 = vmatpush1.bf16.msra.mxu0 %v4909
        %7072 = vmatprep.subr.bf16.mxu0 0
        %7073 = vmatpush1.bf16.msra.mxu0 %v4908
        %7074 = vmatprep.subr.bf16.mxu0 0
        %7075 = vmatpush1.bf16.msra.mxu0 %v4907
        %7076 = vmatprep.subr.bf16.mxu0 0
        %7077 = vmatpush1.bf16.msra.mxu0 %v4906
        %7078 = vmatprep.subr.bf16.mxu0 0
        %7079 = vmatpush1.bf16.msra.mxu0 %v4905
        %7080 = vmatprep.subr.bf16.mxu0 0
        %7081 = vmatpush1.bf16.msra.mxu0 %v4904
        %7082 = vmatprep.subr.bf16.mxu0 0
        %7083 = vmatpush1.bf16.msra.mxu0 %v4903
        %7084 = vmatprep.subr.bf16.mxu0 0
        %7085 = vmatpush1.bf16.msra.mxu0 %v4902
        %7086 = vmatprep.subr.bf16.mxu0 0
        %7087 = vmatpush2.bf16.msra.mxu0 %v4917
        %7088 = vmatprep.subr.bf16.mxu0 0
        %7089 = vmatpush2.bf16.msra.mxu0 %v4916
        %7090 = vmatprep.subr.bf16.mxu0 0
        %7091 = vmatpush2.bf16.msra.mxu0 %v4915
        %7092 = vmatprep.subr.bf16.mxu0 0
        %7093 = vmatpush2.bf16.msra.mxu0 %v4914
        %7094 = vmatprep.subr.bf16.mxu0 0
        %7095 = vmatpush2.bf16.msra.mxu0 %v4913
        %7096 = vmatprep.subr.bf16.mxu0 0
        %7097 = vmatpush2.bf16.msra.mxu0 %v4912
        %7098 = vmatprep.subr.bf16.mxu0 0
        %7099 = vmatpush2.bf16.msra.mxu0 %v4911
        %7100 = vmatprep.subr.bf16.mxu0 0
        %7101 = vmatpush2.bf16.msra.mxu0 %v4910
        %7102 = vmatprep.mubr.bf16.mxu0 %v464
        %7103 = vmatmul.mubr.bf16.gmra.mxu0 %v463
        %v7104 = vpop.f32.mrf.mxu0
        %v7105 = vadd.f32 %v7065, %v7104
        %v7106 = vpop.f32.mrf.mxu0
        %v7107 = vpop.f32.mrf.mxu0
        %v7108 = vpop.f32.mrf.mxu0
        %7109 = vdwg.mxu0
        %7110 = vmatprep.subr.bf16.mxu0 0
        %7111 = vmatpush1.bf16.msra.mxu0 %v4925
        %7112 = vmatprep.subr.bf16.mxu0 0
        %7113 = vmatpush1.bf16.msra.mxu0 %v4924
        %7114 = vmatprep.subr.bf16.mxu0 0
        %7115 = vmatpush1.bf16.msra.mxu0 %v4923
        %7116 = vmatprep.subr.bf16.mxu0 0
        %7117 = vmatpush1.bf16.msra.mxu0 %v4922
        %7118 = vmatprep.subr.bf16.mxu0 0
        %7119 = vmatpush1.bf16.msra.mxu0 %v4921
        %7120 = vmatprep.subr.bf16.mxu0 0
        %7121 = vmatpush1.bf16.msra.mxu0 %v4920
        %7122 = vmatprep.subr.bf16.mxu0 0
        %7123 = vmatpush1.bf16.msra.mxu0 %v4919
        %7124 = vmatprep.subr.bf16.mxu0 0
        %7125 = vmatpush1.bf16.msra.mxu0 %v4918
        %7126 = vmatprep.subr.bf16.mxu0 0
        %7127 = vmatpush2.bf16.msra.mxu0 %v4933
        %7128 = vmatprep.subr.bf16.mxu0 0
        %7129 = vmatpush2.bf16.msra.mxu0 %v4932
        %7130 = vmatprep.subr.bf16.mxu0 0
        %7131 = vmatpush2.bf16.msra.mxu0 %v4931
        %7132 = vmatprep.subr.bf16.mxu0 0
        %7133 = vmatpush2.bf16.msra.mxu0 %v4930
        %7134 = vmatprep.subr.bf16.mxu0 0
        %7135 = vmatpush2.bf16.msra.mxu0 %v4929
        %7136 = vmatprep.subr.bf16.mxu0 0
        %7137 = vmatpush2.bf16.msra.mxu0 %v4928
        %7138 = vmatprep.subr.bf16.mxu0 0
        %7139 = vmatpush2.bf16.msra.mxu0 %v4927
        %7140 = vmatprep.subr.bf16.mxu0 0
        %7141 = vmatpush2.bf16.msra.mxu0 %v4926
        %7142 = vmatprep.mubr.bf16.mxu0 %v466
        %7143 = vmatmul.mubr.bf16.gmra.mxu0 %v465
        %v7144 = vpop.f32.mrf.mxu0
        %v7145 = vadd.f32 %v7105, %v7144
        %v7146 = vpop.f32.mrf.mxu0
        %v7147 = vpop.f32.mrf.mxu0
        %v7148 = vpop.f32.mrf.mxu0
        %7149 = vdwg.mxu0
        %7150 = vmatprep.subr.bf16.mxu0 0
        %7151 = vmatpush1.bf16.msra.mxu0 %v4941
        %7152 = vmatprep.subr.bf16.mxu0 0
        %7153 = vmatpush1.bf16.msra.mxu0 %v4940
        %7154 = vmatprep.subr.bf16.mxu0 0
        %7155 = vmatpush1.bf16.msra.mxu0 %v4939
        %7156 = vmatprep.subr.bf16.mxu0 0
        %7157 = vmatpush1.bf16.msra.mxu0 %v4938
        %7158 = vmatprep.subr.bf16.mxu0 0
        %7159 = vmatpush1.bf16.msra.mxu0 %v4937
        %7160 = vmatprep.subr.bf16.mxu0 0
        %7161 = vmatpush1.bf16.msra.mxu0 %v4936
        %7162 = vmatprep.subr.bf16.mxu0 0
        %7163 = vmatpush1.bf16.msra.mxu0 %v4935
        %7164 = vmatprep.subr.bf16.mxu0 0
        %7165 = vmatpush1.bf16.msra.mxu0 %v4934
        %7166 = vmatprep.subr.bf16.mxu0 0
        %7167 = vmatpush2.bf16.msra.mxu0 %v4949
        %7168 = vmatprep.subr.bf16.mxu0 0
        %7169 = vmatpush2.bf16.msra.mxu0 %v4948
        %7170 = vmatprep.subr.bf16.mxu0 0
        %7171 = vmatpush2.bf16.msra.mxu0 %v4947
        %7172 = vmatprep.subr.bf16.mxu0 0
        %7173 = vmatpush2.bf16.msra.mxu0 %v4946
        %7174 = vmatprep.subr.bf16.mxu0 0
        %7175 = vmatpush2.bf16.msra.mxu0 %v4945
        %7176 = vmatprep.subr.bf16.mxu0 0
        %7177 = vmatpush2.bf16.msra.mxu0 %v4944
        %7178 = vmatprep.subr.bf16.mxu0 0
        %7179 = vmatpush2.bf16.msra.mxu0 %v4943
        %7180 = vmatprep.subr.bf16.mxu0 0
        %7181 = vmatpush2.bf16.msra.mxu0 %v4942
        %7182 = vmatprep.mubr.bf16.mxu0 %v468
        %7183 = vmatmul.mubr.bf16.gmra.mxu0 %v467
        %v7184 = vpop.f32.mrf.mxu0
        %v7185 = vadd.f32 %v7145, %v7184
        %v7186 = vpop.f32.mrf.mxu0
        %v7187 = vpop.f32.mrf.mxu0
        %v7188 = vpop.f32.mrf.mxu0
        %7189 = vdwg.mxu0
        %v7190 = vpack.c.bf16 %v7185, %v7185
        %v7191 = vld [vmem:[%s259] sm:$0xff]
        %v7192 = vld [vmem:[%s259 + $0x8] sm:$0xff]
        %v7193 = vld [vmem:[%s259 + $0x10] sm:$0xff]
        %v7194 = vld [vmem:[%s259 + $0x18] sm:$0xff]
        %v7195 = vld [vmem:[%s259 + $0x20] sm:$0xff]
        %v7196 = vld [vmem:[%s259 + $0x28] sm:$0xff]
        %v7197 = vld [vmem:[%s259 + $0x30] sm:$0xff]
        %v7198 = vld [vmem:[%s259 + $0x38] sm:$0xff]
        %v7199 = vld [vmem:[%s259 + $0x40] sm:$0xff]
        %v7200 = vld [vmem:[%s259 + $0x48] sm:$0xff]
        %v7201 = vld [vmem:[%s259 + $0x50] sm:$0xff]
        %v7202 = vld [vmem:[%s259 + $0x58] sm:$0xff]
        %v7203 = vld [vmem:[%s259 + $0x60] sm:$0xff]
        %v7204 = vld [vmem:[%s259 + $0x68] sm:$0xff]
        %v7205 = vld [vmem:[%s259 + $0x70] sm:$0xff]
        %v7206 = vld [vmem:[%s259 + $0x78] sm:$0xff]
        %v7207 = vld [vmem:[%s259 + $0x80] sm:$0xff]
        %v7208 = vld [vmem:[%s259 + $0x88] sm:$0xff]
        %v7209 = vld [vmem:[%s259 + $0x90] sm:$0xff]
        %v7210 = vld [vmem:[%s259 + $0x98] sm:$0xff]
        %v7211 = vld [vmem:[%s259 + $0xa0] sm:$0xff]
        %v7212 = vld [vmem:[%s259 + $0xa8] sm:$0xff]
        %v7213 = vld [vmem:[%s259 + $0xb0] sm:$0xff]
        %v7214 = vld [vmem:[%s259 + $0xb8] sm:$0xff]
        %v7215 = vld [vmem:[%s259 + $0xc0] sm:$0xff]
        %v7216 = vld [vmem:[%s259 + $0xc8] sm:$0xff]
        %v7217 = vld [vmem:[%s259 + $0xd0] sm:$0xff]
        %v7218 = vld [vmem:[%s259 + $0xd8] sm:$0xff]
        %v7219 = vld [vmem:[%s259 + $0xe0] sm:$0xff]
        %v7220 = vld [vmem:[%s259 + $0xe8] sm:$0xff]
        %v7221 = vld [vmem:[%s259 + $0xf0] sm:$0xff]
        %v7222 = vld [vmem:[%s259 + $0xf8] sm:$0xff]
        %v7223 = vld [vmem:[%s259 + $0x100] sm:$0xff]
        %v7224 = vld [vmem:[%s259 + $0x108] sm:$0xff]
        %v7225 = vld [vmem:[%s259 + $0x110] sm:$0xff]
        %v7226 = vld [vmem:[%s259 + $0x118] sm:$0xff]
        %v7227 = vld [vmem:[%s259 + $0x120] sm:$0xff]
        %v7228 = vld [vmem:[%s259 + $0x128] sm:$0xff]
        %v7229 = vld [vmem:[%s259 + $0x130] sm:$0xff]
        %v7230 = vld [vmem:[%s259 + $0x138] sm:$0xff]
        %v7231 = vld [vmem:[%s259 + $0x140] sm:$0xff]
        %v7232 = vld [vmem:[%s259 + $0x148] sm:$0xff]
        %v7233 = vld [vmem:[%s259 + $0x150] sm:$0xff]
        %v7234 = vld [vmem:[%s259 + $0x158] sm:$0xff]
        %v7235 = vld [vmem:[%s259 + $0x160] sm:$0xff]
        %v7236 = vld [vmem:[%s259 + $0x168] sm:$0xff]
        %v7237 = vld [vmem:[%s259 + $0x170] sm:$0xff]
        %v7238 = vld [vmem:[%s259 + $0x178] sm:$0xff]
        %v7239 = vld [vmem:[%s259 + $0x180] sm:$0xff]
        %v7240 = vld [vmem:[%s259 + $0x188] sm:$0xff]
        %v7241 = vld [vmem:[%s259 + $0x190] sm:$0xff]
        %v7242 = vld [vmem:[%s259 + $0x198] sm:$0xff]
        %v7243 = vld [vmem:[%s259 + $0x1a0] sm:$0xff]
        %v7244 = vld [vmem:[%s259 + $0x1a8] sm:$0xff]
        %v7245 = vld [vmem:[%s259 + $0x1b0] sm:$0xff]
        %v7246 = vld [vmem:[%s259 + $0x1b8] sm:$0xff]
        %v7247 = vld [vmem:[%s259 + $0x1c0] sm:$0xff]
        %v7248 = vld [vmem:[%s259 + $0x1c8] sm:$0xff]
        %v7249 = vld [vmem:[%s259 + $0x1d0] sm:$0xff]
        %v7250 = vld [vmem:[%s259 + $0x1d8] sm:$0xff]
        %v7251 = vld [vmem:[%s259 + $0x1e0] sm:$0xff]
        %v7252 = vld [vmem:[%s259 + $0x1e8] sm:$0xff]
        %v7253 = vld [vmem:[%s259 + $0x1f0] sm:$0xff]
        %v7254 = vld [vmem:[%s259 + $0x1f8] sm:$0xff]
        %v7255 = vld [vmem:[%s259 + $0x200] sm:$0xff]
        %v7256 = vld [vmem:[%s259 + $0x208] sm:$0xff]
        %v7257 = vld [vmem:[%s259 + $0x210] sm:$0xff]
        %v7258 = vld [vmem:[%s259 + $0x218] sm:$0xff]
        %v7259 = vld [vmem:[%s259 + $0x220] sm:$0xff]
        %v7260 = vld [vmem:[%s259 + $0x228] sm:$0xff]
        %v7261 = vld [vmem:[%s259 + $0x230] sm:$0xff]
        %v7262 = vld [vmem:[%s259 + $0x238] sm:$0xff]
        %v7263 = vld [vmem:[%s259 + $0x240] sm:$0xff]
        %v7264 = vld [vmem:[%s259 + $0x248] sm:$0xff]
        %v7265 = vld [vmem:[%s259 + $0x250] sm:$0xff]
        %v7266 = vld [vmem:[%s259 + $0x258] sm:$0xff]
        %v7267 = vld [vmem:[%s259 + $0x260] sm:$0xff]
        %v7268 = vld [vmem:[%s259 + $0x268] sm:$0xff]
        %v7269 = vld [vmem:[%s259 + $0x270] sm:$0xff]
        %v7270 = vld [vmem:[%s259 + $0x278] sm:$0xff]
        %v7271 = vld [vmem:[%s259 + $0x280] sm:$0xff]
        %v7272 = vld [vmem:[%s259 + $0x288] sm:$0xff]
        %v7273 = vld [vmem:[%s259 + $0x290] sm:$0xff]
        %v7274 = vld [vmem:[%s259 + $0x298] sm:$0xff]
        %v7275 = vld [vmem:[%s259 + $0x2a0] sm:$0xff]
        %v7276 = vld [vmem:[%s259 + $0x2a8] sm:$0xff]
        %v7277 = vld [vmem:[%s259 + $0x2b0] sm:$0xff]
        %v7278 = vld [vmem:[%s259 + $0x2b8] sm:$0xff]
        %v7279 = vld [vmem:[%s259 + $0x2c0] sm:$0xff]
        %v7280 = vld [vmem:[%s259 + $0x2c8] sm:$0xff]
        %v7281 = vld [vmem:[%s259 + $0x2d0] sm:$0xff]
        %v7282 = vld [vmem:[%s259 + $0x2d8] sm:$0xff]
        %v7283 = vld [vmem:[%s259 + $0x2e0] sm:$0xff]
        %v7284 = vld [vmem:[%s259 + $0x2e8] sm:$0xff]
        %v7285 = vld [vmem:[%s259 + $0x2f0] sm:$0xff]
        %v7286 = vld [vmem:[%s259 + $0x2f8] sm:$0xff]
        %v7287 = vld [vmem:[%s259 + $0x300] sm:$0xff]
        %v7288 = vld [vmem:[%s259 + $0x308] sm:$0xff]
        %v7289 = vld [vmem:[%s259 + $0x310] sm:$0xff]
        %v7290 = vld [vmem:[%s259 + $0x318] sm:$0xff]
        %v7291 = vld [vmem:[%s259 + $0x320] sm:$0xff]
        %v7292 = vld [vmem:[%s259 + $0x328] sm:$0xff]
        %v7293 = vld [vmem:[%s259 + $0x330] sm:$0xff]
        %v7294 = vld [vmem:[%s259 + $0x338] sm:$0xff]
        %v7295 = vld [vmem:[%s259 + $0x340] sm:$0xff]
        %v7296 = vld [vmem:[%s259 + $0x348] sm:$0xff]
        %v7297 = vld [vmem:[%s259 + $0x350] sm:$0xff]
        %v7298 = vld [vmem:[%s259 + $0x358] sm:$0xff]
        %v7299 = vld [vmem:[%s259 + $0x360] sm:$0xff]
        %v7300 = vld [vmem:[%s259 + $0x368] sm:$0xff]
        %v7301 = vld [vmem:[%s259 + $0x370] sm:$0xff]
        %v7302 = vld [vmem:[%s259 + $0x378] sm:$0xff]
        %v7303 = vld [vmem:[%s259 + $0x380] sm:$0xff]
        %v7304 = vld [vmem:[%s259 + $0x388] sm:$0xff]
        %v7305 = vld [vmem:[%s259 + $0x390] sm:$0xff]
        %v7306 = vld [vmem:[%s259 + $0x398] sm:$0xff]
        %v7307 = vld [vmem:[%s259 + $0x3a0] sm:$0xff]
        %v7308 = vld [vmem:[%s259 + $0x3a8] sm:$0xff]
        %v7309 = vld [vmem:[%s259 + $0x3b0] sm:$0xff]
        %v7310 = vld [vmem:[%s259 + $0x3b8] sm:$0xff]
        %v7311 = vld [vmem:[%s259 + $0x3c0] sm:$0xff]
        %v7312 = vld [vmem:[%s259 + $0x3c8] sm:$0xff]
        %v7313 = vld [vmem:[%s259 + $0x3d0] sm:$0xff]
        %v7314 = vld [vmem:[%s259 + $0x3d8] sm:$0xff]
        %v7315 = vld [vmem:[%s259 + $0x3e0] sm:$0xff]
        %v7316 = vld [vmem:[%s259 + $0x3e8] sm:$0xff]
        %v7317 = vld [vmem:[%s259 + $0x3f0] sm:$0xff]
        %v7318 = vld [vmem:[%s259 + $0x3f8] sm:$0xff]
        %v7319 = vld [vmem:[%s259 + $0x400] sm:$0xff]
        %v7320 = vld [vmem:[%s259 + $0x408] sm:$0xff]
        %v7321 = vld [vmem:[%s259 + $0x410] sm:$0xff]
        %v7322 = vld [vmem:[%s259 + $0x418] sm:$0xff]
        %v7323 = vld [vmem:[%s259 + $0x420] sm:$0xff]
        %v7324 = vld [vmem:[%s259 + $0x428] sm:$0xff]
        %v7325 = vld [vmem:[%s259 + $0x430] sm:$0xff]
        %v7326 = vld [vmem:[%s259 + $0x438] sm:$0xff]
        %v7327 = vld [vmem:[%s259 + $0x440] sm:$0xff]
        %v7328 = vld [vmem:[%s259 + $0x448] sm:$0xff]
        %v7329 = vld [vmem:[%s259 + $0x450] sm:$0xff]
        %v7330 = vld [vmem:[%s259 + $0x458] sm:$0xff]
        %v7331 = vld [vmem:[%s259 + $0x460] sm:$0xff]
        %v7332 = vld [vmem:[%s259 + $0x468] sm:$0xff]
        %v7333 = vld [vmem:[%s259 + $0x470] sm:$0xff]
        %v7334 = vld [vmem:[%s259 + $0x478] sm:$0xff]
        %v7335 = vld [vmem:[%s259 + $0x480] sm:$0xff]
        %v7336 = vld [vmem:[%s259 + $0x488] sm:$0xff]
        %v7337 = vld [vmem:[%s259 + $0x490] sm:$0xff]
        %v7338 = vld [vmem:[%s259 + $0x498] sm:$0xff]
        %v7339 = vld [vmem:[%s259 + $0x4a0] sm:$0xff]
        %v7340 = vld [vmem:[%s259 + $0x4a8] sm:$0xff]
        %v7341 = vld [vmem:[%s259 + $0x4b0] sm:$0xff]
        %v7342 = vld [vmem:[%s259 + $0x4b8] sm:$0xff]
        %v7343 = vld [vmem:[%s259 + $0x4c0] sm:$0xff]
        %v7344 = vld [vmem:[%s259 + $0x4c8] sm:$0xff]
        %v7345 = vld [vmem:[%s259 + $0x4d0] sm:$0xff]
        %v7346 = vld [vmem:[%s259 + $0x4d8] sm:$0xff]
        %v7347 = vld [vmem:[%s259 + $0x4e0] sm:$0xff]
        %v7348 = vld [vmem:[%s259 + $0x4e8] sm:$0xff]
        %v7349 = vld [vmem:[%s259 + $0x4f0] sm:$0xff]
        %v7350 = vld [vmem:[%s259 + $0x4f8] sm:$0xff]
        %v7351 = vld [vmem:[%s259 + $0x500] sm:$0xff]
        %v7352 = vld [vmem:[%s259 + $0x508] sm:$0xff]
        %v7353 = vld [vmem:[%s259 + $0x510] sm:$0xff]
        %v7354 = vld [vmem:[%s259 + $0x518] sm:$0xff]
        %v7355 = vld [vmem:[%s259 + $0x520] sm:$0xff]
        %v7356 = vld [vmem:[%s259 + $0x528] sm:$0xff]
        %v7357 = vld [vmem:[%s259 + $0x530] sm:$0xff]
        %v7358 = vld [vmem:[%s259 + $0x538] sm:$0xff]
        %v7359 = vld [vmem:[%s259 + $0x540] sm:$0xff]
        %v7360 = vld [vmem:[%s259 + $0x548] sm:$0xff]
        %v7361 = vld [vmem:[%s259 + $0x550] sm:$0xff]
        %v7362 = vld [vmem:[%s259 + $0x558] sm:$0xff]
        %v7363 = vld [vmem:[%s259 + $0x560] sm:$0xff]
        %v7364 = vld [vmem:[%s259 + $0x568] sm:$0xff]
        %v7365 = vld [vmem:[%s259 + $0x570] sm:$0xff]
        %v7366 = vld [vmem:[%s259 + $0x578] sm:$0xff]
        %v7367 = vld [vmem:[%s259 + $0x580] sm:$0xff]
        %v7368 = vld [vmem:[%s259 + $0x588] sm:$0xff]
        %v7369 = vld [vmem:[%s259 + $0x590] sm:$0xff]
        %v7370 = vld [vmem:[%s259 + $0x598] sm:$0xff]
        %v7371 = vld [vmem:[%s259 + $0x5a0] sm:$0xff]
        %v7372 = vld [vmem:[%s259 + $0x5a8] sm:$0xff]
        %v7373 = vld [vmem:[%s259 + $0x5b0] sm:$0xff]
        %v7374 = vld [vmem:[%s259 + $0x5b8] sm:$0xff]
        %v7375 = vld [vmem:[%s259 + $0x5c0] sm:$0xff]
        %v7376 = vld [vmem:[%s259 + $0x5c8] sm:$0xff]
        %v7377 = vld [vmem:[%s259 + $0x5d0] sm:$0xff]
        %v7378 = vld [vmem:[%s259 + $0x5d8] sm:$0xff]
        %v7379 = vld [vmem:[%s259 + $0x5e0] sm:$0xff]
        %v7380 = vld [vmem:[%s259 + $0x5e8] sm:$0xff]
        %v7381 = vld [vmem:[%s259 + $0x5f0] sm:$0xff]
        %v7382 = vld [vmem:[%s259 + $0x5f8] sm:$0xff]
        %v7383 = vld [vmem:[%s259 + $0x600] sm:$0xff]
        %v7384 = vld [vmem:[%s259 + $0x608] sm:$0xff]
        %v7385 = vld [vmem:[%s259 + $0x610] sm:$0xff]
        %v7386 = vld [vmem:[%s259 + $0x618] sm:$0xff]
        %v7387 = vld [vmem:[%s259 + $0x620] sm:$0xff]
        %v7388 = vld [vmem:[%s259 + $0x628] sm:$0xff]
        %v7389 = vld [vmem:[%s259 + $0x630] sm:$0xff]
        %v7390 = vld [vmem:[%s259 + $0x638] sm:$0xff]
        %v7391 = vld [vmem:[%s259 + $0x640] sm:$0xff]
        %v7392 = vld [vmem:[%s259 + $0x648] sm:$0xff]
        %v7393 = vld [vmem:[%s259 + $0x650] sm:$0xff]
        %v7394 = vld [vmem:[%s259 + $0x658] sm:$0xff]
        %v7395 = vld [vmem:[%s259 + $0x660] sm:$0xff]
        %v7396 = vld [vmem:[%s259 + $0x668] sm:$0xff]
        %v7397 = vld [vmem:[%s259 + $0x670] sm:$0xff]
        %v7398 = vld [vmem:[%s259 + $0x678] sm:$0xff]
        %v7399 = vld [vmem:[%s259 + $0x680] sm:$0xff]
        %v7400 = vld [vmem:[%s259 + $0x688] sm:$0xff]
        %v7401 = vld [vmem:[%s259 + $0x690] sm:$0xff]
        %v7402 = vld [vmem:[%s259 + $0x698] sm:$0xff]
        %v7403 = vld [vmem:[%s259 + $0x6a0] sm:$0xff]
        %v7404 = vld [vmem:[%s259 + $0x6a8] sm:$0xff]
        %v7405 = vld [vmem:[%s259 + $0x6b0] sm:$0xff]
        %v7406 = vld [vmem:[%s259 + $0x6b8] sm:$0xff]
        %v7407 = vld [vmem:[%s259 + $0x6c0] sm:$0xff]
        %v7408 = vld [vmem:[%s259 + $0x6c8] sm:$0xff]
        %v7409 = vld [vmem:[%s259 + $0x6d0] sm:$0xff]
        %v7410 = vld [vmem:[%s259 + $0x6d8] sm:$0xff]
        %v7411 = vld [vmem:[%s259 + $0x6e0] sm:$0xff]
        %v7412 = vld [vmem:[%s259 + $0x6e8] sm:$0xff]
        %v7413 = vld [vmem:[%s259 + $0x6f0] sm:$0xff]
        %v7414 = vld [vmem:[%s259 + $0x6f8] sm:$0xff]
        %v7415 = vld [vmem:[%s259 + $0x700] sm:$0xff]
        %v7416 = vld [vmem:[%s259 + $0x708] sm:$0xff]
        %v7417 = vld [vmem:[%s259 + $0x710] sm:$0xff]
        %v7418 = vld [vmem:[%s259 + $0x718] sm:$0xff]
        %v7419 = vld [vmem:[%s259 + $0x720] sm:$0xff]
        %v7420 = vld [vmem:[%s259 + $0x728] sm:$0xff]
        %v7421 = vld [vmem:[%s259 + $0x730] sm:$0xff]
        %v7422 = vld [vmem:[%s259 + $0x738] sm:$0xff]
        %v7423 = vld [vmem:[%s259 + $0x740] sm:$0xff]
        %v7424 = vld [vmem:[%s259 + $0x748] sm:$0xff]
        %v7425 = vld [vmem:[%s259 + $0x750] sm:$0xff]
        %v7426 = vld [vmem:[%s259 + $0x758] sm:$0xff]
        %v7427 = vld [vmem:[%s259 + $0x760] sm:$0xff]
        %v7428 = vld [vmem:[%s259 + $0x768] sm:$0xff]
        %v7429 = vld [vmem:[%s259 + $0x770] sm:$0xff]
        %v7430 = vld [vmem:[%s259 + $0x778] sm:$0xff]
        %v7431 = vld [vmem:[%s259 + $0x780] sm:$0xff]
        %v7432 = vld [vmem:[%s259 + $0x788] sm:$0xff]
        %v7433 = vld [vmem:[%s259 + $0x790] sm:$0xff]
        %v7434 = vld [vmem:[%s259 + $0x798] sm:$0xff]
        %v7435 = vld [vmem:[%s259 + $0x7a0] sm:$0xff]
        %v7436 = vld [vmem:[%s259 + $0x7a8] sm:$0xff]
        %v7437 = vld [vmem:[%s259 + $0x7b0] sm:$0xff]
        %v7438 = vld [vmem:[%s259 + $0x7b8] sm:$0xff]
        %v7439 = vld [vmem:[%s259 + $0x7c0] sm:$0xff]
        %v7440 = vld [vmem:[%s259 + $0x7c8] sm:$0xff]
        %v7441 = vld [vmem:[%s259 + $0x7d0] sm:$0xff]
        %v7442 = vld [vmem:[%s259 + $0x7d8] sm:$0xff]
        %v7443 = vld [vmem:[%s259 + $0x7e0] sm:$0xff]
        %v7444 = vld [vmem:[%s259 + $0x7e8] sm:$0xff]
        %v7445 = vld [vmem:[%s259 + $0x7f0] sm:$0xff]
        %v7446 = vld [vmem:[%s259 + $0x7f8] sm:$0xff]
        %v7447 = vld [vmem:[%s259 + $0x800] sm:$0xff]
        %v7448 = vld [vmem:[%s259 + $0x808] sm:$0xff]
        %v7449 = vld [vmem:[%s259 + $0x810] sm:$0xff]
        %v7450 = vld [vmem:[%s259 + $0x818] sm:$0xff]
        %v7451 = vld [vmem:[%s259 + $0x820] sm:$0xff]
        %v7452 = vld [vmem:[%s259 + $0x828] sm:$0xff]
        %v7453 = vld [vmem:[%s259 + $0x830] sm:$0xff]
        %v7454 = vld [vmem:[%s259 + $0x838] sm:$0xff]
        %v7455 = vld [vmem:[%s259 + $0x840] sm:$0xff]
        %v7456 = vld [vmem:[%s259 + $0x848] sm:$0xff]
        %v7457 = vld [vmem:[%s259 + $0x850] sm:$0xff]
        %v7458 = vld [vmem:[%s259 + $0x858] sm:$0xff]
        %v7459 = vld [vmem:[%s259 + $0x860] sm:$0xff]
        %v7460 = vld [vmem:[%s259 + $0x868] sm:$0xff]
        %v7461 = vld [vmem:[%s259 + $0x870] sm:$0xff]
        %v7462 = vld [vmem:[%s259 + $0x878] sm:$0xff]
        %v7463 = vld [vmem:[%s259 + $0x880] sm:$0xff]
        %v7464 = vld [vmem:[%s259 + $0x888] sm:$0xff]
        %v7465 = vld [vmem:[%s259 + $0x890] sm:$0xff]
        %v7466 = vld [vmem:[%s259 + $0x898] sm:$0xff]
        %v7467 = vld [vmem:[%s259 + $0x8a0] sm:$0xff]
        %v7468 = vld [vmem:[%s259 + $0x8a8] sm:$0xff]
        %v7469 = vld [vmem:[%s259 + $0x8b0] sm:$0xff]
        %v7470 = vld [vmem:[%s259 + $0x8b8] sm:$0xff]
        %v7471 = vld [vmem:[%s259 + $0x8c0] sm:$0xff]
        %v7472 = vld [vmem:[%s259 + $0x8c8] sm:$0xff]
        %v7473 = vld [vmem:[%s259 + $0x8d0] sm:$0xff]
        %v7474 = vld [vmem:[%s259 + $0x8d8] sm:$0xff]
        %v7475 = vld [vmem:[%s259 + $0x8e0] sm:$0xff]
        %v7476 = vld [vmem:[%s259 + $0x8e8] sm:$0xff]
        %v7477 = vld [vmem:[%s259 + $0x8f0] sm:$0xff]
        %v7478 = vld [vmem:[%s259 + $0x8f8] sm:$0xff]
        %v7479 = vld [vmem:[%s259 + $0x900] sm:$0xff]
        %v7480 = vld [vmem:[%s259 + $0x908] sm:$0xff]
        %v7481 = vld [vmem:[%s259 + $0x910] sm:$0xff]
        %v7482 = vld [vmem:[%s259 + $0x918] sm:$0xff]
        %v7483 = vld [vmem:[%s259 + $0x920] sm:$0xff]
        %v7484 = vld [vmem:[%s259 + $0x928] sm:$0xff]
        %v7485 = vld [vmem:[%s259 + $0x930] sm:$0xff]
        %v7486 = vld [vmem:[%s259 + $0x938] sm:$0xff]
        %v7487 = vld [vmem:[%s259 + $0x940] sm:$0xff]
        %v7488 = vld [vmem:[%s259 + $0x948] sm:$0xff]
        %v7489 = vld [vmem:[%s259 + $0x950] sm:$0xff]
        %v7490 = vld [vmem:[%s259 + $0x958] sm:$0xff]
        %v7491 = vld [vmem:[%s259 + $0x960] sm:$0xff]
        %v7492 = vld [vmem:[%s259 + $0x968] sm:$0xff]
        %v7493 = vld [vmem:[%s259 + $0x970] sm:$0xff]
        %v7494 = vld [vmem:[%s259 + $0x978] sm:$0xff]
        %v7495 = vld [vmem:[%s259 + $0x980] sm:$0xff]
        %v7496 = vld [vmem:[%s259 + $0x988] sm:$0xff]
        %v7497 = vld [vmem:[%s259 + $0x990] sm:$0xff]
        %v7498 = vld [vmem:[%s259 + $0x998] sm:$0xff]
        %v7499 = vld [vmem:[%s259 + $0x9a0] sm:$0xff]
        %v7500 = vld [vmem:[%s259 + $0x9a8] sm:$0xff]
        %v7501 = vld [vmem:[%s259 + $0x9b0] sm:$0xff]
        %v7502 = vld [vmem:[%s259 + $0x9b8] sm:$0xff]
        %v7503 = vld [vmem:[%s259 + $0x9c0] sm:$0xff]
        %v7504 = vld [vmem:[%s259 + $0x9c8] sm:$0xff]
        %v7505 = vld [vmem:[%s259 + $0x9d0] sm:$0xff]
        %v7506 = vld [vmem:[%s259 + $0x9d8] sm:$0xff]
        %v7507 = vld [vmem:[%s259 + $0x9e0] sm:$0xff]
        %v7508 = vld [vmem:[%s259 + $0x9e8] sm:$0xff]
        %v7509 = vld [vmem:[%s259 + $0x9f0] sm:$0xff]
        %v7510 = vld [vmem:[%s259 + $0x9f8] sm:$0xff]
        %v7511 = vld [vmem:[%s268] sm:$0xff]
        %v7512 = vld [vmem:[%s268 + $0x8] sm:$0xff]
        %v7513 = vld [vmem:[%s268 + $0x10] sm:$0xff]
        %v7514 = vld [vmem:[%s268 + $0x18] sm:$0xff]
        %v7515 = vld [vmem:[%s268 + $0x20] sm:$0xff]
        %v7516 = vld [vmem:[%s268 + $0x28] sm:$0xff]
        %v7517 = vld [vmem:[%s268 + $0x30] sm:$0xff]
        %v7518 = vld [vmem:[%s268 + $0x38] sm:$0xff]
        %v7519 = vld [vmem:[%s268 + $0x40] sm:$0xff]
        %v7520 = vld [vmem:[%s268 + $0x48] sm:$0xff]
        %v7521 = vld [vmem:[%s268 + $0x50] sm:$0xff]
        %v7522 = vld [vmem:[%s268 + $0x58] sm:$0xff]
        %v7523 = vld [vmem:[%s268 + $0x60] sm:$0xff]
        %v7524 = vld [vmem:[%s268 + $0x68] sm:$0xff]
        %v7525 = vld [vmem:[%s268 + $0x70] sm:$0xff]
        %v7526 = vld [vmem:[%s268 + $0x78] sm:$0xff]
        %v7527 = vld [vmem:[%s268 + $0x80] sm:$0xff]
        %v7528 = vld [vmem:[%s268 + $0x88] sm:$0xff]
        %v7529 = vld [vmem:[%s268 + $0x90] sm:$0xff]
        %v7530 = vld [vmem:[%s268 + $0x98] sm:$0xff]
        %v7531 = vld [vmem:[%s268 + $0xa0] sm:$0xff]
        %v7532 = vld [vmem:[%s268 + $0xa8] sm:$0xff]
        %v7533 = vld [vmem:[%s268 + $0xb0] sm:$0xff]
        %v7534 = vld [vmem:[%s268 + $0xb8] sm:$0xff]
        %v7535 = vld [vmem:[%s268 + $0xc0] sm:$0xff]
        %v7536 = vld [vmem:[%s268 + $0xc8] sm:$0xff]
        %v7537 = vld [vmem:[%s268 + $0xd0] sm:$0xff]
        %v7538 = vld [vmem:[%s268 + $0xd8] sm:$0xff]
        %v7539 = vld [vmem:[%s268 + $0xe0] sm:$0xff]
        %v7540 = vld [vmem:[%s268 + $0xe8] sm:$0xff]
        %v7541 = vld [vmem:[%s268 + $0xf0] sm:$0xff]
        %v7542 = vld [vmem:[%s268 + $0xf8] sm:$0xff]
        %v7543 = vld [vmem:[%s268 + $0x100] sm:$0xff]
        %v7544 = vld [vmem:[%s268 + $0x108] sm:$0xff]
        %v7545 = vld [vmem:[%s268 + $0x110] sm:$0xff]
        %v7546 = vld [vmem:[%s268 + $0x118] sm:$0xff]
        %v7547 = vld [vmem:[%s268 + $0x120] sm:$0xff]
        %v7548 = vld [vmem:[%s268 + $0x128] sm:$0xff]
        %v7549 = vld [vmem:[%s268 + $0x130] sm:$0xff]
        %v7550 = vld [vmem:[%s268 + $0x138] sm:$0xff]
        %v7871 = vunpack.c.l.b16 %v7191
        %v7872 = vunpack.c.h.b16 %v7191
        %v7873 = vunpack.c.l.b16 %v7192
        %v7874 = vunpack.c.h.b16 %v7192
        %v7875 = vunpack.c.l.b16 %v7193
        %v7876 = vunpack.c.h.b16 %v7193
        %v7877 = vunpack.c.l.b16 %v7194
        %v7878 = vunpack.c.h.b16 %v7194
        %v7879 = vunpack.c.l.b16 %v7195
        %v7880 = vunpack.c.h.b16 %v7195
        %v7881 = vunpack.c.l.b16 %v7196
        %v7882 = vunpack.c.h.b16 %v7196
        %v7883 = vunpack.c.l.b16 %v7197
        %v7884 = vunpack.c.h.b16 %v7197
        %v7885 = vunpack.c.l.b16 %v7198
        %v7886 = vunpack.c.h.b16 %v7198
        %v7887 = vunpack.c.l.b16 %v7199
        %v7888 = vunpack.c.h.b16 %v7199
        %v7889 = vunpack.c.l.b16 %v7200
        %v7890 = vunpack.c.h.b16 %v7200
        %v7891 = vunpack.c.l.b16 %v7201
        %v7892 = vunpack.c.h.b16 %v7201
        %v7893 = vunpack.c.l.b16 %v7202
        %v7894 = vunpack.c.h.b16 %v7202
        %v7895 = vunpack.c.l.b16 %v7203
        %v7896 = vunpack.c.h.b16 %v7203
        %v7897 = vunpack.c.l.b16 %v7204
        %v7898 = vunpack.c.h.b16 %v7204
        %v7899 = vunpack.c.l.b16 %v7205
        %v7900 = vunpack.c.h.b16 %v7205
        %v7901 = vunpack.c.l.b16 %v7206
        %v7902 = vunpack.c.h.b16 %v7206
        %v7903 = vunpack.c.l.b16 %v7207
        %v7904 = vunpack.c.h.b16 %v7207
        %v7905 = vunpack.c.l.b16 %v7208
        %v7906 = vunpack.c.h.b16 %v7208
        %v7907 = vunpack.c.l.b16 %v7209
        %v7908 = vunpack.c.h.b16 %v7209
        %v7909 = vunpack.c.l.b16 %v7210
        %v7910 = vunpack.c.h.b16 %v7210
        %v7911 = vunpack.c.l.b16 %v7211
        %v7912 = vunpack.c.h.b16 %v7211
        %v7913 = vunpack.c.l.b16 %v7212
        %v7914 = vunpack.c.h.b16 %v7212
        %v7915 = vunpack.c.l.b16 %v7213
        %v7916 = vunpack.c.h.b16 %v7213
        %v7917 = vunpack.c.l.b16 %v7214
        %v7918 = vunpack.c.h.b16 %v7214
        %v7919 = vunpack.c.l.b16 %v7215
        %v7920 = vunpack.c.h.b16 %v7215
        %v7921 = vunpack.c.l.b16 %v7216
        %v7922 = vunpack.c.h.b16 %v7216
        %v7923 = vunpack.c.l.b16 %v7217
        %v7924 = vunpack.c.h.b16 %v7217
        %v7925 = vunpack.c.l.b16 %v7218
        %v7926 = vunpack.c.h.b16 %v7218
        %v7927 = vunpack.c.l.b16 %v7219
        %v7928 = vunpack.c.h.b16 %v7219
        %v7929 = vunpack.c.l.b16 %v7220
        %v7930 = vunpack.c.h.b16 %v7220
        %v7931 = vunpack.c.l.b16 %v7221
        %v7932 = vunpack.c.h.b16 %v7221
        %v7933 = vunpack.c.l.b16 %v7222
        %v7934 = vunpack.c.h.b16 %v7222
        %v7935 = vunpack.c.l.b16 %v7223
        %v7936 = vunpack.c.h.b16 %v7223
        %v7937 = vunpack.c.l.b16 %v7224
        %v7938 = vunpack.c.h.b16 %v7224
        %v7939 = vunpack.c.l.b16 %v7225
        %v7940 = vunpack.c.h.b16 %v7225
        %v7941 = vunpack.c.l.b16 %v7226
        %v7942 = vunpack.c.h.b16 %v7226
        %v7943 = vunpack.c.l.b16 %v7227
        %v7944 = vunpack.c.h.b16 %v7227
        %v7945 = vunpack.c.l.b16 %v7228
        %v7946 = vunpack.c.h.b16 %v7228
        %v7947 = vunpack.c.l.b16 %v7229
        %v7948 = vunpack.c.h.b16 %v7229
        %v7949 = vunpack.c.l.b16 %v7230
        %v7950 = vunpack.c.h.b16 %v7230
        %v7951 = vunpack.c.l.b16 %v7231
        %v7952 = vunpack.c.h.b16 %v7231
        %v7953 = vunpack.c.l.b16 %v7232
        %v7954 = vunpack.c.h.b16 %v7232
        %v7955 = vunpack.c.l.b16 %v7233
        %v7956 = vunpack.c.h.b16 %v7233
        %v7957 = vunpack.c.l.b16 %v7234
        %v7958 = vunpack.c.h.b16 %v7234
        %v7959 = vunpack.c.l.b16 %v7235
        %v7960 = vunpack.c.h.b16 %v7235
        %v7961 = vunpack.c.l.b16 %v7236
        %v7962 = vunpack.c.h.b16 %v7236
        %v7963 = vunpack.c.l.b16 %v7237
        %v7964 = vunpack.c.h.b16 %v7237
        %v7965 = vunpack.c.l.b16 %v7238
        %v7966 = vunpack.c.h.b16 %v7238
        %v7967 = vunpack.c.l.b16 %v7239
        %v7968 = vunpack.c.h.b16 %v7239
        %v7969 = vunpack.c.l.b16 %v7240
        %v7970 = vunpack.c.h.b16 %v7240
        %v7971 = vunpack.c.l.b16 %v7241
        %v7972 = vunpack.c.h.b16 %v7241
        %v7973 = vunpack.c.l.b16 %v7242
        %v7974 = vunpack.c.h.b16 %v7242
        %v7975 = vunpack.c.l.b16 %v7243
        %v7976 = vunpack.c.h.b16 %v7243
        %v7977 = vunpack.c.l.b16 %v7244
        %v7978 = vunpack.c.h.b16 %v7244
        %v7979 = vunpack.c.l.b16 %v7245
        %v7980 = vunpack.c.h.b16 %v7245
        %v7981 = vunpack.c.l.b16 %v7246
        %v7982 = vunpack.c.h.b16 %v7246
        %v7983 = vunpack.c.l.b16 %v7247
        %v7984 = vunpack.c.h.b16 %v7247
        %v7985 = vunpack.c.l.b16 %v7248
        %v7986 = vunpack.c.h.b16 %v7248
        %v7987 = vunpack.c.l.b16 %v7249
        %v7988 = vunpack.c.h.b16 %v7249
        %v7989 = vunpack.c.l.b16 %v7250
        %v7990 = vunpack.c.h.b16 %v7250
        %v7991 = vunpack.c.l.b16 %v7251
        %v7992 = vunpack.c.h.b16 %v7251
        %v7993 = vunpack.c.l.b16 %v7252
        %v7994 = vunpack.c.h.b16 %v7252
        %v7995 = vunpack.c.l.b16 %v7253
        %v7996 = vunpack.c.h.b16 %v7253
        %v7997 = vunpack.c.l.b16 %v7254
        %v7998 = vunpack.c.h.b16 %v7254
        %v7999 = vunpack.c.l.b16 %v7255
        %v8000 = vunpack.c.h.b16 %v7255
        %v8001 = vunpack.c.l.b16 %v7256
        %v8002 = vunpack.c.h.b16 %v7256
        %v8003 = vunpack.c.l.b16 %v7257
        %v8004 = vunpack.c.h.b16 %v7257
        %v8005 = vunpack.c.l.b16 %v7258
        %v8006 = vunpack.c.h.b16 %v7258
        %v8007 = vunpack.c.l.b16 %v7259
        %v8008 = vunpack.c.h.b16 %v7259
        %v8009 = vunpack.c.l.b16 %v7260
        %v8010 = vunpack.c.h.b16 %v7260
        %v8011 = vunpack.c.l.b16 %v7261
        %v8012 = vunpack.c.h.b16 %v7261
        %v8013 = vunpack.c.l.b16 %v7262
        %v8014 = vunpack.c.h.b16 %v7262
        %v8015 = vunpack.c.l.b16 %v7263
        %v8016 = vunpack.c.h.b16 %v7263
        %v8017 = vunpack.c.l.b16 %v7264
        %v8018 = vunpack.c.h.b16 %v7264
        %v8019 = vunpack.c.l.b16 %v7265
        %v8020 = vunpack.c.h.b16 %v7265
        %v8021 = vunpack.c.l.b16 %v7266
        %v8022 = vunpack.c.h.b16 %v7266
        %v8023 = vunpack.c.l.b16 %v7267
        %v8024 = vunpack.c.h.b16 %v7267
        %v8025 = vunpack.c.l.b16 %v7268
        %v8026 = vunpack.c.h.b16 %v7268
        %v8027 = vunpack.c.l.b16 %v7269
        %v8028 = vunpack.c.h.b16 %v7269
        %v8029 = vunpack.c.l.b16 %v7270
        %v8030 = vunpack.c.h.b16 %v7270
        %v8031 = vunpack.c.l.b16 %v7271
        %v8032 = vunpack.c.h.b16 %v7271
        %v8033 = vunpack.c.l.b16 %v7272
        %v8034 = vunpack.c.h.b16 %v7272
        %v8035 = vunpack.c.l.b16 %v7273
        %v8036 = vunpack.c.h.b16 %v7273
        %v8037 = vunpack.c.l.b16 %v7274
        %v8038 = vunpack.c.h.b16 %v7274
        %v8039 = vunpack.c.l.b16 %v7275
        %v8040 = vunpack.c.h.b16 %v7275
        %v8041 = vunpack.c.l.b16 %v7276
        %v8042 = vunpack.c.h.b16 %v7276
        %v8043 = vunpack.c.l.b16 %v7277
        %v8044 = vunpack.c.h.b16 %v7277
        %v8045 = vunpack.c.l.b16 %v7278
        %v8046 = vunpack.c.h.b16 %v7278
        %v8047 = vunpack.c.l.b16 %v7279
        %v8048 = vunpack.c.h.b16 %v7279
        %v8049 = vunpack.c.l.b16 %v7280
        %v8050 = vunpack.c.h.b16 %v7280
        %v8051 = vunpack.c.l.b16 %v7281
        %v8052 = vunpack.c.h.b16 %v7281
        %v8053 = vunpack.c.l.b16 %v7282
        %v8054 = vunpack.c.h.b16 %v7282
        %v8055 = vunpack.c.l.b16 %v7283
        %v8056 = vunpack.c.h.b16 %v7283
        %v8057 = vunpack.c.l.b16 %v7284
        %v8058 = vunpack.c.h.b16 %v7284
        %v8059 = vunpack.c.l.b16 %v7285
        %v8060 = vunpack.c.h.b16 %v7285
        %v8061 = vunpack.c.l.b16 %v7286
        %v8062 = vunpack.c.h.b16 %v7286
        %v8063 = vunpack.c.l.b16 %v7287
        %v8064 = vunpack.c.h.b16 %v7287
        %v8065 = vunpack.c.l.b16 %v7288
        %v8066 = vunpack.c.h.b16 %v7288
        %v8067 = vunpack.c.l.b16 %v7289
        %v8068 = vunpack.c.h.b16 %v7289
        %v8069 = vunpack.c.l.b16 %v7290
        %v8070 = vunpack.c.h.b16 %v7290
        %v8071 = vunpack.c.l.b16 %v7291
        %v8072 = vunpack.c.h.b16 %v7291
        %v8073 = vunpack.c.l.b16 %v7292
        %v8074 = vunpack.c.h.b16 %v7292
        %v8075 = vunpack.c.l.b16 %v7293
        %v8076 = vunpack.c.h.b16 %v7293
        %v8077 = vunpack.c.l.b16 %v7294
        %v8078 = vunpack.c.h.b16 %v7294
        %v8079 = vunpack.c.l.b16 %v7295
        %v8080 = vunpack.c.h.b16 %v7295
        %v8081 = vunpack.c.l.b16 %v7296
        %v8082 = vunpack.c.h.b16 %v7296
        %v8083 = vunpack.c.l.b16 %v7297
        %v8084 = vunpack.c.h.b16 %v7297
        %v8085 = vunpack.c.l.b16 %v7298
        %v8086 = vunpack.c.h.b16 %v7298
        %v8087 = vunpack.c.l.b16 %v7299
        %v8088 = vunpack.c.h.b16 %v7299
        %v8089 = vunpack.c.l.b16 %v7300
        %v8090 = vunpack.c.h.b16 %v7300
        %v8091 = vunpack.c.l.b16 %v7301
        %v8092 = vunpack.c.h.b16 %v7301
        %v8093 = vunpack.c.l.b16 %v7302
        %v8094 = vunpack.c.h.b16 %v7302
        %v8095 = vunpack.c.l.b16 %v7303
        %v8096 = vunpack.c.h.b16 %v7303
        %v8097 = vunpack.c.l.b16 %v7304
        %v8098 = vunpack.c.h.b16 %v7304
        %v8099 = vunpack.c.l.b16 %v7305
        %v8100 = vunpack.c.h.b16 %v7305
        %v8101 = vunpack.c.l.b16 %v7306
        %v8102 = vunpack.c.h.b16 %v7306
        %v8103 = vunpack.c.l.b16 %v7307
        %v8104 = vunpack.c.h.b16 %v7307
        %v8105 = vunpack.c.l.b16 %v7308
        %v8106 = vunpack.c.h.b16 %v7308
        %v8107 = vunpack.c.l.b16 %v7309
        %v8108 = vunpack.c.h.b16 %v7309
        %v8109 = vunpack.c.l.b16 %v7310
        %v8110 = vunpack.c.h.b16 %v7310
        %v8111 = vunpack.c.l.b16 %v7311
        %v8112 = vunpack.c.h.b16 %v7311
        %v8113 = vunpack.c.l.b16 %v7312
        %v8114 = vunpack.c.h.b16 %v7312
        %v8115 = vunpack.c.l.b16 %v7313
        %v8116 = vunpack.c.h.b16 %v7313
        %v8117 = vunpack.c.l.b16 %v7314
        %v8118 = vunpack.c.h.b16 %v7314
        %v8119 = vunpack.c.l.b16 %v7315
        %v8120 = vunpack.c.h.b16 %v7315
        %v8121 = vunpack.c.l.b16 %v7316
        %v8122 = vunpack.c.h.b16 %v7316
        %v8123 = vunpack.c.l.b16 %v7317
        %v8124 = vunpack.c.h.b16 %v7317
        %v8125 = vunpack.c.l.b16 %v7318
        %v8126 = vunpack.c.h.b16 %v7318
        %v8127 = vunpack.c.l.b16 %v7319
        %v8128 = vunpack.c.h.b16 %v7319
        %v8129 = vunpack.c.l.b16 %v7320
        %v8130 = vunpack.c.h.b16 %v7320
        %v8131 = vunpack.c.l.b16 %v7321
        %v8132 = vunpack.c.h.b16 %v7321
        %v8133 = vunpack.c.l.b16 %v7322
        %v8134 = vunpack.c.h.b16 %v7322
        %v8135 = vunpack.c.l.b16 %v7323
        %v8136 = vunpack.c.h.b16 %v7323
        %v8137 = vunpack.c.l.b16 %v7324
        %v8138 = vunpack.c.h.b16 %v7324
        %v8139 = vunpack.c.l.b16 %v7325
        %v8140 = vunpack.c.h.b16 %v7325
        %v8141 = vunpack.c.l.b16 %v7326
        %v8142 = vunpack.c.h.b16 %v7326
        %v8143 = vunpack.c.l.b16 %v7327
        %v8144 = vunpack.c.h.b16 %v7327
        %v8145 = vunpack.c.l.b16 %v7328
        %v8146 = vunpack.c.h.b16 %v7328
        %v8147 = vunpack.c.l.b16 %v7329
        %v8148 = vunpack.c.h.b16 %v7329
        %v8149 = vunpack.c.l.b16 %v7330
        %v8150 = vunpack.c.h.b16 %v7330
        %v8151 = vunpack.c.l.b16 %v7331
        %v8152 = vunpack.c.h.b16 %v7331
        %v8153 = vunpack.c.l.b16 %v7332
        %v8154 = vunpack.c.h.b16 %v7332
        %v8155 = vunpack.c.l.b16 %v7333
        %v8156 = vunpack.c.h.b16 %v7333
        %v8157 = vunpack.c.l.b16 %v7334
        %v8158 = vunpack.c.h.b16 %v7334
        %v8159 = vunpack.c.l.b16 %v7335
        %v8160 = vunpack.c.h.b16 %v7335
        %v8161 = vunpack.c.l.b16 %v7336
        %v8162 = vunpack.c.h.b16 %v7336
        %v8163 = vunpack.c.l.b16 %v7337
        %v8164 = vunpack.c.h.b16 %v7337
        %v8165 = vunpack.c.l.b16 %v7338
        %v8166 = vunpack.c.h.b16 %v7338
        %v8167 = vunpack.c.l.b16 %v7339
        %v8168 = vunpack.c.h.b16 %v7339
        %v8169 = vunpack.c.l.b16 %v7340
        %v8170 = vunpack.c.h.b16 %v7340
        %v8171 = vunpack.c.l.b16 %v7341
        %v8172 = vunpack.c.h.b16 %v7341
        %v8173 = vunpack.c.l.b16 %v7342
        %v8174 = vunpack.c.h.b16 %v7342
        %v8175 = vunpack.c.l.b16 %v7343
        %v8176 = vunpack.c.h.b16 %v7343
        %v8177 = vunpack.c.l.b16 %v7344
        %v8178 = vunpack.c.h.b16 %v7344
        %v8179 = vunpack.c.l.b16 %v7345
        %v8180 = vunpack.c.h.b16 %v7345
        %v8181 = vunpack.c.l.b16 %v7346
        %v8182 = vunpack.c.h.b16 %v7346
        %v8183 = vunpack.c.l.b16 %v7347
        %v8184 = vunpack.c.h.b16 %v7347
        %v8185 = vunpack.c.l.b16 %v7348
        %v8186 = vunpack.c.h.b16 %v7348
        %v8187 = vunpack.c.l.b16 %v7349
        %v8188 = vunpack.c.h.b16 %v7349
        %v8189 = vunpack.c.l.b16 %v7350
        %v8190 = vunpack.c.h.b16 %v7350
        %v8191 = vunpack.c.l.b16 %v7351
        %v8192 = vunpack.c.h.b16 %v7351
        %v8193 = vunpack.c.l.b16 %v7352
        %v8194 = vunpack.c.h.b16 %v7352
        %v8195 = vunpack.c.l.b16 %v7353
        %v8196 = vunpack.c.h.b16 %v7353
        %v8197 = vunpack.c.l.b16 %v7354
        %v8198 = vunpack.c.h.b16 %v7354
        %v8199 = vunpack.c.l.b16 %v7355
        %v8200 = vunpack.c.h.b16 %v7355
        %v8201 = vunpack.c.l.b16 %v7356
        %v8202 = vunpack.c.h.b16 %v7356
        %v8203 = vunpack.c.l.b16 %v7357
        %v8204 = vunpack.c.h.b16 %v7357
        %v8205 = vunpack.c.l.b16 %v7358
        %v8206 = vunpack.c.h.b16 %v7358
        %v8207 = vunpack.c.l.b16 %v7359
        %v8208 = vunpack.c.h.b16 %v7359
        %v8209 = vunpack.c.l.b16 %v7360
        %v8210 = vunpack.c.h.b16 %v7360
        %v8211 = vunpack.c.l.b16 %v7361
        %v8212 = vunpack.c.h.b16 %v7361
        %v8213 = vunpack.c.l.b16 %v7362
        %v8214 = vunpack.c.h.b16 %v7362
        %v8215 = vunpack.c.l.b16 %v7363
        %v8216 = vunpack.c.h.b16 %v7363
        %v8217 = vunpack.c.l.b16 %v7364
        %v8218 = vunpack.c.h.b16 %v7364
        %v8219 = vunpack.c.l.b16 %v7365
        %v8220 = vunpack.c.h.b16 %v7365
        %v8221 = vunpack.c.l.b16 %v7366
        %v8222 = vunpack.c.h.b16 %v7366
        %v8223 = vunpack.c.l.b16 %v7367
        %v8224 = vunpack.c.h.b16 %v7367
        %v8225 = vunpack.c.l.b16 %v7368
        %v8226 = vunpack.c.h.b16 %v7368
        %v8227 = vunpack.c.l.b16 %v7369
        %v8228 = vunpack.c.h.b16 %v7369
        %v8229 = vunpack.c.l.b16 %v7370
        %v8230 = vunpack.c.h.b16 %v7370
        %v8231 = vunpack.c.l.b16 %v7371
        %v8232 = vunpack.c.h.b16 %v7371
        %v8233 = vunpack.c.l.b16 %v7372
        %v8234 = vunpack.c.h.b16 %v7372
        %v8235 = vunpack.c.l.b16 %v7373
        %v8236 = vunpack.c.h.b16 %v7373
        %v8237 = vunpack.c.l.b16 %v7374
        %v8238 = vunpack.c.h.b16 %v7374
        %v8239 = vunpack.c.l.b16 %v7375
        %v8240 = vunpack.c.h.b16 %v7375
        %v8241 = vunpack.c.l.b16 %v7376
        %v8242 = vunpack.c.h.b16 %v7376
        %v8243 = vunpack.c.l.b16 %v7377
        %v8244 = vunpack.c.h.b16 %v7377
        %v8245 = vunpack.c.l.b16 %v7378
        %v8246 = vunpack.c.h.b16 %v7378
        %v8247 = vunpack.c.l.b16 %v7379
        %v8248 = vunpack.c.h.b16 %v7379
        %v8249 = vunpack.c.l.b16 %v7380
        %v8250 = vunpack.c.h.b16 %v7380
        %v8251 = vunpack.c.l.b16 %v7381
        %v8252 = vunpack.c.h.b16 %v7381
        %v8253 = vunpack.c.l.b16 %v7382
        %v8254 = vunpack.c.h.b16 %v7382
        %v8255 = vunpack.c.l.b16 %v7383
        %v8256 = vunpack.c.h.b16 %v7383
        %v8257 = vunpack.c.l.b16 %v7384
        %v8258 = vunpack.c.h.b16 %v7384
        %v8259 = vunpack.c.l.b16 %v7385
        %v8260 = vunpack.c.h.b16 %v7385
        %v8261 = vunpack.c.l.b16 %v7386
        %v8262 = vunpack.c.h.b16 %v7386
        %v8263 = vunpack.c.l.b16 %v7387
        %v8264 = vunpack.c.h.b16 %v7387
        %v8265 = vunpack.c.l.b16 %v7388
        %v8266 = vunpack.c.h.b16 %v7388
        %v8267 = vunpack.c.l.b16 %v7389
        %v8268 = vunpack.c.h.b16 %v7389
        %v8269 = vunpack.c.l.b16 %v7390
        %v8270 = vunpack.c.h.b16 %v7390
        %v8271 = vunpack.c.l.b16 %v7391
        %v8272 = vunpack.c.h.b16 %v7391
        %v8273 = vunpack.c.l.b16 %v7392
        %v8274 = vunpack.c.h.b16 %v7392
        %v8275 = vunpack.c.l.b16 %v7393
        %v8276 = vunpack.c.h.b16 %v7393
        %v8277 = vunpack.c.l.b16 %v7394
        %v8278 = vunpack.c.h.b16 %v7394
        %v8279 = vunpack.c.l.b16 %v7395
        %v8280 = vunpack.c.h.b16 %v7395
        %v8281 = vunpack.c.l.b16 %v7396
        %v8282 = vunpack.c.h.b16 %v7396
        %v8283 = vunpack.c.l.b16 %v7397
        %v8284 = vunpack.c.h.b16 %v7397
        %v8285 = vunpack.c.l.b16 %v7398
        %v8286 = vunpack.c.h.b16 %v7398
        %v8287 = vunpack.c.l.b16 %v7399
        %v8288 = vunpack.c.h.b16 %v7399
        %v8289 = vunpack.c.l.b16 %v7400
        %v8290 = vunpack.c.h.b16 %v7400
        %v8291 = vunpack.c.l.b16 %v7401
        %v8292 = vunpack.c.h.b16 %v7401
        %v8293 = vunpack.c.l.b16 %v7402
        %v8294 = vunpack.c.h.b16 %v7402
        %v8295 = vunpack.c.l.b16 %v7403
        %v8296 = vunpack.c.h.b16 %v7403
        %v8297 = vunpack.c.l.b16 %v7404
        %v8298 = vunpack.c.h.b16 %v7404
        %v8299 = vunpack.c.l.b16 %v7405
        %v8300 = vunpack.c.h.b16 %v7405
        %v8301 = vunpack.c.l.b16 %v7406
        %v8302 = vunpack.c.h.b16 %v7406
        %v8303 = vunpack.c.l.b16 %v7407
        %v8304 = vunpack.c.h.b16 %v7407
        %v8305 = vunpack.c.l.b16 %v7408
        %v8306 = vunpack.c.h.b16 %v7408
        %v8307 = vunpack.c.l.b16 %v7409
        %v8308 = vunpack.c.h.b16 %v7409
        %v8309 = vunpack.c.l.b16 %v7410
        %v8310 = vunpack.c.h.b16 %v7410
        %v8311 = vunpack.c.l.b16 %v7411
        %v8312 = vunpack.c.h.b16 %v7411
        %v8313 = vunpack.c.l.b16 %v7412
        %v8314 = vunpack.c.h.b16 %v7412
        %v8315 = vunpack.c.l.b16 %v7413
        %v8316 = vunpack.c.h.b16 %v7413
        %v8317 = vunpack.c.l.b16 %v7414
        %v8318 = vunpack.c.h.b16 %v7414
        %v8319 = vunpack.c.l.b16 %v7415
        %v8320 = vunpack.c.h.b16 %v7415
        %v8321 = vunpack.c.l.b16 %v7416
        %v8322 = vunpack.c.h.b16 %v7416
        %v8323 = vunpack.c.l.b16 %v7417
        %v8324 = vunpack.c.h.b16 %v7417
        %v8325 = vunpack.c.l.b16 %v7418
        %v8326 = vunpack.c.h.b16 %v7418
        %v8327 = vunpack.c.l.b16 %v7419
        %v8328 = vunpack.c.h.b16 %v7419
        %v8329 = vunpack.c.l.b16 %v7420
        %v8330 = vunpack.c.h.b16 %v7420
        %v8331 = vunpack.c.l.b16 %v7421
        %v8332 = vunpack.c.h.b16 %v7421
        %v8333 = vunpack.c.l.b16 %v7422
        %v8334 = vunpack.c.h.b16 %v7422
        %v8335 = vunpack.c.l.b16 %v7423
        %v8336 = vunpack.c.h.b16 %v7423
        %v8337 = vunpack.c.l.b16 %v7424
        %v8338 = vunpack.c.h.b16 %v7424
        %v8339 = vunpack.c.l.b16 %v7425
        %v8340 = vunpack.c.h.b16 %v7425
        %v8341 = vunpack.c.l.b16 %v7426
        %v8342 = vunpack.c.h.b16 %v7426
        %v8343 = vunpack.c.l.b16 %v7427
        %v8344 = vunpack.c.h.b16 %v7427
        %v8345 = vunpack.c.l.b16 %v7428
        %v8346 = vunpack.c.h.b16 %v7428
        %v8347 = vunpack.c.l.b16 %v7429
        %v8348 = vunpack.c.h.b16 %v7429
        %v8349 = vunpack.c.l.b16 %v7430
        %v8350 = vunpack.c.h.b16 %v7430
        %v8351 = vunpack.c.l.b16 %v7431
        %v8352 = vunpack.c.h.b16 %v7431
        %v8353 = vunpack.c.l.b16 %v7432
        %v8354 = vunpack.c.h.b16 %v7432
        %v8355 = vunpack.c.l.b16 %v7433
        %v8356 = vunpack.c.h.b16 %v7433
        %v8357 = vunpack.c.l.b16 %v7434
        %v8358 = vunpack.c.h.b16 %v7434
        %v8359 = vunpack.c.l.b16 %v7435
        %v8360 = vunpack.c.h.b16 %v7435
        %v8361 = vunpack.c.l.b16 %v7436
        %v8362 = vunpack.c.h.b16 %v7436
        %v8363 = vunpack.c.l.b16 %v7437
        %v8364 = vunpack.c.h.b16 %v7437
        %v8365 = vunpack.c.l.b16 %v7438
        %v8366 = vunpack.c.h.b16 %v7438
        %v8367 = vunpack.c.l.b16 %v7439
        %v8368 = vunpack.c.h.b16 %v7439
        %v8369 = vunpack.c.l.b16 %v7440
        %v8370 = vunpack.c.h.b16 %v7440
        %v8371 = vunpack.c.l.b16 %v7441
        %v8372 = vunpack.c.h.b16 %v7441
        %v8373 = vunpack.c.l.b16 %v7442
        %v8374 = vunpack.c.h.b16 %v7442
        %v8375 = vunpack.c.l.b16 %v7443
        %v8376 = vunpack.c.h.b16 %v7443
        %v8377 = vunpack.c.l.b16 %v7444
        %v8378 = vunpack.c.h.b16 %v7444
        %v8379 = vunpack.c.l.b16 %v7445
        %v8380 = vunpack.c.h.b16 %v7445
        %v8381 = vunpack.c.l.b16 %v7446
        %v8382 = vunpack.c.h.b16 %v7446
        %v8383 = vunpack.c.l.b16 %v7447
        %v8384 = vunpack.c.h.b16 %v7447
        %v8385 = vunpack.c.l.b16 %v7448
        %v8386 = vunpack.c.h.b16 %v7448
        %v8387 = vunpack.c.l.b16 %v7449
        %v8388 = vunpack.c.h.b16 %v7449
        %v8389 = vunpack.c.l.b16 %v7450
        %v8390 = vunpack.c.h.b16 %v7450
        %v8391 = vunpack.c.l.b16 %v7451
        %v8392 = vunpack.c.h.b16 %v7451
        %v8393 = vunpack.c.l.b16 %v7452
        %v8394 = vunpack.c.h.b16 %v7452
        %v8395 = vunpack.c.l.b16 %v7453
        %v8396 = vunpack.c.h.b16 %v7453
        %v8397 = vunpack.c.l.b16 %v7454
        %v8398 = vunpack.c.h.b16 %v7454
        %v8399 = vunpack.c.l.b16 %v7455
        %v8400 = vunpack.c.h.b16 %v7455
        %v8401 = vunpack.c.l.b16 %v7456
        %v8402 = vunpack.c.h.b16 %v7456
        %v8403 = vunpack.c.l.b16 %v7457
        %v8404 = vunpack.c.h.b16 %v7457
        %v8405 = vunpack.c.l.b16 %v7458
        %v8406 = vunpack.c.h.b16 %v7458
        %v8407 = vunpack.c.l.b16 %v7459
        %v8408 = vunpack.c.h.b16 %v7459
        %v8409 = vunpack.c.l.b16 %v7460
        %v8410 = vunpack.c.h.b16 %v7460
        %v8411 = vunpack.c.l.b16 %v7461
        %v8412 = vunpack.c.h.b16 %v7461
        %v8413 = vunpack.c.l.b16 %v7462
        %v8414 = vunpack.c.h.b16 %v7462
        %v8415 = vunpack.c.l.b16 %v7463
        %v8416 = vunpack.c.h.b16 %v7463
        %v8417 = vunpack.c.l.b16 %v7464
        %v8418 = vunpack.c.h.b16 %v7464
        %v8419 = vunpack.c.l.b16 %v7465
        %v8420 = vunpack.c.h.b16 %v7465
        %v8421 = vunpack.c.l.b16 %v7466
        %v8422 = vunpack.c.h.b16 %v7466
        %v8423 = vunpack.c.l.b16 %v7467
        %v8424 = vunpack.c.h.b16 %v7467
        %v8425 = vunpack.c.l.b16 %v7468
        %v8426 = vunpack.c.h.b16 %v7468
        %v8427 = vunpack.c.l.b16 %v7469
        %v8428 = vunpack.c.h.b16 %v7469
        %v8429 = vunpack.c.l.b16 %v7470
        %v8430 = vunpack.c.h.b16 %v7470
        %v8431 = vunpack.c.l.b16 %v7471
        %v8432 = vunpack.c.h.b16 %v7471
        %v8433 = vunpack.c.l.b16 %v7472
        %v8434 = vunpack.c.h.b16 %v7472
        %v8435 = vunpack.c.l.b16 %v7473
        %v8436 = vunpack.c.h.b16 %v7473
        %v8437 = vunpack.c.l.b16 %v7474
        %v8438 = vunpack.c.h.b16 %v7474
        %v8439 = vunpack.c.l.b16 %v7475
        %v8440 = vunpack.c.h.b16 %v7475
        %v8441 = vunpack.c.l.b16 %v7476
        %v8442 = vunpack.c.h.b16 %v7476
        %v8443 = vunpack.c.l.b16 %v7477
        %v8444 = vunpack.c.h.b16 %v7477
        %v8445 = vunpack.c.l.b16 %v7478
        %v8446 = vunpack.c.h.b16 %v7478
        %v8447 = vunpack.c.l.b16 %v7479
        %v8448 = vunpack.c.h.b16 %v7479
        %v8449 = vunpack.c.l.b16 %v7480
        %v8450 = vunpack.c.h.b16 %v7480
        %v8451 = vunpack.c.l.b16 %v7481
        %v8452 = vunpack.c.h.b16 %v7481
        %v8453 = vunpack.c.l.b16 %v7482
        %v8454 = vunpack.c.h.b16 %v7482
        %v8455 = vunpack.c.l.b16 %v7483
        %v8456 = vunpack.c.h.b16 %v7483
        %v8457 = vunpack.c.l.b16 %v7484
        %v8458 = vunpack.c.h.b16 %v7484
        %v8459 = vunpack.c.l.b16 %v7485
        %v8460 = vunpack.c.h.b16 %v7485
        %v8461 = vunpack.c.l.b16 %v7486
        %v8462 = vunpack.c.h.b16 %v7486
        %v8463 = vunpack.c.l.b16 %v7487
        %v8464 = vunpack.c.h.b16 %v7487
        %v8465 = vunpack.c.l.b16 %v7488
        %v8466 = vunpack.c.h.b16 %v7488
        %v8467 = vunpack.c.l.b16 %v7489
        %v8468 = vunpack.c.h.b16 %v7489
        %v8469 = vunpack.c.l.b16 %v7490
        %v8470 = vunpack.c.h.b16 %v7490
        %v8471 = vunpack.c.l.b16 %v7491
        %v8472 = vunpack.c.h.b16 %v7491
        %v8473 = vunpack.c.l.b16 %v7492
        %v8474 = vunpack.c.h.b16 %v7492
        %v8475 = vunpack.c.l.b16 %v7493
        %v8476 = vunpack.c.h.b16 %v7493
        %v8477 = vunpack.c.l.b16 %v7494
        %v8478 = vunpack.c.h.b16 %v7494
        %v8479 = vunpack.c.l.b16 %v7495
        %v8480 = vunpack.c.h.b16 %v7495
        %v8481 = vunpack.c.l.b16 %v7496
        %v8482 = vunpack.c.h.b16 %v7496
        %v8483 = vunpack.c.l.b16 %v7497
        %v8484 = vunpack.c.h.b16 %v7497
        %v8485 = vunpack.c.l.b16 %v7498
        %v8486 = vunpack.c.h.b16 %v7498
        %v8487 = vunpack.c.l.b16 %v7499
        %v8488 = vunpack.c.h.b16 %v7499
        %v8489 = vunpack.c.l.b16 %v7500
        %v8490 = vunpack.c.h.b16 %v7500
        %v8491 = vunpack.c.l.b16 %v7501
        %v8492 = vunpack.c.h.b16 %v7501
        %v8493 = vunpack.c.l.b16 %v7502
        %v8494 = vunpack.c.h.b16 %v7502
        %v8495 = vunpack.c.l.b16 %v7503
        %v8496 = vunpack.c.h.b16 %v7503
        %v8497 = vunpack.c.l.b16 %v7504
        %v8498 = vunpack.c.h.b16 %v7504
        %v8499 = vunpack.c.l.b16 %v7505
        %v8500 = vunpack.c.h.b16 %v7505
        %v8501 = vunpack.c.l.b16 %v7506
        %v8502 = vunpack.c.h.b16 %v7506
        %v8503 = vunpack.c.l.b16 %v7507
        %v8504 = vunpack.c.h.b16 %v7507
        %v8505 = vunpack.c.l.b16 %v7508
        %v8506 = vunpack.c.h.b16 %v7508
        %v8507 = vunpack.c.l.b16 %v7509
        %v8508 = vunpack.c.h.b16 %v7509
        %v8509 = vunpack.c.l.b16 %v7510
        %v8510 = vunpack.c.h.b16 %v7510
        %v8511 = vpack.c.b16 %v7911, %v7871
        %v8512 = vpack.c.b16 %v7912, %v7872
        %v8513 = vpack.c.b16 %v7913, %v7873
        %v8514 = vpack.c.b16 %v7914, %v7874
        %v8515 = vpack.c.b16 %v7915, %v7875
        %v8516 = vpack.c.b16 %v7916, %v7876
        %v8517 = vpack.c.b16 %v7917, %v7877
        %v8518 = vpack.c.b16 %v7918, %v7878
        %v8519 = vpack.c.b16 %v7919, %v7879
        %v8520 = vpack.c.b16 %v7920, %v7880
        %v8521 = vpack.c.b16 %v7921, %v7881
        %v8522 = vpack.c.b16 %v7922, %v7882
        %v8523 = vpack.c.b16 %v7923, %v7883
        %v8524 = vpack.c.b16 %v7924, %v7884
        %v8525 = vpack.c.b16 %v7925, %v7885
        %v8526 = vpack.c.b16 %v7926, %v7886
        %v8527 = vpack.c.b16 %v7927, %v7887
        %v8528 = vpack.c.b16 %v7928, %v7888
        %v8529 = vpack.c.b16 %v7929, %v7889
        %v8530 = vpack.c.b16 %v7930, %v7890
        %v8531 = vpack.c.b16 %v7931, %v7891
        %v8532 = vpack.c.b16 %v7932, %v7892
        %v8533 = vpack.c.b16 %v7933, %v7893
        %v8534 = vpack.c.b16 %v7934, %v7894
        %v8535 = vpack.c.b16 %v7935, %v7895
        %v8536 = vpack.c.b16 %v7936, %v7896
        %v8537 = vpack.c.b16 %v7937, %v7897
        %v8538 = vpack.c.b16 %v7938, %v7898
        %v8539 = vpack.c.b16 %v7939, %v7899
        %v8540 = vpack.c.b16 %v7940, %v7900
        %v8541 = vpack.c.b16 %v7941, %v7901
        %v8542 = vpack.c.b16 %v7942, %v7902
        %v8543 = vpack.c.b16 %v7943, %v7903
        %v8544 = vpack.c.b16 %v7944, %v7904
        %v8545 = vpack.c.b16 %v7945, %v7905
        %v8546 = vpack.c.b16 %v7946, %v7906
        %v8547 = vpack.c.b16 %v7947, %v7907
        %v8548 = vpack.c.b16 %v7948, %v7908
        %v8549 = vpack.c.b16 %v7949, %v7909
        %v8550 = vpack.c.b16 %v7950, %v7910
        %v8551 = vpack.c.b16 %v7991, %v7951
        %v8552 = vpack.c.b16 %v7992, %v7952
        %v8553 = vpack.c.b16 %v7993, %v7953
        %v8554 = vpack.c.b16 %v7994, %v7954
        %v8555 = vpack.c.b16 %v7995, %v7955
        %v8556 = vpack.c.b16 %v7996, %v7956
        %v8557 = vpack.c.b16 %v7997, %v7957
        %v8558 = vpack.c.b16 %v7998, %v7958
        %v8559 = vpack.c.b16 %v7999, %v7959
        %v8560 = vpack.c.b16 %v8000, %v7960
        %v8561 = vpack.c.b16 %v8001, %v7961
        %v8562 = vpack.c.b16 %v8002, %v7962
        %v8563 = vpack.c.b16 %v8003, %v7963
        %v8564 = vpack.c.b16 %v8004, %v7964
        %v8565 = vpack.c.b16 %v8005, %v7965
        %v8566 = vpack.c.b16 %v8006, %v7966
        %v8567 = vpack.c.b16 %v8007, %v7967
        %v8568 = vpack.c.b16 %v8008, %v7968
        %v8569 = vpack.c.b16 %v8009, %v7969
        %v8570 = vpack.c.b16 %v8010, %v7970
        %v8571 = vpack.c.b16 %v8011, %v7971
        %v8572 = vpack.c.b16 %v8012, %v7972
        %v8573 = vpack.c.b16 %v8013, %v7973
        %v8574 = vpack.c.b16 %v8014, %v7974
        %v8575 = vpack.c.b16 %v8015, %v7975
        %v8576 = vpack.c.b16 %v8016, %v7976
        %v8577 = vpack.c.b16 %v8017, %v7977
        %v8578 = vpack.c.b16 %v8018, %v7978
        %v8579 = vpack.c.b16 %v8019, %v7979
        %v8580 = vpack.c.b16 %v8020, %v7980
        %v8581 = vpack.c.b16 %v8021, %v7981
        %v8582 = vpack.c.b16 %v8022, %v7982
        %v8583 = vpack.c.b16 %v8023, %v7983
        %v8584 = vpack.c.b16 %v8024, %v7984
        %v8585 = vpack.c.b16 %v8025, %v7985
        %v8586 = vpack.c.b16 %v8026, %v7986
        %v8587 = vpack.c.b16 %v8027, %v7987
        %v8588 = vpack.c.b16 %v8028, %v7988
        %v8589 = vpack.c.b16 %v8029, %v7989
        %v8590 = vpack.c.b16 %v8030, %v7990
        %v8591 = vpack.c.b16 %v8071, %v8031
        %v8592 = vpack.c.b16 %v8072, %v8032
        %v8593 = vpack.c.b16 %v8073, %v8033
        %v8594 = vpack.c.b16 %v8074, %v8034
        %v8595 = vpack.c.b16 %v8075, %v8035
        %v8596 = vpack.c.b16 %v8076, %v8036
        %v8597 = vpack.c.b16 %v8077, %v8037
        %v8598 = vpack.c.b16 %v8078, %v8038
        %v8599 = vpack.c.b16 %v8079, %v8039
        %v8600 = vpack.c.b16 %v8080, %v8040
        %v8601 = vpack.c.b16 %v8081, %v8041
        %v8602 = vpack.c.b16 %v8082, %v8042
        %v8603 = vpack.c.b16 %v8083, %v8043
        %v8604 = vpack.c.b16 %v8084, %v8044
        %v8605 = vpack.c.b16 %v8085, %v8045
        %v8606 = vpack.c.b16 %v8086, %v8046
        %v8607 = vpack.c.b16 %v8087, %v8047
        %v8608 = vpack.c.b16 %v8088, %v8048
        %v8609 = vpack.c.b16 %v8089, %v8049
        %v8610 = vpack.c.b16 %v8090, %v8050
        %v8611 = vpack.c.b16 %v8091, %v8051
        %v8612 = vpack.c.b16 %v8092, %v8052
        %v8613 = vpack.c.b16 %v8093, %v8053
        %v8614 = vpack.c.b16 %v8094, %v8054
        %v8615 = vpack.c.b16 %v8095, %v8055
        %v8616 = vpack.c.b16 %v8096, %v8056
        %v8617 = vpack.c.b16 %v8097, %v8057
        %v8618 = vpack.c.b16 %v8098, %v8058
        %v8619 = vpack.c.b16 %v8099, %v8059
        %v8620 = vpack.c.b16 %v8100, %v8060
        %v8621 = vpack.c.b16 %v8101, %v8061
        %v8622 = vpack.c.b16 %v8102, %v8062
        %v8623 = vpack.c.b16 %v8103, %v8063
        %v8624 = vpack.c.b16 %v8104, %v8064
        %v8625 = vpack.c.b16 %v8105, %v8065
        %v8626 = vpack.c.b16 %v8106, %v8066
        %v8627 = vpack.c.b16 %v8107, %v8067
        %v8628 = vpack.c.b16 %v8108, %v8068
        %v8629 = vpack.c.b16 %v8109, %v8069
        %v8630 = vpack.c.b16 %v8110, %v8070
        %v8631 = vpack.c.b16 %v8151, %v8111
        %v8632 = vpack.c.b16 %v8152, %v8112
        %v8633 = vpack.c.b16 %v8153, %v8113
        %v8634 = vpack.c.b16 %v8154, %v8114
        %v8635 = vpack.c.b16 %v8155, %v8115
        %v8636 = vpack.c.b16 %v8156, %v8116
        %v8637 = vpack.c.b16 %v8157, %v8117
        %v8638 = vpack.c.b16 %v8158, %v8118
        %v8639 = vpack.c.b16 %v8159, %v8119
        %v8640 = vpack.c.b16 %v8160, %v8120
        %v8641 = vpack.c.b16 %v8161, %v8121
        %v8642 = vpack.c.b16 %v8162, %v8122
        %v8643 = vpack.c.b16 %v8163, %v8123
        %v8644 = vpack.c.b16 %v8164, %v8124
        %v8645 = vpack.c.b16 %v8165, %v8125
        %v8646 = vpack.c.b16 %v8166, %v8126
        %v8647 = vpack.c.b16 %v8167, %v8127
        %v8648 = vpack.c.b16 %v8168, %v8128
        %v8649 = vpack.c.b16 %v8169, %v8129
        %v8650 = vpack.c.b16 %v8170, %v8130
        %v8651 = vpack.c.b16 %v8171, %v8131
        %v8652 = vpack.c.b16 %v8172, %v8132
        %v8653 = vpack.c.b16 %v8173, %v8133
        %v8654 = vpack.c.b16 %v8174, %v8134
        %v8655 = vpack.c.b16 %v8175, %v8135
        %v8656 = vpack.c.b16 %v8176, %v8136
        %v8657 = vpack.c.b16 %v8177, %v8137
        %v8658 = vpack.c.b16 %v8178, %v8138
        %v8659 = vpack.c.b16 %v8179, %v8139
        %v8660 = vpack.c.b16 %v8180, %v8140
        %v8661 = vpack.c.b16 %v8181, %v8141
        %v8662 = vpack.c.b16 %v8182, %v8142
        %v8663 = vpack.c.b16 %v8183, %v8143
        %v8664 = vpack.c.b16 %v8184, %v8144
        %v8665 = vpack.c.b16 %v8185, %v8145
        %v8666 = vpack.c.b16 %v8186, %v8146
        %v8667 = vpack.c.b16 %v8187, %v8147
        %v8668 = vpack.c.b16 %v8188, %v8148
        %v8669 = vpack.c.b16 %v8189, %v8149
        %v8670 = vpack.c.b16 %v8190, %v8150
        %v8671 = vpack.c.b16 %v8231, %v8191
        %v8672 = vpack.c.b16 %v8232, %v8192
        %v8673 = vpack.c.b16 %v8233, %v8193
        %v8674 = vpack.c.b16 %v8234, %v8194
        %v8675 = vpack.c.b16 %v8235, %v8195
        %v8676 = vpack.c.b16 %v8236, %v8196
        %v8677 = vpack.c.b16 %v8237, %v8197
        %v8678 = vpack.c.b16 %v8238, %v8198
        %v8679 = vpack.c.b16 %v8239, %v8199
        %v8680 = vpack.c.b16 %v8240, %v8200
        %v8681 = vpack.c.b16 %v8241, %v8201
        %v8682 = vpack.c.b16 %v8242, %v8202
        %v8683 = vpack.c.b16 %v8243, %v8203
        %v8684 = vpack.c.b16 %v8244, %v8204
        %v8685 = vpack.c.b16 %v8245, %v8205
        %v8686 = vpack.c.b16 %v8246, %v8206
        %v8687 = vpack.c.b16 %v8247, %v8207
        %v8688 = vpack.c.b16 %v8248, %v8208
        %v8689 = vpack.c.b16 %v8249, %v8209
        %v8690 = vpack.c.b16 %v8250, %v8210
        %v8691 = vpack.c.b16 %v8251, %v8211
        %v8692 = vpack.c.b16 %v8252, %v8212
        %v8693 = vpack.c.b16 %v8253, %v8213
        %v8694 = vpack.c.b16 %v8254, %v8214
        %v8695 = vpack.c.b16 %v8255, %v8215
        %v8696 = vpack.c.b16 %v8256, %v8216
        %v8697 = vpack.c.b16 %v8257, %v8217
        %v8698 = vpack.c.b16 %v8258, %v8218
        %v8699 = vpack.c.b16 %v8259, %v8219
        %v8700 = vpack.c.b16 %v8260, %v8220
        %v8701 = vpack.c.b16 %v8261, %v8221
        %v8702 = vpack.c.b16 %v8262, %v8222
        %v8703 = vpack.c.b16 %v8263, %v8223
        %v8704 = vpack.c.b16 %v8264, %v8224
        %v8705 = vpack.c.b16 %v8265, %v8225
        %v8706 = vpack.c.b16 %v8266, %v8226
        %v8707 = vpack.c.b16 %v8267, %v8227
        %v8708 = vpack.c.b16 %v8268, %v8228
        %v8709 = vpack.c.b16 %v8269, %v8229
        %v8710 = vpack.c.b16 %v8270, %v8230
        %v8711 = vpack.c.b16 %v8311, %v8271
        %v8712 = vpack.c.b16 %v8312, %v8272
        %v8713 = vpack.c.b16 %v8313, %v8273
        %v8714 = vpack.c.b16 %v8314, %v8274
        %v8715 = vpack.c.b16 %v8315, %v8275
        %v8716 = vpack.c.b16 %v8316, %v8276
        %v8717 = vpack.c.b16 %v8317, %v8277
        %v8718 = vpack.c.b16 %v8318, %v8278
        %v8719 = vpack.c.b16 %v8319, %v8279
        %v8720 = vpack.c.b16 %v8320, %v8280
        %v8721 = vpack.c.b16 %v8321, %v8281
        %v8722 = vpack.c.b16 %v8322, %v8282
        %v8723 = vpack.c.b16 %v8323, %v8283
        %v8724 = vpack.c.b16 %v8324, %v8284
        %v8725 = vpack.c.b16 %v8325, %v8285
        %v8726 = vpack.c.b16 %v8326, %v8286
        %v8727 = vpack.c.b16 %v8327, %v8287
        %v8728 = vpack.c.b16 %v8328, %v8288
        %v8729 = vpack.c.b16 %v8329, %v8289
        %v8730 = vpack.c.b16 %v8330, %v8290
        %v8731 = vpack.c.b16 %v8331, %v8291
        %v8732 = vpack.c.b16 %v8332, %v8292
        %v8733 = vpack.c.b16 %v8333, %v8293
        %v8734 = vpack.c.b16 %v8334, %v8294
        %v8735 = vpack.c.b16 %v8335, %v8295
        %v8736 = vpack.c.b16 %v8336, %v8296
        %v8737 = vpack.c.b16 %v8337, %v8297
        %v8738 = vpack.c.b16 %v8338, %v8298
        %v8739 = vpack.c.b16 %v8339, %v8299
        %v8740 = vpack.c.b16 %v8340, %v8300
        %v8741 = vpack.c.b16 %v8341, %v8301
        %v8742 = vpack.c.b16 %v8342, %v8302
        %v8743 = vpack.c.b16 %v8343, %v8303
        %v8744 = vpack.c.b16 %v8344, %v8304
        %v8745 = vpack.c.b16 %v8345, %v8305
        %v8746 = vpack.c.b16 %v8346, %v8306
        %v8747 = vpack.c.b16 %v8347, %v8307
        %v8748 = vpack.c.b16 %v8348, %v8308
        %v8749 = vpack.c.b16 %v8349, %v8309
        %v8750 = vpack.c.b16 %v8350, %v8310
        %v8751 = vpack.c.b16 %v8391, %v8351
        %v8752 = vpack.c.b16 %v8392, %v8352
        %v8753 = vpack.c.b16 %v8393, %v8353
        %v8754 = vpack.c.b16 %v8394, %v8354
        %v8755 = vpack.c.b16 %v8395, %v8355
        %v8756 = vpack.c.b16 %v8396, %v8356
        %v8757 = vpack.c.b16 %v8397, %v8357
        %v8758 = vpack.c.b16 %v8398, %v8358
        %v8759 = vpack.c.b16 %v8399, %v8359
        %v8760 = vpack.c.b16 %v8400, %v8360
        %v8761 = vpack.c.b16 %v8401, %v8361
        %v8762 = vpack.c.b16 %v8402, %v8362
        %v8763 = vpack.c.b16 %v8403, %v8363
        %v8764 = vpack.c.b16 %v8404, %v8364
        %v8765 = vpack.c.b16 %v8405, %v8365
        %v8766 = vpack.c.b16 %v8406, %v8366
        %v8767 = vpack.c.b16 %v8407, %v8367
        %v8768 = vpack.c.b16 %v8408, %v8368
        %v8769 = vpack.c.b16 %v8409, %v8369
        %v8770 = vpack.c.b16 %v8410, %v8370
        %v8771 = vpack.c.b16 %v8411, %v8371
        %v8772 = vpack.c.b16 %v8412, %v8372
        %v8773 = vpack.c.b16 %v8413, %v8373
        %v8774 = vpack.c.b16 %v8414, %v8374
        %v8775 = vpack.c.b16 %v8415, %v8375
        %v8776 = vpack.c.b16 %v8416, %v8376
        %v8777 = vpack.c.b16 %v8417, %v8377
        %v8778 = vpack.c.b16 %v8418, %v8378
        %v8779 = vpack.c.b16 %v8419, %v8379
        %v8780 = vpack.c.b16 %v8420, %v8380
        %v8781 = vpack.c.b16 %v8421, %v8381
        %v8782 = vpack.c.b16 %v8422, %v8382
        %v8783 = vpack.c.b16 %v8423, %v8383
        %v8784 = vpack.c.b16 %v8424, %v8384
        %v8785 = vpack.c.b16 %v8425, %v8385
        %v8786 = vpack.c.b16 %v8426, %v8386
        %v8787 = vpack.c.b16 %v8427, %v8387
        %v8788 = vpack.c.b16 %v8428, %v8388
        %v8789 = vpack.c.b16 %v8429, %v8389
        %v8790 = vpack.c.b16 %v8430, %v8390
        %v8791 = vpack.c.b16 %v8471, %v8431
        %v8792 = vpack.c.b16 %v8472, %v8432
        %v8793 = vpack.c.b16 %v8473, %v8433
        %v8794 = vpack.c.b16 %v8474, %v8434
        %v8795 = vpack.c.b16 %v8475, %v8435
        %v8796 = vpack.c.b16 %v8476, %v8436
        %v8797 = vpack.c.b16 %v8477, %v8437
        %v8798 = vpack.c.b16 %v8478, %v8438
        %v8799 = vpack.c.b16 %v8479, %v8439
        %v8800 = vpack.c.b16 %v8480, %v8440
        %v8801 = vpack.c.b16 %v8481, %v8441
        %v8802 = vpack.c.b16 %v8482, %v8442
        %v8803 = vpack.c.b16 %v8483, %v8443
        %v8804 = vpack.c.b16 %v8484, %v8444
        %v8805 = vpack.c.b16 %v8485, %v8445
        %v8806 = vpack.c.b16 %v8486, %v8446
        %v8807 = vpack.c.b16 %v8487, %v8447
        %v8808 = vpack.c.b16 %v8488, %v8448
        %v8809 = vpack.c.b16 %v8489, %v8449
        %v8810 = vpack.c.b16 %v8490, %v8450
        %v8811 = vpack.c.b16 %v8491, %v8451
        %v8812 = vpack.c.b16 %v8492, %v8452
        %v8813 = vpack.c.b16 %v8493, %v8453
        %v8814 = vpack.c.b16 %v8494, %v8454
        %v8815 = vpack.c.b16 %v8495, %v8455
        %v8816 = vpack.c.b16 %v8496, %v8456
        %v8817 = vpack.c.b16 %v8497, %v8457
        %v8818 = vpack.c.b16 %v8498, %v8458
        %v8819 = vpack.c.b16 %v8499, %v8459
        %v8820 = vpack.c.b16 %v8500, %v8460
        %v8821 = vpack.c.b16 %v8501, %v8461
        %v8822 = vpack.c.b16 %v8502, %v8462
        %v8823 = vpack.c.b16 %v8503, %v8463
        %v8824 = vpack.c.b16 %v8504, %v8464
        %v8825 = vpack.c.b16 %v8505, %v8465
        %v8826 = vpack.c.b16 %v8506, %v8466
        %v8827 = vpack.c.b16 %v8507, %v8467
        %v8828 = vpack.c.b16 %v8508, %v8468
        %v8829 = vpack.c.b16 %v8509, %v8469
        %v8830 = vpack.c.b16 %v8510, %v8470
        %9151 = vmatprep.subr.bf16.mxu0 %v8792
        %9152 = vmatpush1.bf16.msra.mxu0 %v8791
        %9153 = vmatprep.subr.bf16.mxu0 %v8752
        %9154 = vmatpush1.bf16.msra.mxu0 %v8751
        %9155 = vmatprep.subr.bf16.mxu0 %v8712
        %9156 = vmatpush1.bf16.msra.mxu0 %v8711
        %9157 = vmatprep.subr.bf16.mxu0 %v8672
        %9158 = vmatpush1.bf16.msra.mxu0 %v8671
        %9159 = vmatprep.subr.bf16.mxu0 %v8632
        %9160 = vmatpush1.bf16.msra.mxu0 %v8631
        %9161 = vmatprep.subr.bf16.mxu0 %v8592
        %9162 = vmatpush1.bf16.msra.mxu0 %v8591
        %9163 = vmatprep.subr.bf16.mxu0 %v8552
        %9164 = vmatpush1.bf16.msra.mxu0 %v8551
        %9165 = vmatprep.subr.bf16.mxu0 %v8512
        %9166 = vmatpush1.bf16.msra.mxu0 %v8511
        %9167 = vmatprep.subr.bf16.mxu0 0
        %9168 = vmatpush2.bf16.msra.mxu0 0
        %9169 = vmatprep.subr.bf16.mxu0 0
        %9170 = vmatpush2.bf16.msra.mxu0 0
        %9171 = vmatprep.subr.bf16.mxu0 0
        %9172 = vmatpush2.bf16.msra.mxu0 0
        %9173 = vmatprep.subr.bf16.mxu0 0
        %9174 = vmatpush2.bf16.msra.mxu0 0
        %9175 = vmatprep.subr.bf16.mxu0 0
        %9176 = vmatpush2.bf16.msra.mxu0 0
        %9177 = vmatprep.subr.bf16.mxu0 0
        %9178 = vmatpush2.bf16.msra.mxu0 0
        %9179 = vmatprep.subr.bf16.mxu0 0
        %9180 = vmatpush2.bf16.msra.mxu0 0
        %9181 = vmatprep.subr.bf16.mxu0 0
        %9182 = vmatpush2.bf16.msra.mxu0 0
        %9183 = vmatprep.mubr.bf16.mxu0 0
        %9184 = vmatmul.mubr.bf16.gmra.mxu0 %v7190
        %v9185 = vpop.f32.mrf.mxu0
        %v9186 = vadd.f32 %v7511, %v9185
        %v9187 = vpop.f32.mrf.mxu0
        %v9188 = vadd.f32 %v7512, %v9187
        %v9189 = vpop.f32.mrf.mxu0
        %v9190 = vpop.f32.mrf.mxu0
        %9191 = vdwg.mxu0
        %9192 = vmatprep.subr.bf16.mxu0 %v8794
        %9193 = vmatpush1.bf16.msra.mxu0 %v8793
        %9194 = vmatprep.subr.bf16.mxu0 %v8754
        %9195 = vmatpush1.bf16.msra.mxu0 %v8753
        %9196 = vmatprep.subr.bf16.mxu0 %v8714
        %9197 = vmatpush1.bf16.msra.mxu0 %v8713
        %9198 = vmatprep.subr.bf16.mxu0 %v8674
        %9199 = vmatpush1.bf16.msra.mxu0 %v8673
        %9200 = vmatprep.subr.bf16.mxu0 %v8634
        %9201 = vmatpush1.bf16.msra.mxu0 %v8633
        %9202 = vmatprep.subr.bf16.mxu0 %v8594
        %9203 = vmatpush1.bf16.msra.mxu0 %v8593
        %9204 = vmatprep.subr.bf16.mxu0 %v8554
        %9205 = vmatpush1.bf16.msra.mxu0 %v8553
        %9206 = vmatprep.subr.bf16.mxu0 %v8514
        %9207 = vmatpush1.bf16.msra.mxu0 %v8513
        %9208 = vmatprep.subr.bf16.mxu0 0
        %9209 = vmatpush2.bf16.msra.mxu0 0
        %9210 = vmatprep.subr.bf16.mxu0 0
        %9211 = vmatpush2.bf16.msra.mxu0 0
        %9212 = vmatprep.subr.bf16.mxu0 0
        %9213 = vmatpush2.bf16.msra.mxu0 0
        %9214 = vmatprep.subr.bf16.mxu0 0
        %9215 = vmatpush2.bf16.msra.mxu0 0
        %9216 = vmatprep.subr.bf16.mxu0 0
        %9217 = vmatpush2.bf16.msra.mxu0 0
        %9218 = vmatprep.subr.bf16.mxu0 0
        %9219 = vmatpush2.bf16.msra.mxu0 0
        %9220 = vmatprep.subr.bf16.mxu0 0
        %9221 = vmatpush2.bf16.msra.mxu0 0
        %9222 = vmatprep.subr.bf16.mxu0 0
        %9223 = vmatpush2.bf16.msra.mxu0 0
        %9224 = vmatprep.mubr.bf16.mxu0 0
        %9225 = vmatmul.mubr.bf16.gmra.mxu0 %v7190
        %v9226 = vpop.f32.mrf.mxu0
        %v9227 = vadd.f32 %v7513, %v9226
        %v9228 = vpop.f32.mrf.mxu0
        %v9229 = vadd.f32 %v7514, %v9228
        %v9230 = vpop.f32.mrf.mxu0
        %v9231 = vpop.f32.mrf.mxu0
        %9232 = vdwg.mxu0
        %9233 = vmatprep.subr.bf16.mxu0 %v8796
        %9234 = vmatpush1.bf16.msra.mxu0 %v8795
        %9235 = vmatprep.subr.bf16.mxu0 %v8756
        %9236 = vmatpush1.bf16.msra.mxu0 %v8755
        %9237 = vmatprep.subr.bf16.mxu0 %v8716
        %9238 = vmatpush1.bf16.msra.mxu0 %v8715
        %9239 = vmatprep.subr.bf16.mxu0 %v8676
        %9240 = vmatpush1.bf16.msra.mxu0 %v8675
        %9241 = vmatprep.subr.bf16.mxu0 %v8636
        %9242 = vmatpush1.bf16.msra.mxu0 %v8635
        %9243 = vmatprep.subr.bf16.mxu0 %v8596
        %9244 = vmatpush1.bf16.msra.mxu0 %v8595
        %9245 = vmatprep.subr.bf16.mxu0 %v8556
        %9246 = vmatpush1.bf16.msra.mxu0 %v8555
        %9247 = vmatprep.subr.bf16.mxu0 %v8516
        %9248 = vmatpush1.bf16.msra.mxu0 %v8515
        %9249 = vmatprep.subr.bf16.mxu0 0
        %9250 = vmatpush2.bf16.msra.mxu0 0
        %9251 = vmatprep.subr.bf16.mxu0 0
        %9252 = vmatpush2.bf16.msra.mxu0 0
        %9253 = vmatprep.subr.bf16.mxu0 0
        %9254 = vmatpush2.bf16.msra.mxu0 0
        %9255 = vmatprep.subr.bf16.mxu0 0
        %9256 = vmatpush2.bf16.msra.mxu0 0
        %9257 = vmatprep.subr.bf16.mxu0 0
        %9258 = vmatpush2.bf16.msra.mxu0 0
        %9259 = vmatprep.subr.bf16.mxu0 0
        %9260 = vmatpush2.bf16.msra.mxu0 0
        %9261 = vmatprep.subr.bf16.mxu0 0
        %9262 = vmatpush2.bf16.msra.mxu0 0
        %9263 = vmatprep.subr.bf16.mxu0 0
        %9264 = vmatpush2.bf16.msra.mxu0 0
        %9265 = vmatprep.mubr.bf16.mxu0 0
        %9266 = vmatmul.mubr.bf16.gmra.mxu0 %v7190
        %v9267 = vpop.f32.mrf.mxu0
        %v9268 = vadd.f32 %v7515, %v9267
        %v9269 = vpop.f32.mrf.mxu0
        %v9270 = vadd.f32 %v7516, %v9269
        %v9271 = vpop.f32.mrf.mxu0
        %v9272 = vpop.f32.mrf.mxu0
        %9273 = vdwg.mxu0
        %9274 = vmatprep.subr.bf16.mxu0 %v8798
        %9275 = vmatpush1.bf16.msra.mxu0 %v8797
        %9276 = vmatprep.subr.bf16.mxu0 %v8758
        %9277 = vmatpush1.bf16.msra.mxu0 %v8757
        %9278 = vmatprep.subr.bf16.mxu0 %v8718
        %9279 = vmatpush1.bf16.msra.mxu0 %v8717
        %9280 = vmatprep.subr.bf16.mxu0 %v8678
        %9281 = vmatpush1.bf16.msra.mxu0 %v8677
        %9282 = vmatprep.subr.bf16.mxu0 %v8638
        %9283 = vmatpush1.bf16.msra.mxu0 %v8637
        %9284 = vmatprep.subr.bf16.mxu0 %v8598
        %9285 = vmatpush1.bf16.msra.mxu0 %v8597
        %9286 = vmatprep.subr.bf16.mxu0 %v8558
        %9287 = vmatpush1.bf16.msra.mxu0 %v8557
        %9288 = vmatprep.subr.bf16.mxu0 %v8518
        %9289 = vmatpush1.bf16.msra.mxu0 %v8517
        %9290 = vmatprep.subr.bf16.mxu0 0
        %9291 = vmatpush2.bf16.msra.mxu0 0
        %9292 = vmatprep.subr.bf16.mxu0 0
        %9293 = vmatpush2.bf16.msra.mxu0 0
        %9294 = vmatprep.subr.bf16.mxu0 0
        %9295 = vmatpush2.bf16.msra.mxu0 0
        %9296 = vmatprep.subr.bf16.mxu0 0
        %9297 = vmatpush2.bf16.msra.mxu0 0
        %9298 = vmatprep.subr.bf16.mxu0 0
        %9299 = vmatpush2.bf16.msra.mxu0 0
        %9300 = vmatprep.subr.bf16.mxu0 0
        %9301 = vmatpush2.bf16.msra.mxu0 0
        %9302 = vmatprep.subr.bf16.mxu0 0
        %9303 = vmatpush2.bf16.msra.mxu0 0
        %9304 = vmatprep.subr.bf16.mxu0 0
        %9305 = vmatpush2.bf16.msra.mxu0 0
        %9306 = vmatprep.mubr.bf16.mxu0 0
        %9307 = vmatmul.mubr.bf16.gmra.mxu0 %v7190
        %v9308 = vpop.f32.mrf.mxu0
        %v9309 = vadd.f32 %v7517, %v9308
        %v9310 = vpop.f32.mrf.mxu0
        %v9311 = vadd.f32 %v7518, %v9310
        %v9312 = vpop.f32.mrf.mxu0
        %v9313 = vpop.f32.mrf.mxu0
        %9314 = vdwg.mxu0
        %9315 = vmatprep.subr.bf16.mxu0 %v8800
        %9316 = vmatpush1.bf16.msra.mxu0 %v8799
        %9317 = vmatprep.subr.bf16.mxu0 %v8760
        %9318 = vmatpush1.bf16.msra.mxu0 %v8759
        %9319 = vmatprep.subr.bf16.mxu0 %v8720
        %9320 = vmatpush1.bf16.msra.mxu0 %v8719
        %9321 = vmatprep.subr.bf16.mxu0 %v8680
        %9322 = vmatpush1.bf16.msra.mxu0 %v8679
        %9323 = vmatprep.subr.bf16.mxu0 %v8640
        %9324 = vmatpush1.bf16.msra.mxu0 %v8639
        %9325 = vmatprep.subr.bf16.mxu0 %v8600
        %9326 = vmatpush1.bf16.msra.mxu0 %v8599
        %9327 = vmatprep.subr.bf16.mxu0 %v8560
        %9328 = vmatpush1.bf16.msra.mxu0 %v8559
        %9329 = vmatprep.subr.bf16.mxu0 %v8520
        %9330 = vmatpush1.bf16.msra.mxu0 %v8519
        %9331 = vmatprep.subr.bf16.mxu0 0
        %9332 = vmatpush2.bf16.msra.mxu0 0
        %9333 = vmatprep.subr.bf16.mxu0 0
        %9334 = vmatpush2.bf16.msra.mxu0 0
        %9335 = vmatprep.subr.bf16.mxu0 0
        %9336 = vmatpush2.bf16.msra.mxu0 0
        %9337 = vmatprep.subr.bf16.mxu0 0
        %9338 = vmatpush2.bf16.msra.mxu0 0
        %9339 = vmatprep.subr.bf16.mxu0 0
        %9340 = vmatpush2.bf16.msra.mxu0 0
        %9341 = vmatprep.subr.bf16.mxu0 0
        %9342 = vmatpush2.bf16.msra.mxu0 0
        %9343 = vmatprep.subr.bf16.mxu0 0
        %9344 = vmatpush2.bf16.msra.mxu0 0
        %9345 = vmatprep.subr.bf16.mxu0 0
        %9346 = vmatpush2.bf16.msra.mxu0 0
        %9347 = vmatprep.mubr.bf16.mxu0 0
        %9348 = vmatmul.mubr.bf16.gmra.mxu0 %v7190
        %v9349 = vpop.f32.mrf.mxu0
        %v9350 = vadd.f32 %v7519, %v9349
        %v9351 = vpop.f32.mrf.mxu0
        %v9352 = vadd.f32 %v7520, %v9351
        %v9353 = vpop.f32.mrf.mxu0
        %v9354 = vpop.f32.mrf.mxu0
        %9355 = vdwg.mxu0
        %9356 = vmatprep.subr.bf16.mxu0 %v8802
        %9357 = vmatpush1.bf16.msra.mxu0 %v8801
        %9358 = vmatprep.subr.bf16.mxu0 %v8762
        %9359 = vmatpush1.bf16.msra.mxu0 %v8761
        %9360 = vmatprep.subr.bf16.mxu0 %v8722
        %9361 = vmatpush1.bf16.msra.mxu0 %v8721
        %9362 = vmatprep.subr.bf16.mxu0 %v8682
        %9363 = vmatpush1.bf16.msra.mxu0 %v8681
        %9364 = vmatprep.subr.bf16.mxu0 %v8642
        %9365 = vmatpush1.bf16.msra.mxu0 %v8641
        %9366 = vmatprep.subr.bf16.mxu0 %v8602
        %9367 = vmatpush1.bf16.msra.mxu0 %v8601
        %9368 = vmatprep.subr.bf16.mxu0 %v8562
        %9369 = vmatpush1.bf16.msra.mxu0 %v8561
        %9370 = vmatprep.subr.bf16.mxu0 %v8522
        %9371 = vmatpush1.bf16.msra.mxu0 %v8521
        %9372 = vmatprep.subr.bf16.mxu0 0
        %9373 = vmatpush2.bf16.msra.mxu0 0
        %9374 = vmatprep.subr.bf16.mxu0 0
        %9375 = vmatpush2.bf16.msra.mxu0 0
        %9376 = vmatprep.subr.bf16.mxu0 0
        %9377 = vmatpush2.bf16.msra.mxu0 0
        %9378 = vmatprep.subr.bf16.mxu0 0
        %9379 = vmatpush2.bf16.msra.mxu0 0
        %9380 = vmatprep.subr.bf16.mxu0 0
        %9381 = vmatpush2.bf16.msra.mxu0 0
        %9382 = vmatprep.subr.bf16.mxu0 0
        %9383 = vmatpush2.bf16.msra.mxu0 0
        %9384 = vmatprep.subr.bf16.mxu0 0
        %9385 = vmatpush2.bf16.msra.mxu0 0
        %9386 = vmatprep.subr.bf16.mxu0 0
        %9387 = vmatpush2.bf16.msra.mxu0 0
        %9388 = vmatprep.mubr.bf16.mxu0 0
        %9389 = vmatmul.mubr.bf16.gmra.mxu0 %v7190
        %v9390 = vpop.f32.mrf.mxu0
        %v9391 = vadd.f32 %v7521, %v9390
        %v9392 = vpop.f32.mrf.mxu0
        %v9393 = vadd.f32 %v7522, %v9392
        %v9394 = vpop.f32.mrf.mxu0
        %v9395 = vpop.f32.mrf.mxu0
        %9396 = vdwg.mxu0
        %9397 = vmatprep.subr.bf16.mxu0 %v8804
        %9398 = vmatpush1.bf16.msra.mxu0 %v8803
        %9399 = vmatprep.subr.bf16.mxu0 %v8764
        %9400 = vmatpush1.bf16.msra.mxu0 %v8763
        %9401 = vmatprep.subr.bf16.mxu0 %v8724
        %9402 = vmatpush1.bf16.msra.mxu0 %v8723
        %9403 = vmatprep.subr.bf16.mxu0 %v8684
        %9404 = vmatpush1.bf16.msra.mxu0 %v8683
        %9405 = vmatprep.subr.bf16.mxu0 %v8644
        %9406 = vmatpush1.bf16.msra.mxu0 %v8643
        %9407 = vmatprep.subr.bf16.mxu0 %v8604
        %9408 = vmatpush1.bf16.msra.mxu0 %v8603
        %9409 = vmatprep.subr.bf16.mxu0 %v8564
        %9410 = vmatpush1.bf16.msra.mxu0 %v8563
        %9411 = vmatprep.subr.bf16.mxu0 %v8524
        %9412 = vmatpush1.bf16.msra.mxu0 %v8523
        %9413 = vmatprep.subr.bf16.mxu0 0
        %9414 = vmatpush2.bf16.msra.mxu0 0
        %9415 = vmatprep.subr.bf16.mxu0 0
        %9416 = vmatpush2.bf16.msra.mxu0 0
        %9417 = vmatprep.subr.bf16.mxu0 0
        %9418 = vmatpush2.bf16.msra.mxu0 0
        %9419 = vmatprep.subr.bf16.mxu0 0
        %9420 = vmatpush2.bf16.msra.mxu0 0
        %9421 = vmatprep.subr.bf16.mxu0 0
        %9422 = vmatpush2.bf16.msra.mxu0 0
        %9423 = vmatprep.subr.bf16.mxu0 0
        %9424 = vmatpush2.bf16.msra.mxu0 0
        %9425 = vmatprep.subr.bf16.mxu0 0
        %9426 = vmatpush2.bf16.msra.mxu0 0
        %9427 = vmatprep.subr.bf16.mxu0 0
        %9428 = vmatpush2.bf16.msra.mxu0 0
        %9429 = vmatprep.mubr.bf16.mxu0 0
        %9430 = vmatmul.mubr.bf16.gmra.mxu0 %v7190
        %v9431 = vpop.f32.mrf.mxu0
        %v9432 = vadd.f32 %v7523, %v9431
        %v9433 = vpop.f32.mrf.mxu0
        %v9434 = vadd.f32 %v7524, %v9433
        %v9435 = vpop.f32.mrf.mxu0
        %v9436 = vpop.f32.mrf.mxu0
        %9437 = vdwg.mxu0
        %9438 = vmatprep.subr.bf16.mxu0 %v8806
        %9439 = vmatpush1.bf16.msra.mxu0 %v8805
        %9440 = vmatprep.subr.bf16.mxu0 %v8766
        %9441 = vmatpush1.bf16.msra.mxu0 %v8765
        %9442 = vmatprep.subr.bf16.mxu0 %v8726
        %9443 = vmatpush1.bf16.msra.mxu0 %v8725
        %9444 = vmatprep.subr.bf16.mxu0 %v8686
        %9445 = vmatpush1.bf16.msra.mxu0 %v8685
        %9446 = vmatprep.subr.bf16.mxu0 %v8646
        %9447 = vmatpush1.bf16.msra.mxu0 %v8645
        %9448 = vmatprep.subr.bf16.mxu0 %v8606
        %9449 = vmatpush1.bf16.msra.mxu0 %v8605
        %9450 = vmatprep.subr.bf16.mxu0 %v8566
        %9451 = vmatpush1.bf16.msra.mxu0 %v8565
        %9452 = vmatprep.subr.bf16.mxu0 %v8526
        %9453 = vmatpush1.bf16.msra.mxu0 %v8525
        %9454 = vmatprep.subr.bf16.mxu0 0
        %9455 = vmatpush2.bf16.msra.mxu0 0
        %9456 = vmatprep.subr.bf16.mxu0 0
        %9457 = vmatpush2.bf16.msra.mxu0 0
        %9458 = vmatprep.subr.bf16.mxu0 0
        %9459 = vmatpush2.bf16.msra.mxu0 0
        %9460 = vmatprep.subr.bf16.mxu0 0
        %9461 = vmatpush2.bf16.msra.mxu0 0
        %9462 = vmatprep.subr.bf16.mxu0 0
        %9463 = vmatpush2.bf16.msra.mxu0 0
        %9464 = vmatprep.subr.bf16.mxu0 0
        %9465 = vmatpush2.bf16.msra.mxu0 0
        %9466 = vmatprep.subr.bf16.mxu0 0
        %9467 = vmatpush2.bf16.msra.mxu0 0
        %9468 = vmatprep.subr.bf16.mxu0 0
        %9469 = vmatpush2.bf16.msra.mxu0 0
        %9470 = vmatprep.mubr.bf16.mxu0 0
        %9471 = vmatmul.mubr.bf16.gmra.mxu0 %v7190
        %v9472 = vpop.f32.mrf.mxu0
        %v9473 = vadd.f32 %v7525, %v9472
        %v9474 = vpop.f32.mrf.mxu0
        %v9475 = vadd.f32 %v7526, %v9474
        %v9476 = vpop.f32.mrf.mxu0
        %v9477 = vpop.f32.mrf.mxu0
        %9478 = vdwg.mxu0
        %9479 = vmatprep.subr.bf16.mxu0 %v8808
        %9480 = vmatpush1.bf16.msra.mxu0 %v8807
        %9481 = vmatprep.subr.bf16.mxu0 %v8768
        %9482 = vmatpush1.bf16.msra.mxu0 %v8767
        %9483 = vmatprep.subr.bf16.mxu0 %v8728
        %9484 = vmatpush1.bf16.msra.mxu0 %v8727
        %9485 = vmatprep.subr.bf16.mxu0 %v8688
        %9486 = vmatpush1.bf16.msra.mxu0 %v8687
        %9487 = vmatprep.subr.bf16.mxu0 %v8648
        %9488 = vmatpush1.bf16.msra.mxu0 %v8647
        %9489 = vmatprep.subr.bf16.mxu0 %v8608
        %9490 = vmatpush1.bf16.msra.mxu0 %v8607
        %9491 = vmatprep.subr.bf16.mxu0 %v8568
        %9492 = vmatpush1.bf16.msra.mxu0 %v8567
        %9493 = vmatprep.subr.bf16.mxu0 %v8528
        %9494 = vmatpush1.bf16.msra.mxu0 %v8527
        %9495 = vmatprep.subr.bf16.mxu0 0
        %9496 = vmatpush2.bf16.msra.mxu0 0
        %9497 = vmatprep.subr.bf16.mxu0 0
        %9498 = vmatpush2.bf16.msra.mxu0 0
        %9499 = vmatprep.subr.bf16.mxu0 0
        %9500 = vmatpush2.bf16.msra.mxu0 0
        %9501 = vmatprep.subr.bf16.mxu0 0
        %9502 = vmatpush2.bf16.msra.mxu0 0
        %9503 = vmatprep.subr.bf16.mxu0 0
        %9504 = vmatpush2.bf16.msra.mxu0 0
        %9505 = vmatprep.subr.bf16.mxu0 0
        %9506 = vmatpush2.bf16.msra.mxu0 0
        %9507 = vmatprep.subr.bf16.mxu0 0
        %9508 = vmatpush2.bf16.msra.mxu0 0
        %9509 = vmatprep.subr.bf16.mxu0 0
        %9510 = vmatpush2.bf16.msra.mxu0 0
        %9511 = vmatprep.mubr.bf16.mxu0 0
        %9512 = vmatmul.mubr.bf16.gmra.mxu0 %v7190
        %v9513 = vpop.f32.mrf.mxu0
        %v9514 = vadd.f32 %v7527, %v9513
        %v9515 = vpop.f32.mrf.mxu0
        %v9516 = vadd.f32 %v7528, %v9515
        %v9517 = vpop.f32.mrf.mxu0
        %v9518 = vpop.f32.mrf.mxu0
        %9519 = vdwg.mxu0
        %9520 = vmatprep.subr.bf16.mxu0 %v8810
        %9521 = vmatpush1.bf16.msra.mxu0 %v8809
        %9522 = vmatprep.subr.bf16.mxu0 %v8770
        %9523 = vmatpush1.bf16.msra.mxu0 %v8769
        %9524 = vmatprep.subr.bf16.mxu0 %v8730
        %9525 = vmatpush1.bf16.msra.mxu0 %v8729
        %9526 = vmatprep.subr.bf16.mxu0 %v8690
        %9527 = vmatpush1.bf16.msra.mxu0 %v8689
        %9528 = vmatprep.subr.bf16.mxu0 %v8650
        %9529 = vmatpush1.bf16.msra.mxu0 %v8649
        %9530 = vmatprep.subr.bf16.mxu0 %v8610
        %9531 = vmatpush1.bf16.msra.mxu0 %v8609
        %9532 = vmatprep.subr.bf16.mxu0 %v8570
        %9533 = vmatpush1.bf16.msra.mxu0 %v8569
        %9534 = vmatprep.subr.bf16.mxu0 %v8530
        %9535 = vmatpush1.bf16.msra.mxu0 %v8529
        %9536 = vmatprep.subr.bf16.mxu0 0
        %9537 = vmatpush2.bf16.msra.mxu0 0
        %9538 = vmatprep.subr.bf16.mxu0 0
        %9539 = vmatpush2.bf16.msra.mxu0 0
        %9540 = vmatprep.subr.bf16.mxu0 0
        %9541 = vmatpush2.bf16.msra.mxu0 0
        %9542 = vmatprep.subr.bf16.mxu0 0
        %9543 = vmatpush2.bf16.msra.mxu0 0
        %9544 = vmatprep.subr.bf16.mxu0 0
        %9545 = vmatpush2.bf16.msra.mxu0 0
        %9546 = vmatprep.subr.bf16.mxu0 0
        %9547 = vmatpush2.bf16.msra.mxu0 0
        %9548 = vmatprep.subr.bf16.mxu0 0
        %9549 = vmatpush2.bf16.msra.mxu0 0
        %9550 = vmatprep.subr.bf16.mxu0 0
        %9551 = vmatpush2.bf16.msra.mxu0 0
        %9552 = vmatprep.mubr.bf16.mxu0 0
        %9553 = vmatmul.mubr.bf16.gmra.mxu0 %v7190
        %v9554 = vpop.f32.mrf.mxu0
        %v9555 = vadd.f32 %v7529, %v9554
        %v9556 = vpop.f32.mrf.mxu0
        %v9557 = vadd.f32 %v7530, %v9556
        %v9558 = vpop.f32.mrf.mxu0
        %v9559 = vpop.f32.mrf.mxu0
        %9560 = vdwg.mxu0
        %9561 = vmatprep.subr.bf16.mxu0 %v8812
        %9562 = vmatpush1.bf16.msra.mxu0 %v8811
        %9563 = vmatprep.subr.bf16.mxu0 %v8772
        %9564 = vmatpush1.bf16.msra.mxu0 %v8771
        %9565 = vmatprep.subr.bf16.mxu0 %v8732
        %9566 = vmatpush1.bf16.msra.mxu0 %v8731
        %9567 = vmatprep.subr.bf16.mxu0 %v8692
        %9568 = vmatpush1.bf16.msra.mxu0 %v8691
        %9569 = vmatprep.subr.bf16.mxu0 %v8652
        %9570 = vmatpush1.bf16.msra.mxu0 %v8651
        %9571 = vmatprep.subr.bf16.mxu0 %v8612
        %9572 = vmatpush1.bf16.msra.mxu0 %v8611
        %9573 = vmatprep.subr.bf16.mxu0 %v8572
        %9574 = vmatpush1.bf16.msra.mxu0 %v8571
        %9575 = vmatprep.subr.bf16.mxu0 %v8532
        %9576 = vmatpush1.bf16.msra.mxu0 %v8531
        %9577 = vmatprep.subr.bf16.mxu0 0
        %9578 = vmatpush2.bf16.msra.mxu0 0
        %9579 = vmatprep.subr.bf16.mxu0 0
        %9580 = vmatpush2.bf16.msra.mxu0 0
        %9581 = vmatprep.subr.bf16.mxu0 0
        %9582 = vmatpush2.bf16.msra.mxu0 0
        %9583 = vmatprep.subr.bf16.mxu0 0
        %9584 = vmatpush2.bf16.msra.mxu0 0
        %9585 = vmatprep.subr.bf16.mxu0 0
        %9586 = vmatpush2.bf16.msra.mxu0 0
        %9587 = vmatprep.subr.bf16.mxu0 0
        %9588 = vmatpush2.bf16.msra.mxu0 0
        %9589 = vmatprep.subr.bf16.mxu0 0
        %9590 = vmatpush2.bf16.msra.mxu0 0
        %9591 = vmatprep.subr.bf16.mxu0 0
        %9592 = vmatpush2.bf16.msra.mxu0 0
        %9593 = vmatprep.mubr.bf16.mxu0 0
        %9594 = vmatmul.mubr.bf16.gmra.mxu0 %v7190
        %v9595 = vpop.f32.mrf.mxu0
        %v9596 = vadd.f32 %v7531, %v9595
        %v9597 = vpop.f32.mrf.mxu0
        %v9598 = vadd.f32 %v7532, %v9597
        %v9599 = vpop.f32.mrf.mxu0
        %v9600 = vpop.f32.mrf.mxu0
        %9601 = vdwg.mxu0
        %9602 = vmatprep.subr.bf16.mxu0 %v8814
        %9603 = vmatpush1.bf16.msra.mxu0 %v8813
        %9604 = vmatprep.subr.bf16.mxu0 %v8774
        %9605 = vmatpush1.bf16.msra.mxu0 %v8773
        %9606 = vmatprep.subr.bf16.mxu0 %v8734
        %9607 = vmatpush1.bf16.msra.mxu0 %v8733
        %9608 = vmatprep.subr.bf16.mxu0 %v8694
        %9609 = vmatpush1.bf16.msra.mxu0 %v8693
        %9610 = vmatprep.subr.bf16.mxu0 %v8654
        %9611 = vmatpush1.bf16.msra.mxu0 %v8653
        %9612 = vmatprep.subr.bf16.mxu0 %v8614
        %9613 = vmatpush1.bf16.msra.mxu0 %v8613
        %9614 = vmatprep.subr.bf16.mxu0 %v8574
        %9615 = vmatpush1.bf16.msra.mxu0 %v8573
        %9616 = vmatprep.subr.bf16.mxu0 %v8534
        %9617 = vmatpush1.bf16.msra.mxu0 %v8533
        %9618 = vmatprep.subr.bf16.mxu0 0
        %9619 = vmatpush2.bf16.msra.mxu0 0
        %9620 = vmatprep.subr.bf16.mxu0 0
        %9621 = vmatpush2.bf16.msra.mxu0 0
        %9622 = vmatprep.subr.bf16.mxu0 0
        %9623 = vmatpush2.bf16.msra.mxu0 0
        %9624 = vmatprep.subr.bf16.mxu0 0
        %9625 = vmatpush2.bf16.msra.mxu0 0
        %9626 = vmatprep.subr.bf16.mxu0 0
        %9627 = vmatpush2.bf16.msra.mxu0 0
        %9628 = vmatprep.subr.bf16.mxu0 0
        %9629 = vmatpush2.bf16.msra.mxu0 0
        %9630 = vmatprep.subr.bf16.mxu0 0
        %9631 = vmatpush2.bf16.msra.mxu0 0
        %9632 = vmatprep.subr.bf16.mxu0 0
        %9633 = vmatpush2.bf16.msra.mxu0 0
        %9634 = vmatprep.mubr.bf16.mxu0 0
        %9635 = vmatmul.mubr.bf16.gmra.mxu0 %v7190
        %v9636 = vpop.f32.mrf.mxu0
        %v9637 = vadd.f32 %v7533, %v9636
        %v9638 = vpop.f32.mrf.mxu0
        %v9639 = vadd.f32 %v7534, %v9638
        %v9640 = vpop.f32.mrf.mxu0
        %v9641 = vpop.f32.mrf.mxu0
        %9642 = vdwg.mxu0
        %9643 = vmatprep.subr.bf16.mxu0 %v8816
        %9644 = vmatpush1.bf16.msra.mxu0 %v8815
        %9645 = vmatprep.subr.bf16.mxu0 %v8776
        %9646 = vmatpush1.bf16.msra.mxu0 %v8775
        %9647 = vmatprep.subr.bf16.mxu0 %v8736
        %9648 = vmatpush1.bf16.msra.mxu0 %v8735
        %9649 = vmatprep.subr.bf16.mxu0 %v8696
        %9650 = vmatpush1.bf16.msra.mxu0 %v8695
        %9651 = vmatprep.subr.bf16.mxu0 %v8656
        %9652 = vmatpush1.bf16.msra.mxu0 %v8655
        %9653 = vmatprep.subr.bf16.mxu0 %v8616
        %9654 = vmatpush1.bf16.msra.mxu0 %v8615
        %9655 = vmatprep.subr.bf16.mxu0 %v8576
        %9656 = vmatpush1.bf16.msra.mxu0 %v8575
        %9657 = vmatprep.subr.bf16.mxu0 %v8536
        %9658 = vmatpush1.bf16.msra.mxu0 %v8535
        %9659 = vmatprep.subr.bf16.mxu0 0
        %9660 = vmatpush2.bf16.msra.mxu0 0
        %9661 = vmatprep.subr.bf16.mxu0 0
        %9662 = vmatpush2.bf16.msra.mxu0 0
        %9663 = vmatprep.subr.bf16.mxu0 0
        %9664 = vmatpush2.bf16.msra.mxu0 0
        %9665 = vmatprep.subr.bf16.mxu0 0
        %9666 = vmatpush2.bf16.msra.mxu0 0
        %9667 = vmatprep.subr.bf16.mxu0 0
        %9668 = vmatpush2.bf16.msra.mxu0 0
        %9669 = vmatprep.subr.bf16.mxu0 0
        %9670 = vmatpush2.bf16.msra.mxu0 0
        %9671 = vmatprep.subr.bf16.mxu0 0
        %9672 = vmatpush2.bf16.msra.mxu0 0
        %9673 = vmatprep.subr.bf16.mxu0 0
        %9674 = vmatpush2.bf16.msra.mxu0 0
        %9675 = vmatprep.mubr.bf16.mxu0 0
        %9676 = vmatmul.mubr.bf16.gmra.mxu0 %v7190
        %v9677 = vpop.f32.mrf.mxu0
        %v9678 = vadd.f32 %v7535, %v9677
        %v9679 = vpop.f32.mrf.mxu0
        %v9680 = vadd.f32 %v7536, %v9679
        %v9681 = vpop.f32.mrf.mxu0
        %v9682 = vpop.f32.mrf.mxu0
        %9683 = vdwg.mxu0
        %9684 = vmatprep.subr.bf16.mxu0 %v8818
        %9685 = vmatpush1.bf16.msra.mxu0 %v8817
        %9686 = vmatprep.subr.bf16.mxu0 %v8778
        %9687 = vmatpush1.bf16.msra.mxu0 %v8777
        %9688 = vmatprep.subr.bf16.mxu0 %v8738
        %9689 = vmatpush1.bf16.msra.mxu0 %v8737
        %9690 = vmatprep.subr.bf16.mxu0 %v8698
        %9691 = vmatpush1.bf16.msra.mxu0 %v8697
        %9692 = vmatprep.subr.bf16.mxu0 %v8658
        %9693 = vmatpush1.bf16.msra.mxu0 %v8657
        %9694 = vmatprep.subr.bf16.mxu0 %v8618
        %9695 = vmatpush1.bf16.msra.mxu0 %v8617
        %9696 = vmatprep.subr.bf16.mxu0 %v8578
        %9697 = vmatpush1.bf16.msra.mxu0 %v8577
        %9698 = vmatprep.subr.bf16.mxu0 %v8538
        %9699 = vmatpush1.bf16.msra.mxu0 %v8537
        %9700 = vmatprep.subr.bf16.mxu0 0
        %9701 = vmatpush2.bf16.msra.mxu0 0
        %9702 = vmatprep.subr.bf16.mxu0 0
        %9703 = vmatpush2.bf16.msra.mxu0 0
        %9704 = vmatprep.subr.bf16.mxu0 0
        %9705 = vmatpush2.bf16.msra.mxu0 0
        %9706 = vmatprep.subr.bf16.mxu0 0
        %9707 = vmatpush2.bf16.msra.mxu0 0
        %9708 = vmatprep.subr.bf16.mxu0 0
        %9709 = vmatpush2.bf16.msra.mxu0 0
        %9710 = vmatprep.subr.bf16.mxu0 0
        %9711 = vmatpush2.bf16.msra.mxu0 0
        %9712 = vmatprep.subr.bf16.mxu0 0
        %9713 = vmatpush2.bf16.msra.mxu0 0
        %9714 = vmatprep.subr.bf16.mxu0 0
        %9715 = vmatpush2.bf16.msra.mxu0 0
        %9716 = vmatprep.mubr.bf16.mxu0 0
        %9717 = vmatmul.mubr.bf16.gmra.mxu0 %v7190
        %v9718 = vpop.f32.mrf.mxu0
        %v9719 = vadd.f32 %v7537, %v9718
        %v9720 = vpop.f32.mrf.mxu0
        %v9721 = vadd.f32 %v7538, %v9720
        %v9722 = vpop.f32.mrf.mxu0
        %v9723 = vpop.f32.mrf.mxu0
        %9724 = vdwg.mxu0
        %9725 = vmatprep.subr.bf16.mxu0 %v8820
        %9726 = vmatpush1.bf16.msra.mxu0 %v8819
        %9727 = vmatprep.subr.bf16.mxu0 %v8780
        %9728 = vmatpush1.bf16.msra.mxu0 %v8779
        %9729 = vmatprep.subr.bf16.mxu0 %v8740
        %9730 = vmatpush1.bf16.msra.mxu0 %v8739
        %9731 = vmatprep.subr.bf16.mxu0 %v8700
        %9732 = vmatpush1.bf16.msra.mxu0 %v8699
        %9733 = vmatprep.subr.bf16.mxu0 %v8660
        %9734 = vmatpush1.bf16.msra.mxu0 %v8659
        %9735 = vmatprep.subr.bf16.mxu0 %v8620
        %9736 = vmatpush1.bf16.msra.mxu0 %v8619
        %9737 = vmatprep.subr.bf16.mxu0 %v8580
        %9738 = vmatpush1.bf16.msra.mxu0 %v8579
        %9739 = vmatprep.subr.bf16.mxu0 %v8540
        %9740 = vmatpush1.bf16.msra.mxu0 %v8539
        %9741 = vmatprep.subr.bf16.mxu0 0
        %9742 = vmatpush2.bf16.msra.mxu0 0
        %9743 = vmatprep.subr.bf16.mxu0 0
        %9744 = vmatpush2.bf16.msra.mxu0 0
        %9745 = vmatprep.subr.bf16.mxu0 0
        %9746 = vmatpush2.bf16.msra.mxu0 0
        %9747 = vmatprep.subr.bf16.mxu0 0
        %9748 = vmatpush2.bf16.msra.mxu0 0
        %9749 = vmatprep.subr.bf16.mxu0 0
        %9750 = vmatpush2.bf16.msra.mxu0 0
        %9751 = vmatprep.subr.bf16.mxu0 0
        %9752 = vmatpush2.bf16.msra.mxu0 0
        %9753 = vmatprep.subr.bf16.mxu0 0
        %9754 = vmatpush2.bf16.msra.mxu0 0
        %9755 = vmatprep.subr.bf16.mxu0 0
        %9756 = vmatpush2.bf16.msra.mxu0 0
        %9757 = vmatprep.mubr.bf16.mxu0 0
        %9758 = vmatmul.mubr.bf16.gmra.mxu0 %v7190
        %v9759 = vpop.f32.mrf.mxu0
        %v9760 = vadd.f32 %v7539, %v9759
        %v9761 = vpop.f32.mrf.mxu0
        %v9762 = vadd.f32 %v7540, %v9761
        %v9763 = vpop.f32.mrf.mxu0
        %v9764 = vpop.f32.mrf.mxu0
        %9765 = vdwg.mxu0
        %9766 = vmatprep.subr.bf16.mxu0 %v8822
        %9767 = vmatpush1.bf16.msra.mxu0 %v8821
        %9768 = vmatprep.subr.bf16.mxu0 %v8782
        %9769 = vmatpush1.bf16.msra.mxu0 %v8781
        %9770 = vmatprep.subr.bf16.mxu0 %v8742
        %9771 = vmatpush1.bf16.msra.mxu0 %v8741
        %9772 = vmatprep.subr.bf16.mxu0 %v8702
        %9773 = vmatpush1.bf16.msra.mxu0 %v8701
        %9774 = vmatprep.subr.bf16.mxu0 %v8662
        %9775 = vmatpush1.bf16.msra.mxu0 %v8661
        %9776 = vmatprep.subr.bf16.mxu0 %v8622
        %9777 = vmatpush1.bf16.msra.mxu0 %v8621
        %9778 = vmatprep.subr.bf16.mxu0 %v8582
        %9779 = vmatpush1.bf16.msra.mxu0 %v8581
        %9780 = vmatprep.subr.bf16.mxu0 %v8542
        %9781 = vmatpush1.bf16.msra.mxu0 %v8541
        %9782 = vmatprep.subr.bf16.mxu0 0
        %9783 = vmatpush2.bf16.msra.mxu0 0
        %9784 = vmatprep.subr.bf16.mxu0 0
        %9785 = vmatpush2.bf16.msra.mxu0 0
        %9786 = vmatprep.subr.bf16.mxu0 0
        %9787 = vmatpush2.bf16.msra.mxu0 0
        %9788 = vmatprep.subr.bf16.mxu0 0
        %9789 = vmatpush2.bf16.msra.mxu0 0
        %9790 = vmatprep.subr.bf16.mxu0 0
        %9791 = vmatpush2.bf16.msra.mxu0 0
        %9792 = vmatprep.subr.bf16.mxu0 0
        %9793 = vmatpush2.bf16.msra.mxu0 0
        %9794 = vmatprep.subr.bf16.mxu0 0
        %9795 = vmatpush2.bf16.msra.mxu0 0
        %9796 = vmatprep.subr.bf16.mxu0 0
        %9797 = vmatpush2.bf16.msra.mxu0 0
        %9798 = vmatprep.mubr.bf16.mxu0 0
        %9799 = vmatmul.mubr.bf16.gmra.mxu0 %v7190
        %v9800 = vpop.f32.mrf.mxu0
        %v9801 = vadd.f32 %v7541, %v9800
        %v9802 = vpop.f32.mrf.mxu0
        %v9803 = vadd.f32 %v7542, %v9802
        %v9804 = vpop.f32.mrf.mxu0
        %v9805 = vpop.f32.mrf.mxu0
        %9806 = vdwg.mxu0
        %9807 = vmatprep.subr.bf16.mxu0 %v8824
        %9808 = vmatpush1.bf16.msra.mxu0 %v8823
        %9809 = vmatprep.subr.bf16.mxu0 %v8784
        %9810 = vmatpush1.bf16.msra.mxu0 %v8783
        %9811 = vmatprep.subr.bf16.mxu0 %v8744
        %9812 = vmatpush1.bf16.msra.mxu0 %v8743
        %9813 = vmatprep.subr.bf16.mxu0 %v8704
        %9814 = vmatpush1.bf16.msra.mxu0 %v8703
        %9815 = vmatprep.subr.bf16.mxu0 %v8664
        %9816 = vmatpush1.bf16.msra.mxu0 %v8663
        %9817 = vmatprep.subr.bf16.mxu0 %v8624
        %9818 = vmatpush1.bf16.msra.mxu0 %v8623
        %9819 = vmatprep.subr.bf16.mxu0 %v8584
        %9820 = vmatpush1.bf16.msra.mxu0 %v8583
        %9821 = vmatprep.subr.bf16.mxu0 %v8544
        %9822 = vmatpush1.bf16.msra.mxu0 %v8543
        %9823 = vmatprep.subr.bf16.mxu0 0
        %9824 = vmatpush2.bf16.msra.mxu0 0
        %9825 = vmatprep.subr.bf16.mxu0 0
        %9826 = vmatpush2.bf16.msra.mxu0 0
        %9827 = vmatprep.subr.bf16.mxu0 0
        %9828 = vmatpush2.bf16.msra.mxu0 0
        %9829 = vmatprep.subr.bf16.mxu0 0
        %9830 = vmatpush2.bf16.msra.mxu0 0
        %9831 = vmatprep.subr.bf16.mxu0 0
        %9832 = vmatpush2.bf16.msra.mxu0 0
        %9833 = vmatprep.subr.bf16.mxu0 0
        %9834 = vmatpush2.bf16.msra.mxu0 0
        %9835 = vmatprep.subr.bf16.mxu0 0
        %9836 = vmatpush2.bf16.msra.mxu0 0
        %9837 = vmatprep.subr.bf16.mxu0 0
        %9838 = vmatpush2.bf16.msra.mxu0 0
        %9839 = vmatprep.mubr.bf16.mxu0 0
        %9840 = vmatmul.mubr.bf16.gmra.mxu0 %v7190
        %v9841 = vpop.f32.mrf.mxu0
        %v9842 = vadd.f32 %v7543, %v9841
        %v9843 = vpop.f32.mrf.mxu0
        %v9844 = vadd.f32 %v7544, %v9843
        %v9845 = vpop.f32.mrf.mxu0
        %v9846 = vpop.f32.mrf.mxu0
        %9847 = vdwg.mxu0
        %9848 = vmatprep.subr.bf16.mxu0 %v8826
        %9849 = vmatpush1.bf16.msra.mxu0 %v8825
        %9850 = vmatprep.subr.bf16.mxu0 %v8786
        %9851 = vmatpush1.bf16.msra.mxu0 %v8785
        %9852 = vmatprep.subr.bf16.mxu0 %v8746
        %9853 = vmatpush1.bf16.msra.mxu0 %v8745
        %9854 = vmatprep.subr.bf16.mxu0 %v8706
        %9855 = vmatpush1.bf16.msra.mxu0 %v8705
        %9856 = vmatprep.subr.bf16.mxu0 %v8666
        %9857 = vmatpush1.bf16.msra.mxu0 %v8665
        %9858 = vmatprep.subr.bf16.mxu0 %v8626
        %9859 = vmatpush1.bf16.msra.mxu0 %v8625
        %9860 = vmatprep.subr.bf16.mxu0 %v8586
        %9861 = vmatpush1.bf16.msra.mxu0 %v8585
        %9862 = vmatprep.subr.bf16.mxu0 %v8546
        %9863 = vmatpush1.bf16.msra.mxu0 %v8545
        %9864 = vmatprep.subr.bf16.mxu0 0
        %9865 = vmatpush2.bf16.msra.mxu0 0
        %9866 = vmatprep.subr.bf16.mxu0 0
        %9867 = vmatpush2.bf16.msra.mxu0 0
        %9868 = vmatprep.subr.bf16.mxu0 0
        %9869 = vmatpush2.bf16.msra.mxu0 0
        %9870 = vmatprep.subr.bf16.mxu0 0
        %9871 = vmatpush2.bf16.msra.mxu0 0
        %9872 = vmatprep.subr.bf16.mxu0 0
        %9873 = vmatpush2.bf16.msra.mxu0 0
        %9874 = vmatprep.subr.bf16.mxu0 0
        %9875 = vmatpush2.bf16.msra.mxu0 0
        %9876 = vmatprep.subr.bf16.mxu0 0
        %9877 = vmatpush2.bf16.msra.mxu0 0
        %9878 = vmatprep.subr.bf16.mxu0 0
        %9879 = vmatpush2.bf16.msra.mxu0 0
        %9880 = vmatprep.mubr.bf16.mxu0 0
        %9881 = vmatmul.mubr.bf16.gmra.mxu0 %v7190
        %v9882 = vpop.f32.mrf.mxu0
        %v9883 = vadd.f32 %v7545, %v9882
        %v9884 = vpop.f32.mrf.mxu0
        %v9885 = vadd.f32 %v7546, %v9884
        %v9886 = vpop.f32.mrf.mxu0
        %v9887 = vpop.f32.mrf.mxu0
        %9888 = vdwg.mxu0
        %9889 = vmatprep.subr.bf16.mxu0 %v8828
        %9890 = vmatpush1.bf16.msra.mxu0 %v8827
        %9891 = vmatprep.subr.bf16.mxu0 %v8788
        %9892 = vmatpush1.bf16.msra.mxu0 %v8787
        %9893 = vmatprep.subr.bf16.mxu0 %v8748
        %9894 = vmatpush1.bf16.msra.mxu0 %v8747
        %9895 = vmatprep.subr.bf16.mxu0 %v8708
        %9896 = vmatpush1.bf16.msra.mxu0 %v8707
        %9897 = vmatprep.subr.bf16.mxu0 %v8668
        %9898 = vmatpush1.bf16.msra.mxu0 %v8667
        %9899 = vmatprep.subr.bf16.mxu0 %v8628
        %9900 = vmatpush1.bf16.msra.mxu0 %v8627
        %9901 = vmatprep.subr.bf16.mxu0 %v8588
        %9902 = vmatpush1.bf16.msra.mxu0 %v8587
        %9903 = vmatprep.subr.bf16.mxu0 %v8548
        %9904 = vmatpush1.bf16.msra.mxu0 %v8547
        %9905 = vmatprep.subr.bf16.mxu0 0
        %9906 = vmatpush2.bf16.msra.mxu0 0
        %9907 = vmatprep.subr.bf16.mxu0 0
        %9908 = vmatpush2.bf16.msra.mxu0 0
        %9909 = vmatprep.subr.bf16.mxu0 0
        %9910 = vmatpush2.bf16.msra.mxu0 0
        %9911 = vmatprep.subr.bf16.mxu0 0
        %9912 = vmatpush2.bf16.msra.mxu0 0
        %9913 = vmatprep.subr.bf16.mxu0 0
        %9914 = vmatpush2.bf16.msra.mxu0 0
        %9915 = vmatprep.subr.bf16.mxu0 0
        %9916 = vmatpush2.bf16.msra.mxu0 0
        %9917 = vmatprep.subr.bf16.mxu0 0
        %9918 = vmatpush2.bf16.msra.mxu0 0
        %9919 = vmatprep.subr.bf16.mxu0 0
        %9920 = vmatpush2.bf16.msra.mxu0 0
        %9921 = vmatprep.mubr.bf16.mxu0 0
        %9922 = vmatmul.mubr.bf16.gmra.mxu0 %v7190
        %v9923 = vpop.f32.mrf.mxu0
        %v9924 = vadd.f32 %v7547, %v9923
        %v9925 = vpop.f32.mrf.mxu0
        %v9926 = vadd.f32 %v7548, %v9925
        %v9927 = vpop.f32.mrf.mxu0
        %v9928 = vpop.f32.mrf.mxu0
        %9929 = vdwg.mxu0
        %9930 = vmatprep.subr.bf16.mxu0 %v8830
        %9931 = vmatpush1.bf16.msra.mxu0 %v8829
        %9932 = vmatprep.subr.bf16.mxu0 %v8790
        %9933 = vmatpush1.bf16.msra.mxu0 %v8789
        %9934 = vmatprep.subr.bf16.mxu0 %v8750
        %9935 = vmatpush1.bf16.msra.mxu0 %v8749
        %9936 = vmatprep.subr.bf16.mxu0 %v8710
        %9937 = vmatpush1.bf16.msra.mxu0 %v8709
        %9938 = vmatprep.subr.bf16.mxu0 %v8670
        %9939 = vmatpush1.bf16.msra.mxu0 %v8669
        %9940 = vmatprep.subr.bf16.mxu0 %v8630
        %9941 = vmatpush1.bf16.msra.mxu0 %v8629
        %9942 = vmatprep.subr.bf16.mxu0 %v8590
        %9943 = vmatpush1.bf16.msra.mxu0 %v8589
        %9944 = vmatprep.subr.bf16.mxu0 %v8550
        %9945 = vmatpush1.bf16.msra.mxu0 %v8549
        %9946 = vmatprep.subr.bf16.mxu0 0
        %9947 = vmatpush2.bf16.msra.mxu0 0
        %9948 = vmatprep.subr.bf16.mxu0 0
        %9949 = vmatpush2.bf16.msra.mxu0 0
        %9950 = vmatprep.subr.bf16.mxu0 0
        %9951 = vmatpush2.bf16.msra.mxu0 0
        %9952 = vmatprep.subr.bf16.mxu0 0
        %9953 = vmatpush2.bf16.msra.mxu0 0
        %9954 = vmatprep.subr.bf16.mxu0 0
        %9955 = vmatpush2.bf16.msra.mxu0 0
        %9956 = vmatprep.subr.bf16.mxu0 0
        %9957 = vmatpush2.bf16.msra.mxu0 0
        %9958 = vmatprep.subr.bf16.mxu0 0
        %9959 = vmatpush2.bf16.msra.mxu0 0
        %9960 = vmatprep.subr.bf16.mxu0 0
        %9961 = vmatpush2.bf16.msra.mxu0 0
        %9962 = vmatprep.mubr.bf16.mxu0 0
        %9963 = vmatmul.mubr.bf16.gmra.mxu0 %v7190
        %v9964 = vpop.f32.mrf.mxu0
        %v9965 = vadd.f32 %v7549, %v9964
        %v9966 = vpop.f32.mrf.mxu0
        %v9967 = vadd.f32 %v7550, %v9966
        %v9968 = vpop.f32.mrf.mxu0
        %v9969 = vpop.f32.mrf.mxu0
        %9970 = vdwg.mxu0
        %9971 = vst [vmem:[%s306] sm:$0xff] %v9186
        %9972 = vst [vmem:[%s306 + $0x8] sm:$0xff] %v9188
        %9973 = vst [vmem:[%s306 + $0x10] sm:$0xff] %v9227
        %9974 = vst [vmem:[%s306 + $0x18] sm:$0xff] %v9229
        %9975 = vst [vmem:[%s306 + $0x20] sm:$0xff] %v9268
        %9976 = vst [vmem:[%s306 + $0x28] sm:$0xff] %v9270
        %9977 = vst [vmem:[%s306 + $0x30] sm:$0xff] %v9309
        %9978 = vst [vmem:[%s306 + $0x38] sm:$0xff] %v9311
        %9979 = vst [vmem:[%s306 + $0x40] sm:$0xff] %v9350
        %9980 = vst [vmem:[%s306 + $0x48] sm:$0xff] %v9352
        %9981 = vst [vmem:[%s306 + $0x50] sm:$0xff] %v9391
        %9982 = vst [vmem:[%s306 + $0x58] sm:$0xff] %v9393
        %9983 = vst [vmem:[%s306 + $0x60] sm:$0xff] %v9432
        %9984 = vst [vmem:[%s306 + $0x68] sm:$0xff] %v9434
        %9985 = vst [vmem:[%s306 + $0x70] sm:$0xff] %v9473
        %9986 = vst [vmem:[%s306 + $0x78] sm:$0xff] %v9475
        %9987 = vst [vmem:[%s306 + $0x80] sm:$0xff] %v9514
        %9988 = vst [vmem:[%s306 + $0x88] sm:$0xff] %v9516
        %9989 = vst [vmem:[%s306 + $0x90] sm:$0xff] %v9555
        %9990 = vst [vmem:[%s306 + $0x98] sm:$0xff] %v9557
        %9991 = vst [vmem:[%s306 + $0xa0] sm:$0xff] %v9596
        %9992 = vst [vmem:[%s306 + $0xa8] sm:$0xff] %v9598
        %9993 = vst [vmem:[%s306 + $0xb0] sm:$0xff] %v9637
        %9994 = vst [vmem:[%s306 + $0xb8] sm:$0xff] %v9639
        %9995 = vst [vmem:[%s306 + $0xc0] sm:$0xff] %v9678
        %9996 = vst [vmem:[%s306 + $0xc8] sm:$0xff] %v9680
        %9997 = vst [vmem:[%s306 + $0xd0] sm:$0xff] %v9719
        %9998 = vst [vmem:[%s306 + $0xd8] sm:$0xff] %v9721
        %9999 = vst [vmem:[%s306 + $0xe0] sm:$0xff] %v9760
        %10000 = vst [vmem:[%s306 + $0xe8] sm:$0xff] %v9762
        %10001 = vst [vmem:[%s306 + $0xf0] sm:$0xff] %v9801
        %10002 = vst [vmem:[%s306 + $0xf8] sm:$0xff] %v9803
        %10003 = vst [vmem:[%s306 + $0x100] sm:$0xff] %v9842
        %10004 = vst [vmem:[%s306 + $0x108] sm:$0xff] %v9844
        %10005 = vst [vmem:[%s306 + $0x110] sm:$0xff] %v9883
        %10006 = vst [vmem:[%s306 + $0x118] sm:$0xff] %v9885
        %10007 = vst [vmem:[%s306 + $0x120] sm:$0xff] %v9924
        %10008 = vst [vmem:[%s306 + $0x128] sm:$0xff] %v9926
        %10009 = vst [vmem:[%s306 + $0x130] sm:$0xff] %v9965
        %10010 = vst [vmem:[%s306 + $0x138] sm:$0xff] %v9967
        %s10011 = smul.u32 40, %s18
        %p10012 = scmp.lt.s32.totalorder %s10011, 79
        %s10013 = scalar_select %p10012, %s10011, 79
        %s10014 = smul.addr %s10013, 8
        %s10015 = scalar_lea.vmem %s5, %s10014
        // Predicated region
        $region57: #{_lambda_.1} parent=39 // pred_check
          %p10016 = pneg %p151
        $region58: #{_lambda_.1} parent=39 // pred_check_branch
          %10018 = sbr.rel (%p10016) target = $region60
        $region59: #{_lambda_.1} parent=39 // pred_region
          %s10019 = smul.u32 40, %s18
        $region60: #{_lambda_.1} parent=39 // pred_fallthru
          _
      $region40: #{_lambda_.1} parent=5 // pred_fallthru
        _
      %p10020 = scmp.le.s32.totalorder 2, %s13
      // Predicated region
      $region61: #{_lambda_.1} parent=5 // pred_check
        %p10021 = pneg %p10020
      $region62: #{_lambda_.1} parent=5 // pred_check_branch
        %10023 = sbr.rel (%p10021) target = $region64
      $region63: #{_lambda_.1} parent=5 // pred_region
        %s10024 = ssub.s32 %s13, 2
        // Predicated region
        $region65: #{_lambda_.1} parent=63 // pred_check
          %p10025 = pneg %p157
        $region66: #{_lambda_.1} parent=63 // pred_check_branch
          %10027 = sbr.rel (%p10025) target = $region68
        $region67: #{_lambda_.1} parent=63 // pred_region
          %s10028 = smul.u32 40, %s19
          %p10029 = scmp.lt.s32.totalorder %s10028, 79
          %s10030 = scalar_select %p10029, %s10028, 79
          %s10031 = smul.addr %s10030, 8
          %s10032 = scalar_lea.vmem %s5, %s10031
        $region68: #{_lambda_.1} parent=63 // pred_fallthru
          _
      $region64: #{_lambda_.1} parent=5 // pred_fallthru
        _
    $region6: #{_lambda_.1} parent=1 // loop_footer
      %s17 = sadd.s32 1, %s13
    $region7: #{_lambda_.1} parent=1 // loop_footer_branch
      %12 = sbr.rel target = $region3
    $region8: #{_lambda_.1} parent=1 // loop_exit
      _
    %10033 = vsyncpa [#allocation3], 1
    %s10034 = scalar_lea.sflag [#allocation3], 1
    %10035 = vsyncpa %s10034, 1
    %10036 = vsyncpa [#allocation5], 1

</llo_original>
